<compile_context>
chip_gen: v5e
topology: v5e:2x2
jax: 0.10.0
libtpu: 0.0.40
codegen_flags: <defaults>
</compile_context>

<pallas_src>
import functools
import math

import jax
import jax.numpy as jnp
from jax import lax
from jax.experimental import pallas as pl
from jax.experimental.pallas import tpu as pltpu

_BN_EPS = 1e-5
_BN_SCALE = 1.0 / math.sqrt(1.0 + _BN_EPS)   # inference BN with deterministic init
_LANE = 128


# ----------------------------------------------------------------------------
# small helpers / per-generation sizing
# ----------------------------------------------------------------------------
def _round_up(x, m):
    return ((x + m - 1) // m) * m


def _vmem_capacity_bytes():
    """Physical VMEM of this TPU generation (fallback: v7x-sized 64 MiB)."""
    try:
        info = pltpu.get_tpu_info()
    except Exception:
        return 64 * 1024 * 1024
    for name in ("vmem_capacity_bytes", "vmem_bytes", "vmem_size_bytes"):
        v = getattr(info, name, None)
        try:
            v = int(v)
        except (TypeError, ValueError):
            continue
        if v > 0:
            return v
    return 64 * 1024 * 1024


_VMEM_CAP = _vmem_capacity_bytes()
# v5e/v6e (128 MiB physical) -> larger tiles + ~96 MiB scoped limit;
# v7x / unknown (64 MiB)      -> 512-row tiles + 48 MiB limit.
_VMEM_LIMIT = int(min((_VMEM_CAP * 3) // 4, 112 * 1024 * 1024))
_MAX_TILE = 1024 if _VMEM_CAP >= 96 * 1024 * 1024 else 512


def _cparams(*sem):
    return pltpu.CompilerParams(dimension_semantics=sem,
                                vmem_limit_bytes=_VMEM_LIMIT)


def _pick_row_tile(m):
    """Largest tile <= _MAX_TILE dividing m, preferring 256/128 multiples
    (MXU fill on v6e/v7x); divisor choice avoids any jnp.pad copy of A."""
    cap = min(m, _MAX_TILE)
    for align in (256, 128, 8):
        t = (cap // align) * align
        while t >= align:
            if m % t == 0:
                return t
            t -= align
    return min(_MAX_TILE, _round_up(m, 8))      # fallback -> caller pads rows


def _pick_k_tile(k):
    cap = min(k, _MAX_TILE)
    t = (cap // _LANE) * _LANE
    while t >= _LANE:
        if k % t == 0:
            return t
        t -= _LANE
    return _LANE


# ----------------------------------------------------------------------------
# Pallas matmul: bf16 operands, f32 accumulation, fused pre-activation ReLU,
# VMEM-resident weights (fetched once), K-streamed activations.
# ----------------------------------------------------------------------------
def _matmul_kernel(relu, tk, single_k, a_ref, b_ref, o_ref, acc_ref):
    kk = pl.program_id(1)

    @pl.when(kk == 0)
    def _init():
        acc_ref[...] = jnp.zeros_like(acc_ref)

    a = a_ref[...]
    if relu:                                   # fused norm+ReLU (scale folded into B)
        a = jnp.maximum(a, 0)
    if single_k:
        b = b_ref[...]
    else:
        koff = pl.multiple_of(kk * tk, _LANE)
        b = b_ref[pl.ds(koff, tk), :]
    acc_ref[...] += jnp.dot(a, b, preferred_element_type=jnp.float32)

    @pl.when(kk == pl.num_programs(1) - 1)
    def _store():
        o_ref[...] = acc_ref[...].astype(o_ref.dtype)


def pallas_matmul(a, b, *, relu=False, out_dtype=jnp.bfloat16):
    """out = [relu](a[:, :K]) @ b with f32 accumulation on the MXU.

    a : (M, Ka) -- Ka may exceed K (zero-padded dense-block slab); only the
                   first K columns are DMA'd (partial K grid coverage).
    b : (K, N)  -- resident in VMEM for the whole call (constant index_map);
                   N is padded to a 128-lane multiple -> unmasked stores.
    The M tile is a divisor of M, so no A padding / output slicing copies.
    """
    a = a.astype(jnp.bfloat16)
    b = b.astype(jnp.bfloat16)
    m, ka = a.shape
    k, n = b.shape
    assert k <= ka, (k, ka)

    n_pad = _round_up(n, _LANE)
    if n_pad != n:
        b = jnp.pad(b, ((0, 0), (0, n_pad - n)))

    if k % _LANE:
        # single K step -> the A block spans A's full (unaligned) last dim
        assert ka == k, (ka, k)
        tk, nk, single_k = k, 1, True
    else:
        tk = _pick_k_tile(k)
        nk, single_k = k // tk, False

    tm = _pick_row_tile(m)
    mp = _round_up(m, tm)
    if mp != m:                                # robustness fallback only
        a = jnp.pad(a, ((0, mp - m), (0, 0)))

    out = pl.pallas_call(
        functools.partial(_matmul_kernel, relu, tk, single_k),
        out_shape=jax.ShapeDtypeStruct((mp, n_pad), out_dtype),
        grid=(mp // tm, nk),
        in_specs=[
            pl.BlockSpec((tm, tk), lambda i, kk: (i, kk)),
            pl.BlockSpec((k, n_pad), lambda i, kk: (0, 0)),     # resident weights
        ],
        out_specs=pl.BlockSpec((tm, n_pad), lambda i, kk: (i, 0)),
        scratch_shapes=[pltpu.VMEM((tm, n_pad), jnp.float32)],
        compiler_params=_cparams("parallel", "arbitrary"),
    )(a, b)
    if mp != m:
        out = out[:m]
    return out                                  # (M, n_pad), channel-padded


def conv1x1_from_slab(slab, w2d, *, relu):
    """1x1 conv reading the live prefix of the zero-padded feature slab."""
    cin, cout = w2d.shape
    k_used = _round_up(cin, _LANE)
    wp = jnp.pad(w2d, ((0, k_used - cin), (0, 0))) if k_used != cin else w2d
    return pallas_matmul(slab, wp, relu=relu)


# ----------------------------------------------------------------------------
# Direct 3x3 / stride-1 / pad-1 conv (no im2col slab in HBM)
# ----------------------------------------------------------------------------
def _conv3x3_kernel(relu, rs, cin, x_ref, w_ref, o_ref, acc_ref):
    # x_ref: (P_in, Cin)  flattened, spatially padded image (bf16)
    # w_ref: (9*Cin, Np)  tap-major weights, resident
    # o_ref: (Pv, Np)     flattened padded-grid output rows
    pv = o_ref.shape[0]
    first = True
    for dh in range(3):
        for dw in range(3):
            a = x_ref[pl.ds(dh * rs + dw, pv), :]
            if relu:
                a = jnp.maximum(a, 0)
            wt = w_ref[pl.ds((dh * 3 + dw) * cin, cin), :]
            contrib = jnp.dot(a, wt, preferred_element_type=jnp.float32)
            if first:
                acc_ref[...] = contrib
                first = False
            else:
                acc_ref[...] += contrib
    o_ref[...] = acc_ref[...].astype(o_ref.dtype)


def conv3x3_s1_p1(x_nhwc, w4, *, relu):
    """Direct 3x3 conv: for flat output row g, tap (dh, dw) reads input row
    g + dh*(W+2) + dw of the flattened padded image, so the kernel reduces over
    9 statically shifted slices of one VMEM-resident image.  Rows whose column
    index falls in the W-padding are junk and dropped by the caller."""
    n, h, w, cin = x_nhwc.shape
    kh, kw, wc_in, cout = w4.shape
    assert (kh, kw) == (3, 3) and wc_in == cin, (w4.shape, cin)
    n_pad = _round_up(cout, _LANE)
    rs = w + 2
    pv = h * rs                     # output rows computed per image (incl. junk cols)
    p_in = (h + 3) * rs             # pad H by (1,2), W by (1,1) -> enough halo

    xp = jnp.pad(x_nhwc.astype(jnp.bfloat16), ((0, 0), (1, 2), (1, 1), (0, 0)))
    xf = xp.reshape(n, p_in, cin)   # contiguous reshape (free)
    wf = w4.reshape(9 * cin, cout).astype(jnp.bfloat16)
    if n_pad != cout:
        wf = jnp.pad(wf, ((0, 0), (0, n_pad - cout)))

    out = pl.pallas_call(
        functools.partial(_conv3x3_kernel, relu, rs, cin),
        out_shape=jax.ShapeDtypeStruct((n, pv, n_pad), jnp.bfloat16),
        grid=(n,),
        in_specs=[
            pl.BlockSpec((None, p_in, cin), lambda i: (i, 0, 0)),
            pl.BlockSpec((9 * cin, n_pad), lambda i: (0, 0)),   # resident weights
        ],
        out_specs=pl.BlockSpec((None, pv, n_pad), lambda i: (i, 0, 0)),
        scratch_shapes=[pltpu.VMEM((pv, n_pad), jnp.float32)],
        compiler_params=_cparams("parallel"),
    )(xf, wf)
    return out                       # (N, H*(W+2), n_pad)


def _conv3x3_valid(out, n, h, w, cout):
    """Extract the valid (non-pad-column) rows / live channels."""
    return out.reshape(n, h, w + 2, out.shape[-1])[:, :, :w, :cout]


# ----------------------------------------------------------------------------
# Pooling kernels
# ----------------------------------------------------------------------------
def _phase_split_2x2(x):
    """(N,H,W,C) -> (N*4, H/2, W/2, C) with row 4n+2a+b = x[n, a::2, b::2, :]."""
    n, h, w, c = x.shape
    x = x.reshape(n, h // 2, 2, w // 2, 2, c).transpose(0, 2, 4, 1, 3, 5)
    return x.reshape(n * 4, h // 2, w // 2, c)


def _maxpool3x3s2_relu_kernel(x_ref, o_ref):
    # x_ref: (4, Hq, Wq, C) = 2x2-phase view of the zero-padded pre-ReLU map.
    v = jnp.maximum(x_ref[...], 0)                      # bf16 math (max is exact)
    hq, wq = v.shape[1], v.shape[2]
    lo_h, hi_h = slice(0, hq - 1), slice(1, hq)
    lo_w, hi_w = slice(0, wq - 1), slice(1, wq)
    acc = None
    for a, hs in ((0, lo_h), (1, lo_h), (0, hi_h)):
        for b, ws in ((0, lo_w), (1, lo_w), (0, hi_w)):
            t = v[2 * a + b, hs, ws, :]
            acc = t if acc is None else jnp.maximum(acc, t)
    o_ref[0] = acc.astype(o_ref.dtype)


def maxpool3x3_s2_p1_relu(x):
    """ReLU fused with MaxPool2d(kernel=3, stride=2, padding=1). H, W even.
    Zero spatial padding == -inf padding here because the pool runs post-ReLU."""
    n, h, w, c = x.shape
    ph = _phase_split_2x2(jnp.pad(x, ((0, 0), (1, 1), (1, 1), (0, 0))))
    hq, wq = ph.shape[1], ph.shape[2]
    ho, wo = h // 2, w // 2
    return pl.pallas_call(
        _maxpool3x3s2_relu_kernel,
        out_shape=jax.ShapeDtypeStruct((n, ho, wo, c), x.dtype),
        grid=(n,),
        in_specs=[pl.BlockSpec((4, hq, wq, c), lambda i: (i, 0, 0, 0))],
        out_specs=pl.BlockSpec((1, ho, wo, c), lambda i: (i, 0, 0, 0)),
        compiler_params=_cparams("parallel"),
    )(ph)


def _relu_avgpool4_kernel(x_ref, o_ref):
    # x_ref: (4, tm, C) stacked 2x2 phases, lane-dense, row-tiled; bf16 math.
    v = jnp.maximum(x_ref[...], 0)
    o_ref[...] = (((v[0] + v[1]) + (v[2] + v[3])) * 0.25).astype(o_ref.dtype)


def relu_avgpool2x2_s2_rows(x_nhwc):
    """ReLU + AvgPool2d(k=2, s=2), returned as flattened (N*Ho*Wo, C) rows.
    Row-tiled 2-D layout: C (128-padded) on lanes, grid over row tiles."""
    n, h, w, c = x_nhwc.shape
    hq, wq = h // 2, w // 2
    mq = n * hq * wq
    ph = (x_nhwc.reshape(n, hq, 2, wq, 2, c)
          .transpose(2, 4, 0, 1, 3, 5)
          .reshape(4, mq, c))
    tm = _pick_row_tile(mq)
    mp = _round_up(mq, tm)
    if mp != mq:
        ph = jnp.pad(ph, ((0, 0), (0, mp - mq), (0, 0)))
    out = pl.pallas_call(
        _relu_avgpool4_kernel,
        out_shape=jax.ShapeDtypeStruct((mp, c), x_nhwc.dtype),
        grid=(mp // tm,),
        in_specs=[pl.BlockSpec((4, tm, c), lambda i: (0, i, 0))],
        out_specs=pl.BlockSpec((tm, c), lambda i: (i, 0)),
        compiler_params=_cparams("parallel"),
    )(ph)
    return out[:mq] if mp != mq else out


def _relu_scale_avgpool2x2s1_kernel(scale, x_ref, o_ref):
    # norm5 (scale) + ReLU + AvgPool2d(kernel=2, stride=1), fused.
    v = jnp.maximum(x_ref[0].astype(jnp.float32), 0.0) * scale      # (H, W, C)
    s = v[:-1, :-1, :] + v[:-1, 1:, :] + v[1:, :-1, :] + v[1:, 1:, :]
    o_ref[0] = (s * 0.25).astype(o_ref.dtype)


def relu_scale_avgpool2x2_s1(x, scale):
    n, h, w, c = x.shape
    return pl.pallas_call(
        functools.partial(_relu_scale_avgpool2x2s1_kernel, scale),
        out_shape=jax.ShapeDtypeStruct((n, h - 1, w - 1, c), jnp.float32),
        grid=(n,),
        in_specs=[pl.BlockSpec((1, h, w, c), lambda i: (i, 0, 0, 0))],
        out_specs=pl.BlockSpec((1, h - 1, w - 1, c), lambda i: (i, 0, 0, 0)),
        compiler_params=_cparams("parallel"),
    )(x)


# ----------------------------------------------------------------------------
# conv0 stem (im2col kept only here: Cin=3, one-shot)
# ----------------------------------------------------------------------------
def _im2col(x, kh, kw, stride, padding):
    n, h, w, c = x.shape
    if padding:
        x = jnp.pad(x, ((0, 0), (padding, padding), (padding, padding), (0, 0)))
    ho = (h + 2 * padding - kh) // stride + 1
    wo = (w + 2 * padding - kw) // stride + 1
    cols = [x[:, i:i + stride * ho:stride, j:j + stride * wo:stride, :]
            for i in range(kh) for j in range(kw)]
    a = jnp.concatenate(cols, axis=-1).reshape(n * ho * wo, kh * kw * c)
    return a, ho, wo


def conv0_7x7_s2_p3(x, w4):
    """7x7/s2/p3 stem conv (no bias, norm0 folded into the weights)."""
    n = x.shape[0]
    kh, kw, cin, cout = w4.shape
    a, ho, wo = _im2col(x.astype(jnp.bfloat16), kh, kw, 2, 3)
    out = pallas_matmul(a, w4.reshape(kh * kw * cin, cout), relu=False)
    return out.reshape(n, ho, wo, -1), ho, wo      # channel-padded to 128


# ----------------------------------------------------------------------------
# DenseNet parameters + forward
# ----------------------------------------------------------------------------
def init_densenet_params(key, growth_rate, block_config, num_init_features, bn_size):
    """Kaiming-normal conv weights (matches nn.init.kaiming_normal_)."""
    def kaiming(k, shape):  # shape = (kh, kw, cin, cout)
        fan_in = shape[0] * shape[1] * shape[2]
        return math.sqrt(2.0 / fan_in) * jax.random.normal(k, shape, jnp.float32)

    n_convs = 1 + 2 * sum(block_config) + (len(block_config) - 1)
    keys = iter(jax.random.split(key, n_convs))
    params = {"conv0": kaiming(next(keys), (7, 7, 3, num_init_features))}
    nf = num_init_features
    for bi, num_layers in enumerate(block_config):
        for li in range(num_layers):
            cin = nf + li * growth_rate
            params[f"db{bi}_l{li}_conv1"] = kaiming(next(keys), (1, 1, cin, bn_size * growth_rate))
            params[f"db{bi}_l{li}_conv2"] = kaiming(next(keys), (3, 3, bn_size * growth_rate, growth_rate))
        nf += num_layers * growth_rate
        if bi != len(block_config) - 1:
            params[f"tr{bi}_conv"] = kaiming(next(keys), (1, 1, nf, nf // 2))
            nf //= 2
    return params, nf


def densenet_forward(x_nchw, params, growth_rate, block_config, num_init_features, bn_size):
    # Every BatchNorm under the module's deterministic init is y = s * x with
    # s = 1/sqrt(1+eps) > 0 and zero shift, so it is folded into the adjacent
    # conv weights and the ReLU commutes with it.
    s = _BN_SCALE
    x = jnp.transpose(x_nchw, (0, 2, 3, 1)).astype(jnp.bfloat16)   # NCHW -> NHWC
    n = x.shape[0]

    # stem: conv0 (norm0 folded) -> relu0 + pool0 fused in the pooling kernel
    x, _, _ = conv0_7x7_s2_p3(x, params["conv0"] * s)
    x = maxpool3x3_s2_p1_relu(x)                                   # (N, H, W, 128)
    h, w = x.shape[1], x.shape[2]
    x2d = x.reshape(n * h * w, x.shape[3])                         # channel-padded rows

    nf = num_init_features
    for bi, num_layers in enumerate(block_config):
        m = n * h * w
        c_final = nf + num_layers * growth_rate
        c_pad = _round_up(c_final, _LANE)
        # persistent per-block feature slab; x2d's channels >= nf are already
        # zero, so padding it out gives a correctly zeroed slab without a
        # separate zeros+update pass.
        slab = (jnp.pad(x2d, ((0, 0), (0, c_pad - x2d.shape[1])))
                if c_pad > x2d.shape[1] else x2d)
        cur = nf
        for li in range(num_layers):
            w1 = params[f"db{bi}_l{li}_conv1"][0, 0] * s            # norm1 folded
            h1 = conv1x1_from_slab(slab, w1, relu=True)             # relu1 fused
            mid_pad = h1.shape[1]
            w2 = params[f"db{bi}_l{li}_conv2"] * s                  # norm2 folded
            if mid_pad != w2.shape[2]:                              # pad cin (zeros)
                w2 = jnp.pad(w2, ((0, 0), (0, 0), (0, mid_pad - w2.shape[2]), (0, 0)))
            h2f = conv3x3_s1_p1(h1.reshape(n, h, w, mid_pad), w2, relu=True)
            h2 = _conv3x3_valid(h2f, n, h, w, growth_rate).reshape(m, growth_rate)
            # TODO(synk): write growth channels via input_output_aliases +
            # 128-aligned slab slots to drop this dynamic_update_slice.
            slab = lax.dynamic_update_slice(slab, h2.astype(slab.dtype), (0, cur))
            cur += growth_rate
            # drop_rate == 0 -> dropout is a no-op
        nf = c_final
        if bi != len(block_config) - 1:
            # transition: norm folded into the conv weight, ReLU fused into the
            # pool; the 2x2/s2 avg-pool is commuted in front of the 1x1 conv
            # (both linear), so the conv runs on 4x fewer rows and the full-res
            # transition output never round-trips HBM.
            pooled = relu_avgpool2x2_s2_rows(slab.reshape(n, h, w, c_pad))
            wt = params[f"tr{bi}_conv"][0, 0] * s
            x2d = conv1x1_from_slab(pooled, wt, relu=False)
            nf //= 2
            h //= 2
            w //= 2
        else:
            x2d = slab

    # norm5 + F.relu(features) + F.avg_pool2d(kernel=2, stride=1), fused
    y = relu_scale_avgpool2x2_s1(x2d.reshape(n, h, w, x2d.shape[1]), s)
    y = y[..., :nf]
    # classifier Linear is defined in __init__ but never used in forward()
    return jnp.transpose(y, (0, 3, 1, 2)).astype(jnp.float32)


# ----------------------------------------------------------------------------
if __name__ == "__main__":
    key = jax.random.PRNGKey(0)
    pkey, xkey = jax.random.split(key)

    # Small but structurally faithful DenseNet config (same __init__ signature).
    growth_rate = 8
    block_config = (2, 2)
    num_init_features = 16
    bn_size = 4

    params, final_features = init_densenet_params(
        pkey, growth_rate, block_config, num_init_features, bn_size)

    x = jax.random.normal(xkey, (2, 3, 32, 32), dtype=jnp.float32)  # NCHW input

    fwd = jax.jit(functools.partial(
        densenet_forward,
        growth_rate=growth_rate,
        block_config=block_config,
        num_init_features=num_init_features,
        bn_size=bn_size))

    out = fwd(x, params)
    jax.block_until_ready(out)

    # 32x32 -> conv0/pool0 -> 8x8 -> transition -> 4x4 -> final avgpool(k=2,s=1) -> 3x3
    assert out.shape == (2, final_features, 3, 3), out.shape
    assert out.dtype == jnp.float32
    print("KERNEL_OK")
</pallas_src>

<mosaic_0001>
module attributes {stable_mosaic.version = 11 : i64} {
  func.func @_matmul_kernel(%arg0: i32, %arg1: i32, %arg2: memref<512x147xbf16, #tpu.memory_space<vmem>>, %arg3: memref<147x128xbf16, #tpu.memory_space<vmem>>, %arg4: memref<512x128xbf16, #tpu.memory_space<vmem>>, %arg5: memref<512x128xf32, #tpu.memory_space<vmem>>) attributes {dimension_semantics = [#tpu.dimension_semantics<parallel>, #tpu.dimension_semantics<arbitrary>], iteration_bounds = array<i64: 1, 1>, scalar_prefetch = 0 : i64, scratch_operands = 1 : i64, tpu.core_type = #tpu.core_type<tc>, window_params = [{transform_indices = @transform_0, window_bounds = array<i64: 512, 147>}, {pipeline_mode = #tpu.pipeline_mode<synchronous>, transform_indices = @transform_1, window_bounds = array<i64: 147, 128>}, {transform_indices = @transform_2, window_bounds = array<i64: 512, 128>}]} {
    %c0_i32 = arith.constant 0 : i32
    %0 = arith.cmpi eq, %arg1, %c0_i32 : i32
    %1 = arith.extui %0 : i1 to i32
    %c0_i32_0 = arith.constant 0 : i32
    %2 = arith.cmpi ne, %1, %c0_i32_0 : i32
    scf.if %2 {
      %cst_10 = arith.constant 0.000000e+00 : f32
      %12 = vector.broadcast %cst_10 : f32 to vector<512x128xf32>
      %c0_11 = arith.constant 0 : index
      %c0_12 = arith.constant 0 : index
      %13 = vector.load %arg5[%c0_11, %c0_12] : memref<512x128xf32, #tpu.memory_space<vmem>>, vector<512x128xf32>
      tpu.vector_store %arg5[%c0_11, %c0_12], %12 {strides = array<i32>} : memref<512x128xf32, #tpu.memory_space<vmem>>, vector<512x128xf32>,
    } else {
    }
    %c0 = arith.constant 0 : index
    %c0_1 = arith.constant 0 : index
    %3 = vector.load %arg2[%c0, %c0_1] : memref<512x147xbf16, #tpu.memory_space<vmem>>, vector<512x147xbf16>
    %c0_2 = arith.constant 0 : index
    %c0_3 = arith.constant 0 : index
    %4 = vector.load %arg3[%c0_2, %c0_3] : memref<147x128xbf16, #tpu.memory_space<vmem>>, vector<147x128xbf16>
    %c0_4 = arith.constant 0 : index
    %c0_5 = arith.constant 0 : index
    %5 = vector.load %arg5[%c0_4, %c0_5] : memref<512x128xf32, #tpu.memory_space<vmem>>, vector<512x128xf32>
    %cst = arith.constant dense<0.000000e+00> : vector<512x128xf32>
    %6 = tpu.matmul %3, %4, %cst {dimension_numbers = #tpu.dot_dimension_numbers<[1], [0], [0], [1], [0, 0, 1, 1], [], []>} : vector<512x147xbf16>, vector<147x128xbf16>, vector<512x128xf32> -> vector<512x128xf32>
    %7 = arith.addf %5, %6 : vector<512x128xf32>
    %c0_6 = arith.constant 0 : index
    %c0_7 = arith.constant 0 : index
    %8 = vector.load %arg5[%c0_6, %c0_7] : memref<512x128xf32, #tpu.memory_space<vmem>>, vector<512x128xf32>
    tpu.vector_store %arg5[%c0_6, %c0_7], %7 {strides = array<i32>} : memref<512x128xf32, #tpu.memory_space<vmem>>, vector<512x128xf32>,
    %c0_i32_8 = arith.constant 0 : i32
    %9 = arith.cmpi eq, %arg1, %c0_i32_8 : i32
    %10 = arith.extui %9 : i1 to i32
    %c0_i32_9 = arith.constant 0 : i32
    %11 = arith.cmpi ne, %10, %c0_i32_9 : i32
    scf.if %11 {
      %c0_10 = arith.constant 0 : index
      %c0_11 = arith.constant 0 : index
      %12 = vector.load %arg5[%c0_10, %c0_11] : memref<512x128xf32, #tpu.memory_space<vmem>>, vector<512x128xf32>
      %13 = arith.truncf %12 : vector<512x128xf32> to vector<512x128xbf16>
      %c0_12 = arith.constant 0 : index
      %c0_13 = arith.constant 0 : index
      %14 = vector.load %arg4[%c0_12, %c0_13] : memref<512x128xbf16, #tpu.memory_space<vmem>>, vector<512x128xbf16>
      tpu.vector_store %arg4[%c0_12, %c0_13], %13 {strides = array<i32>} : memref<512x128xbf16, #tpu.memory_space<vmem>>, vector<512x128xbf16>,
    } else {
    }
    return
  }
  func.func @transform_0(%arg0: i32, %arg1: i32) -> (i32, i32) {
    %c0_i32 = arith.constant 0 : i32
    return %arg0, %arg1 : i32, i32
  }
  func.func @transform_1(%arg0: i32, %arg1: i32) -> (i32, i32) {
    %c0_i32 = arith.constant 0 : i32
    %c0_i32_0 = arith.constant 0 : i32
    %c0_i32_1 = arith.constant 0 : i32
    return %c0_i32, %c0_i32_0 : i32, i32
  }
  func.func @transform_2(%arg0: i32, %arg1: i32) -> (i32, i32) {
    %c0_i32 = arith.constant 0 : i32
    %c0_i32_0 = arith.constant 0 : i32
    return %arg0, %c0_i32 : i32, i32
  }
}

module attributes {stable_mosaic.version = 11 : i64} {
  func.func @_maxpool3x3s2_relu_kernel(%arg0: i32, %arg1: memref<4x9x9x128xbf16, #tpu.memory_space<vmem>>, %arg2: memref<1x8x8x128xbf16, #tpu.memory_space<vmem>>) attributes {dimension_semantics = [#tpu.dimension_semantics<parallel>], iteration_bounds = array<i64: 2>, scalar_prefetch = 0 : i64, scratch_operands = 0 : i64, tpu.core_type = #tpu.core_type<tc>, window_params = [{transform_indices = @transform_0, window_bounds = array<i64: 4, 9, 9, 128>}, {transform_indices = @transform_1, window_bounds = array<i64: 1, 8, 8, 128>}]} {
    %c0 = arith.constant 0 : index
    %c0_0 = arith.constant 0 : index
    %c0_1 = arith.constant 0 : index
    %c0_2 = arith.constant 0 : index
    %0 = vector.load %arg1[%c0, %c0_0, %c0_1, %c0_2] : memref<4x9x9x128xbf16, #tpu.memory_space<vmem>>, vector<4x9x9x128xbf16>
    %cst = arith.constant 0.000000e+00 : bf16
    %1 = vector.broadcast %cst : bf16 to vector<4x9x9x128xbf16>
    %2 = arith.maximumf %0, %1 : vector<4x9x9x128xbf16>
    %3 = vector.extract_strided_slice %2 {offsets = [0, 0, 0, 0], sizes = [1, 8, 8, 128], strides = [1, 1, 1, 1]} : vector<4x9x9x128xbf16> to vector<1x8x8x128xbf16>
    %4 = vector.shape_cast %3 : vector<1x8x8x128xbf16> to vector<8x8x128xbf16>
    %5 = vector.extract_strided_slice %2 {offsets = [1, 0, 0, 0], sizes = [1, 8, 8, 128], strides = [1, 1, 1, 1]} : vector<4x9x9x128xbf16> to vector<1x8x8x128xbf16>
    %6 = vector.shape_cast %5 : vector<1x8x8x128xbf16> to vector<8x8x128xbf16>
    %7 = arith.maximumf %4, %6 : vector<8x8x128xbf16>
    %8 = vector.extract_strided_slice %2 {offsets = [0, 0, 1, 0], sizes = [1, 8, 8, 128], strides = [1, 1, 1, 1]} : vector<4x9x9x128xbf16> to vector<1x8x8x128xbf16>
    %9 = vector.shape_cast %8 : vector<1x8x8x128xbf16> to vector<8x8x128xbf16>
    %10 = arith.maximumf %7, %9 : vector<8x8x128xbf16>
    %11 = vector.extract_strided_slice %2 {offsets = [2, 0, 0, 0], sizes = [1, 8, 8, 128], strides = [1, 1, 1, 1]} : vector<4x9x9x128xbf16> to vector<1x8x8x128xbf16>
    %12 = vector.shape_cast %11 : vector<1x8x8x128xbf16> to vector<8x8x128xbf16>
    %13 = arith.maximumf %10, %12 : vector<8x8x128xbf16>
    %14 = vector.extract_strided_slice %2 {offsets = [3, 0, 0, 0], sizes = [1, 8, 8, 128], strides = [1, 1, 1, 1]} : vector<4x9x9x128xbf16> to vector<1x8x8x128xbf16>
    %15 = vector.shape_cast %14 : vector<1x8x8x128xbf16> to vector<8x8x128xbf16>
    %16 = arith.maximumf %13, %15 : vector<8x8x128xbf16>
    %17 = vector.extract_strided_slice %2 {offsets = [2, 0, 1, 0], sizes = [1, 8, 8, 128], strides = [1, 1, 1, 1]} : vector<4x9x9x128xbf16> to vector<1x8x8x128xbf16>
    %18 = vector.shape_cast %17 : vector<1x8x8x128xbf16> to vector<8x8x128xbf16>
    %19 = arith.maximumf %16, %18 : vector<8x8x128xbf16>
    %20 = vector.extract_strided_slice %2 {offsets = [0, 1, 0, 0], sizes = [1, 8, 8, 128], strides = [1, 1, 1, 1]} : vector<4x9x9x128xbf16> to vector<1x8x8x128xbf16>
    %21 = vector.shape_cast %20 : vector<1x8x8x128xbf16> to vector<8x8x128xbf16>
    %22 = arith.maximumf %19, %21 : vector<8x8x128xbf16>
    %23 = vector.extract_strided_slice %2 {offsets = [1, 1, 0, 0], sizes = [1, 8, 8, 128], strides = [1, 1, 1, 1]} : vector<4x9x9x128xbf16> to vector<1x8x8x128xbf16>
    %24 = vector.shape_cast %23 : vector<1x8x8x128xbf16> to vector<8x8x128xbf16>
    %25 = arith.maximumf %22, %24 : vector<8x8x128xbf16>
    %26 = vector.extract_strided_slice %2 {offsets = [0, 1, 1, 0], sizes = [1, 8, 8, 128], strides = [1, 1, 1, 1]} : vector<4x9x9x128xbf16> to vector<1x8x8x128xbf16>
    %27 = vector.shape_cast %26 : vector<1x8x8x128xbf16> to vector<8x8x128xbf16>
    %28 = arith.maximumf %25, %27 : vector<8x8x128xbf16>
    %c0_3 = arith.constant 0 : index
    %c0_4 = arith.constant 0 : index
    %c0_5 = arith.constant 0 : index
    %c0_6 = arith.constant 0 : index
    %29 = vector.load %arg2[%c0_3, %c0_4, %c0_5, %c0_6] : memref<1x8x8x128xbf16, #tpu.memory_space<vmem>>, vector<1x8x8x128xbf16>
    %30 = vector.shape_cast %29 : vector<1x8x8x128xbf16> to vector<8x8x128xbf16>
    %31 = vector.shape_cast %28 : vector<8x8x128xbf16> to vector<1x8x8x128xbf16>
    tpu.vector_store %arg2[%c0_3, %c0_4, %c0_5, %c0_6], %31 {strides = array<i32>} : memref<1x8x8x128xbf16, #tpu.memory_space<vmem>>, vector<1x8x8x128xbf16>,
    return
  }
  func.func @transform_0(%arg0: i32) -> (i32, i32, i32, i32) {
    %c0_i32 = arith.constant 0 : i32
    %c0_i32_0 = arith.constant 0 : i32
    %c0_i32_1 = arith.constant 0 : i32
    %c0_i32_2 = arith.constant 0 : i32
    return %arg0, %c0_i32, %c0_i32_0, %c0_i32_1 : i32, i32, i32, i32
  }
  func.func @transform_1(%arg0: i32) -> (i32, i32, i32, i32) {
    %c0_i32 = arith.constant 0 : i32
    %c0_i32_0 = arith.constant 0 : i32
    %c0_i32_1 = arith.constant 0 : i32
    %c0_i32_2 = arith.constant 0 : i32
    return %arg0, %c0_i32, %c0_i32_0, %c0_i32_1 : i32, i32, i32, i32
  }
}

module attributes {stable_mosaic.version = 11 : i64} {
  func.func @_matmul_kernel(%arg0: i32, %arg1: i32, %arg2: memref<128x128xbf16, #tpu.memory_space<vmem>>, %arg3: memref<128x128xbf16, #tpu.memory_space<vmem>>, %arg4: memref<128x128xbf16, #tpu.memory_space<vmem>>, %arg5: memref<128x128xf32, #tpu.memory_space<vmem>>) attributes {dimension_semantics = [#tpu.dimension_semantics<parallel>, #tpu.dimension_semantics<arbitrary>], iteration_bounds = array<i64: 1, 1>, scalar_prefetch = 0 : i64, scratch_operands = 1 : i64, tpu.core_type = #tpu.core_type<tc>, window_params = [{transform_indices = @transform_0, window_bounds = array<i64: 128, 128>}, {pipeline_mode = #tpu.pipeline_mode<synchronous>, transform_indices = @transform_1, window_bounds = array<i64: 128, 128>}, {transform_indices = @transform_2, window_bounds = array<i64: 128, 128>}]} {
    %c0_i32 = arith.constant 0 : i32
    %0 = arith.cmpi eq, %arg1, %c0_i32 : i32
    %1 = arith.extui %0 : i1 to i32
    %c0_i32_0 = arith.constant 0 : i32
    %2 = arith.cmpi ne, %1, %c0_i32_0 : i32
    scf.if %2 {
      %cst_10 = arith.constant 0.000000e+00 : f32
      %17 = vector.broadcast %cst_10 : f32 to vector<128x128xf32>
      %c0_11 = arith.constant 0 : index
      %c0_12 = arith.constant 0 : index
      %18 = vector.load %arg5[%c0_11, %c0_12] : memref<128x128xf32, #tpu.memory_space<vmem>>, vector<128x128xf32>
      tpu.vector_store %arg5[%c0_11, %c0_12], %17 {strides = array<i32>} : memref<128x128xf32, #tpu.memory_space<vmem>>, vector<128x128xf32>,
    } else {
    }
    %c0 = arith.constant 0 : index
    %c0_1 = arith.constant 0 : index
    %3 = vector.load %arg2[%c0, %c0_1] : memref<128x128xbf16, #tpu.memory_space<vmem>>, vector<128x128xbf16>
    %cst = arith.constant 0.000000e+00 : bf16
    %4 = vector.broadcast %cst : bf16 to vector<128x128xbf16>
    %5 = arith.maximumf %3, %4 : vector<128x128xbf16>
    %c128_i32 = arith.constant 128 : i32
    %6 = arith.muli %arg1, %c128_i32 : i32
    %7 = tpu.assume_multiple %6, 128 : i32
    %8 = arith.index_cast %7 : i32 to index
    %c0_2 = arith.constant 0 : index
    %9 = vector.load %arg3[%8, %c0_2] : memref<128x128xbf16, #tpu.memory_space<vmem>>, vector<128x128xbf16>
    %c0_3 = arith.constant 0 : index
    %c0_4 = arith.constant 0 : index
    %10 = vector.load %arg5[%c0_3, %c0_4] : memref<128x128xf32, #tpu.memory_space<vmem>>, vector<128x128xf32>
    %cst_5 = arith.constant dense<0.000000e+00> : vector<128x128xf32>
    %11 = tpu.matmul %5, %9, %cst_5 {dimension_numbers = #tpu.dot_dimension_numbers<[1], [0], [0], [1], [0, 0, 1, 1], [], []>} : vector<128x128xbf16>, vector<128x128xbf16>, vector<128x128xf32> -> vector<128x128xf32>
    %12 = arith.addf %10, %11 : vector<128x128xf32>
    %c0_6 = arith.constant 0 : index
    %c0_7 = arith.constant 0 : index
    %13 = vector.load %arg5[%c0_6, %c0_7] : memref<128x128xf32, #tpu.memory_space<vmem>>, vector<128x128xf32>
    tpu.vector_store %arg5[%c0_6, %c0_7], %12 {strides = array<i32>} : memref<128x128xf32, #tpu.memory_space<vmem>>, vector<128x128xf32>,
    %c0_i32_8 = arith.constant 0 : i32
    %14 = arith.cmpi eq, %arg1, %c0_i32_8 : i32
    %15 = arith.extui %14 : i1 to i32
    %c0_i32_9 = arith.constant 0 : i32
    %16 = arith.cmpi ne, %15, %c0_i32_9 : i32
    scf.if %16 {
      %c0_10 = arith.constant 0 : index
      %c0_11 = arith.constant 0 : index
      %17 = vector.load %arg5[%c0_10, %c0_11] : memref<128x128xf32, #tpu.memory_space<vmem>>, vector<128x128xf32>
      %18 = arith.truncf %17 : vector<128x128xf32> to vector<128x128xbf16>
      %c0_12 = arith.constant 0 : index
      %c0_13 = arith.constant 0 : index
      %19 = vector.load %arg4[%c0_12, %c0_13] : memref<128x128xbf16, #tpu.memory_space<vmem>>, vector<128x128xbf16>
      tpu.vector_store %arg4[%c0_12, %c0_13], %18 {strides = array<i32>} : memref<128x128xbf16, #tpu.memory_space<vmem>>, vector<128x128xbf16>,
    } else {
    }
    return
  }
  func.func @transform_0(%arg0: i32, %arg1: i32) -> (i32, i32) {
    %c0_i32 = arith.constant 0 : i32
    return %arg0, %arg1 : i32, i32
  }
  func.func @transform_1(%arg0: i32, %arg1: i32) -> (i32, i32) {
    %c0_i32 = arith.constant 0 : i32
    %c0_i32_0 = arith.constant 0 : i32
    %c0_i32_1 = arith.constant 0 : i32
    return %c0_i32, %c0_i32_0 : i32, i32
  }
  func.func @transform_2(%arg0: i32, %arg1: i32) -> (i32, i32) {
    %c0_i32 = arith.constant 0 : i32
    %c0_i32_0 = arith.constant 0 : i32
    return %arg0, %c0_i32 : i32, i32
  }
}

module attributes {stable_mosaic.version = 11 : i64} {
  func.func @_conv3x3_kernel(%arg0: i32, %arg1: memref<1x110x128xbf16, #tpu.memory_space<vmem>>, %arg2: memref<1152x128xbf16, #tpu.memory_space<vmem>>, %arg3: memref<1x80x128xbf16, #tpu.memory_space<vmem>>, %arg4: memref<80x128xf32, #tpu.memory_space<vmem>>) attributes {dimension_semantics = [#tpu.dimension_semantics<parallel>], iteration_bounds = array<i64: 2>, scalar_prefetch = 0 : i64, scratch_operands = 1 : i64, tpu.core_type = #tpu.core_type<tc>, window_params = [{transform_indices = @transform_0, window_bounds = array<i64: 1, 110, 128>}, {pipeline_mode = #tpu.pipeline_mode<synchronous>, transform_indices = @transform_1, window_bounds = array<i64: 1152, 128>}, {transform_indices = @transform_2, window_bounds = array<i64: 1, 80, 128>}]} {
    %c0 = arith.constant 0 : index
    %c0_0 = arith.constant 0 : index
    %c0_1 = arith.constant 0 : index
    %0 = vector.load %arg1[%c0, %c0_0, %c0_1] : memref<1x110x128xbf16, #tpu.memory_space<vmem>>, vector<1x80x128xbf16>
    %1 = vector.shape_cast %0 : vector<1x80x128xbf16> to vector<80x128xbf16>
    %cst = arith.constant 0.000000e+00 : bf16
    %2 = vector.broadcast %cst : bf16 to vector<80x128xbf16>
    %3 = arith.maximumf %1, %2 : vector<80x128xbf16>
    %c0_2 = arith.constant 0 : index
    %c0_3 = arith.constant 0 : index
    %4 = vector.load %arg2[%c0_2, %c0_3] : memref<1152x128xbf16, #tpu.memory_space<vmem>>, vector<128x128xbf16>
    %cst_4 = arith.constant dense<0.000000e+00> : vector<80x128xf32>
    %5 = tpu.matmul %3, %4, %cst_4 {dimension_numbers = #tpu.dot_dimension_numbers<[1], [0], [0], [1], [0, 0, 1, 1], [], []>} : vector<80x128xbf16>, vector<128x128xbf16>, vector<80x128xf32> -> vector<80x128xf32>
    %c0_5 = arith.constant 0 : index
    %c0_6 = arith.constant 0 : index
    %6 = vector.load %arg4[%c0_5, %c0_6] : memref<80x128xf32, #tpu.memory_space<vmem>>, vector<80x128xf32>
    tpu.vector_store %arg4[%c0_5, %c0_6], %5 {strides = array<i32>} : memref<80x128xf32, #tpu.memory_space<vmem>>, vector<80x128xf32>,
    %c0_7 = arith.constant 0 : index
    %c1 = arith.constant 1 : index
    %c0_8 = arith.constant 0 : index
    %7 = vector.load %arg1[%c0_7, %c1, %c0_8] : memref<1x110x128xbf16, #tpu.memory_space<vmem>>, vector<1x80x128xbf16>
    %8 = vector.shape_cast %7 : vector<1x80x128xbf16> to vector<80x128xbf16>
    %cst_9 = arith.constant 0.000000e+00 : bf16
    %9 = vector.broadcast %cst_9 : bf16 to vector<80x128xbf16>
    %10 = arith.maximumf %8, %9 : vector<80x128xbf16>
    %c128 = arith.constant 128 : index
    %c0_10 = arith.constant 0 : index
    %11 = vector.load %arg2[%c128, %c0_10] : memref<1152x128xbf16, #tpu.memory_space<vmem>>, vector<128x128xbf16>
    %cst_11 = arith.constant dense<0.000000e+00> : vector<80x128xf32>
    %12 = tpu.matmul %10, %11, %cst_11 {dimension_numbers = #tpu.dot_dimension_numbers<[1], [0], [0], [1], [0, 0, 1, 1], [], []>} : vector<80x128xbf16>, vector<128x128xbf16>, vector<80x128xf32> -> vector<80x128xf32>
    %c0_12 = arith.constant 0 : index
    %c0_13 = arith.constant 0 : index
    %13 = vector.load %arg4[%c0_12, %c0_13] : memref<80x128xf32, #tpu.memory_space<vmem>>, vector<80x128xf32>
    %14 = arith.addf %13, %12 : vector<80x128xf32>
    %c0_14 = arith.constant 0 : index
    %c0_15 = arith.constant 0 : index
    %15 = vector.load %arg4[%c0_14, %c0_15] : memref<80x128xf32, #tpu.memory_space<vmem>>, vector<80x128xf32>
    tpu.vector_store %arg4[%c0_14, %c0_15], %14 {strides = array<i32>} : memref<80x128xf32, #tpu.memory_space<vmem>>, vector<80x128xf32>,
    %c0_16 = arith.constant 0 : index
    %c2 = arith.constant 2 : index
    %c0_17 = arith.constant 0 : index
    %16 = vector.load %arg1[%c0_16, %c2, %c0_17] : memref<1x110x128xbf16, #tpu.memory_space<vmem>>, vector<1x80x128xbf16>
    %17 = vector.shape_cast %16 : vector<1x80x128xbf16> to vector<80x128xbf16>
    %cst_18 = arith.constant 0.000000e+00 : bf16
    %18 = vector.broadcast %cst_18 : bf16 to vector<80x128xbf16>
    %19 = arith.maximumf %17, %18 : vector<80x128xbf16>
    %c256 = arith.constant 256 : index
    %c0_19 = arith.constant 0 : index
    %20 = vector.load %arg2[%c256, %c0_19] : memref<1152x128xbf16, #tpu.memory_space<vmem>>, vector<128x128xbf16>
    %cst_20 = arith.constant dense<0.000000e+00> : vector<80x128xf32>
    %21 = tpu.matmul %19, %20, %cst_20 {dimension_numbers = #tpu.dot_dimension_numbers<[1], [0], [0], [1], [0, 0, 1, 1], [], []>} : vector<80x128xbf16>, vector<128x128xbf16>, vector<80x128xf32> -> vector<80x128xf32>
    %c0_21 = arith.constant 0 : index
    %c0_22 = arith.constant 0 : index
    %22 = vector.load %arg4[%c0_21, %c0_22] : memref<80x128xf32, #tpu.memory_space<vmem>>, vector<80x128xf32>
    %23 = arith.addf %22, %21 : vector<80x128xf32>
    %c0_23 = arith.constant 0 : index
    %c0_24 = arith.constant 0 : index
    %24 = vector.load %arg4[%c0_23, %c0_24] : memref<80x128xf32, #tpu.memory_space<vmem>>, vector<80x128xf32>
    tpu.vector_store %arg4[%c0_23, %c0_24], %23 {strides = array<i32>} : memref<80x128xf32, #tpu.memory_space<vmem>>, vector<80x128xf32>,
    %c0_25 = arith.constant 0 : index
    %c10 = arith.constant 10 : index
    %c0_26 = arith.constant 0 : index
    %25 = vector.load %arg1[%c0_25, %c10, %c0_26] : memref<1x110x128xbf16, #tpu.memory_space<vmem>>, vector<1x80x128xbf16>
    %26 = vector.shape_cast %25 : vector<1x80x128xbf16> to vector<80x128xbf16>
    %cst_27 = arith.constant 0.000000e+00 : bf16
    %27 = vector.broadcast %cst_27 : bf16 to vector<80x128xbf16>
    %28 = arith.maximumf %26, %27 : vector<80x128xbf16>
    %c384 = arith.constant 384 : index
    %c0_28 = arith.constant 0 : index
    %29 = vector.load %arg2[%c384, %c0_28] : memref<1152x128xbf16, #tpu.memory_space<vmem>>, vector<128x128xbf16>
    %cst_29 = arith.constant dense<0.000000e+00> : vector<80x128xf32>
    %30 = tpu.matmul %28, %29, %cst_29 {dimension_numbers = #tpu.dot_dimension_numbers<[1], [0], [0], [1], [0, 0, 1, 1], [], []>} : vector<80x128xbf16>, vector<128x128xbf16>, vector<80x128xf32> -> vector<80x128xf32>
    %c0_30 = arith.constant 0 : index
    %c0_31 = arith.constant 0 : index
    %31 = vector.load %arg4[%c0_30, %c0_31] : memref<80x128xf32, #tpu.memory_space<vmem>>, vector<80x128xf32>
    %32 = arith.addf %31, %30 : vector<80x128xf32>
    %c0_32 = arith.constant 0 : index
    %c0_33 = arith.constant 0 : index
    %33 = vector.load %arg4[%c0_32, %c0_33] : memref<80x128xf32, #tpu.memory_space<vmem>>, vector<80x128xf32>
    tpu.vector_store %arg4[%c0_32, %c0_33], %32 {strides = array<i32>} : memref<80x128xf32, #tpu.memory_space<vmem>>, vector<80x128xf32>,
    %c0_34 = arith.constant 0 : index
    %c11 = arith.constant 11 : index
    %c0_35 = arith.constant 0 : index
    %34 = vector.load %arg1[%c0_34, %c11, %c0_35] : memref<1x110x128xbf16, #tpu.memory_space<vmem>>, vector<1x80x128xbf16>
    %35 = vector.shape_cast %34 : vector<1x80x128xbf16> to vector<80x128xbf16>
    %cst_36 = arith.constant 0.000000e+00 : bf16
    %36 = vector.broadcast %cst_36 : bf16 to vector<80x128xbf16>
    %37 = arith.maximumf %35, %36 : vector<80x128xbf16>
    %c512 = arith.constant 512 : index
    %c0_37 = arith.constant 0 : index
    %38 = vector.load %arg2[%c512, %c0_37] : memref<1152x128xbf16, #tpu.memory_space<vmem>>, vector<128x128xbf16>
    %cst_38 = arith.constant dense<0.000000e+00> : vector<80x128xf32>
    %39 = tpu.matmul %37, %38, %cst_38 {dimension_numbers = #tpu.dot_dimension_numbers<[1], [0], [0], [1], [0, 0, 1, 1], [], []>} : vector<80x128xbf16>, vector<128x128xbf16>, vector<80x128xf32> -> vector<80x128xf32>
    %c0_39 = arith.constant 0 : index
    %c0_40 = arith.constant 0 : index
    %40 = vector.load %arg4[%c0_39, %c0_40] : memref<80x128xf32, #tpu.memory_space<vmem>>, vector<80x128xf32>
    %41 = arith.addf %40, %39 : vector<80x128xf32>
    %c0_41 = arith.constant 0 : index
    %c0_42 = arith.constant 0 : index
    %42 = vector.load %arg4[%c0_41, %c0_42] : memref<80x128xf32, #tpu.memory_space<vmem>>, vector<80x128xf32>
    tpu.vector_store %arg4[%c0_41, %c0_42], %41 {strides = array<i32>} : memref<80x128xf32, #tpu.memory_space<vmem>>, vector<80x128xf32>,
    %c0_43 = arith.constant 0 : index
    %c12 = arith.constant 12 : index
    %c0_44 = arith.constant 0 : index
    %43 = vector.load %arg1[%c0_43, %c12, %c0_44] : memref<1x110x128xbf16, #tpu.memory_space<vmem>>, vector<1x80x128xbf16>
    %44 = vector.shape_cast %43 : vector<1x80x128xbf16> to vector<80x128xbf16>
    %cst_45 = arith.constant 0.000000e+00 : bf16
    %45 = vector.broadcast %cst_45 : bf16 to vector<80x128xbf16>
    %46 = arith.maximumf %44, %45 : vector<80x128xbf16>
    %c640 = arith.constant 640 : index
    %c0_46 = arith.constant 0 : index
    %47 = vector.load %arg2[%c640, %c0_46] : memref<1152x128xbf16, #tpu.memory_space<vmem>>, vector<128x128xbf16>
    %cst_47 = arith.constant dense<0.000000e+00> : vector<80x128xf32>
    %48 = tpu.matmul %46, %47, %cst_47 {dimension_numbers = #tpu.dot_dimension_numbers<[1], [0], [0], [1], [0, 0, 1, 1], [], []>} : vector<80x128xbf16>, vector<128x128xbf16>, vector<80x128xf32> -> vector<80x128xf32>
    %c0_48 = arith.constant 0 : index
    %c0_49 = arith.constant 0 : index
    %49 = vector.load %arg4[%c0_48, %c0_49] : memref<80x128xf32, #tpu.memory_space<vmem>>, vector<80x128xf32>
    %50 = arith.addf %49, %48 : vector<80x128xf32>
    %c0_50 = arith.constant 0 : index
    %c0_51 = arith.constant 0 : index
    %51 = vector.load %arg4[%c0_50, %c0_51] : memref<80x128xf32, #tpu.memory_space<vmem>>, vector<80x128xf32>
    tpu.vector_store %arg4[%c0_50, %c0_51], %50 {strides = array<i32>} : memref<80x128xf32, #tpu.memory_space<vmem>>, vector<80x128xf32>,
    %c0_52 = arith.constant 0 : index
    %c20 = arith.constant 20 : index
    %c0_53 = arith.constant 0 : index
    %52 = vector.load %arg1[%c0_52, %c20, %c0_53] : memref<1x110x128xbf16, #tpu.memory_space<vmem>>, vector<1x80x128xbf16>
    %53 = vector.shape_cast %52 : vector<1x80x128xbf16> to vector<80x128xbf16>
    %cst_54 = arith.constant 0.000000e+00 : bf16
    %54 = vector.broadcast %cst_54 : bf16 to vector<80x128xbf16>
    %55 = arith.maximumf %53, %54 : vector<80x128xbf16>
    %c768 = arith.constant 768 : index
    %c0_55 = arith.constant 0 : index
    %56 = vector.load %arg2[%c768, %c0_55] : memref<1152x128xbf16, #tpu.memory_space<vmem>>, vector<128x128xbf16>
    %cst_56 = arith.constant dense<0.000000e+00> : vector<80x128xf32>
    %57 = tpu.matmul %55, %56, %cst_56 {dimension_numbers = #tpu.dot_dimension_numbers<[1], [0], [0], [1], [0, 0, 1, 1], [], []>} : vector<80x128xbf16>, vector<128x128xbf16>, vector<80x128xf32> -> vector<80x128xf32>
    %c0_57 = arith.constant 0 : index
    %c0_58 = arith.constant 0 : index
    %58 = vector.load %arg4[%c0_57, %c0_58] : memref<80x128xf32, #tpu.memory_space<vmem>>, vector<80x128xf32>
    %59 = arith.addf %58, %57 : vector<80x128xf32>
    %c0_59 = arith.constant 0 : index
    %c0_60 = arith.constant 0 : index
    %60 = vector.load %arg4[%c0_59, %c0_60] : memref<80x128xf32, #tpu.memory_space<vmem>>, vector<80x128xf32>
    tpu.vector_store %arg4[%c0_59, %c0_60], %59 {strides = array<i32>} : memref<80x128xf32, #tpu.memory_space<vmem>>, vector<80x128xf32>,
    %c0_61 = arith.constant 0 : index
    %c21 = arith.constant 21 : index
    %c0_62 = arith.constant 0 : index
    %61 = vector.load %arg1[%c0_61, %c21, %c0_62] : memref<1x110x128xbf16, #tpu.memory_space<vmem>>, vector<1x80x128xbf16>
    %62 = vector.shape_cast %61 : vector<1x80x128xbf16> to vector<80x128xbf16>
    %cst_63 = arith.constant 0.000000e+00 : bf16
    %63 = vector.broadcast %cst_63 : bf16 to vector<80x128xbf16>
    %64 = arith.maximumf %62, %63 : vector<80x128xbf16>
    %c896 = arith.constant 896 : index
    %c0_64 = arith.constant 0 : index
    %65 = vector.load %arg2[%c896, %c0_64] : memref<1152x128xbf16, #tpu.memory_space<vmem>>, vector<128x128xbf16>
    %cst_65 = arith.constant dense<0.000000e+00> : vector<80x128xf32>
    %66 = tpu.matmul %64, %65, %cst_65 {dimension_numbers = #tpu.dot_dimension_numbers<[1], [0], [0], [1], [0, 0, 1, 1], [], []>} : vector<80x128xbf16>, vector<128x128xbf16>, vector<80x128xf32> -> vector<80x128xf32>
    %c0_66 = arith.constant 0 : index
    %c0_67 = arith.constant 0 : index
    %67 = vector.load %arg4[%c0_66, %c0_67] : memref<80x128xf32, #tpu.memory_space<vmem>>, vector<80x128xf32>
    %68 = arith.addf %67, %66 : vector<80x128xf32>
    %c0_68 = arith.constant 0 : index
    %c0_69 = arith.constant 0 : index
    %69 = vector.load %arg4[%c0_68, %c0_69] : memref<80x128xf32, #tpu.memory_space<vmem>>, vector<80x128xf32>
    tpu.vector_store %arg4[%c0_68, %c0_69], %68 {strides = array<i32>} : memref<80x128xf32, #tpu.memory_space<vmem>>, vector<80x128xf32>,
    %c0_70 = arith.constant 0 : index
    %c22 = arith.constant 22 : index
    %c0_71 = arith.constant 0 : index
    %70 = vector.load %arg1[%c0_70, %c22, %c0_71] : memref<1x110x128xbf16, #tpu.memory_space<vmem>>, vector<1x80x128xbf16>
    %71 = vector.shape_cast %70 : vector<1x80x128xbf16> to vector<80x128xbf16>
    %cst_72 = arith.constant 0.000000e+00 : bf16
    %72 = vector.broadcast %cst_72 : bf16 to vector<80x128xbf16>
    %73 = arith.maximumf %71, %72 : vector<80x128xbf16>
    %c1024 = arith.constant 1024 : index
    %c0_73 = arith.constant 0 : index
    %74 = vector.load %arg2[%c1024, %c0_73] : memref<1152x128xbf16, #tpu.memory_space<vmem>>, vector<128x128xbf16>
    %cst_74 = arith.constant dense<0.000000e+00> : vector<80x128xf32>
    %75 = tpu.matmul %73, %74, %cst_74 {dimension_numbers = #tpu.dot_dimension_numbers<[1], [0], [0], [1], [0, 0, 1, 1], [], []>} : vector<80x128xbf16>, vector<128x128xbf16>, vector<80x128xf32> -> vector<80x128xf32>
    %c0_75 = arith.constant 0 : index
    %c0_76 = arith.constant 0 : index
    %76 = vector.load %arg4[%c0_75, %c0_76] : memref<80x128xf32, #tpu.memory_space<vmem>>, vector<80x128xf32>
    %77 = arith.addf %76, %75 : vector<80x128xf32>
    %c0_77 = arith.constant 0 : index
    %c0_78 = arith.constant 0 : index
    %78 = vector.load %arg4[%c0_77, %c0_78] : memref<80x128xf32, #tpu.memory_space<vmem>>, vector<80x128xf32>
    tpu.vector_store %arg4[%c0_77, %c0_78], %77 {strides = array<i32>} : memref<80x128xf32, #tpu.memory_space<vmem>>, vector<80x128xf32>,
    %c0_79 = arith.constant 0 : index
    %c0_80 = arith.constant 0 : index
    %79 = vector.load %arg4[%c0_79, %c0_80] : memref<80x128xf32, #tpu.memory_space<vmem>>, vector<80x128xf32>
    %80 = arith.truncf %79 : vector<80x128xf32> to vector<80x128xbf16>
    %c0_81 = arith.constant 0 : index
    %c0_82 = arith.constant 0 : index
    %c0_83 = arith.constant 0 : index
    %81 = vector.load %arg3[%c0_81, %c0_82, %c0_83] : memref<1x80x128xbf16, #tpu.memory_space<vmem>>, vector<1x80x128xbf16>
    %82 = vector.shape_cast %81 : vector<1x80x128xbf16> to vector<80x128xbf16>
    %83 = vector.shape_cast %80 : vector<80x128xbf16> to vector<1x80x128xbf16>
    tpu.vector_store %arg3[%c0_81, %c0_82, %c0_83], %83 {strides = array<i32>} : memref<1x80x128xbf16, #tpu.memory_space<vmem>>, vector<1x80x128xbf16>,
    return
  }
  func.func @transform_0(%arg0: i32) -> (i32, i32, i32) {
    %c0_i32 = arith.constant 0 : i32
    %c0_i32_0 = arith.constant 0 : i32
    %c0_i32_1 = arith.constant 0 : i32
    return %arg0, %c0_i32, %c0_i32_0 : i32, i32, i32
  }
  func.func @transform_1(%arg0: i32) -> (i32, i32) {
    %c0_i32 = arith.constant 0 : i32
    %c0_i32_0 = arith.constant 0 : i32
    %c0_i32_1 = arith.constant 0 : i32
    return %c0_i32, %c0_i32_0 : i32, i32
  }
  func.func @transform_2(%arg0: i32) -> (i32, i32, i32) {
    %c0_i32 = arith.constant 0 : i32
    %c0_i32_0 = arith.constant 0 : i32
    %c0_i32_1 = arith.constant 0 : i32
    return %arg0, %c0_i32, %c0_i32_0 : i32, i32, i32
  }
}

module attributes {stable_mosaic.version = 11 : i64} {
  func.func @_relu_avgpool4_kernel(%arg0: i32, %arg1: memref<4x32x128xbf16, #tpu.memory_space<vmem>>, %arg2: memref<32x128xbf16, #tpu.memory_space<vmem>>) attributes {dimension_semantics = [#tpu.dimension_semantics<parallel>], iteration_bounds = array<i64: 1>, scalar_prefetch = 0 : i64, scratch_operands = 0 : i64, tpu.core_type = #tpu.core_type<tc>, window_params = [{transform_indices = @transform_0, window_bounds = array<i64: 4, 32, 128>}, {transform_indices = @transform_1, window_bounds = array<i64: 32, 128>}]} {
    %c0 = arith.constant 0 : index
    %c0_0 = arith.constant 0 : index
    %c0_1 = arith.constant 0 : index
    %0 = vector.load %arg1[%c0, %c0_0, %c0_1] : memref<4x32x128xbf16, #tpu.memory_space<vmem>>, vector<4x32x128xbf16>
    %cst = arith.constant 0.000000e+00 : bf16
    %1 = vector.broadcast %cst : bf16 to vector<4x32x128xbf16>
    %2 = arith.maximumf %0, %1 : vector<4x32x128xbf16>
    %3 = vector.extract_strided_slice %2 {offsets = [0, 0, 0], sizes = [1, 32, 128], strides = [1, 1, 1]} : vector<4x32x128xbf16> to vector<1x32x128xbf16>
    %4 = vector.shape_cast %3 : vector<1x32x128xbf16> to vector<32x128xbf16>
    %5 = vector.extract_strided_slice %2 {offsets = [1, 0, 0], sizes = [1, 32, 128], strides = [1, 1, 1]} : vector<4x32x128xbf16> to vector<1x32x128xbf16>
    %6 = vector.shape_cast %5 : vector<1x32x128xbf16> to vector<32x128xbf16>
    %7 = arith.addf %4, %6 : vector<32x128xbf16>
    %8 = vector.extract_strided_slice %2 {offsets = [2, 0, 0], sizes = [1, 32, 128], strides = [1, 1, 1]} : vector<4x32x128xbf16> to vector<1x32x128xbf16>
    %9 = vector.shape_cast %8 : vector<1x32x128xbf16> to vector<32x128xbf16>
    %10 = vector.extract_strided_slice %2 {offsets = [3, 0, 0], sizes = [1, 32, 128], strides = [1, 1, 1]} : vector<4x32x128xbf16> to vector<1x32x128xbf16>
    %11 = vector.shape_cast %10 : vector<1x32x128xbf16> to vector<32x128xbf16>
    %12 = arith.addf %9, %11 : vector<32x128xbf16>
    %13 = arith.addf %7, %12 : vector<32x128xbf16>
    %cst_2 = arith.constant 2.500000e-01 : bf16
    %14 = vector.broadcast %cst_2 : bf16 to vector<32x128xbf16>
    %15 = arith.mulf %13, %14 : vector<32x128xbf16>
    %c0_3 = arith.constant 0 : index
    %c0_4 = arith.constant 0 : index
    %16 = vector.load %arg2[%c0_3, %c0_4] : memref<32x128xbf16, #tpu.memory_space<vmem>>, vector<32x128xbf16>
    tpu.vector_store %arg2[%c0_3, %c0_4], %15 {strides = array<i32>} : memref<32x128xbf16, #tpu.memory_space<vmem>>, vector<32x128xbf16>,
    return
  }
  func.func @transform_0(%arg0: i32) -> (i32, i32, i32) {
    %c0_i32 = arith.constant 0 : i32
    %c0_i32_0 = arith.constant 0 : i32
    %c0_i32_1 = arith.constant 0 : i32
    return %c0_i32, %arg0, %c0_i32_0 : i32, i32, i32
  }
  func.func @transform_1(%arg0: i32) -> (i32, i32) {
    %c0_i32 = arith.constant 0 : i32
    %c0_i32_0 = arith.constant 0 : i32
    return %arg0, %c0_i32 : i32, i32
  }
}

module attributes {stable_mosaic.version = 11 : i64} {
  func.func @_matmul_kernel(%arg0: i32, %arg1: i32, %arg2: memref<32x128xbf16, #tpu.memory_space<vmem>>, %arg3: memref<128x128xbf16, #tpu.memory_space<vmem>>, %arg4: memref<32x128xbf16, #tpu.memory_space<vmem>>, %arg5: memref<32x128xf32, #tpu.memory_space<vmem>>) attributes {dimension_semantics = [#tpu.dimension_semantics<parallel>, #tpu.dimension_semantics<arbitrary>], iteration_bounds = array<i64: 1, 1>, scalar_prefetch = 0 : i64, scratch_operands = 1 : i64, tpu.core_type = #tpu.core_type<tc>, window_params = [{transform_indices = @transform_0, window_bounds = array<i64: 32, 128>}, {pipeline_mode = #tpu.pipeline_mode<synchronous>, transform_indices = @transform_1, window_bounds = array<i64: 128, 128>}, {transform_indices = @transform_2, window_bounds = array<i64: 32, 128>}]} {
    %c0_i32 = arith.constant 0 : i32
    %0 = arith.cmpi eq, %arg1, %c0_i32 : i32
    %1 = arith.extui %0 : i1 to i32
    %c0_i32_0 = arith.constant 0 : i32
    %2 = arith.cmpi ne, %1, %c0_i32_0 : i32
    scf.if %2 {
      %cst_10 = arith.constant 0.000000e+00 : f32
      %17 = vector.broadcast %cst_10 : f32 to vector<32x128xf32>
      %c0_11 = arith.constant 0 : index
      %c0_12 = arith.constant 0 : index
      %18 = vector.load %arg5[%c0_11, %c0_12] : memref<32x128xf32, #tpu.memory_space<vmem>>, vector<32x128xf32>
      tpu.vector_store %arg5[%c0_11, %c0_12], %17 {strides = array<i32>} : memref<32x128xf32, #tpu.memory_space<vmem>>, vector<32x128xf32>,
    } else {
    }
    %c0 = arith.constant 0 : index
    %c0_1 = arith.constant 0 : index
    %3 = vector.load %arg2[%c0, %c0_1] : memref<32x128xbf16, #tpu.memory_space<vmem>>, vector<32x128xbf16>
    %cst = arith.constant 0.000000e+00 : bf16
    %4 = vector.broadcast %cst : bf16 to vector<32x128xbf16>
    %5 = arith.maximumf %3, %4 : vector<32x128xbf16>
    %c128_i32 = arith.constant 128 : i32
    %6 = arith.muli %arg1, %c128_i32 : i32
    %7 = tpu.assume_multiple %6, 128 : i32
    %8 = arith.index_cast %7 : i32 to index
    %c0_2 = arith.constant 0 : index
    %9 = vector.load %arg3[%8, %c0_2] : memref<128x128xbf16, #tpu.memory_space<vmem>>, vector<128x128xbf16>
    %c0_3 = arith.constant 0 : index
    %c0_4 = arith.constant 0 : index
    %10 = vector.load %arg5[%c0_3, %c0_4] : memref<32x128xf32, #tpu.memory_space<vmem>>, vector<32x128xf32>
    %cst_5 = arith.constant dense<0.000000e+00> : vector<32x128xf32>
    %11 = tpu.matmul %5, %9, %cst_5 {dimension_numbers = #tpu.dot_dimension_numbers<[1], [0], [0], [1], [0, 0, 1, 1], [], []>} : vector<32x128xbf16>, vector<128x128xbf16>, vector<32x128xf32> -> vector<32x128xf32>
    %12 = arith.addf %10, %11 : vector<32x128xf32>
    %c0_6 = arith.constant 0 : index
    %c0_7 = arith.constant 0 : index
    %13 = vector.load %arg5[%c0_6, %c0_7] : memref<32x128xf32, #tpu.memory_space<vmem>>, vector<32x128xf32>
    tpu.vector_store %arg5[%c0_6, %c0_7], %12 {strides = array<i32>} : memref<32x128xf32, #tpu.memory_space<vmem>>, vector<32x128xf32>,
    %c0_i32_8 = arith.constant 0 : i32
    %14 = arith.cmpi eq, %arg1, %c0_i32_8 : i32
    %15 = arith.extui %14 : i1 to i32
    %c0_i32_9 = arith.constant 0 : i32
    %16 = arith.cmpi ne, %15, %c0_i32_9 : i32
    scf.if %16 {
      %c0_10 = arith.constant 0 : index
      %c0_11 = arith.constant 0 : index
      %17 = vector.load %arg5[%c0_10, %c0_11] : memref<32x128xf32, #tpu.memory_space<vmem>>, vector<32x128xf32>
      %18 = arith.truncf %17 : vector<32x128xf32> to vector<32x128xbf16>
      %c0_12 = arith.constant 0 : index
      %c0_13 = arith.constant 0 : index
      %19 = vector.load %arg4[%c0_12, %c0_13] : memref<32x128xbf16, #tpu.memory_space<vmem>>, vector<32x128xbf16>
      tpu.vector_store %arg4[%c0_12, %c0_13], %18 {strides = array<i32>} : memref<32x128xbf16, #tpu.memory_space<vmem>>, vector<32x128xbf16>,
    } else {
    }
    return
  }
  func.func @transform_0(%arg0: i32, %arg1: i32) -> (i32, i32) {
    %c0_i32 = arith.constant 0 : i32
    return %arg0, %arg1 : i32, i32
  }
  func.func @transform_1(%arg0: i32, %arg1: i32) -> (i32, i32) {
    %c0_i32 = arith.constant 0 : i32
    %c0_i32_0 = arith.constant 0 : i32
    %c0_i32_1 = arith.constant 0 : i32
    return %c0_i32, %c0_i32_0 : i32, i32
  }
  func.func @transform_2(%arg0: i32, %arg1: i32) -> (i32, i32) {
    %c0_i32 = arith.constant 0 : i32
    %c0_i32_0 = arith.constant 0 : i32
    return %arg0, %c0_i32 : i32, i32
  }
}

module attributes {stable_mosaic.version = 11 : i64} {
  func.func @_matmul_kernel(%arg0: i32, %arg1: i32, %arg2: memref<32x128xbf16, #tpu.memory_space<vmem>>, %arg3: memref<128x128xbf16, #tpu.memory_space<vmem>>, %arg4: memref<32x128xbf16, #tpu.memory_space<vmem>>, %arg5: memref<32x128xf32, #tpu.memory_space<vmem>>) attributes {dimension_semantics = [#tpu.dimension_semantics<parallel>, #tpu.dimension_semantics<arbitrary>], iteration_bounds = array<i64: 1, 1>, scalar_prefetch = 0 : i64, scratch_operands = 1 : i64, tpu.core_type = #tpu.core_type<tc>, window_params = [{transform_indices = @transform_0, window_bounds = array<i64: 32, 128>}, {pipeline_mode = #tpu.pipeline_mode<synchronous>, transform_indices = @transform_1, window_bounds = array<i64: 128, 128>}, {transform_indices = @transform_2, window_bounds = array<i64: 32, 128>}]} {
    %c0_i32 = arith.constant 0 : i32
    %0 = arith.cmpi eq, %arg1, %c0_i32 : i32
    %1 = arith.extui %0 : i1 to i32
    %c0_i32_0 = arith.constant 0 : i32
    %2 = arith.cmpi ne, %1, %c0_i32_0 : i32
    scf.if %2 {
      %cst_9 = arith.constant 0.000000e+00 : f32
      %15 = vector.broadcast %cst_9 : f32 to vector<32x128xf32>
      %c0_10 = arith.constant 0 : index
      %c0_11 = arith.constant 0 : index
      %16 = vector.load %arg5[%c0_10, %c0_11] : memref<32x128xf32, #tpu.memory_space<vmem>>, vector<32x128xf32>
      tpu.vector_store %arg5[%c0_10, %c0_11], %15 {strides = array<i32>} : memref<32x128xf32, #tpu.memory_space<vmem>>, vector<32x128xf32>,
    } else {
    }
    %c0 = arith.constant 0 : index
    %c0_1 = arith.constant 0 : index
    %3 = vector.load %arg2[%c0, %c0_1] : memref<32x128xbf16, #tpu.memory_space<vmem>>, vector<32x128xbf16>
    %c128_i32 = arith.constant 128 : i32
    %4 = arith.muli %arg1, %c128_i32 : i32
    %5 = tpu.assume_multiple %4, 128 : i32
    %6 = arith.index_cast %5 : i32 to index
    %c0_2 = arith.constant 0 : index
    %7 = vector.load %arg3[%6, %c0_2] : memref<128x128xbf16, #tpu.memory_space<vmem>>, vector<128x128xbf16>
    %c0_3 = arith.constant 0 : index
    %c0_4 = arith.constant 0 : index
    %8 = vector.load %arg5[%c0_3, %c0_4] : memref<32x128xf32, #tpu.memory_space<vmem>>, vector<32x128xf32>
    %cst = arith.constant dense<0.000000e+00> : vector<32x128xf32>
    %9 = tpu.matmul %3, %7, %cst {dimension_numbers = #tpu.dot_dimension_numbers<[1], [0], [0], [1], [0, 0, 1, 1], [], []>} : vector<32x128xbf16>, vector<128x128xbf16>, vector<32x128xf32> -> vector<32x128xf32>
    %10 = arith.addf %8, %9 : vector<32x128xf32>
    %c0_5 = arith.constant 0 : index
    %c0_6 = arith.constant 0 : index
    %11 = vector.load %arg5[%c0_5, %c0_6] : memref<32x128xf32, #tpu.memory_space<vmem>>, vector<32x128xf32>
    tpu.vector_store %arg5[%c0_5, %c0_6], %10 {strides = array<i32>} : memref<32x128xf32, #tpu.memory_space<vmem>>, vector<32x128xf32>,
    %c0_i32_7 = arith.constant 0 : i32
    %12 = arith.cmpi eq, %arg1, %c0_i32_7 : i32
    %13 = arith.extui %12 : i1 to i32
    %c0_i32_8 = arith.constant 0 : i32
    %14 = arith.cmpi ne, %13, %c0_i32_8 : i32
    scf.if %14 {
      %c0_9 = arith.constant 0 : index
      %c0_10 = arith.constant 0 : index
      %15 = vector.load %arg5[%c0_9, %c0_10] : memref<32x128xf32, #tpu.memory_space<vmem>>, vector<32x128xf32>
      %16 = arith.truncf %15 : vector<32x128xf32> to vector<32x128xbf16>
      %c0_11 = arith.constant 0 : index
      %c0_12 = arith.constant 0 : index
      %17 = vector.load %arg4[%c0_11, %c0_12] : memref<32x128xbf16, #tpu.memory_space<vmem>>, vector<32x128xbf16>
      tpu.vector_store %arg4[%c0_11, %c0_12], %16 {strides = array<i32>} : memref<32x128xbf16, #tpu.memory_space<vmem>>, vector<32x128xbf16>,
    } else {
    }
    return
  }
  func.func @transform_0(%arg0: i32, %arg1: i32) -> (i32, i32) {
    %c0_i32 = arith.constant 0 : i32
    return %arg0, %arg1 : i32, i32
  }
  func.func @transform_1(%arg0: i32, %arg1: i32) -> (i32, i32) {
    %c0_i32 = arith.constant 0 : i32
    %c0_i32_0 = arith.constant 0 : i32
    %c0_i32_1 = arith.constant 0 : i32
    return %c0_i32, %c0_i32_0 : i32, i32
  }
  func.func @transform_2(%arg0: i32, %arg1: i32) -> (i32, i32) {
    %c0_i32 = arith.constant 0 : i32
    %c0_i32_0 = arith.constant 0 : i32
    return %arg0, %c0_i32 : i32, i32
  }
}

module attributes {stable_mosaic.version = 11 : i64} {
  func.func @_conv3x3_kernel(%arg0: i32, %arg1: memref<1x42x128xbf16, #tpu.memory_space<vmem>>, %arg2: memref<1152x128xbf16, #tpu.memory_space<vmem>>, %arg3: memref<1x24x128xbf16, #tpu.memory_space<vmem>>, %arg4: memref<24x128xf32, #tpu.memory_space<vmem>>) attributes {dimension_semantics = [#tpu.dimension_semantics<parallel>], iteration_bounds = array<i64: 2>, scalar_prefetch = 0 : i64, scratch_operands = 1 : i64, tpu.core_type = #tpu.core_type<tc>, window_params = [{transform_indices = @transform_0, window_bounds = array<i64: 1, 42, 128>}, {pipeline_mode = #tpu.pipeline_mode<synchronous>, transform_indices = @transform_1, window_bounds = array<i64: 1152, 128>}, {transform_indices = @transform_2, window_bounds = array<i64: 1, 24, 128>}]} {
    %c0 = arith.constant 0 : index
    %c0_0 = arith.constant 0 : index
    %c0_1 = arith.constant 0 : index
    %0 = vector.load %arg1[%c0, %c0_0, %c0_1] : memref<1x42x128xbf16, #tpu.memory_space<vmem>>, vector<1x24x128xbf16>
    %1 = vector.shape_cast %0 : vector<1x24x128xbf16> to vector<24x128xbf16>
    %cst = arith.constant 0.000000e+00 : bf16
    %2 = vector.broadcast %cst : bf16 to vector<24x128xbf16>
    %3 = arith.maximumf %1, %2 : vector<24x128xbf16>
    %c0_2 = arith.constant 0 : index
    %c0_3 = arith.constant 0 : index
    %4 = vector.load %arg2[%c0_2, %c0_3] : memref<1152x128xbf16, #tpu.memory_space<vmem>>, vector<128x128xbf16>
    %cst_4 = arith.constant dense<0.000000e+00> : vector<24x128xf32>
    %5 = tpu.matmul %3, %4, %cst_4 {dimension_numbers = #tpu.dot_dimension_numbers<[1], [0], [0], [1], [0, 0, 1, 1], [], []>} : vector<24x128xbf16>, vector<128x128xbf16>, vector<24x128xf32> -> vector<24x128xf32>
    %c0_5 = arith.constant 0 : index
    %c0_6 = arith.constant 0 : index
    %6 = vector.load %arg4[%c0_5, %c0_6] : memref<24x128xf32, #tpu.memory_space<vmem>>, vector<24x128xf32>
    tpu.vector_store %arg4[%c0_5, %c0_6], %5 {strides = array<i32>} : memref<24x128xf32, #tpu.memory_space<vmem>>, vector<24x128xf32>,
    %c0_7 = arith.constant 0 : index
    %c1 = arith.constant 1 : index
    %c0_8 = arith.constant 0 : index
    %7 = vector.load %arg1[%c0_7, %c1, %c0_8] : memref<1x42x128xbf16, #tpu.memory_space<vmem>>, vector<1x24x128xbf16>
    %8 = vector.shape_cast %7 : vector<1x24x128xbf16> to vector<24x128xbf16>
    %cst_9 = arith.constant 0.000000e+00 : bf16
    %9 = vector.broadcast %cst_9 : bf16 to vector<24x128xbf16>
    %10 = arith.maximumf %8, %9 : vector<24x128xbf16>
    %c128 = arith.constant 128 : index
    %c0_10 = arith.constant 0 : index
    %11 = vector.load %arg2[%c128, %c0_10] : memref<1152x128xbf16, #tpu.memory_space<vmem>>, vector<128x128xbf16>
    %cst_11 = arith.constant dense<0.000000e+00> : vector<24x128xf32>
    %12 = tpu.matmul %10, %11, %cst_11 {dimension_numbers = #tpu.dot_dimension_numbers<[1], [0], [0], [1], [0, 0, 1, 1], [], []>} : vector<24x128xbf16>, vector<128x128xbf16>, vector<24x128xf32> -> vector<24x128xf32>
    %c0_12 = arith.constant 0 : index
    %c0_13 = arith.constant 0 : index
    %13 = vector.load %arg4[%c0_12, %c0_13] : memref<24x128xf32, #tpu.memory_space<vmem>>, vector<24x128xf32>
    %14 = arith.addf %13, %12 : vector<24x128xf32>
    %c0_14 = arith.constant 0 : index
    %c0_15 = arith.constant 0 : index
    %15 = vector.load %arg4[%c0_14, %c0_15] : memref<24x128xf32, #tpu.memory_space<vmem>>, vector<24x128xf32>
    tpu.vector_store %arg4[%c0_14, %c0_15], %14 {strides = array<i32>} : memref<24x128xf32, #tpu.memory_space<vmem>>, vector<24x128xf32>,
    %c0_16 = arith.constant 0 : index
    %c2 = arith.constant 2 : index
    %c0_17 = arith.constant 0 : index
    %16 = vector.load %arg1[%c0_16, %c2, %c0_17] : memref<1x42x128xbf16, #tpu.memory_space<vmem>>, vector<1x24x128xbf16>
    %17 = vector.shape_cast %16 : vector<1x24x128xbf16> to vector<24x128xbf16>
    %cst_18 = arith.constant 0.000000e+00 : bf16
    %18 = vector.broadcast %cst_18 : bf16 to vector<24x128xbf16>
    %19 = arith.maximumf %17, %18 : vector<24x128xbf16>
    %c256 = arith.constant 256 : index
    %c0_19 = arith.constant 0 : index
    %20 = vector.load %arg2[%c256, %c0_19] : memref<1152x128xbf16, #tpu.memory_space<vmem>>, vector<128x128xbf16>
    %cst_20 = arith.constant dense<0.000000e+00> : vector<24x128xf32>
    %21 = tpu.matmul %19, %20, %cst_20 {dimension_numbers = #tpu.dot_dimension_numbers<[1], [0], [0], [1], [0, 0, 1, 1], [], []>} : vector<24x128xbf16>, vector<128x128xbf16>, vector<24x128xf32> -> vector<24x128xf32>
    %c0_21 = arith.constant 0 : index
    %c0_22 = arith.constant 0 : index
    %22 = vector.load %arg4[%c0_21, %c0_22] : memref<24x128xf32, #tpu.memory_space<vmem>>, vector<24x128xf32>
    %23 = arith.addf %22, %21 : vector<24x128xf32>
    %c0_23 = arith.constant 0 : index
    %c0_24 = arith.constant 0 : index
    %24 = vector.load %arg4[%c0_23, %c0_24] : memref<24x128xf32, #tpu.memory_space<vmem>>, vector<24x128xf32>
    tpu.vector_store %arg4[%c0_23, %c0_24], %23 {strides = array<i32>} : memref<24x128xf32, #tpu.memory_space<vmem>>, vector<24x128xf32>,
    %c0_25 = arith.constant 0 : index
    %c6 = arith.constant 6 : index
    %c0_26 = arith.constant 0 : index
    %25 = vector.load %arg1[%c0_25, %c6, %c0_26] : memref<1x42x128xbf16, #tpu.memory_space<vmem>>, vector<1x24x128xbf16>
    %26 = vector.shape_cast %25 : vector<1x24x128xbf16> to vector<24x128xbf16>
    %cst_27 = arith.constant 0.000000e+00 : bf16
    %27 = vector.broadcast %cst_27 : bf16 to vector<24x128xbf16>
    %28 = arith.maximumf %26, %27 : vector<24x128xbf16>
    %c384 = arith.constant 384 : index
    %c0_28 = arith.constant 0 : index
    %29 = vector.load %arg2[%c384, %c0_28] : memref<1152x128xbf16, #tpu.memory_space<vmem>>, vector<128x128xbf16>
    %cst_29 = arith.constant dense<0.000000e+00> : vector<24x128xf32>
    %30 = tpu.matmul %28, %29, %cst_29 {dimension_numbers = #tpu.dot_dimension_numbers<[1], [0], [0], [1], [0, 0, 1, 1], [], []>} : vector<24x128xbf16>, vector<128x128xbf16>, vector<24x128xf32> -> vector<24x128xf32>
    %c0_30 = arith.constant 0 : index
    %c0_31 = arith.constant 0 : index
    %31 = vector.load %arg4[%c0_30, %c0_31] : memref<24x128xf32, #tpu.memory_space<vmem>>, vector<24x128xf32>
    %32 = arith.addf %31, %30 : vector<24x128xf32>
    %c0_32 = arith.constant 0 : index
    %c0_33 = arith.constant 0 : index
    %33 = vector.load %arg4[%c0_32, %c0_33] : memref<24x128xf32, #tpu.memory_space<vmem>>, vector<24x128xf32>
    tpu.vector_store %arg4[%c0_32, %c0_33], %32 {strides = array<i32>} : memref<24x128xf32, #tpu.memory_space<vmem>>, vector<24x128xf32>,
    %c0_34 = arith.constant 0 : index
    %c7 = arith.constant 7 : index
    %c0_35 = arith.constant 0 : index
    %34 = vector.load %arg1[%c0_34, %c7, %c0_35] : memref<1x42x128xbf16, #tpu.memory_space<vmem>>, vector<1x24x128xbf16>
    %35 = vector.shape_cast %34 : vector<1x24x128xbf16> to vector<24x128xbf16>
    %cst_36 = arith.constant 0.000000e+00 : bf16
    %36 = vector.broadcast %cst_36 : bf16 to vector<24x128xbf16>
    %37 = arith.maximumf %35, %36 : vector<24x128xbf16>
    %c512 = arith.constant 512 : index
    %c0_37 = arith.constant 0 : index
    %38 = vector.load %arg2[%c512, %c0_37] : memref<1152x128xbf16, #tpu.memory_space<vmem>>, vector<128x128xbf16>
    %cst_38 = arith.constant dense<0.000000e+00> : vector<24x128xf32>
    %39 = tpu.matmul %37, %38, %cst_38 {dimension_numbers = #tpu.dot_dimension_numbers<[1], [0], [0], [1], [0, 0, 1, 1], [], []>} : vector<24x128xbf16>, vector<128x128xbf16>, vector<24x128xf32> -> vector<24x128xf32>
    %c0_39 = arith.constant 0 : index
    %c0_40 = arith.constant 0 : index
    %40 = vector.load %arg4[%c0_39, %c0_40] : memref<24x128xf32, #tpu.memory_space<vmem>>, vector<24x128xf32>
    %41 = arith.addf %40, %39 : vector<24x128xf32>
    %c0_41 = arith.constant 0 : index
    %c0_42 = arith.constant 0 : index
    %42 = vector.load %arg4[%c0_41, %c0_42] : memref<24x128xf32, #tpu.memory_space<vmem>>, vector<24x128xf32>
    tpu.vector_store %arg4[%c0_41, %c0_42], %41 {strides = array<i32>} : memref<24x128xf32, #tpu.memory_space<vmem>>, vector<24x128xf32>,
    %c0_43 = arith.constant 0 : index
    %c8 = arith.constant 8 : index
    %c0_44 = arith.constant 0 : index
    %43 = vector.load %arg1[%c0_43, %c8, %c0_44] : memref<1x42x128xbf16, #tpu.memory_space<vmem>>, vector<1x24x128xbf16>
    %44 = vector.shape_cast %43 : vector<1x24x128xbf16> to vector<24x128xbf16>
    %cst_45 = arith.constant 0.000000e+00 : bf16
    %45 = vector.broadcast %cst_45 : bf16 to vector<24x128xbf16>
    %46 = arith.maximumf %44, %45 : vector<24x128xbf16>
    %c640 = arith.constant 640 : index
    %c0_46 = arith.constant 0 : index
    %47 = vector.load %arg2[%c640, %c0_46] : memref<1152x128xbf16, #tpu.memory_space<vmem>>, vector<128x128xbf16>
    %cst_47 = arith.constant dense<0.000000e+00> : vector<24x128xf32>
    %48 = tpu.matmul %46, %47, %cst_47 {dimension_numbers = #tpu.dot_dimension_numbers<[1], [0], [0], [1], [0, 0, 1, 1], [], []>} : vector<24x128xbf16>, vector<128x128xbf16>, vector<24x128xf32> -> vector<24x128xf32>
    %c0_48 = arith.constant 0 : index
    %c0_49 = arith.constant 0 : index
    %49 = vector.load %arg4[%c0_48, %c0_49] : memref<24x128xf32, #tpu.memory_space<vmem>>, vector<24x128xf32>
    %50 = arith.addf %49, %48 : vector<24x128xf32>
    %c0_50 = arith.constant 0 : index
    %c0_51 = arith.constant 0 : index
    %51 = vector.load %arg4[%c0_50, %c0_51] : memref<24x128xf32, #tpu.memory_space<vmem>>, vector<24x128xf32>
    tpu.vector_store %arg4[%c0_50, %c0_51], %50 {strides = array<i32>} : memref<24x128xf32, #tpu.memory_space<vmem>>, vector<24x128xf32>,
    %c0_52 = arith.constant 0 : index
    %c12 = arith.constant 12 : index
    %c0_53 = arith.constant 0 : index
    %52 = vector.load %arg1[%c0_52, %c12, %c0_53] : memref<1x42x128xbf16, #tpu.memory_space<vmem>>, vector<1x24x128xbf16>
    %53 = vector.shape_cast %52 : vector<1x24x128xbf16> to vector<24x128xbf16>
    %cst_54 = arith.constant 0.000000e+00 : bf16
    %54 = vector.broadcast %cst_54 : bf16 to vector<24x128xbf16>
    %55 = arith.maximumf %53, %54 : vector<24x128xbf16>
    %c768 = arith.constant 768 : index
    %c0_55 = arith.constant 0 : index
    %56 = vector.load %arg2[%c768, %c0_55] : memref<1152x128xbf16, #tpu.memory_space<vmem>>, vector<128x128xbf16>
    %cst_56 = arith.constant dense<0.000000e+00> : vector<24x128xf32>
    %57 = tpu.matmul %55, %56, %cst_56 {dimension_numbers = #tpu.dot_dimension_numbers<[1], [0], [0], [1], [0, 0, 1, 1], [], []>} : vector<24x128xbf16>, vector<128x128xbf16>, vector<24x128xf32> -> vector<24x128xf32>
    %c0_57 = arith.constant 0 : index
    %c0_58 = arith.constant 0 : index
    %58 = vector.load %arg4[%c0_57, %c0_58] : memref<24x128xf32, #tpu.memory_space<vmem>>, vector<24x128xf32>
    %59 = arith.addf %58, %57 : vector<24x128xf32>
    %c0_59 = arith.constant 0 : index
    %c0_60 = arith.constant 0 : index
    %60 = vector.load %arg4[%c0_59, %c0_60] : memref<24x128xf32, #tpu.memory_space<vmem>>, vector<24x128xf32>
    tpu.vector_store %arg4[%c0_59, %c0_60], %59 {strides = array<i32>} : memref<24x128xf32, #tpu.memory_space<vmem>>, vector<24x128xf32>,
    %c0_61 = arith.constant 0 : index
    %c13 = arith.constant 13 : index
    %c0_62 = arith.constant 0 : index
    %61 = vector.load %arg1[%c0_61, %c13, %c0_62] : memref<1x42x128xbf16, #tpu.memory_space<vmem>>, vector<1x24x128xbf16>
    %62 = vector.shape_cast %61 : vector<1x24x128xbf16> to vector<24x128xbf16>
    %cst_63 = arith.constant 0.000000e+00 : bf16
    %63 = vector.broadcast %cst_63 : bf16 to vector<24x128xbf16>
    %64 = arith.maximumf %62, %63 : vector<24x128xbf16>
    %c896 = arith.constant 896 : index
    %c0_64 = arith.constant 0 : index
    %65 = vector.load %arg2[%c896, %c0_64] : memref<1152x128xbf16, #tpu.memory_space<vmem>>, vector<128x128xbf16>
    %cst_65 = arith.constant dense<0.000000e+00> : vector<24x128xf32>
    %66 = tpu.matmul %64, %65, %cst_65 {dimension_numbers = #tpu.dot_dimension_numbers<[1], [0], [0], [1], [0, 0, 1, 1], [], []>} : vector<24x128xbf16>, vector<128x128xbf16>, vector<24x128xf32> -> vector<24x128xf32>
    %c0_66 = arith.constant 0 : index
    %c0_67 = arith.constant 0 : index
    %67 = vector.load %arg4[%c0_66, %c0_67] : memref<24x128xf32, #tpu.memory_space<vmem>>, vector<24x128xf32>
    %68 = arith.addf %67, %66 : vector<24x128xf32>
    %c0_68 = arith.constant 0 : index
    %c0_69 = arith.constant 0 : index
    %69 = vector.load %arg4[%c0_68, %c0_69] : memref<24x128xf32, #tpu.memory_space<vmem>>, vector<24x128xf32>
    tpu.vector_store %arg4[%c0_68, %c0_69], %68 {strides = array<i32>} : memref<24x128xf32, #tpu.memory_space<vmem>>, vector<24x128xf32>,
    %c0_70 = arith.constant 0 : index
    %c14 = arith.constant 14 : index
    %c0_71 = arith.constant 0 : index
    %70 = vector.load %arg1[%c0_70, %c14, %c0_71] : memref<1x42x128xbf16, #tpu.memory_space<vmem>>, vector<1x24x128xbf16>
    %71 = vector.shape_cast %70 : vector<1x24x128xbf16> to vector<24x128xbf16>
    %cst_72 = arith.constant 0.000000e+00 : bf16
    %72 = vector.broadcast %cst_72 : bf16 to vector<24x128xbf16>
    %73 = arith.maximumf %71, %72 : vector<24x128xbf16>
    %c1024 = arith.constant 1024 : index
    %c0_73 = arith.constant 0 : index
    %74 = vector.load %arg2[%c1024, %c0_73] : memref<1152x128xbf16, #tpu.memory_space<vmem>>, vector<128x128xbf16>
    %cst_74 = arith.constant dense<0.000000e+00> : vector<24x128xf32>
    %75 = tpu.matmul %73, %74, %cst_74 {dimension_numbers = #tpu.dot_dimension_numbers<[1], [0], [0], [1], [0, 0, 1, 1], [], []>} : vector<24x128xbf16>, vector<128x128xbf16>, vector<24x128xf32> -> vector<24x128xf32>
    %c0_75 = arith.constant 0 : index
    %c0_76 = arith.constant 0 : index
    %76 = vector.load %arg4[%c0_75, %c0_76] : memref<24x128xf32, #tpu.memory_space<vmem>>, vector<24x128xf32>
    %77 = arith.addf %76, %75 : vector<24x128xf32>
    %c0_77 = arith.constant 0 : index
    %c0_78 = arith.constant 0 : index
    %78 = vector.load %arg4[%c0_77, %c0_78] : memref<24x128xf32, #tpu.memory_space<vmem>>, vector<24x128xf32>
    tpu.vector_store %arg4[%c0_77, %c0_78], %77 {strides = array<i32>} : memref<24x128xf32, #tpu.memory_space<vmem>>, vector<24x128xf32>,
    %c0_79 = arith.constant 0 : index
    %c0_80 = arith.constant 0 : index
    %79 = vector.load %arg4[%c0_79, %c0_80] : memref<24x128xf32, #tpu.memory_space<vmem>>, vector<24x128xf32>
    %80 = arith.truncf %79 : vector<24x128xf32> to vector<24x128xbf16>
    %c0_81 = arith.constant 0 : index
    %c0_82 = arith.constant 0 : index
    %c0_83 = arith.constant 0 : index
    %81 = vector.load %arg3[%c0_81, %c0_82, %c0_83] : memref<1x24x128xbf16, #tpu.memory_space<vmem>>, vector<1x24x128xbf16>
    %82 = vector.shape_cast %81 : vector<1x24x128xbf16> to vector<24x128xbf16>
    %83 = vector.shape_cast %80 : vector<24x128xbf16> to vector<1x24x128xbf16>
    tpu.vector_store %arg3[%c0_81, %c0_82, %c0_83], %83 {strides = array<i32>} : memref<1x24x128xbf16, #tpu.memory_space<vmem>>, vector<1x24x128xbf16>,
    return
  }
  func.func @transform_0(%arg0: i32) -> (i32, i32, i32) {
    %c0_i32 = arith.constant 0 : i32
    %c0_i32_0 = arith.constant 0 : i32
    %c0_i32_1 = arith.constant 0 : i32
    return %arg0, %c0_i32, %c0_i32_0 : i32, i32, i32
  }
  func.func @transform_1(%arg0: i32) -> (i32, i32) {
    %c0_i32 = arith.constant 0 : i32
    %c0_i32_0 = arith.constant 0 : i32
    %c0_i32_1 = arith.constant 0 : i32
    return %c0_i32, %c0_i32_0 : i32, i32
  }
  func.func @transform_2(%arg0: i32) -> (i32, i32, i32) {
    %c0_i32 = arith.constant 0 : i32
    %c0_i32_0 = arith.constant 0 : i32
    %c0_i32_1 = arith.constant 0 : i32
    return %arg0, %c0_i32, %c0_i32_0 : i32, i32, i32
  }
}

module attributes {stable_mosaic.version = 11 : i64} {
  func.func @_relu_scale_avgpool2x2s1_kernel(%arg0: i32, %arg1: memref<1x4x4x128xbf16, #tpu.memory_space<vmem>>, %arg2: memref<1x3x3x128xf32, #tpu.memory_space<vmem>>) attributes {dimension_semantics = [#tpu.dimension_semantics<parallel>], iteration_bounds = array<i64: 2>, scalar_prefetch = 0 : i64, scratch_operands = 0 : i64, tpu.core_type = #tpu.core_type<tc>, window_params = [{transform_indices = @transform_0, window_bounds = array<i64: 1, 4, 4, 128>}, {transform_indices = @transform_1, window_bounds = array<i64: 1, 3, 3, 128>}]} {
    %c0 = arith.constant 0 : index
    %c0_0 = arith.constant 0 : index
    %c0_1 = arith.constant 0 : index
    %c0_2 = arith.constant 0 : index
    %0 = vector.load %arg1[%c0, %c0_0, %c0_1, %c0_2] : memref<1x4x4x128xbf16, #tpu.memory_space<vmem>>, vector<1x4x4x128xbf16>
    %1 = vector.shape_cast %0 : vector<1x4x4x128xbf16> to vector<4x4x128xbf16>
    %2 = arith.extf %1 : vector<4x4x128xbf16> to vector<4x4x128xf32>
    %cst = arith.constant 0.000000e+00 : f32
    %3 = vector.broadcast %cst : f32 to vector<4x4x128xf32>
    %4 = arith.maximumf %2, %3 : vector<4x4x128xf32>
    %cst_3 = arith.constant 0.999994993 : f32
    %5 = vector.broadcast %cst_3 : f32 to vector<4x4x128xf32>
    %6 = arith.mulf %4, %5 : vector<4x4x128xf32>
    %7 = vector.extract_strided_slice %6 {offsets = [0, 0, 0], sizes = [3, 3, 128], strides = [1, 1, 1]} : vector<4x4x128xf32> to vector<3x3x128xf32>
    %8 = vector.extract_strided_slice %6 {offsets = [0, 1, 0], sizes = [3, 3, 128], strides = [1, 1, 1]} : vector<4x4x128xf32> to vector<3x3x128xf32>
    %9 = arith.addf %7, %8 : vector<3x3x128xf32>
    %10 = vector.extract_strided_slice %6 {offsets = [1, 0, 0], sizes = [3, 3, 128], strides = [1, 1, 1]} : vector<4x4x128xf32> to vector<3x3x128xf32>
    %11 = arith.addf %9, %10 : vector<3x3x128xf32>
    %12 = vector.extract_strided_slice %6 {offsets = [1, 1, 0], sizes = [3, 3, 128], strides = [1, 1, 1]} : vector<4x4x128xf32> to vector<3x3x128xf32>
    %13 = arith.addf %11, %12 : vector<3x3x128xf32>
    %cst_4 = arith.constant 2.500000e-01 : f32
    %14 = vector.broadcast %cst_4 : f32 to vector<3x3x128xf32>
    %15 = arith.mulf %13, %14 : vector<3x3x128xf32>
    %c0_5 = arith.constant 0 : index
    %c0_6 = arith.constant 0 : index
    %c0_7 = arith.constant 0 : index
    %c0_8 = arith.constant 0 : index
    %16 = vector.load %arg2[%c0_5, %c0_6, %c0_7, %c0_8] : memref<1x3x3x128xf32, #tpu.memory_space<vmem>>, vector<1x3x3x128xf32>
    %17 = vector.shape_cast %16 : vector<1x3x3x128xf32> to vector<3x3x128xf32>
    %18 = vector.shape_cast %15 : vector<3x3x128xf32> to vector<1x3x3x128xf32>
    tpu.vector_store %arg2[%c0_5, %c0_6, %c0_7, %c0_8], %18 {strides = array<i32>} : memref<1x3x3x128xf32, #tpu.memory_space<vmem>>, vector<1x3x3x128xf32>,
    return
  }
  func.func @transform_0(%arg0: i32) -> (i32, i32, i32, i32) {
    %c0_i32 = arith.constant 0 : i32
    %c0_i32_0 = arith.constant 0 : i32
    %c0_i32_1 = arith.constant 0 : i32
    %c0_i32_2 = arith.constant 0 : i32
    return %arg0, %c0_i32, %c0_i32_0, %c0_i32_1 : i32, i32, i32, i32
  }
  func.func @transform_1(%arg0: i32) -> (i32, i32, i32, i32) {
    %c0_i32 = arith.constant 0 : i32
    %c0_i32_0 = arith.constant 0 : i32
    %c0_i32_1 = arith.constant 0 : i32
    %c0_i32_2 = arith.constant 0 : i32
    return %arg0, %c0_i32, %c0_i32_0, %c0_i32_1 : i32, i32, i32, i32
  }
}

</mosaic_0001>

<llo_original>
// kernel: densenet_forward.14
$region0: #{densenet_forward.14}
  #allocation0 [shape = 'u32[]', space=smem, size = 0x4, offset = 0x4, fixed_abs, tag = 'smem constant byte address 0x4 - core index']
  #allocation1 [shape = 'u32[72,128]{1,0:T(1,128)}', space=vmem, size = 0x9000, scoped, tag = 'internal scratch']
  %s0 = inlined_call_operand.vmem [shape: bf16[8,9,9,128], index: 0, kind: input, shape index: {}]
  %s1 = inlined_call_operand.vmem [shape: bf16[2,8,8,128], index: 1, kind: output, shape index: {}]
  %s2 = sld [smem:[#allocation0]]
  $region37: #{densenet_forward.14} parent=0
    _
  %s4 = ssub.s32 1, %s2
  %s5 = scalar_select 0, %s4, %s2
  loop: start=0, step=1, limit=4
  $region2: #{densenet_forward.14} parent=0 // loop_pre_header
    _
  $region3: #{densenet_forward.14} parent=0 // loop_header
    %s7 = sphi 0, %s11
    %p8 = scmp.ge.s32.totalorder %s7, 4
    %s17 = sphi 0, %s19
    %s20 = sphi 0, %s17
    %s21 = sphi 0, %s20
    %s37 = sphi 0, %s21
    %s43 = sphi 0, %s45
    %s46 = sphi 0, %s43
    %s47 = sphi 0, %s46
    %s63 = sphi 0, %s47
  $region4: #{densenet_forward.14} parent=0 // loop_header_branch
    %10 = sbr.rel (%p8) target = $region8
  $region5: #{densenet_forward.14} parent=0 // loop_body
    %s12 = ssub.s32 %s7, 1
    %s13 = ssub.s32 %s7, 2
    %s14 = sadd.s32 %s7, 1
    %s15 = ssub.s32 %s7, %s14
    %p16 = scmp.eq.s32.totalorder %s15, 0
    %s18 = sadd.s32 %s17, 1
    %s19 = scalar_select %p16, %s17, %s18
    %p22 = pneg %p16
    %p23 = scmp.eq.s32.totalorder %s7, 1
    %p24 = por %p22, %p23
    %p25 = scmp.ne.s32.totalorder %s17, %s20
    %p26 = scmp.eq.s32.totalorder %s7, 0
    %p27 = por %p25, %p26
    %p28 = scmp.ne.s32.totalorder %s17, %s20
    %p29 = scmp.eq.s32.totalorder %s12, 1
    %p30 = por %p28, %p29
    %p31 = scmp.ne.s32.totalorder %s20, %s21
    %p32 = scmp.eq.s32.totalorder %s12, 0
    %p33 = por %p31, %p32
    %p34 = scmp.ne.s32.totalorder %s20, %s21
    %p35 = scmp.eq.s32.totalorder %s13, 1
    %p36 = por %p34, %p35
    %p38 = scmp.ne.s32.totalorder %s21, %s37
    %p39 = scmp.eq.s32.totalorder %s13, 0
    %p40 = por %p38, %p39
    %s41 = ssub.s32 %s7, %s14
    %p42 = scmp.eq.s32.totalorder %s41, 0
    %s44 = sadd.s32 %s43, 1
    %s45 = scalar_select %p42, %s43, %s44
    %p48 = pneg %p42
    %p49 = scmp.eq.s32.totalorder %s7, 1
    %p50 = por %p48, %p49
    %p51 = scmp.ne.s32.totalorder %s43, %s46
    %p52 = scmp.eq.s32.totalorder %s7, 0
    %p53 = por %p51, %p52
    %p54 = scmp.ne.s32.totalorder %s43, %s46
    %p55 = scmp.eq.s32.totalorder %s12, 1
    %p56 = por %p54, %p55
    %p57 = scmp.ne.s32.totalorder %s46, %s47
    %p58 = scmp.eq.s32.totalorder %s12, 0
    %p59 = por %p57, %p58
    %p60 = scmp.ne.s32.totalorder %s46, %s47
    %p61 = scmp.eq.s32.totalorder %s13, 1
    %p62 = por %p60, %p61
    %p64 = scmp.ne.s32.totalorder %s47, %s63
    %p65 = scmp.eq.s32.totalorder %s13, 0
    %p66 = por %p64, %p65
    %p67 = scmp.le.s32.totalorder 1, %s7
    %p68 = scmp.lt.s32.totalorder %s7, 3
    %p69 = pnand %p67, %p68
    %p70 = pneg %p69
    // Predicated region
    $region9: #{densenet_forward.14} parent=5 // pred_check
      _
    $region10: #{densenet_forward.14} parent=5 // pred_check_branch
      %72 = sbr.rel (%p69) target = $region12
    $region11: #{densenet_forward.14} parent=5 // pred_region
      %s73 = ssub.s32 %s7, 1
    $region12: #{densenet_forward.14} parent=5 // pred_fallthru
      _
    %p74 = scmp.lt.s32.totalorder %s7, 2
    // Predicated region
    $region13: #{densenet_forward.14} parent=5 // pred_check
      %p75 = pneg %p74
    $region14: #{densenet_forward.14} parent=5 // pred_check_branch
      %77 = sbr.rel (%p75) target = $region16
    $region15: #{densenet_forward.14} parent=5 // pred_region
      // Predicated region
      $region17: #{densenet_forward.14} parent=15 // pred_check
        %p78 = pneg %p27
      $region18: #{densenet_forward.14} parent=15 // pred_check_branch
        %80 = sbr.rel (%p78) target = $region20
      $region19: #{densenet_forward.14} parent=15 // pred_region
        %s81 = smul.u32 4, %s7
        %p82 = scmp.lt.s32.totalorder %s81, 7
        %s83 = scalar_select %p82, %s81, 7
        %s84 = smul.addr %s83, 18
        %s85 = smul.addr %s84, 4
        %s86 = scalar_lea.vmem %s0, %s85
        %s87 = smul.u32 4, %s7
      $region20: #{densenet_forward.14} parent=15 // pred_fallthru
        _
    $region16: #{densenet_forward.14} parent=5 // pred_fallthru
      _
    %p88 = scmp.le.s32.totalorder 1, %s7
    %p89 = scmp.lt.s32.totalorder %s7, 3
    %p90 = pnand %p88, %p89
    %p91 = pneg %p90
    // Predicated region
    $region21: #{densenet_forward.14} parent=5 // pred_check
      _
    $region22: #{densenet_forward.14} parent=5 // pred_check_branch
      %93 = sbr.rel (%p90) target = $region24
    $region23: #{densenet_forward.14} parent=5 // pred_region
      %s94 = ssub.s32 %s7, 1
      %s95 = smul.u32 4, %s12
      %p96 = scmp.lt.s32.totalorder %s95, 7
      %s97 = scalar_select %p96, %s95, 7
      %s98 = smul.addr %s97, 18
      %s99 = smul.addr %s98, 4
      %s100 = scalar_lea.vmem %s0, %s99
      %p101 = pneg %p33
      %p102 = pneg %p30
      %p103 = pneg %p59
      %p104 = pneg %p56
      %p105 = scmp.lt.s32.totalorder %s12, 1
      %s106 = scalar_select %p105, %s12, 1
      %s107 = smul.addr %s106, 8
      %s108 = smul.addr %s107, 4
      %s109 = scalar_lea.vmem %s1, %s108
      %s110 = smul.u32 4, %s12
      %p111 = scmp.lt.s32.totalorder %s110, 7
      %s112 = scalar_select %p111, %s110, 7
      %s113 = smul.addr %s112, 18
      %s114 = smul.addr %s113, 4
      %s115 = scalar_lea.vmem %s0, %s114
      %s116 = smul.u32 4, %s12
      %p117 = scmp.lt.s32.totalorder %s12, 1
      %s118 = scalar_select %p117, %s12, 1
      %s119 = smul.addr %s118, 8
      %s120 = smul.addr %s119, 4
      %s121 = scalar_lea.vmem %s1, %s120
      %v122 = vld [vmem:[%s115] sm:$0xf]
      %v123 = vld [vmem:[%s115 + $0x4] sm:$0x1]
      %v124 = vld [vmem:[%s115 + $0x8] sm:$0xf]
      %v125 = vld [vmem:[%s115 + $0xc] sm:$0x1]
      %v126 = vld [vmem:[%s115 + $0x10] sm:$0xf]
      %v127 = vld [vmem:[%s115 + $0x14] sm:$0x1]
      %v128 = vld [vmem:[%s115 + $0x18] sm:$0xf]
      %v129 = vld [vmem:[%s115 + $0x1c] sm:$0x1]
      %v130 = vld [vmem:[%s115 + $0x20] sm:$0xf]
      %v131 = vld [vmem:[%s115 + $0x24] sm:$0x1]
      %v132 = vld [vmem:[%s115 + $0x28] sm:$0xf]
      %v133 = vld [vmem:[%s115 + $0x2c] sm:$0x1]
      %v134 = vld [vmem:[%s115 + $0x30] sm:$0xf]
      %v135 = vld [vmem:[%s115 + $0x34] sm:$0x1]
      %v136 = vld [vmem:[%s115 + $0x38] sm:$0xf]
      %v137 = vld [vmem:[%s115 + $0x3c] sm:$0x1]
      %v138 = vld [vmem:[%s115 + $0x40] sm:$0xf]
      %v139 = vld [vmem:[%s115 + $0x44] sm:$0x1]
      %v140 = vld [vmem:[%s115 + $0x48] sm:$0xf]
      %v141 = vld [vmem:[%s115 + $0x50] sm:$0xf]
      %v142 = vld [vmem:[%s115 + $0x58] sm:$0xf]
      %v143 = vld [vmem:[%s115 + $0x60] sm:$0xf]
      %v144 = vld [vmem:[%s115 + $0x68] sm:$0xf]
      %v145 = vld [vmem:[%s115 + $0x70] sm:$0xf]
      %v146 = vld [vmem:[%s115 + $0x78] sm:$0xf]
      %v147 = vld [vmem:[%s115 + $0x80] sm:$0xf]
      %v148 = vld [vmem:[%s115 + $0x88] sm:$0xf]
      %v149 = vld [vmem:[%s115 + $0x90] sm:$0xf]
      %v150 = vld [vmem:[%s115 + $0x94] sm:$0x1]
      %v151 = vld [vmem:[%s115 + $0x98] sm:$0xf]
      %v152 = vld [vmem:[%s115 + $0x9c] sm:$0x1]
      %v153 = vld [vmem:[%s115 + $0xa0] sm:$0xf]
      %v154 = vld [vmem:[%s115 + $0xa4] sm:$0x1]
      %v155 = vld [vmem:[%s115 + $0xa8] sm:$0xf]
      %v156 = vld [vmem:[%s115 + $0xac] sm:$0x1]
      %v157 = vld [vmem:[%s115 + $0xb0] sm:$0xf]
      %v158 = vld [vmem:[%s115 + $0xb4] sm:$0x1]
      %v159 = vld [vmem:[%s115 + $0xb8] sm:$0xf]
      %v160 = vld [vmem:[%s115 + $0xbc] sm:$0x1]
      %v161 = vld [vmem:[%s115 + $0xc0] sm:$0xf]
      %v162 = vld [vmem:[%s115 + $0xc4] sm:$0x1]
      %v163 = vld [vmem:[%s115 + $0xc8] sm:$0xf]
      %v164 = vld [vmem:[%s115 + $0xcc] sm:$0x1]
      %v165 = vld [vmem:[%s115 + $0xd8] sm:$0xf]
      %v166 = vld [vmem:[%s115 + $0xe0] sm:$0xf]
      %v167 = vld [vmem:[%s115 + $0xe8] sm:$0xf]
      %v168 = vld [vmem:[%s115 + $0xf0] sm:$0xf]
      %v169 = vld [vmem:[%s115 + $0xf8] sm:$0xf]
      %v170 = vld [vmem:[%s115 + $0x100] sm:$0xf]
      %v171 = vld [vmem:[%s115 + $0x108] sm:$0xf]
      %v172 = vld [vmem:[%s115 + $0x110] sm:$0xf]
      %v173 = vunpack.c.l.bf16 %v122
      %v174 = vunpack.c.l.bf16 %v123
      %v175 = vunpack.c.l.bf16 %v124
      %v176 = vunpack.c.l.bf16 %v125
      %v177 = vunpack.c.l.bf16 %v126
      %v178 = vunpack.c.l.bf16 %v127
      %v179 = vunpack.c.l.bf16 %v128
      %v180 = vunpack.c.l.bf16 %v129
      %v181 = vunpack.c.l.bf16 %v130
      %v182 = vunpack.c.l.bf16 %v131
      %v183 = vunpack.c.l.bf16 %v132
      %v184 = vunpack.c.l.bf16 %v133
      %v185 = vunpack.c.l.bf16 %v134
      %v186 = vunpack.c.l.bf16 %v135
      %v187 = vunpack.c.l.bf16 %v136
      %v188 = vunpack.c.l.bf16 %v137
      %v189 = vunpack.c.l.bf16 %v138
      %v190 = vunpack.c.l.bf16 %v139
      %v191 = vunpack.c.l.bf16 %v140
      %v192 = vunpack.c.l.bf16 %v141
      %v193 = vunpack.c.l.bf16 %v142
      %v194 = vunpack.c.l.bf16 %v143
      %v195 = vunpack.c.l.bf16 %v144
      %v196 = vunpack.c.l.bf16 %v145
      %v197 = vunpack.c.l.bf16 %v146
      %v198 = vunpack.c.l.bf16 %v147
      %v199 = vunpack.c.l.bf16 %v148
      %v200 = vunpack.c.l.bf16 %v149
      %v201 = vunpack.c.l.bf16 %v150
      %v202 = vunpack.c.l.bf16 %v151
      %v203 = vunpack.c.l.bf16 %v152
      %v204 = vunpack.c.l.bf16 %v153
      %v205 = vunpack.c.l.bf16 %v154
      %v206 = vunpack.c.l.bf16 %v155
      %v207 = vunpack.c.l.bf16 %v156
      %v208 = vunpack.c.l.bf16 %v157
      %v209 = vunpack.c.l.bf16 %v158
      %v210 = vunpack.c.l.bf16 %v159
      %v211 = vunpack.c.l.bf16 %v160
      %v212 = vunpack.c.l.bf16 %v161
      %v213 = vunpack.c.l.bf16 %v162
      %v214 = vunpack.c.l.bf16 %v163
      %v215 = vunpack.c.l.bf16 %v164
      %v216 = vunpack.c.l.bf16 %v165
      %v217 = vunpack.c.l.bf16 %v166
      %v218 = vunpack.c.l.bf16 %v167
      %v219 = vunpack.c.l.bf16 %v168
      %v220 = vunpack.c.l.bf16 %v169
      %v221 = vunpack.c.l.bf16 %v170
      %v222 = vunpack.c.l.bf16 %v171
      %v223 = vunpack.c.l.bf16 %v172
      %v224 = vmax.f32 %v173, 0.0
      %v225 = vmax.f32 %v174, 0.0
      %v226 = vmax.f32 %v175, 0.0
      %v227 = vmax.f32 %v176, 0.0
      %v228 = vmax.f32 %v177, 0.0
      %v229 = vmax.f32 %v178, 0.0
      %v230 = vmax.f32 %v179, 0.0
      %v231 = vmax.f32 %v180, 0.0
      %v232 = vmax.f32 %v181, 0.0
      %v233 = vmax.f32 %v182, 0.0
      %v234 = vmax.f32 %v183, 0.0
      %v235 = vmax.f32 %v184, 0.0
      %v236 = vmax.f32 %v185, 0.0
      %v237 = vmax.f32 %v186, 0.0
      %v238 = vmax.f32 %v187, 0.0
      %v239 = vmax.f32 %v188, 0.0
      %v240 = vmax.f32 %v189, 0.0
      %v241 = vmax.f32 %v190, 0.0
      %v242 = vmax.f32 %v191, 0.0
      %v243 = vmax.f32 %v192, 0.0
      %v244 = vmax.f32 %v193, 0.0
      %v245 = vmax.f32 %v194, 0.0
      %v246 = vmax.f32 %v195, 0.0
      %v247 = vmax.f32 %v196, 0.0
      %v248 = vmax.f32 %v197, 0.0
      %v249 = vmax.f32 %v198, 0.0
      %v250 = vmax.f32 %v199, 0.0
      %v251 = vmax.f32 %v200, 0.0
      %v252 = vmax.f32 %v201, 0.0
      %v253 = vmax.f32 %v202, 0.0
      %v254 = vmax.f32 %v203, 0.0
      %v255 = vmax.f32 %v204, 0.0
      %v256 = vmax.f32 %v205, 0.0
      %v257 = vmax.f32 %v206, 0.0
      %v258 = vmax.f32 %v207, 0.0
      %v259 = vmax.f32 %v208, 0.0
      %v260 = vmax.f32 %v209, 0.0
      %v261 = vmax.f32 %v210, 0.0
      %v262 = vmax.f32 %v211, 0.0
      %v263 = vmax.f32 %v212, 0.0
      %v264 = vmax.f32 %v213, 0.0
      %v265 = vmax.f32 %v214, 0.0
      %v266 = vmax.f32 %v215, 0.0
      %v267 = vmax.f32 %v216, 0.0
      %v268 = vmax.f32 %v217, 0.0
      %v269 = vmax.f32 %v218, 0.0
      %v270 = vmax.f32 %v219, 0.0
      %v271 = vmax.f32 %v220, 0.0
      %v272 = vmax.f32 %v221, 0.0
      %v273 = vmax.f32 %v222, 0.0
      %v274 = vmax.f32 %v223, 0.0
      %v275 = vpack.c.bf16 %v224, %v224
      %v276 = vpack.c.bf16 %v225, %v225
      %v277 = vpack.c.bf16 %v226, %v226
      %v278 = vpack.c.bf16 %v227, %v227
      %v279 = vpack.c.bf16 %v228, %v228
      %v280 = vpack.c.bf16 %v229, %v229
      %v281 = vpack.c.bf16 %v230, %v230
      %v282 = vpack.c.bf16 %v231, %v231
      %v283 = vpack.c.bf16 %v232, %v232
      %v284 = vpack.c.bf16 %v233, %v233
      %v285 = vpack.c.bf16 %v234, %v234
      %v286 = vpack.c.bf16 %v235, %v235
      %v287 = vpack.c.bf16 %v236, %v236
      %v288 = vpack.c.bf16 %v237, %v237
      %v289 = vpack.c.bf16 %v238, %v238
      %v290 = vpack.c.bf16 %v239, %v239
      %v291 = vpack.c.bf16 %v240, %v240
      %v292 = vpack.c.bf16 %v241, %v241
      %v293 = vpack.c.bf16 %v242, %v242
      %v294 = vpack.c.bf16 %v243, %v243
      %v295 = vpack.c.bf16 %v244, %v244
      %v296 = vpack.c.bf16 %v245, %v245
      %v297 = vpack.c.bf16 %v246, %v246
      %v298 = vpack.c.bf16 %v247, %v247
      %v299 = vpack.c.bf16 %v248, %v248
      %v300 = vpack.c.bf16 %v249, %v249
      %v301 = vpack.c.bf16 %v250, %v250
      %v302 = vpack.c.bf16 %v251, %v251
      %v303 = vpack.c.bf16 %v252, %v252
      %v304 = vpack.c.bf16 %v253, %v253
      %v305 = vpack.c.bf16 %v254, %v254
      %v306 = vpack.c.bf16 %v255, %v255
      %v307 = vpack.c.bf16 %v256, %v256
      %v308 = vpack.c.bf16 %v257, %v257
      %v309 = vpack.c.bf16 %v258, %v258
      %v310 = vpack.c.bf16 %v259, %v259
      %v311 = vpack.c.bf16 %v260, %v260
      %v312 = vpack.c.bf16 %v261, %v261
      %v313 = vpack.c.bf16 %v262, %v262
      %v314 = vpack.c.bf16 %v263, %v263
      %v315 = vpack.c.bf16 %v264, %v264
      %v316 = vpack.c.bf16 %v265, %v265
      %v317 = vpack.c.bf16 %v266, %v266
      %v318 = vpack.c.bf16 %v267, %v267
      %v319 = vpack.c.bf16 %v268, %v268
      %v320 = vpack.c.bf16 %v269, %v269
      %v321 = vpack.c.bf16 %v270, %v270
      %v322 = vpack.c.bf16 %v271, %v271
      %v323 = vpack.c.bf16 %v272, %v272
      %v324 = vpack.c.bf16 %v273, %v273
      %v325 = vpack.c.bf16 %v274, %v274
      %v326 = vunpack.c.l.bf16 %v275
      %v327 = vunpack.c.l.bf16 %v277
      %v328 = vunpack.c.l.bf16 %v279
      %v329 = vunpack.c.l.bf16 %v281
      %v330 = vunpack.c.l.bf16 %v283
      %v331 = vunpack.c.l.bf16 %v285
      %v332 = vunpack.c.l.bf16 %v287
      %v333 = vunpack.c.l.bf16 %v289
      %v334 = vunpack.c.l.bf16 %v293
      %v335 = vunpack.c.l.bf16 %v294
      %v336 = vunpack.c.l.bf16 %v295
      %v337 = vunpack.c.l.bf16 %v296
      %v338 = vunpack.c.l.bf16 %v297
      %v339 = vunpack.c.l.bf16 %v298
      %v340 = vunpack.c.l.bf16 %v299
      %v341 = vunpack.c.l.bf16 %v300
      %v342 = vmax.f32 %v326, %v334
      %v343 = vmax.f32 %v327, %v335
      %v344 = vmax.f32 %v328, %v336
      %v345 = vmax.f32 %v329, %v337
      %v346 = vmax.f32 %v330, %v338
      %v347 = vmax.f32 %v331, %v339
      %v348 = vmax.f32 %v332, %v340
      %v349 = vmax.f32 %v333, %v341
      %v350 = vpack.c.bf16 %v342, %v342
      %v351 = vpack.c.bf16 %v343, %v343
      %v352 = vpack.c.bf16 %v344, %v344
      %v353 = vpack.c.bf16 %v345, %v345
      %v354 = vpack.c.bf16 %v346, %v346
      %v355 = vpack.c.bf16 %v347, %v347
      %v356 = vpack.c.bf16 %v348, %v348
      %v357 = vpack.c.bf16 %v349, %v349
      %v358 = vunpack.c.l.bf16 %v350
      %v359 = vunpack.c.l.bf16 %v351
      %v360 = vunpack.c.l.bf16 %v352
      %v361 = vunpack.c.l.bf16 %v353
      %v362 = vunpack.c.l.bf16 %v354
      %v363 = vunpack.c.l.bf16 %v355
      %v364 = vunpack.c.l.bf16 %v356
      %v365 = vunpack.c.l.bf16 %v357
      %v366 = vunpack.c.l.bf16 %v276
      %v367 = vunpack.c.l.bf16 %v278
      %v368 = vunpack.c.l.bf16 %v280
      %v369 = vunpack.c.l.bf16 %v282
      %v370 = vunpack.c.l.bf16 %v284
      %v371 = vunpack.c.l.bf16 %v286
      %v372 = vunpack.c.l.bf16 %v288
      %v373 = vunpack.c.l.bf16 %v290
      %vm390 = vcmask 1046528
      %v391 = vrot.slane %v326, 1
      %v392 = vrot.slane %v366, 1
      %v393 = vsel %vm390, %v391, %v392
      %v394 = vrot.slane %v327, 1
      %v395 = vrot.slane %v367, 1
      %v396 = vsel %vm390, %v394, %v395
      %v397 = vrot.slane %v328, 1
      %v398 = vrot.slane %v368, 1
      %v399 = vsel %vm390, %v397, %v398
      %v400 = vrot.slane %v329, 1
      %v401 = vrot.slane %v369, 1
      %v402 = vsel %vm390, %v400, %v401
      %v403 = vrot.slane %v330, 1
      %v404 = vrot.slane %v370, 1
      %v405 = vsel %vm390, %v403, %v404
      %v406 = vrot.slane %v331, 1
      %v407 = vrot.slane %v371, 1
      %v408 = vsel %vm390, %v406, %v407
      %v409 = vrot.slane %v332, 1
      %v410 = vrot.slane %v372, 1
      %v411 = vsel %vm390, %v409, %v410
      %v412 = vrot.slane %v333, 1
      %v413 = vrot.slane %v373, 1
      %v414 = vsel %vm390, %v412, %v413
      %v423 = vmax.f32 %v358, %v393
      %v424 = vmax.f32 %v359, %v396
      %v425 = vmax.f32 %v360, %v399
      %v426 = vmax.f32 %v361, %v402
      %v427 = vmax.f32 %v362, %v405
      %v428 = vmax.f32 %v363, %v408
      %v429 = vmax.f32 %v364, %v411
      %v430 = vmax.f32 %v365, %v414
      %v431 = vpack.c.bf16 %v423, %v423
      %v432 = vpack.c.bf16 %v424, %v424
      %v433 = vpack.c.bf16 %v425, %v425
      %v434 = vpack.c.bf16 %v426, %v426
      %v435 = vpack.c.bf16 %v427, %v427
      %v436 = vpack.c.bf16 %v428, %v428
      %v437 = vpack.c.bf16 %v429, %v429
      %v438 = vpack.c.bf16 %v430, %v430
      %v439 = vunpack.c.l.bf16 %v431
      %v440 = vunpack.c.l.bf16 %v432
      %v441 = vunpack.c.l.bf16 %v433
      %v442 = vunpack.c.l.bf16 %v434
      %v443 = vunpack.c.l.bf16 %v435
      %v444 = vunpack.c.l.bf16 %v436
      %v445 = vunpack.c.l.bf16 %v437
      %v446 = vunpack.c.l.bf16 %v438
      %v447 = vunpack.c.l.bf16 %v302
      %v448 = vunpack.c.l.bf16 %v304
      %v449 = vunpack.c.l.bf16 %v306
      %v450 = vunpack.c.l.bf16 %v308
      %v451 = vunpack.c.l.bf16 %v310
      %v452 = vunpack.c.l.bf16 %v312
      %v453 = vunpack.c.l.bf16 %v314
      %v454 = vunpack.c.l.bf16 %v316
      %v455 = vmax.f32 %v439, %v447
      %v456 = vmax.f32 %v440, %v448
      %v457 = vmax.f32 %v441, %v449
      %v458 = vmax.f32 %v442, %v450
      %v459 = vmax.f32 %v443, %v451
      %v460 = vmax.f32 %v444, %v452
      %v461 = vmax.f32 %v445, %v453
      %v462 = vmax.f32 %v446, %v454
      %v463 = vpack.c.bf16 %v455, %v455
      %v464 = vpack.c.bf16 %v456, %v456
      %v465 = vpack.c.bf16 %v457, %v457
      %v466 = vpack.c.bf16 %v458, %v458
      %v467 = vpack.c.bf16 %v459, %v459
      %v468 = vpack.c.bf16 %v460, %v460
      %v469 = vpack.c.bf16 %v461, %v461
      %v470 = vpack.c.bf16 %v462, %v462
      %v471 = vunpack.c.l.bf16 %v463
      %v472 = vunpack.c.l.bf16 %v464
      %v473 = vunpack.c.l.bf16 %v465
      %v474 = vunpack.c.l.bf16 %v466
      %v475 = vunpack.c.l.bf16 %v467
      %v476 = vunpack.c.l.bf16 %v468
      %v477 = vunpack.c.l.bf16 %v469
      %v478 = vunpack.c.l.bf16 %v470
      %v479 = vunpack.c.l.bf16 %v318
      %v480 = vunpack.c.l.bf16 %v319
      %v481 = vunpack.c.l.bf16 %v320
      %v482 = vunpack.c.l.bf16 %v321
      %v483 = vunpack.c.l.bf16 %v322
      %v484 = vunpack.c.l.bf16 %v323
      %v485 = vunpack.c.l.bf16 %v324
      %v486 = vunpack.c.l.bf16 %v325
      %v487 = vmax.f32 %v471, %v479
      %v488 = vmax.f32 %v472, %v480
      %v489 = vmax.f32 %v473, %v481
      %v490 = vmax.f32 %v474, %v482
      %v491 = vmax.f32 %v475, %v483
      %v492 = vmax.f32 %v476, %v484
      %v493 = vmax.f32 %v477, %v485
      %v494 = vmax.f32 %v478, %v486
      %v495 = vpack.c.bf16 %v487, %v487
      %v496 = vpack.c.bf16 %v488, %v488
      %v497 = vpack.c.bf16 %v489, %v489
      %v498 = vpack.c.bf16 %v490, %v490
      %v499 = vpack.c.bf16 %v491, %v491
      %v500 = vpack.c.bf16 %v492, %v492
      %v501 = vpack.c.bf16 %v493, %v493
      %v502 = vpack.c.bf16 %v494, %v494
      %v503 = vunpack.c.l.bf16 %v495
      %v504 = vunpack.c.l.bf16 %v496
      %v505 = vunpack.c.l.bf16 %v497
      %v506 = vunpack.c.l.bf16 %v498
      %v507 = vunpack.c.l.bf16 %v499
      %v508 = vunpack.c.l.bf16 %v500
      %v509 = vunpack.c.l.bf16 %v501
      %v510 = vunpack.c.l.bf16 %v502
      %v511 = vunpack.c.l.bf16 %v303
      %v512 = vunpack.c.l.bf16 %v305
      %v513 = vunpack.c.l.bf16 %v307
      %v514 = vunpack.c.l.bf16 %v309
      %v515 = vunpack.c.l.bf16 %v311
      %v516 = vunpack.c.l.bf16 %v313
      %v517 = vunpack.c.l.bf16 %v315
      %v518 = vunpack.c.l.bf16 %v317
      %v535 = vrot.slane %v447, 1
      %v536 = vrot.slane %v511, 1
      %v537 = vsel %vm390, %v535, %v536
      %v538 = vrot.slane %v448, 1
      %v539 = vrot.slane %v512, 1
      %v540 = vsel %vm390, %v538, %v539
      %v541 = vrot.slane %v449, 1
      %v542 = vrot.slane %v513, 1
      %v543 = vsel %vm390, %v541, %v542
      %v544 = vrot.slane %v450, 1
      %v545 = vrot.slane %v514, 1
      %v546 = vsel %vm390, %v544, %v545
      %v547 = vrot.slane %v451, 1
      %v548 = vrot.slane %v515, 1
      %v549 = vsel %vm390, %v547, %v548
      %v550 = vrot.slane %v452, 1
      %v551 = vrot.slane %v516, 1
      %v552 = vsel %vm390, %v550, %v551
      %v553 = vrot.slane %v453, 1
      %v554 = vrot.slane %v517, 1
      %v555 = vsel %vm390, %v553, %v554
      %v556 = vrot.slane %v454, 1
      %v557 = vrot.slane %v518, 1
      %v558 = vsel %vm390, %v556, %v557
      %v567 = vmax.f32 %v503, %v537
      %v568 = vmax.f32 %v504, %v540
      %v569 = vmax.f32 %v505, %v543
      %v570 = vmax.f32 %v506, %v546
      %v571 = vmax.f32 %v507, %v549
      %v572 = vmax.f32 %v508, %v552
      %v573 = vmax.f32 %v509, %v555
      %v574 = vmax.f32 %v510, %v558
      %v575 = vpack.c.bf16 %v567, %v567
      %v576 = vpack.c.bf16 %v568, %v568
      %v577 = vpack.c.bf16 %v569, %v569
      %v578 = vpack.c.bf16 %v570, %v570
      %v579 = vpack.c.bf16 %v571, %v571
      %v580 = vpack.c.bf16 %v572, %v572
      %v581 = vpack.c.bf16 %v573, %v573
      %v582 = vpack.c.bf16 %v574, %v574
      %v583 = vunpack.c.l.bf16 %v575
      %v584 = vunpack.c.l.bf16 %v576
      %v585 = vunpack.c.l.bf16 %v577
      %v586 = vunpack.c.l.bf16 %v578
      %v587 = vunpack.c.l.bf16 %v579
      %v588 = vunpack.c.l.bf16 %v580
      %v589 = vunpack.c.l.bf16 %v581
      %v590 = vunpack.c.l.bf16 %v582
      %v591 = vunpack.c.l.bf16 %v291
      %v592 = vmax.f32 %v583, %v327
      %v593 = vmax.f32 %v584, %v328
      %v594 = vmax.f32 %v585, %v329
      %v595 = vmax.f32 %v586, %v330
      %v596 = vmax.f32 %v587, %v331
      %v597 = vmax.f32 %v588, %v332
      %v598 = vmax.f32 %v589, %v333
      %v599 = vmax.f32 %v590, %v591
      %v600 = vpack.c.bf16 %v592, %v592
      %v601 = vpack.c.bf16 %v593, %v593
      %v602 = vpack.c.bf16 %v594, %v594
      %v603 = vpack.c.bf16 %v595, %v595
      %v604 = vpack.c.bf16 %v596, %v596
      %v605 = vpack.c.bf16 %v597, %v597
      %v606 = vpack.c.bf16 %v598, %v598
      %v607 = vpack.c.bf16 %v599, %v599
      %v608 = vunpack.c.l.bf16 %v600
      %v609 = vunpack.c.l.bf16 %v601
      %v610 = vunpack.c.l.bf16 %v602
      %v611 = vunpack.c.l.bf16 %v603
      %v612 = vunpack.c.l.bf16 %v604
      %v613 = vunpack.c.l.bf16 %v605
      %v614 = vunpack.c.l.bf16 %v606
      %v615 = vunpack.c.l.bf16 %v607
      %v616 = vunpack.c.l.bf16 %v301
      %v617 = vmax.f32 %v608, %v335
      %v618 = vmax.f32 %v609, %v336
      %v619 = vmax.f32 %v610, %v337
      %v620 = vmax.f32 %v611, %v338
      %v621 = vmax.f32 %v612, %v339
      %v622 = vmax.f32 %v613, %v340
      %v623 = vmax.f32 %v614, %v341
      %v624 = vmax.f32 %v615, %v616
      %v625 = vpack.c.bf16 %v617, %v617
      %v626 = vpack.c.bf16 %v618, %v618
      %v627 = vpack.c.bf16 %v619, %v619
      %v628 = vpack.c.bf16 %v620, %v620
      %v629 = vpack.c.bf16 %v621, %v621
      %v630 = vpack.c.bf16 %v622, %v622
      %v631 = vpack.c.bf16 %v623, %v623
      %v632 = vpack.c.bf16 %v624, %v624
      %v633 = vunpack.c.l.bf16 %v625
      %v634 = vunpack.c.l.bf16 %v626
      %v635 = vunpack.c.l.bf16 %v627
      %v636 = vunpack.c.l.bf16 %v628
      %v637 = vunpack.c.l.bf16 %v629
      %v638 = vunpack.c.l.bf16 %v630
      %v639 = vunpack.c.l.bf16 %v631
      %v640 = vunpack.c.l.bf16 %v632
      %v641 = vunpack.c.l.bf16 %v292
      %v644 = vrot.slane %v591, 1
      %v645 = vrot.slane %v641, 1
      %v646 = vsel %vm390, %v644, %v645
      %v648 = vmax.f32 %v633, %v396
      %v649 = vmax.f32 %v634, %v399
      %v650 = vmax.f32 %v635, %v402
      %v651 = vmax.f32 %v636, %v405
      %v652 = vmax.f32 %v637, %v408
      %v653 = vmax.f32 %v638, %v411
      %v654 = vmax.f32 %v639, %v414
      %v655 = vmax.f32 %v640, %v646
      %v656 = vpack.c.bf16 %v648, %v648
      %v657 = vpack.c.bf16 %v649, %v649
      %v658 = vpack.c.bf16 %v650, %v650
      %v659 = vpack.c.bf16 %v651, %v651
      %v660 = vpack.c.bf16 %v652, %v652
      %v661 = vpack.c.bf16 %v653, %v653
      %v662 = vpack.c.bf16 %v654, %v654
      %v663 = vpack.c.bf16 %v655, %v655
      %664 = vst [vmem:[%s121] sm:$0xf] %v656
      %665 = vst [vmem:[%s121 + $0x4] sm:$0xf] %v657
      %666 = vst [vmem:[%s121 + $0x8] sm:$0xf] %v658
      %667 = vst [vmem:[%s121 + $0xc] sm:$0xf] %v659
      %668 = vst [vmem:[%s121 + $0x10] sm:$0xf] %v660
      %669 = vst [vmem:[%s121 + $0x14] sm:$0xf] %v661
      %670 = vst [vmem:[%s121 + $0x18] sm:$0xf] %v662
      %671 = vst [vmem:[%s121 + $0x1c] sm:$0xf] %v663
      %p672 = scmp.lt.s32.totalorder %s12, 1
      %s673 = scalar_select %p672, %s12, 1
      %s674 = smul.addr %s673, 8
      %s675 = smul.addr %s674, 4
      %s676 = scalar_lea.vmem %s1, %s675
      // Predicated region
      $region25: #{densenet_forward.14} parent=23 // pred_check
        %p677 = pneg %p56
      $region26: #{densenet_forward.14} parent=23 // pred_check_branch
        %679 = sbr.rel (%p677) target = $region28
      $region27: #{densenet_forward.14} parent=23 // pred_region
        _
      $region28: #{densenet_forward.14} parent=23 // pred_fallthru
        _
    $region24: #{densenet_forward.14} parent=5 // pred_fallthru
      _
    %p680 = scmp.le.s32.totalorder 2, %s7
    // Predicated region
    $region29: #{densenet_forward.14} parent=5 // pred_check
      %p681 = pneg %p680
    $region30: #{densenet_forward.14} parent=5 // pred_check_branch
      %683 = sbr.rel (%p681) target = $region32
    $region31: #{densenet_forward.14} parent=5 // pred_region
      %s684 = ssub.s32 %s7, 2
      // Predicated region
      $region33: #{densenet_forward.14} parent=31 // pred_check
        %p685 = pneg %p62
      $region34: #{densenet_forward.14} parent=31 // pred_check_branch
        %687 = sbr.rel (%p685) target = $region36
      $region35: #{densenet_forward.14} parent=31 // pred_region
        %p688 = scmp.lt.s32.totalorder %s13, 1
        %s689 = scalar_select %p688, %s13, 1
        %s690 = smul.addr %s689, 8
        %s691 = smul.addr %s690, 4
        %s692 = scalar_lea.vmem %s1, %s691
      $region36: #{densenet_forward.14} parent=31 // pred_fallthru
        _
    $region32: #{densenet_forward.14} parent=5 // pred_fallthru
      _
  $region6: #{densenet_forward.14} parent=0 // loop_footer
    %s11 = sadd.s32 1, %s7
  $region7: #{densenet_forward.14} parent=0 // loop_footer_branch
    %6 = sbr.rel target = $region3
  $region8: #{densenet_forward.14} parent=0 // loop_exit
    _

// kernel: densenet_forward.13
$region0: #{densenet_forward.13}
  #allocation0 [shape = 'u32[]', space=smem, size = 0x4, offset = 0x4, fixed_abs, tag = 'smem constant byte address 0x4 - core index']
  #allocation1 [shape = 'u32[72,128]{1,0:T(1,128)}', space=vmem, size = 0x9000, scoped, tag = 'internal scratch']
  #allocation2 [shape = 'f32[512,128]{1,0:T(8,128)}', space=vmem, size = 0x40000, scoped, tag = 'scratch operand']
  %s0 = inlined_call_operand.vmem [shape: bf16[512,147], index: 0, kind: input, shape index: {}]
  %s1 = inlined_call_operand.vmem [shape: bf16[147,128], index: 1, kind: input, shape index: {}]
  %s2 = inlined_call_operand.vmem [shape: bf16[512,128], index: 2, kind: output, shape index: {}]
  %s3 = sld [smem:[#allocation0]]
  $region26: #{densenet_forward.13} parent=0
    _
  %s5 = ssub.s32 1, %s3
  %s6 = scalar_select 0, %s5, %s3
  // Predicated region
  $region2: #{densenet_forward.13} parent=0 // pred_check
    _
  $region3: #{densenet_forward.13} parent=0 // pred_check_branch
    %8 = sbr.rel (0) target = $region5
  $region4: #{densenet_forward.13} parent=0 // pred_region
    _
  $region5: #{densenet_forward.13} parent=0 // pred_fallthru
    _
  // Predicated region
  $region6: #{densenet_forward.13} parent=0 // pred_check
    _
  $region7: #{densenet_forward.13} parent=0 // pred_check_branch
    %10 = sbr.rel (0) target = $region9
  $region8: #{densenet_forward.13} parent=0 // pred_region
    _
  $region9: #{densenet_forward.13} parent=0 // pred_fallthru
    _
  %p12 = scmp.eq.s32.totalorder 0, 0
  // Predicated region
  $region10: #{densenet_forward.13} parent=0 // pred_check
    %p13 = pneg %p12
  $region11: #{densenet_forward.13} parent=0 // pred_check_branch
    %15 = sbr.rel (%p13) target = $region13
  $region12: #{densenet_forward.13} parent=0 // pred_region
    %16 = vst [vmem:[#allocation2] sm:$0xff] 0.0
    %17 = vst [vmem:[#allocation2 + $0x8] sm:$0xff] 0.0
    %18 = vst [vmem:[#allocation2 + $0x10] sm:$0xff] 0.0
    %19 = vst [vmem:[#allocation2 + $0x18] sm:$0xff] 0.0
    %20 = vst [vmem:[#allocation2 + $0x20] sm:$0xff] 0.0
    %21 = vst [vmem:[#allocation2 + $0x28] sm:$0xff] 0.0
    %22 = vst [vmem:[#allocation2 + $0x30] sm:$0xff] 0.0
    %23 = vst [vmem:[#allocation2 + $0x38] sm:$0xff] 0.0
    %24 = vst [vmem:[#allocation2 + $0x40] sm:$0xff] 0.0
    %25 = vst [vmem:[#allocation2 + $0x48] sm:$0xff] 0.0
    %26 = vst [vmem:[#allocation2 + $0x50] sm:$0xff] 0.0
    %27 = vst [vmem:[#allocation2 + $0x58] sm:$0xff] 0.0
    %28 = vst [vmem:[#allocation2 + $0x60] sm:$0xff] 0.0
    %29 = vst [vmem:[#allocation2 + $0x68] sm:$0xff] 0.0
    %30 = vst [vmem:[#allocation2 + $0x70] sm:$0xff] 0.0
    %31 = vst [vmem:[#allocation2 + $0x78] sm:$0xff] 0.0
    %32 = vst [vmem:[#allocation2 + $0x80] sm:$0xff] 0.0
    %33 = vst [vmem:[#allocation2 + $0x88] sm:$0xff] 0.0
    %34 = vst [vmem:[#allocation2 + $0x90] sm:$0xff] 0.0
    %35 = vst [vmem:[#allocation2 + $0x98] sm:$0xff] 0.0
    %36 = vst [vmem:[#allocation2 + $0xa0] sm:$0xff] 0.0
    %37 = vst [vmem:[#allocation2 + $0xa8] sm:$0xff] 0.0
    %38 = vst [vmem:[#allocation2 + $0xb0] sm:$0xff] 0.0
    %39 = vst [vmem:[#allocation2 + $0xb8] sm:$0xff] 0.0
    %40 = vst [vmem:[#allocation2 + $0xc0] sm:$0xff] 0.0
    %41 = vst [vmem:[#allocation2 + $0xc8] sm:$0xff] 0.0
    %42 = vst [vmem:[#allocation2 + $0xd0] sm:$0xff] 0.0
    %43 = vst [vmem:[#allocation2 + $0xd8] sm:$0xff] 0.0
    %44 = vst [vmem:[#allocation2 + $0xe0] sm:$0xff] 0.0
    %45 = vst [vmem:[#allocation2 + $0xe8] sm:$0xff] 0.0
    %46 = vst [vmem:[#allocation2 + $0xf0] sm:$0xff] 0.0
    %47 = vst [vmem:[#allocation2 + $0xf8] sm:$0xff] 0.0
    %48 = vst [vmem:[#allocation2 + $0x100] sm:$0xff] 0.0
    %49 = vst [vmem:[#allocation2 + $0x108] sm:$0xff] 0.0
    %50 = vst [vmem:[#allocation2 + $0x110] sm:$0xff] 0.0
    %51 = vst [vmem:[#allocation2 + $0x118] sm:$0xff] 0.0
    %52 = vst [vmem:[#allocation2 + $0x120] sm:$0xff] 0.0
    %53 = vst [vmem:[#allocation2 + $0x128] sm:$0xff] 0.0
    %54 = vst [vmem:[#allocation2 + $0x130] sm:$0xff] 0.0
    %55 = vst [vmem:[#allocation2 + $0x138] sm:$0xff] 0.0
    %56 = vst [vmem:[#allocation2 + $0x140] sm:$0xff] 0.0
    %57 = vst [vmem:[#allocation2 + $0x148] sm:$0xff] 0.0
    %58 = vst [vmem:[#allocation2 + $0x150] sm:$0xff] 0.0
    %59 = vst [vmem:[#allocation2 + $0x158] sm:$0xff] 0.0
    %60 = vst [vmem:[#allocation2 + $0x160] sm:$0xff] 0.0
    %61 = vst [vmem:[#allocation2 + $0x168] sm:$0xff] 0.0
    %62 = vst [vmem:[#allocation2 + $0x170] sm:$0xff] 0.0
    %63 = vst [vmem:[#allocation2 + $0x178] sm:$0xff] 0.0
    %64 = vst [vmem:[#allocation2 + $0x180] sm:$0xff] 0.0
    %65 = vst [vmem:[#allocation2 + $0x188] sm:$0xff] 0.0
    %66 = vst [vmem:[#allocation2 + $0x190] sm:$0xff] 0.0
    %67 = vst [vmem:[#allocation2 + $0x198] sm:$0xff] 0.0
    %68 = vst [vmem:[#allocation2 + $0x1a0] sm:$0xff] 0.0
    %69 = vst [vmem:[#allocation2 + $0x1a8] sm:$0xff] 0.0
    %70 = vst [vmem:[#allocation2 + $0x1b0] sm:$0xff] 0.0
    %71 = vst [vmem:[#allocation2 + $0x1b8] sm:$0xff] 0.0
    %72 = vst [vmem:[#allocation2 + $0x1c0] sm:$0xff] 0.0
    %73 = vst [vmem:[#allocation2 + $0x1c8] sm:$0xff] 0.0
    %74 = vst [vmem:[#allocation2 + $0x1d0] sm:$0xff] 0.0
    %75 = vst [vmem:[#allocation2 + $0x1d8] sm:$0xff] 0.0
    %76 = vst [vmem:[#allocation2 + $0x1e0] sm:$0xff] 0.0
    %77 = vst [vmem:[#allocation2 + $0x1e8] sm:$0xff] 0.0
    %78 = vst [vmem:[#allocation2 + $0x1f0] sm:$0xff] 0.0
    %79 = vst [vmem:[#allocation2 + $0x1f8] sm:$0xff] 0.0
  $region13: #{densenet_forward.13} parent=0 // pred_fallthru
    _
  %v80 = vld [vmem:[%s0] sm:$0xff]
  %v81 = vld [vmem:[%s0 + $0x8] sm:$0xff]
  %v82 = vld [vmem:[%s0 + $0x10] sm:$0xff]
  %v83 = vld [vmem:[%s0 + $0x18] sm:$0xff]
  %v84 = vld [vmem:[%s0 + $0x20] sm:$0xff]
  %v85 = vld [vmem:[%s0 + $0x28] sm:$0xff]
  %v86 = vld [vmem:[%s0 + $0x30] sm:$0xff]
  %v87 = vld [vmem:[%s0 + $0x38] sm:$0xff]
  %v88 = vld [vmem:[%s0 + $0x40] sm:$0xff]
  %v89 = vld [vmem:[%s0 + $0x48] sm:$0xff]
  %v90 = vld [vmem:[%s0 + $0x50] sm:$0xff]
  %v91 = vld [vmem:[%s0 + $0x58] sm:$0xff]
  %v92 = vld [vmem:[%s0 + $0x60] sm:$0xff]
  %v93 = vld [vmem:[%s0 + $0x68] sm:$0xff]
  %v94 = vld [vmem:[%s0 + $0x70] sm:$0xff]
  %v95 = vld [vmem:[%s0 + $0x78] sm:$0xff]
  %v96 = vld [vmem:[%s0 + $0x80] sm:$0xff]
  %v97 = vld [vmem:[%s0 + $0x88] sm:$0xff]
  %v98 = vld [vmem:[%s0 + $0x90] sm:$0xff]
  %v99 = vld [vmem:[%s0 + $0x98] sm:$0xff]
  %v100 = vld [vmem:[%s0 + $0xa0] sm:$0xff]
  %v101 = vld [vmem:[%s0 + $0xa8] sm:$0xff]
  %v102 = vld [vmem:[%s0 + $0xb0] sm:$0xff]
  %v103 = vld [vmem:[%s0 + $0xb8] sm:$0xff]
  %v104 = vld [vmem:[%s0 + $0xc0] sm:$0xff]
  %v105 = vld [vmem:[%s0 + $0xc8] sm:$0xff]
  %v106 = vld [vmem:[%s0 + $0xd0] sm:$0xff]
  %v107 = vld [vmem:[%s0 + $0xd8] sm:$0xff]
  %v108 = vld [vmem:[%s0 + $0xe0] sm:$0xff]
  %v109 = vld [vmem:[%s0 + $0xe8] sm:$0xff]
  %v110 = vld [vmem:[%s0 + $0xf0] sm:$0xff]
  %v111 = vld [vmem:[%s0 + $0xf8] sm:$0xff]
  %v112 = vld [vmem:[%s0 + $0x100] sm:$0xff]
  %v113 = vld [vmem:[%s0 + $0x108] sm:$0xff]
  %v114 = vld [vmem:[%s0 + $0x110] sm:$0xff]
  %v115 = vld [vmem:[%s0 + $0x118] sm:$0xff]
  %v116 = vld [vmem:[%s0 + $0x120] sm:$0xff]
  %v117 = vld [vmem:[%s0 + $0x128] sm:$0xff]
  %v118 = vld [vmem:[%s0 + $0x130] sm:$0xff]
  %v119 = vld [vmem:[%s0 + $0x138] sm:$0xff]
  %v120 = vld [vmem:[%s0 + $0x140] sm:$0xff]
  %v121 = vld [vmem:[%s0 + $0x148] sm:$0xff]
  %v122 = vld [vmem:[%s0 + $0x150] sm:$0xff]
  %v123 = vld [vmem:[%s0 + $0x158] sm:$0xff]
  %v124 = vld [vmem:[%s0 + $0x160] sm:$0xff]
  %v125 = vld [vmem:[%s0 + $0x168] sm:$0xff]
  %v126 = vld [vmem:[%s0 + $0x170] sm:$0xff]
  %v127 = vld [vmem:[%s0 + $0x178] sm:$0xff]
  %v128 = vld [vmem:[%s0 + $0x180] sm:$0xff]
  %v129 = vld [vmem:[%s0 + $0x188] sm:$0xff]
  %v130 = vld [vmem:[%s0 + $0x190] sm:$0xff]
  %v131 = vld [vmem:[%s0 + $0x198] sm:$0xff]
  %v132 = vld [vmem:[%s0 + $0x1a0] sm:$0xff]
  %v133 = vld [vmem:[%s0 + $0x1a8] sm:$0xff]
  %v134 = vld [vmem:[%s0 + $0x1b0] sm:$0xff]
  %v135 = vld [vmem:[%s0 + $0x1b8] sm:$0xff]
  %v136 = vld [vmem:[%s0 + $0x1c0] sm:$0xff]
  %v137 = vld [vmem:[%s0 + $0x1c8] sm:$0xff]
  %v138 = vld [vmem:[%s0 + $0x1d0] sm:$0xff]
  %v139 = vld [vmem:[%s0 + $0x1d8] sm:$0xff]
  %v140 = vld [vmem:[%s0 + $0x1e0] sm:$0xff]
  %v141 = vld [vmem:[%s0 + $0x1e8] sm:$0xff]
  %v142 = vld [vmem:[%s0 + $0x1f0] sm:$0xff]
  %v143 = vld [vmem:[%s0 + $0x1f8] sm:$0xff]
  %v144 = vld [vmem:[%s1] sm:$0xf]
  %v145 = vld [vmem:[%s1 + $0x4] sm:$0xf]
  %v146 = vld [vmem:[%s1 + $0x8] sm:$0xf]
  %v147 = vld [vmem:[%s1 + $0xc] sm:$0xf]
  %v148 = vld [vmem:[%s1 + $0x10] sm:$0xf]
  %v149 = vld [vmem:[%s1 + $0x14] sm:$0xf]
  %v150 = vld [vmem:[%s1 + $0x18] sm:$0xf]
  %v151 = vld [vmem:[%s1 + $0x1c] sm:$0xf]
  %v152 = vld [vmem:[%s1 + $0x20] sm:$0xf]
  %v153 = vld [vmem:[%s1 + $0x24] sm:$0xf]
  %v154 = vld [vmem:[%s1 + $0x28] sm:$0xf]
  %v155 = vld [vmem:[%s1 + $0x2c] sm:$0xf]
  %v156 = vld [vmem:[%s1 + $0x30] sm:$0xf]
  %v157 = vld [vmem:[%s1 + $0x34] sm:$0xf]
  %v158 = vld [vmem:[%s1 + $0x38] sm:$0xf]
  %v159 = vld [vmem:[%s1 + $0x3c] sm:$0xf]
  %v160 = vld [vmem:[%s1 + $0x40] sm:$0xf]
  %v161 = vld [vmem:[%s1 + $0x44] sm:$0xf]
  %v162 = vld [vmem:[%s1 + $0x48] sm:$0x3]
  %v163 = vld [vmem:[#allocation2] sm:$0xff]
  %v164 = vld [vmem:[#allocation2 + $0x8] sm:$0xff]
  %v165 = vld [vmem:[#allocation2 + $0x10] sm:$0xff]
  %v166 = vld [vmem:[#allocation2 + $0x18] sm:$0xff]
  %v167 = vld [vmem:[#allocation2 + $0x20] sm:$0xff]
  %v168 = vld [vmem:[#allocation2 + $0x28] sm:$0xff]
  %v169 = vld [vmem:[#allocation2 + $0x30] sm:$0xff]
  %v170 = vld [vmem:[#allocation2 + $0x38] sm:$0xff]
  %v171 = vld [vmem:[#allocation2 + $0x40] sm:$0xff]
  %v172 = vld [vmem:[#allocation2 + $0x48] sm:$0xff]
  %v173 = vld [vmem:[#allocation2 + $0x50] sm:$0xff]
  %v174 = vld [vmem:[#allocation2 + $0x58] sm:$0xff]
  %v175 = vld [vmem:[#allocation2 + $0x60] sm:$0xff]
  %v176 = vld [vmem:[#allocation2 + $0x68] sm:$0xff]
  %v177 = vld [vmem:[#allocation2 + $0x70] sm:$0xff]
  %v178 = vld [vmem:[#allocation2 + $0x78] sm:$0xff]
  %v179 = vld [vmem:[#allocation2 + $0x80] sm:$0xff]
  %v180 = vld [vmem:[#allocation2 + $0x88] sm:$0xff]
  %v181 = vld [vmem:[#allocation2 + $0x90] sm:$0xff]
  %v182 = vld [vmem:[#allocation2 + $0x98] sm:$0xff]
  %v183 = vld [vmem:[#allocation2 + $0xa0] sm:$0xff]
  %v184 = vld [vmem:[#allocation2 + $0xa8] sm:$0xff]
  %v185 = vld [vmem:[#allocation2 + $0xb0] sm:$0xff]
  %v186 = vld [vmem:[#allocation2 + $0xb8] sm:$0xff]
  %v187 = vld [vmem:[#allocation2 + $0xc0] sm:$0xff]
  %v188 = vld [vmem:[#allocation2 + $0xc8] sm:$0xff]
  %v189 = vld [vmem:[#allocation2 + $0xd0] sm:$0xff]
  %v190 = vld [vmem:[#allocation2 + $0xd8] sm:$0xff]
  %v191 = vld [vmem:[#allocation2 + $0xe0] sm:$0xff]
  %v192 = vld [vmem:[#allocation2 + $0xe8] sm:$0xff]
  %v193 = vld [vmem:[#allocation2 + $0xf0] sm:$0xff]
  %v194 = vld [vmem:[#allocation2 + $0xf8] sm:$0xff]
  %v195 = vld [vmem:[#allocation2 + $0x100] sm:$0xff]
  %v196 = vld [vmem:[#allocation2 + $0x108] sm:$0xff]
  %v197 = vld [vmem:[#allocation2 + $0x110] sm:$0xff]
  %v198 = vld [vmem:[#allocation2 + $0x118] sm:$0xff]
  %v199 = vld [vmem:[#allocation2 + $0x120] sm:$0xff]
  %v200 = vld [vmem:[#allocation2 + $0x128] sm:$0xff]
  %v201 = vld [vmem:[#allocation2 + $0x130] sm:$0xff]
  %v202 = vld [vmem:[#allocation2 + $0x138] sm:$0xff]
  %v203 = vld [vmem:[#allocation2 + $0x140] sm:$0xff]
  %v204 = vld [vmem:[#allocation2 + $0x148] sm:$0xff]
  %v205 = vld [vmem:[#allocation2 + $0x150] sm:$0xff]
  %v206 = vld [vmem:[#allocation2 + $0x158] sm:$0xff]
  %v207 = vld [vmem:[#allocation2 + $0x160] sm:$0xff]
  %v208 = vld [vmem:[#allocation2 + $0x168] sm:$0xff]
  %v209 = vld [vmem:[#allocation2 + $0x170] sm:$0xff]
  %v210 = vld [vmem:[#allocation2 + $0x178] sm:$0xff]
  %v211 = vld [vmem:[#allocation2 + $0x180] sm:$0xff]
  %v212 = vld [vmem:[#allocation2 + $0x188] sm:$0xff]
  %v213 = vld [vmem:[#allocation2 + $0x190] sm:$0xff]
  %v214 = vld [vmem:[#allocation2 + $0x198] sm:$0xff]
  %v215 = vld [vmem:[#allocation2 + $0x1a0] sm:$0xff]
  %v216 = vld [vmem:[#allocation2 + $0x1a8] sm:$0xff]
  %v217 = vld [vmem:[#allocation2 + $0x1b0] sm:$0xff]
  %v218 = vld [vmem:[#allocation2 + $0x1b8] sm:$0xff]
  %v219 = vld [vmem:[#allocation2 + $0x1c0] sm:$0xff]
  %v220 = vld [vmem:[#allocation2 + $0x1c8] sm:$0xff]
  %v221 = vld [vmem:[#allocation2 + $0x1d0] sm:$0xff]
  %v222 = vld [vmem:[#allocation2 + $0x1d8] sm:$0xff]
  %v223 = vld [vmem:[#allocation2 + $0x1e0] sm:$0xff]
  %v224 = vld [vmem:[#allocation2 + $0x1e8] sm:$0xff]
  %v225 = vld [vmem:[#allocation2 + $0x1f0] sm:$0xff]
  %v226 = vld [vmem:[#allocation2 + $0x1f8] sm:$0xff]
  %v291 = vunpack.c.l.b16 %v80
  %v292 = vunpack.c.h.b16 %v80
  %v293 = vunpack.c.l.b16 %v81
  %v294 = vunpack.c.h.b16 %v81
  %v295 = vunpack.c.l.b16 %v82
  %v296 = vunpack.c.h.b16 %v82
  %v297 = vunpack.c.l.b16 %v83
  %v298 = vunpack.c.h.b16 %v83
  %v299 = vunpack.c.l.b16 %v84
  %v300 = vunpack.c.h.b16 %v84
  %v301 = vunpack.c.l.b16 %v85
  %v302 = vunpack.c.h.b16 %v85
  %v303 = vunpack.c.l.b16 %v86
  %v304 = vunpack.c.h.b16 %v86
  %v305 = vunpack.c.l.b16 %v87
  %v306 = vunpack.c.h.b16 %v87
  %v307 = vunpack.c.l.b16 %v88
  %v308 = vunpack.c.h.b16 %v88
  %v309 = vunpack.c.l.b16 %v89
  %v310 = vunpack.c.h.b16 %v89
  %v311 = vunpack.c.l.b16 %v90
  %v312 = vunpack.c.h.b16 %v90
  %v313 = vunpack.c.l.b16 %v91
  %v314 = vunpack.c.h.b16 %v91
  %v315 = vunpack.c.l.b16 %v92
  %v316 = vunpack.c.h.b16 %v92
  %v317 = vunpack.c.l.b16 %v93
  %v318 = vunpack.c.h.b16 %v93
  %v319 = vunpack.c.l.b16 %v94
  %v320 = vunpack.c.h.b16 %v94
  %v321 = vunpack.c.l.b16 %v95
  %v322 = vunpack.c.h.b16 %v95
  %v323 = vunpack.c.l.b16 %v96
  %v324 = vunpack.c.h.b16 %v96
  %v325 = vunpack.c.l.b16 %v97
  %v326 = vunpack.c.h.b16 %v97
  %v327 = vunpack.c.l.b16 %v98
  %v328 = vunpack.c.h.b16 %v98
  %v329 = vunpack.c.l.b16 %v99
  %v330 = vunpack.c.h.b16 %v99
  %v331 = vunpack.c.l.b16 %v100
  %v332 = vunpack.c.h.b16 %v100
  %v333 = vunpack.c.l.b16 %v101
  %v334 = vunpack.c.h.b16 %v101
  %v335 = vunpack.c.l.b16 %v102
  %v336 = vunpack.c.h.b16 %v102
  %v337 = vunpack.c.l.b16 %v103
  %v338 = vunpack.c.h.b16 %v103
  %v339 = vunpack.c.l.b16 %v104
  %v340 = vunpack.c.h.b16 %v104
  %v341 = vunpack.c.l.b16 %v105
  %v342 = vunpack.c.h.b16 %v105
  %v343 = vunpack.c.l.b16 %v106
  %v344 = vunpack.c.h.b16 %v106
  %v345 = vunpack.c.l.b16 %v107
  %v346 = vunpack.c.h.b16 %v107
  %v347 = vunpack.c.l.b16 %v108
  %v348 = vunpack.c.h.b16 %v108
  %v349 = vunpack.c.l.b16 %v109
  %v350 = vunpack.c.h.b16 %v109
  %v351 = vunpack.c.l.b16 %v110
  %v352 = vunpack.c.h.b16 %v110
  %v353 = vunpack.c.l.b16 %v111
  %v354 = vunpack.c.h.b16 %v111
  %v355 = vunpack.c.l.b16 %v112
  %v356 = vunpack.c.h.b16 %v112
  %v357 = vunpack.c.l.b16 %v113
  %v358 = vunpack.c.h.b16 %v113
  %v359 = vunpack.c.l.b16 %v114
  %v360 = vunpack.c.h.b16 %v114
  %v361 = vunpack.c.l.b16 %v115
  %v362 = vunpack.c.h.b16 %v115
  %v363 = vunpack.c.l.b16 %v116
  %v364 = vunpack.c.h.b16 %v116
  %v365 = vunpack.c.l.b16 %v117
  %v366 = vunpack.c.h.b16 %v117
  %v367 = vunpack.c.l.b16 %v118
  %v368 = vunpack.c.h.b16 %v118
  %v369 = vunpack.c.l.b16 %v119
  %v370 = vunpack.c.h.b16 %v119
  %v371 = vunpack.c.l.b16 %v120
  %v372 = vunpack.c.h.b16 %v120
  %v373 = vunpack.c.l.b16 %v121
  %v374 = vunpack.c.h.b16 %v121
  %v375 = vunpack.c.l.b16 %v122
  %v376 = vunpack.c.h.b16 %v122
  %v377 = vunpack.c.l.b16 %v123
  %v378 = vunpack.c.h.b16 %v123
  %v379 = vunpack.c.l.b16 %v124
  %v380 = vunpack.c.h.b16 %v124
  %v381 = vunpack.c.l.b16 %v125
  %v382 = vunpack.c.h.b16 %v125
  %v383 = vunpack.c.l.b16 %v126
  %v384 = vunpack.c.h.b16 %v126
  %v385 = vunpack.c.l.b16 %v127
  %v386 = vunpack.c.h.b16 %v127
  %v387 = vunpack.c.l.b16 %v128
  %v388 = vunpack.c.h.b16 %v128
  %v389 = vunpack.c.l.b16 %v129
  %v390 = vunpack.c.h.b16 %v129
  %v391 = vunpack.c.l.b16 %v130
  %v392 = vunpack.c.h.b16 %v130
  %v393 = vunpack.c.l.b16 %v131
  %v394 = vunpack.c.h.b16 %v131
  %v395 = vunpack.c.l.b16 %v132
  %v396 = vunpack.c.h.b16 %v132
  %v397 = vunpack.c.l.b16 %v133
  %v398 = vunpack.c.h.b16 %v133
  %v399 = vunpack.c.l.b16 %v134
  %v400 = vunpack.c.h.b16 %v134
  %v401 = vunpack.c.l.b16 %v135
  %v402 = vunpack.c.h.b16 %v135
  %v403 = vunpack.c.l.b16 %v136
  %v404 = vunpack.c.h.b16 %v136
  %v405 = vunpack.c.l.b16 %v137
  %v406 = vunpack.c.h.b16 %v137
  %v407 = vunpack.c.l.b16 %v138
  %v408 = vunpack.c.h.b16 %v138
  %v409 = vunpack.c.l.b16 %v139
  %v410 = vunpack.c.h.b16 %v139
  %v411 = vunpack.c.l.b16 %v140
  %v412 = vunpack.c.h.b16 %v140
  %v413 = vunpack.c.l.b16 %v141
  %v414 = vunpack.c.h.b16 %v141
  %v415 = vunpack.c.l.b16 %v142
  %v416 = vunpack.c.h.b16 %v142
  %v417 = vunpack.c.l.b16 %v143
  %v418 = vunpack.c.h.b16 %v143
  %v419 = vpack.c.b16 %v293, %v291
  %v420 = vpack.c.b16 %v294, %v292
  %v421 = vpack.c.b16 %v297, %v295
  %v422 = vpack.c.b16 %v298, %v296
  %v423 = vpack.c.b16 %v301, %v299
  %v424 = vpack.c.b16 %v302, %v300
  %v425 = vpack.c.b16 %v305, %v303
  %v426 = vpack.c.b16 %v306, %v304
  %v427 = vpack.c.b16 %v309, %v307
  %v428 = vpack.c.b16 %v310, %v308
  %v429 = vpack.c.b16 %v313, %v311
  %v430 = vpack.c.b16 %v314, %v312
  %v431 = vpack.c.b16 %v317, %v315
  %v432 = vpack.c.b16 %v318, %v316
  %v433 = vpack.c.b16 %v321, %v319
  %v434 = vpack.c.b16 %v322, %v320
  %v435 = vpack.c.b16 %v325, %v323
  %v436 = vpack.c.b16 %v326, %v324
  %v437 = vpack.c.b16 %v329, %v327
  %v438 = vpack.c.b16 %v330, %v328
  %v439 = vpack.c.b16 %v333, %v331
  %v440 = vpack.c.b16 %v334, %v332
  %v441 = vpack.c.b16 %v337, %v335
  %v442 = vpack.c.b16 %v338, %v336
  %v443 = vpack.c.b16 %v341, %v339
  %v444 = vpack.c.b16 %v342, %v340
  %v445 = vpack.c.b16 %v345, %v343
  %v446 = vpack.c.b16 %v346, %v344
  %v447 = vpack.c.b16 %v349, %v347
  %v448 = vpack.c.b16 %v350, %v348
  %v449 = vpack.c.b16 %v353, %v351
  %v450 = vpack.c.b16 %v354, %v352
  %v451 = vpack.c.b16 %v357, %v355
  %v452 = vpack.c.b16 %v358, %v356
  %v453 = vpack.c.b16 %v361, %v359
  %v454 = vpack.c.b16 %v362, %v360
  %v455 = vpack.c.b16 %v365, %v363
  %v456 = vpack.c.b16 %v366, %v364
  %v457 = vpack.c.b16 %v369, %v367
  %v458 = vpack.c.b16 %v370, %v368
  %v459 = vpack.c.b16 %v373, %v371
  %v460 = vpack.c.b16 %v374, %v372
  %v461 = vpack.c.b16 %v377, %v375
  %v462 = vpack.c.b16 %v378, %v376
  %v463 = vpack.c.b16 %v381, %v379
  %v464 = vpack.c.b16 %v382, %v380
  %v465 = vpack.c.b16 %v385, %v383
  %v466 = vpack.c.b16 %v386, %v384
  %v467 = vpack.c.b16 %v389, %v387
  %v468 = vpack.c.b16 %v390, %v388
  %v469 = vpack.c.b16 %v393, %v391
  %v470 = vpack.c.b16 %v394, %v392
  %v471 = vpack.c.b16 %v397, %v395
  %v472 = vpack.c.b16 %v398, %v396
  %v473 = vpack.c.b16 %v401, %v399
  %v474 = vpack.c.b16 %v402, %v400
  %v475 = vpack.c.b16 %v405, %v403
  %v476 = vpack.c.b16 %v406, %v404
  %v477 = vpack.c.b16 %v409, %v407
  %v478 = vpack.c.b16 %v410, %v408
  %v479 = vpack.c.b16 %v413, %v411
  %v480 = vpack.c.b16 %v414, %v412
  %v481 = vpack.c.b16 %v417, %v415
  %v482 = vpack.c.b16 %v418, %v416
  %v534 = vunpack.c.l.b16 %v144
  %v535 = vunpack.c.l.b16 %v145
  %v536 = vunpack.c.l.b16 %v146
  %v537 = vunpack.c.l.b16 %v147
  %v538 = vunpack.c.l.b16 %v148
  %v539 = vunpack.c.l.b16 %v149
  %v540 = vunpack.c.l.b16 %v150
  %v541 = vunpack.c.l.b16 %v151
  %v542 = vunpack.c.l.b16 %v152
  %v543 = vunpack.c.l.b16 %v153
  %v544 = vunpack.c.l.b16 %v154
  %v545 = vunpack.c.l.b16 %v155
  %v546 = vunpack.c.l.b16 %v156
  %v547 = vunpack.c.l.b16 %v157
  %v548 = vunpack.c.l.b16 %v158
  %v549 = vunpack.c.l.b16 %v159
  %v550 = vunpack.c.l.b16 %v160
  %v551 = vunpack.c.l.b16 %v161
  %v552 = vunpack.c.l.b16 %v162
  %v553 = vpack.c.b16 %v535, %v534
  %v554 = vpack.c.b16 %v537, %v536
  %v555 = vpack.c.b16 %v539, %v538
  %v556 = vpack.c.b16 %v541, %v540
  %v557 = vpack.c.b16 %v543, %v542
  %v558 = vpack.c.b16 %v545, %v544
  %v559 = vpack.c.b16 %v547, %v546
  %v560 = vpack.c.b16 %v549, %v548
  %v561 = vpack.c.b16 %v551, %v550
  %v562 = vpack.c.b16 %v552, %v552
  %vm572 = vcmask 154624
  %v574 = vsel %vm572, %v420, 0
  %v577 = vsel %vm572, %v422, 0
  %v580 = vsel %vm572, %v424, 0
  %v583 = vsel %vm572, %v426, 0
  %v586 = vsel %vm572, %v428, 0
  %v589 = vsel %vm572, %v430, 0
  %v592 = vsel %vm572, %v432, 0
  %v595 = vsel %vm572, %v434, 0
  %v598 = vsel %vm572, %v436, 0
  %v601 = vsel %vm572, %v438, 0
  %v604 = vsel %vm572, %v440, 0
  %v607 = vsel %vm572, %v442, 0
  %v610 = vsel %vm572, %v444, 0
  %v613 = vsel %vm572, %v446, 0
  %v616 = vsel %vm572, %v448, 0
  %v619 = vsel %vm572, %v450, 0
  %v622 = vsel %vm572, %v452, 0
  %v625 = vsel %vm572, %v454, 0
  %v628 = vsel %vm572, %v456, 0
  %v631 = vsel %vm572, %v458, 0
  %v634 = vsel %vm572, %v460, 0
  %v637 = vsel %vm572, %v462, 0
  %v640 = vsel %vm572, %v464, 0
  %v643 = vsel %vm572, %v466, 0
  %v646 = vsel %vm572, %v468, 0
  %v649 = vsel %vm572, %v470, 0
  %v652 = vsel %vm572, %v472, 0
  %v655 = vsel %vm572, %v474, 0
  %v658 = vsel %vm572, %v476, 0
  %v661 = vsel %vm572, %v478, 0
  %v664 = vsel %vm572, %v480, 0
  %v667 = vsel %vm572, %v482, 0
  %vm669 = vcmask 1040384
  %vm670 = vcmask 1041408
  %v671 = vsel %vm669, 4294967295, 65535
  %v672 = vsel %vm670, %v671, 0
  %v674 = vand.u32 %v562, %v672
  %676 = vmatpush.bf16.msra.mxu0 %v560
  %677 = vmatpush.bf16.msra.mxu0 %v559
  %678 = vmatpush.bf16.msra.mxu0 %v558
  %679 = vmatpush.bf16.msra.mxu0 %v557
  %680 = vmatpush.bf16.msra.mxu0 %v556
  %681 = vmatpush.bf16.msra.mxu0 %v555
  %682 = vmatpush.bf16.msra.mxu0 %v554
  %683 = vmatpush.bf16.msra.mxu0 %v553
  %684 = vmatmul.bf16.gmra.mxu0 %v419
  %v685 = vpop.f32.mrf.mxu0
  %v686 = vadd.f32 0.0, %v685
  %v687 = vpop.f32.mrf.mxu0
  %v688 = vadd.f32 0.0, %v687
  %689 = vmatmul.bf16.gmra.mxu0 %v421
  %v690 = vpop.f32.mrf.mxu0
  %v691 = vadd.f32 0.0, %v690
  %v692 = vpop.f32.mrf.mxu0
  %v693 = vadd.f32 0.0, %v692
  %694 = vmatmul.bf16.gmra.mxu0 %v423
  %v695 = vpop.f32.mrf.mxu0
  %v696 = vadd.f32 0.0, %v695
  %v697 = vpop.f32.mrf.mxu0
  %v698 = vadd.f32 0.0, %v697
  %699 = vmatmul.bf16.gmra.mxu0 %v425
  %v700 = vpop.f32.mrf.mxu0
  %v701 = vadd.f32 0.0, %v700
  %v702 = vpop.f32.mrf.mxu0
  %v703 = vadd.f32 0.0, %v702
  %704 = vmatmul.bf16.gmra.mxu0 %v427
  %v705 = vpop.f32.mrf.mxu0
  %v706 = vadd.f32 0.0, %v705
  %v707 = vpop.f32.mrf.mxu0
  %v708 = vadd.f32 0.0, %v707
  %709 = vmatmul.bf16.gmra.mxu0 %v429
  %v710 = vpop.f32.mrf.mxu0
  %v711 = vadd.f32 0.0, %v710
  %v712 = vpop.f32.mrf.mxu0
  %v713 = vadd.f32 0.0, %v712
  %714 = vmatmul.bf16.gmra.mxu0 %v431
  %v715 = vpop.f32.mrf.mxu0
  %v716 = vadd.f32 0.0, %v715
  %v717 = vpop.f32.mrf.mxu0
  %v718 = vadd.f32 0.0, %v717
  %719 = vmatmul.bf16.gmra.mxu0 %v433
  %v720 = vpop.f32.mrf.mxu0
  %v721 = vadd.f32 0.0, %v720
  %v722 = vpop.f32.mrf.mxu0
  %v723 = vadd.f32 0.0, %v722
  %724 = vmatmul.bf16.gmra.mxu0 %v435
  %v725 = vpop.f32.mrf.mxu0
  %v726 = vadd.f32 0.0, %v725
  %v727 = vpop.f32.mrf.mxu0
  %v728 = vadd.f32 0.0, %v727
  %729 = vmatmul.bf16.gmra.mxu0 %v437
  %v730 = vpop.f32.mrf.mxu0
  %v731 = vadd.f32 0.0, %v730
  %v732 = vpop.f32.mrf.mxu0
  %v733 = vadd.f32 0.0, %v732
  %734 = vmatmul.bf16.gmra.mxu0 %v439
  %v735 = vpop.f32.mrf.mxu0
  %v736 = vadd.f32 0.0, %v735
  %v737 = vpop.f32.mrf.mxu0
  %v738 = vadd.f32 0.0, %v737
  %739 = vmatmul.bf16.gmra.mxu0 %v441
  %v740 = vpop.f32.mrf.mxu0
  %v741 = vadd.f32 0.0, %v740
  %v742 = vpop.f32.mrf.mxu0
  %v743 = vadd.f32 0.0, %v742
  %744 = vmatmul.bf16.gmra.mxu0 %v443
  %v745 = vpop.f32.mrf.mxu0
  %v746 = vadd.f32 0.0, %v745
  %v747 = vpop.f32.mrf.mxu0
  %v748 = vadd.f32 0.0, %v747
  %749 = vmatmul.bf16.gmra.mxu0 %v445
  %v750 = vpop.f32.mrf.mxu0
  %v751 = vadd.f32 0.0, %v750
  %v752 = vpop.f32.mrf.mxu0
  %v753 = vadd.f32 0.0, %v752
  %754 = vmatmul.bf16.gmra.mxu0 %v447
  %v755 = vpop.f32.mrf.mxu0
  %v756 = vadd.f32 0.0, %v755
  %v757 = vpop.f32.mrf.mxu0
  %v758 = vadd.f32 0.0, %v757
  %759 = vmatmul.bf16.gmra.mxu0 %v449
  %v760 = vpop.f32.mrf.mxu0
  %v761 = vadd.f32 0.0, %v760
  %v762 = vpop.f32.mrf.mxu0
  %v763 = vadd.f32 0.0, %v762
  %764 = vmatmul.bf16.gmra.mxu0 %v451
  %v765 = vpop.f32.mrf.mxu0
  %v766 = vadd.f32 0.0, %v765
  %v767 = vpop.f32.mrf.mxu0
  %v768 = vadd.f32 0.0, %v767
  %769 = vmatmul.bf16.gmra.mxu0 %v453
  %v770 = vpop.f32.mrf.mxu0
  %v771 = vadd.f32 0.0, %v770
  %v772 = vpop.f32.mrf.mxu0
  %v773 = vadd.f32 0.0, %v772
  %774 = vmatmul.bf16.gmra.mxu0 %v455
  %v775 = vpop.f32.mrf.mxu0
  %v776 = vadd.f32 0.0, %v775
  %v777 = vpop.f32.mrf.mxu0
  %v778 = vadd.f32 0.0, %v777
  %779 = vmatmul.bf16.gmra.mxu0 %v457
  %v780 = vpop.f32.mrf.mxu0
  %v781 = vadd.f32 0.0, %v780
  %v782 = vpop.f32.mrf.mxu0
  %v783 = vadd.f32 0.0, %v782
  %784 = vmatmul.bf16.gmra.mxu0 %v459
  %v785 = vpop.f32.mrf.mxu0
  %v786 = vadd.f32 0.0, %v785
  %v787 = vpop.f32.mrf.mxu0
  %v788 = vadd.f32 0.0, %v787
  %789 = vmatmul.bf16.gmra.mxu0 %v461
  %v790 = vpop.f32.mrf.mxu0
  %v791 = vadd.f32 0.0, %v790
  %v792 = vpop.f32.mrf.mxu0
  %v793 = vadd.f32 0.0, %v792
  %794 = vmatmul.bf16.gmra.mxu0 %v463
  %v795 = vpop.f32.mrf.mxu0
  %v796 = vadd.f32 0.0, %v795
  %v797 = vpop.f32.mrf.mxu0
  %v798 = vadd.f32 0.0, %v797
  %799 = vmatmul.bf16.gmra.mxu0 %v465
  %v800 = vpop.f32.mrf.mxu0
  %v801 = vadd.f32 0.0, %v800
  %v802 = vpop.f32.mrf.mxu0
  %v803 = vadd.f32 0.0, %v802
  %804 = vmatmul.bf16.gmra.mxu0 %v467
  %v805 = vpop.f32.mrf.mxu0
  %v806 = vadd.f32 0.0, %v805
  %v807 = vpop.f32.mrf.mxu0
  %v808 = vadd.f32 0.0, %v807
  %809 = vmatmul.bf16.gmra.mxu0 %v469
  %v810 = vpop.f32.mrf.mxu0
  %v811 = vadd.f32 0.0, %v810
  %v812 = vpop.f32.mrf.mxu0
  %v813 = vadd.f32 0.0, %v812
  %814 = vmatmul.bf16.gmra.mxu0 %v471
  %v815 = vpop.f32.mrf.mxu0
  %v816 = vadd.f32 0.0, %v815
  %v817 = vpop.f32.mrf.mxu0
  %v818 = vadd.f32 0.0, %v817
  %819 = vmatmul.bf16.gmra.mxu0 %v473
  %v820 = vpop.f32.mrf.mxu0
  %v821 = vadd.f32 0.0, %v820
  %v822 = vpop.f32.mrf.mxu0
  %v823 = vadd.f32 0.0, %v822
  %824 = vmatmul.bf16.gmra.mxu0 %v475
  %v825 = vpop.f32.mrf.mxu0
  %v826 = vadd.f32 0.0, %v825
  %v827 = vpop.f32.mrf.mxu0
  %v828 = vadd.f32 0.0, %v827
  %829 = vmatmul.bf16.gmra.mxu0 %v477
  %v830 = vpop.f32.mrf.mxu0
  %v831 = vadd.f32 0.0, %v830
  %v832 = vpop.f32.mrf.mxu0
  %v833 = vadd.f32 0.0, %v832
  %834 = vmatmul.bf16.gmra.mxu0 %v479
  %v835 = vpop.f32.mrf.mxu0
  %v836 = vadd.f32 0.0, %v835
  %v837 = vpop.f32.mrf.mxu0
  %v838 = vadd.f32 0.0, %v837
  %839 = vmatmul.bf16.gmra.mxu0 %v481
  %v840 = vpop.f32.mrf.mxu0
  %v841 = vadd.f32 0.0, %v840
  %v842 = vpop.f32.mrf.mxu0
  %v843 = vadd.f32 0.0, %v842
  %844 = vdwg.mxu0
  %845 = vmatpush.bf16.msra.mxu0 0
  %846 = vmatpush.bf16.msra.mxu0 0
  %847 = vmatpush.bf16.msra.mxu0 0
  %848 = vmatpush.bf16.msra.mxu0 0
  %849 = vmatpush.bf16.msra.mxu0 0
  %850 = vmatpush.bf16.msra.mxu0 0
  %851 = vmatpush.bf16.msra.mxu0 %v674
  %852 = vmatpush.bf16.msra.mxu0 %v561
  %853 = vmatmul.bf16.gmra.mxu0 %v574
  %v854 = vpop.f32.mrf.mxu0
  %v855 = vadd.f32 %v686, %v854
  %v856 = vpop.f32.mrf.mxu0
  %v857 = vadd.f32 %v688, %v856
  %858 = vmatmul.bf16.gmra.mxu0 %v577
  %v859 = vpop.f32.mrf.mxu0
  %v860 = vadd.f32 %v691, %v859
  %v861 = vpop.f32.mrf.mxu0
  %v862 = vadd.f32 %v693, %v861
  %863 = vmatmul.bf16.gmra.mxu0 %v580
  %v864 = vpop.f32.mrf.mxu0
  %v865 = vadd.f32 %v696, %v864
  %v866 = vpop.f32.mrf.mxu0
  %v867 = vadd.f32 %v698, %v866
  %868 = vmatmul.bf16.gmra.mxu0 %v583
  %v869 = vpop.f32.mrf.mxu0
  %v870 = vadd.f32 %v701, %v869
  %v871 = vpop.f32.mrf.mxu0
  %v872 = vadd.f32 %v703, %v871
  %873 = vmatmul.bf16.gmra.mxu0 %v586
  %v874 = vpop.f32.mrf.mxu0
  %v875 = vadd.f32 %v706, %v874
  %v876 = vpop.f32.mrf.mxu0
  %v877 = vadd.f32 %v708, %v876
  %878 = vmatmul.bf16.gmra.mxu0 %v589
  %v879 = vpop.f32.mrf.mxu0
  %v880 = vadd.f32 %v711, %v879
  %v881 = vpop.f32.mrf.mxu0
  %v882 = vadd.f32 %v713, %v881
  %883 = vmatmul.bf16.gmra.mxu0 %v592
  %v884 = vpop.f32.mrf.mxu0
  %v885 = vadd.f32 %v716, %v884
  %v886 = vpop.f32.mrf.mxu0
  %v887 = vadd.f32 %v718, %v886
  %888 = vmatmul.bf16.gmra.mxu0 %v595
  %v889 = vpop.f32.mrf.mxu0
  %v890 = vadd.f32 %v721, %v889
  %v891 = vpop.f32.mrf.mxu0
  %v892 = vadd.f32 %v723, %v891
  %893 = vmatmul.bf16.gmra.mxu0 %v598
  %v894 = vpop.f32.mrf.mxu0
  %v895 = vadd.f32 %v726, %v894
  %v896 = vpop.f32.mrf.mxu0
  %v897 = vadd.f32 %v728, %v896
  %898 = vmatmul.bf16.gmra.mxu0 %v601
  %v899 = vpop.f32.mrf.mxu0
  %v900 = vadd.f32 %v731, %v899
  %v901 = vpop.f32.mrf.mxu0
  %v902 = vadd.f32 %v733, %v901
  %903 = vmatmul.bf16.gmra.mxu0 %v604
  %v904 = vpop.f32.mrf.mxu0
  %v905 = vadd.f32 %v736, %v904
  %v906 = vpop.f32.mrf.mxu0
  %v907 = vadd.f32 %v738, %v906
  %908 = vmatmul.bf16.gmra.mxu0 %v607
  %v909 = vpop.f32.mrf.mxu0
  %v910 = vadd.f32 %v741, %v909
  %v911 = vpop.f32.mrf.mxu0
  %v912 = vadd.f32 %v743, %v911
  %913 = vmatmul.bf16.gmra.mxu0 %v610
  %v914 = vpop.f32.mrf.mxu0
  %v915 = vadd.f32 %v746, %v914
  %v916 = vpop.f32.mrf.mxu0
  %v917 = vadd.f32 %v748, %v916
  %918 = vmatmul.bf16.gmra.mxu0 %v613
  %v919 = vpop.f32.mrf.mxu0
  %v920 = vadd.f32 %v751, %v919
  %v921 = vpop.f32.mrf.mxu0
  %v922 = vadd.f32 %v753, %v921
  %923 = vmatmul.bf16.gmra.mxu0 %v616
  %v924 = vpop.f32.mrf.mxu0
  %v925 = vadd.f32 %v756, %v924
  %v926 = vpop.f32.mrf.mxu0
  %v927 = vadd.f32 %v758, %v926
  %928 = vmatmul.bf16.gmra.mxu0 %v619
  %v929 = vpop.f32.mrf.mxu0
  %v930 = vadd.f32 %v761, %v929
  %v931 = vpop.f32.mrf.mxu0
  %v932 = vadd.f32 %v763, %v931
  %933 = vmatmul.bf16.gmra.mxu0 %v622
  %v934 = vpop.f32.mrf.mxu0
  %v935 = vadd.f32 %v766, %v934
  %v936 = vpop.f32.mrf.mxu0
  %v937 = vadd.f32 %v768, %v936
  %938 = vmatmul.bf16.gmra.mxu0 %v625
  %v939 = vpop.f32.mrf.mxu0
  %v940 = vadd.f32 %v771, %v939
  %v941 = vpop.f32.mrf.mxu0
  %v942 = vadd.f32 %v773, %v941
  %943 = vmatmul.bf16.gmra.mxu0 %v628
  %v944 = vpop.f32.mrf.mxu0
  %v945 = vadd.f32 %v776, %v944
  %v946 = vpop.f32.mrf.mxu0
  %v947 = vadd.f32 %v778, %v946
  %948 = vmatmul.bf16.gmra.mxu0 %v631
  %v949 = vpop.f32.mrf.mxu0
  %v950 = vadd.f32 %v781, %v949
  %v951 = vpop.f32.mrf.mxu0
  %v952 = vadd.f32 %v783, %v951
  %953 = vmatmul.bf16.gmra.mxu0 %v634
  %v954 = vpop.f32.mrf.mxu0
  %v955 = vadd.f32 %v786, %v954
  %v956 = vpop.f32.mrf.mxu0
  %v957 = vadd.f32 %v788, %v956
  %958 = vmatmul.bf16.gmra.mxu0 %v637
  %v959 = vpop.f32.mrf.mxu0
  %v960 = vadd.f32 %v791, %v959
  %v961 = vpop.f32.mrf.mxu0
  %v962 = vadd.f32 %v793, %v961
  %963 = vmatmul.bf16.gmra.mxu0 %v640
  %v964 = vpop.f32.mrf.mxu0
  %v965 = vadd.f32 %v796, %v964
  %v966 = vpop.f32.mrf.mxu0
  %v967 = vadd.f32 %v798, %v966
  %968 = vmatmul.bf16.gmra.mxu0 %v643
  %v969 = vpop.f32.mrf.mxu0
  %v970 = vadd.f32 %v801, %v969
  %v971 = vpop.f32.mrf.mxu0
  %v972 = vadd.f32 %v803, %v971
  %973 = vmatmul.bf16.gmra.mxu0 %v646
  %v974 = vpop.f32.mrf.mxu0
  %v975 = vadd.f32 %v806, %v974
  %v976 = vpop.f32.mrf.mxu0
  %v977 = vadd.f32 %v808, %v976
  %978 = vmatmul.bf16.gmra.mxu0 %v649
  %v979 = vpop.f32.mrf.mxu0
  %v980 = vadd.f32 %v811, %v979
  %v981 = vpop.f32.mrf.mxu0
  %v982 = vadd.f32 %v813, %v981
  %983 = vmatmul.bf16.gmra.mxu0 %v652
  %v984 = vpop.f32.mrf.mxu0
  %v985 = vadd.f32 %v816, %v984
  %v986 = vpop.f32.mrf.mxu0
  %v987 = vadd.f32 %v818, %v986
  %988 = vmatmul.bf16.gmra.mxu0 %v655
  %v989 = vpop.f32.mrf.mxu0
  %v990 = vadd.f32 %v821, %v989
  %v991 = vpop.f32.mrf.mxu0
  %v992 = vadd.f32 %v823, %v991
  %993 = vmatmul.bf16.gmra.mxu0 %v658
  %v994 = vpop.f32.mrf.mxu0
  %v995 = vadd.f32 %v826, %v994
  %v996 = vpop.f32.mrf.mxu0
  %v997 = vadd.f32 %v828, %v996
  %998 = vmatmul.bf16.gmra.mxu0 %v661
  %v999 = vpop.f32.mrf.mxu0
  %v1000 = vadd.f32 %v831, %v999
  %v1001 = vpop.f32.mrf.mxu0
  %v1002 = vadd.f32 %v833, %v1001
  %1003 = vmatmul.bf16.gmra.mxu0 %v664
  %v1004 = vpop.f32.mrf.mxu0
  %v1005 = vadd.f32 %v836, %v1004
  %v1006 = vpop.f32.mrf.mxu0
  %v1007 = vadd.f32 %v838, %v1006
  %1008 = vmatmul.bf16.gmra.mxu0 %v667
  %v1009 = vpop.f32.mrf.mxu0
  %v1010 = vadd.f32 %v841, %v1009
  %v1011 = vpop.f32.mrf.mxu0
  %v1012 = vadd.f32 %v843, %v1011
  %1013 = vdwg.mxu0
  %v1014 = vadd.f32 %v163, %v855
  %v1015 = vadd.f32 %v164, %v857
  %v1016 = vadd.f32 %v165, %v860
  %v1017 = vadd.f32 %v166, %v862
  %v1018 = vadd.f32 %v167, %v865
  %v1019 = vadd.f32 %v168, %v867
  %v1020 = vadd.f32 %v169, %v870
  %v1021 = vadd.f32 %v170, %v872
  %v1022 = vadd.f32 %v171, %v875
  %v1023 = vadd.f32 %v172, %v877
  %v1024 = vadd.f32 %v173, %v880
  %v1025 = vadd.f32 %v174, %v882
  %v1026 = vadd.f32 %v175, %v885
  %v1027 = vadd.f32 %v176, %v887
  %v1028 = vadd.f32 %v177, %v890
  %v1029 = vadd.f32 %v178, %v892
  %v1030 = vadd.f32 %v179, %v895
  %v1031 = vadd.f32 %v180, %v897
  %v1032 = vadd.f32 %v181, %v900
  %v1033 = vadd.f32 %v182, %v902
  %v1034 = vadd.f32 %v183, %v905
  %v1035 = vadd.f32 %v184, %v907
  %v1036 = vadd.f32 %v185, %v910
  %v1037 = vadd.f32 %v186, %v912
  %v1038 = vadd.f32 %v187, %v915
  %v1039 = vadd.f32 %v188, %v917
  %v1040 = vadd.f32 %v189, %v920
  %v1041 = vadd.f32 %v190, %v922
  %v1042 = vadd.f32 %v191, %v925
  %v1043 = vadd.f32 %v192, %v927
  %v1044 = vadd.f32 %v193, %v930
  %v1045 = vadd.f32 %v194, %v932
  %v1046 = vadd.f32 %v195, %v935
  %v1047 = vadd.f32 %v196, %v937
  %v1048 = vadd.f32 %v197, %v940
  %v1049 = vadd.f32 %v198, %v942
  %v1050 = vadd.f32 %v199, %v945
  %v1051 = vadd.f32 %v200, %v947
  %v1052 = vadd.f32 %v201, %v950
  %v1053 = vadd.f32 %v202, %v952
  %v1054 = vadd.f32 %v203, %v955
  %v1055 = vadd.f32 %v204, %v957
  %v1056 = vadd.f32 %v205, %v960
  %v1057 = vadd.f32 %v206, %v962
  %v1058 = vadd.f32 %v207, %v965
  %v1059 = vadd.f32 %v208, %v967
  %v1060 = vadd.f32 %v209, %v970
  %v1061 = vadd.f32 %v210, %v972
  %v1062 = vadd.f32 %v211, %v975
  %v1063 = vadd.f32 %v212, %v977
  %v1064 = vadd.f32 %v213, %v980
  %v1065 = vadd.f32 %v214, %v982
  %v1066 = vadd.f32 %v215, %v985
  %v1067 = vadd.f32 %v216, %v987
  %v1068 = vadd.f32 %v217, %v990
  %v1069 = vadd.f32 %v218, %v992
  %v1070 = vadd.f32 %v219, %v995
  %v1071 = vadd.f32 %v220, %v997
  %v1072 = vadd.f32 %v221, %v1000
  %v1073 = vadd.f32 %v222, %v1002
  %v1074 = vadd.f32 %v223, %v1005
  %v1075 = vadd.f32 %v224, %v1007
  %v1076 = vadd.f32 %v225, %v1010
  %v1077 = vadd.f32 %v226, %v1012
  %1078 = vst [vmem:[#allocation2] sm:$0xff] %v1014
  %1079 = vst [vmem:[#allocation2 + $0x8] sm:$0xff] %v1015
  %1080 = vst [vmem:[#allocation2 + $0x10] sm:$0xff] %v1016
  %1081 = vst [vmem:[#allocation2 + $0x18] sm:$0xff] %v1017
  %1082 = vst [vmem:[#allocation2 + $0x20] sm:$0xff] %v1018
  %1083 = vst [vmem:[#allocation2 + $0x28] sm:$0xff] %v1019
  %1084 = vst [vmem:[#allocation2 + $0x30] sm:$0xff] %v1020
  %1085 = vst [vmem:[#allocation2 + $0x38] sm:$0xff] %v1021
  %1086 = vst [vmem:[#allocation2 + $0x40] sm:$0xff] %v1022
  %1087 = vst [vmem:[#allocation2 + $0x48] sm:$0xff] %v1023
  %1088 = vst [vmem:[#allocation2 + $0x50] sm:$0xff] %v1024
  %1089 = vst [vmem:[#allocation2 + $0x58] sm:$0xff] %v1025
  %1090 = vst [vmem:[#allocation2 + $0x60] sm:$0xff] %v1026
  %1091 = vst [vmem:[#allocation2 + $0x68] sm:$0xff] %v1027
  %1092 = vst [vmem:[#allocation2 + $0x70] sm:$0xff] %v1028
  %1093 = vst [vmem:[#allocation2 + $0x78] sm:$0xff] %v1029
  %1094 = vst [vmem:[#allocation2 + $0x80] sm:$0xff] %v1030
  %1095 = vst [vmem:[#allocation2 + $0x88] sm:$0xff] %v1031
  %1096 = vst [vmem:[#allocation2 + $0x90] sm:$0xff] %v1032
  %1097 = vst [vmem:[#allocation2 + $0x98] sm:$0xff] %v1033
  %1098 = vst [vmem:[#allocation2 + $0xa0] sm:$0xff] %v1034
  %1099 = vst [vmem:[#allocation2 + $0xa8] sm:$0xff] %v1035
  %1100 = vst [vmem:[#allocation2 + $0xb0] sm:$0xff] %v1036
  %1101 = vst [vmem:[#allocation2 + $0xb8] sm:$0xff] %v1037
  %1102 = vst [vmem:[#allocation2 + $0xc0] sm:$0xff] %v1038
  %1103 = vst [vmem:[#allocation2 + $0xc8] sm:$0xff] %v1039
  %1104 = vst [vmem:[#allocation2 + $0xd0] sm:$0xff] %v1040
  %1105 = vst [vmem:[#allocation2 + $0xd8] sm:$0xff] %v1041
  %1106 = vst [vmem:[#allocation2 + $0xe0] sm:$0xff] %v1042
  %1107 = vst [vmem:[#allocation2 + $0xe8] sm:$0xff] %v1043
  %1108 = vst [vmem:[#allocation2 + $0xf0] sm:$0xff] %v1044
  %1109 = vst [vmem:[#allocation2 + $0xf8] sm:$0xff] %v1045
  %1110 = vst [vmem:[#allocation2 + $0x100] sm:$0xff] %v1046
  %1111 = vst [vmem:[#allocation2 + $0x108] sm:$0xff] %v1047
  %1112 = vst [vmem:[#allocation2 + $0x110] sm:$0xff] %v1048
  %1113 = vst [vmem:[#allocation2 + $0x118] sm:$0xff] %v1049
  %1114 = vst [vmem:[#allocation2 + $0x120] sm:$0xff] %v1050
  %1115 = vst [vmem:[#allocation2 + $0x128] sm:$0xff] %v1051
  %1116 = vst [vmem:[#allocation2 + $0x130] sm:$0xff] %v1052
  %1117 = vst [vmem:[#allocation2 + $0x138] sm:$0xff] %v1053
  %1118 = vst [vmem:[#allocation2 + $0x140] sm:$0xff] %v1054
  %1119 = vst [vmem:[#allocation2 + $0x148] sm:$0xff] %v1055
  %1120 = vst [vmem:[#allocation2 + $0x150] sm:$0xff] %v1056
  %1121 = vst [vmem:[#allocation2 + $0x158] sm:$0xff] %v1057
  %1122 = vst [vmem:[#allocation2 + $0x160] sm:$0xff] %v1058
  %1123 = vst [vmem:[#allocation2 + $0x168] sm:$0xff] %v1059
  %1124 = vst [vmem:[#allocation2 + $0x170] sm:$0xff] %v1060
  %1125 = vst [vmem:[#allocation2 + $0x178] sm:$0xff] %v1061
  %1126 = vst [vmem:[#allocation2 + $0x180] sm:$0xff] %v1062
  %1127 = vst [vmem:[#allocation2 + $0x188] sm:$0xff] %v1063
  %1128 = vst [vmem:[#allocation2 + $0x190] sm:$0xff] %v1064
  %1129 = vst [vmem:[#allocation2 + $0x198] sm:$0xff] %v1065
  %1130 = vst [vmem:[#allocation2 + $0x1a0] sm:$0xff] %v1066
  %1131 = vst [vmem:[#allocation2 + $0x1a8] sm:$0xff] %v1067
  %1132 = vst [vmem:[#allocation2 + $0x1b0] sm:$0xff] %v1068
  %1133 = vst [vmem:[#allocation2 + $0x1b8] sm:$0xff] %v1069
  %1134 = vst [vmem:[#allocation2 + $0x1c0] sm:$0xff] %v1070
  %1135 = vst [vmem:[#allocation2 + $0x1c8] sm:$0xff] %v1071
  %1136 = vst [vmem:[#allocation2 + $0x1d0] sm:$0xff] %v1072
  %1137 = vst [vmem:[#allocation2 + $0x1d8] sm:$0xff] %v1073
  %1138 = vst [vmem:[#allocation2 + $0x1e0] sm:$0xff] %v1074
  %1139 = vst [vmem:[#allocation2 + $0x1e8] sm:$0xff] %v1075
  %1140 = vst [vmem:[#allocation2 + $0x1f0] sm:$0xff] %v1076
  %1141 = vst [vmem:[#allocation2 + $0x1f8] sm:$0xff] %v1077
  // Predicated region
  $region14: #{densenet_forward.13} parent=0 // pred_check
    %p1142 = pneg %p12
  $region15: #{densenet_forward.13} parent=0 // pred_check_branch
    %1144 = sbr.rel (%p1142) target = $region17
  $region16: #{densenet_forward.13} parent=0 // pred_region
    %v1145 = vld [vmem:[#allocation2] sm:$0xff]
    %v1146 = vld [vmem:[#allocation2 + $0x8] sm:$0xff]
    %v1147 = vld [vmem:[#allocation2 + $0x10] sm:$0xff]
    %v1148 = vld [vmem:[#allocation2 + $0x18] sm:$0xff]
    %v1149 = vld [vmem:[#allocation2 + $0x20] sm:$0xff]
    %v1150 = vld [vmem:[#allocation2 + $0x28] sm:$0xff]
    %v1151 = vld [vmem:[#allocation2 + $0x30] sm:$0xff]
    %v1152 = vld [vmem:[#allocation2 + $0x38] sm:$0xff]
    %v1153 = vld [vmem:[#allocation2 + $0x40] sm:$0xff]
    %v1154 = vld [vmem:[#allocation2 + $0x48] sm:$0xff]
    %v1155 = vld [vmem:[#allocation2 + $0x50] sm:$0xff]
    %v1156 = vld [vmem:[#allocation2 + $0x58] sm:$0xff]
    %v1157 = vld [vmem:[#allocation2 + $0x60] sm:$0xff]
    %v1158 = vld [vmem:[#allocation2 + $0x68] sm:$0xff]
    %v1159 = vld [vmem:[#allocation2 + $0x70] sm:$0xff]
    %v1160 = vld [vmem:[#allocation2 + $0x78] sm:$0xff]
    %v1161 = vld [vmem:[#allocation2 + $0x80] sm:$0xff]
    %v1162 = vld [vmem:[#allocation2 + $0x88] sm:$0xff]
    %v1163 = vld [vmem:[#allocation2 + $0x90] sm:$0xff]
    %v1164 = vld [vmem:[#allocation2 + $0x98] sm:$0xff]
    %v1165 = vld [vmem:[#allocation2 + $0xa0] sm:$0xff]
    %v1166 = vld [vmem:[#allocation2 + $0xa8] sm:$0xff]
    %v1167 = vld [vmem:[#allocation2 + $0xb0] sm:$0xff]
    %v1168 = vld [vmem:[#allocation2 + $0xb8] sm:$0xff]
    %v1169 = vld [vmem:[#allocation2 + $0xc0] sm:$0xff]
    %v1170 = vld [vmem:[#allocation2 + $0xc8] sm:$0xff]
    %v1171 = vld [vmem:[#allocation2 + $0xd0] sm:$0xff]
    %v1172 = vld [vmem:[#allocation2 + $0xd8] sm:$0xff]
    %v1173 = vld [vmem:[#allocation2 + $0xe0] sm:$0xff]
    %v1174 = vld [vmem:[#allocation2 + $0xe8] sm:$0xff]
    %v1175 = vld [vmem:[#allocation2 + $0xf0] sm:$0xff]
    %v1176 = vld [vmem:[#allocation2 + $0xf8] sm:$0xff]
    %v1177 = vld [vmem:[#allocation2 + $0x100] sm:$0xff]
    %v1178 = vld [vmem:[#allocation2 + $0x108] sm:$0xff]
    %v1179 = vld [vmem:[#allocation2 + $0x110] sm:$0xff]
    %v1180 = vld [vmem:[#allocation2 + $0x118] sm:$0xff]
    %v1181 = vld [vmem:[#allocation2 + $0x120] sm:$0xff]
    %v1182 = vld [vmem:[#allocation2 + $0x128] sm:$0xff]
    %v1183 = vld [vmem:[#allocation2 + $0x130] sm:$0xff]
    %v1184 = vld [vmem:[#allocation2 + $0x138] sm:$0xff]
    %v1185 = vld [vmem:[#allocation2 + $0x140] sm:$0xff]
    %v1186 = vld [vmem:[#allocation2 + $0x148] sm:$0xff]
    %v1187 = vld [vmem:[#allocation2 + $0x150] sm:$0xff]
    %v1188 = vld [vmem:[#allocation2 + $0x158] sm:$0xff]
    %v1189 = vld [vmem:[#allocation2 + $0x160] sm:$0xff]
    %v1190 = vld [vmem:[#allocation2 + $0x168] sm:$0xff]
    %v1191 = vld [vmem:[#allocation2 + $0x170] sm:$0xff]
    %v1192 = vld [vmem:[#allocation2 + $0x178] sm:$0xff]
    %v1193 = vld [vmem:[#allocation2 + $0x180] sm:$0xff]
    %v1194 = vld [vmem:[#allocation2 + $0x188] sm:$0xff]
    %v1195 = vld [vmem:[#allocation2 + $0x190] sm:$0xff]
    %v1196 = vld [vmem:[#allocation2 + $0x198] sm:$0xff]
    %v1197 = vld [vmem:[#allocation2 + $0x1a0] sm:$0xff]
    %v1198 = vld [vmem:[#allocation2 + $0x1a8] sm:$0xff]
    %v1199 = vld [vmem:[#allocation2 + $0x1b0] sm:$0xff]
    %v1200 = vld [vmem:[#allocation2 + $0x1b8] sm:$0xff]
    %v1201 = vld [vmem:[#allocation2 + $0x1c0] sm:$0xff]
    %v1202 = vld [vmem:[#allocation2 + $0x1c8] sm:$0xff]
    %v1203 = vld [vmem:[#allocation2 + $0x1d0] sm:$0xff]
    %v1204 = vld [vmem:[#allocation2 + $0x1d8] sm:$0xff]
    %v1205 = vld [vmem:[#allocation2 + $0x1e0] sm:$0xff]
    %v1206 = vld [vmem:[#allocation2 + $0x1e8] sm:$0xff]
    %v1207 = vld [vmem:[#allocation2 + $0x1f0] sm:$0xff]
    %v1208 = vld [vmem:[#allocation2 + $0x1f8] sm:$0xff]
    %v1209 = vpack.c.bf16 %v1145, %v1145
    %v1210 = vpack.c.bf16 %v1146, %v1146
    %v1211 = vpack.c.bf16 %v1147, %v1147
    %v1212 = vpack.c.bf16 %v1148, %v1148
    %v1213 = vpack.c.bf16 %v1149, %v1149
    %v1214 = vpack.c.bf16 %v1150, %v1150
    %v1215 = vpack.c.bf16 %v1151, %v1151
    %v1216 = vpack.c.bf16 %v1152, %v1152
    %v1217 = vpack.c.bf16 %v1153, %v1153
    %v1218 = vpack.c.bf16 %v1154, %v1154
    %v1219 = vpack.c.bf16 %v1155, %v1155
    %v1220 = vpack.c.bf16 %v1156, %v1156
    %v1221 = vpack.c.bf16 %v1157, %v1157
    %v1222 = vpack.c.bf16 %v1158, %v1158
    %v1223 = vpack.c.bf16 %v1159, %v1159
    %v1224 = vpack.c.bf16 %v1160, %v1160
    %v1225 = vpack.c.bf16 %v1161, %v1161
    %v1226 = vpack.c.bf16 %v1162, %v1162
    %v1227 = vpack.c.bf16 %v1163, %v1163
    %v1228 = vpack.c.bf16 %v1164, %v1164
    %v1229 = vpack.c.bf16 %v1165, %v1165
    %v1230 = vpack.c.bf16 %v1166, %v1166
    %v1231 = vpack.c.bf16 %v1167, %v1167
    %v1232 = vpack.c.bf16 %v1168, %v1168
    %v1233 = vpack.c.bf16 %v1169, %v1169
    %v1234 = vpack.c.bf16 %v1170, %v1170
    %v1235 = vpack.c.bf16 %v1171, %v1171
    %v1236 = vpack.c.bf16 %v1172, %v1172
    %v1237 = vpack.c.bf16 %v1173, %v1173
    %v1238 = vpack.c.bf16 %v1174, %v1174
    %v1239 = vpack.c.bf16 %v1175, %v1175
    %v1240 = vpack.c.bf16 %v1176, %v1176
    %v1241 = vpack.c.bf16 %v1177, %v1177
    %v1242 = vpack.c.bf16 %v1178, %v1178
    %v1243 = vpack.c.bf16 %v1179, %v1179
    %v1244 = vpack.c.bf16 %v1180, %v1180
    %v1245 = vpack.c.bf16 %v1181, %v1181
    %v1246 = vpack.c.bf16 %v1182, %v1182
    %v1247 = vpack.c.bf16 %v1183, %v1183
    %v1248 = vpack.c.bf16 %v1184, %v1184
    %v1249 = vpack.c.bf16 %v1185, %v1185
    %v1250 = vpack.c.bf16 %v1186, %v1186
    %v1251 = vpack.c.bf16 %v1187, %v1187
    %v1252 = vpack.c.bf16 %v1188, %v1188
    %v1253 = vpack.c.bf16 %v1189, %v1189
    %v1254 = vpack.c.bf16 %v1190, %v1190
    %v1255 = vpack.c.bf16 %v1191, %v1191
    %v1256 = vpack.c.bf16 %v1192, %v1192
    %v1257 = vpack.c.bf16 %v1193, %v1193
    %v1258 = vpack.c.bf16 %v1194, %v1194
    %v1259 = vpack.c.bf16 %v1195, %v1195
    %v1260 = vpack.c.bf16 %v1196, %v1196
    %v1261 = vpack.c.bf16 %v1197, %v1197
    %v1262 = vpack.c.bf16 %v1198, %v1198
    %v1263 = vpack.c.bf16 %v1199, %v1199
    %v1264 = vpack.c.bf16 %v1200, %v1200
    %v1265 = vpack.c.bf16 %v1201, %v1201
    %v1266 = vpack.c.bf16 %v1202, %v1202
    %v1267 = vpack.c.bf16 %v1203, %v1203
    %v1268 = vpack.c.bf16 %v1204, %v1204
    %v1269 = vpack.c.bf16 %v1205, %v1205
    %v1270 = vpack.c.bf16 %v1206, %v1206
    %v1271 = vpack.c.bf16 %v1207, %v1207
    %v1272 = vpack.c.bf16 %v1208, %v1208
    %1273 = vst [vmem:[%s2] sm:$0xf] %v1209
    %1274 = vst [vmem:[%s2 + $0x4] sm:$0xf] %v1210
    %1275 = vst [vmem:[%s2 + $0x8] sm:$0xf] %v1211
    %1276 = vst [vmem:[%s2 + $0xc] sm:$0xf] %v1212
    %1277 = vst [vmem:[%s2 + $0x10] sm:$0xf] %v1213
    %1278 = vst [vmem:[%s2 + $0x14] sm:$0xf] %v1214
    %1279 = vst [vmem:[%s2 + $0x18] sm:$0xf] %v1215
    %1280 = vst [vmem:[%s2 + $0x1c] sm:$0xf] %v1216
    %1281 = vst [vmem:[%s2 + $0x20] sm:$0xf] %v1217
    %1282 = vst [vmem:[%s2 + $0x24] sm:$0xf] %v1218
    %1283 = vst [vmem:[%s2 + $0x28] sm:$0xf] %v1219
    %1284 = vst [vmem:[%s2 + $0x2c] sm:$0xf] %v1220
    %1285 = vst [vmem:[%s2 + $0x30] sm:$0xf] %v1221
    %1286 = vst [vmem:[%s2 + $0x34] sm:$0xf] %v1222
    %1287 = vst [vmem:[%s2 + $0x38] sm:$0xf] %v1223
    %1288 = vst [vmem:[%s2 + $0x3c] sm:$0xf] %v1224
    %1289 = vst [vmem:[%s2 + $0x40] sm:$0xf] %v1225
    %1290 = vst [vmem:[%s2 + $0x44] sm:$0xf] %v1226
    %1291 = vst [vmem:[%s2 + $0x48] sm:$0xf] %v1227
    %1292 = vst [vmem:[%s2 + $0x4c] sm:$0xf] %v1228
    %1293 = vst [vmem:[%s2 + $0x50] sm:$0xf] %v1229
    %1294 = vst [vmem:[%s2 + $0x54] sm:$0xf] %v1230
    %1295 = vst [vmem:[%s2 + $0x58] sm:$0xf] %v1231
    %1296 = vst [vmem:[%s2 + $0x5c] sm:$0xf] %v1232
    %1297 = vst [vmem:[%s2 + $0x60] sm:$0xf] %v1233
    %1298 = vst [vmem:[%s2 + $0x64] sm:$0xf] %v1234
    %1299 = vst [vmem:[%s2 + $0x68] sm:$0xf] %v1235
    %1300 = vst [vmem:[%s2 + $0x6c] sm:$0xf] %v1236
    %1301 = vst [vmem:[%s2 + $0x70] sm:$0xf] %v1237
    %1302 = vst [vmem:[%s2 + $0x74] sm:$0xf] %v1238
    %1303 = vst [vmem:[%s2 + $0x78] sm:$0xf] %v1239
    %1304 = vst [vmem:[%s2 + $0x7c] sm:$0xf] %v1240
    %1305 = vst [vmem:[%s2 + $0x80] sm:$0xf] %v1241
    %1306 = vst [vmem:[%s2 + $0x84] sm:$0xf] %v1242
    %1307 = vst [vmem:[%s2 + $0x88] sm:$0xf] %v1243
    %1308 = vst [vmem:[%s2 + $0x8c] sm:$0xf] %v1244
    %1309 = vst [vmem:[%s2 + $0x90] sm:$0xf] %v1245
    %1310 = vst [vmem:[%s2 + $0x94] sm:$0xf] %v1246
    %1311 = vst [vmem:[%s2 + $0x98] sm:$0xf] %v1247
    %1312 = vst [vmem:[%s2 + $0x9c] sm:$0xf] %v1248
    %1313 = vst [vmem:[%s2 + $0xa0] sm:$0xf] %v1249
    %1314 = vst [vmem:[%s2 + $0xa4] sm:$0xf] %v1250
    %1315 = vst [vmem:[%s2 + $0xa8] sm:$0xf] %v1251
    %1316 = vst [vmem:[%s2 + $0xac] sm:$0xf] %v1252
    %1317 = vst [vmem:[%s2 + $0xb0] sm:$0xf] %v1253
    %1318 = vst [vmem:[%s2 + $0xb4] sm:$0xf] %v1254
    %1319 = vst [vmem:[%s2 + $0xb8] sm:$0xf] %v1255
    %1320 = vst [vmem:[%s2 + $0xbc] sm:$0xf] %v1256
    %1321 = vst [vmem:[%s2 + $0xc0] sm:$0xf] %v1257
    %1322 = vst [vmem:[%s2 + $0xc4] sm:$0xf] %v1258
    %1323 = vst [vmem:[%s2 + $0xc8] sm:$0xf] %v1259
    %1324 = vst [vmem:[%s2 + $0xcc] sm:$0xf] %v1260
    %1325 = vst [vmem:[%s2 + $0xd0] sm:$0xf] %v1261
    %1326 = vst [vmem:[%s2 + $0xd4] sm:$0xf] %v1262
    %1327 = vst [vmem:[%s2 + $0xd8] sm:$0xf] %v1263
    %1328 = vst [vmem:[%s2 + $0xdc] sm:$0xf] %v1264
    %1329 = vst [vmem:[%s2 + $0xe0] sm:$0xf] %v1265
    %1330 = vst [vmem:[%s2 + $0xe4] sm:$0xf] %v1266
    %1331 = vst [vmem:[%s2 + $0xe8] sm:$0xf] %v1267
    %1332 = vst [vmem:[%s2 + $0xec] sm:$0xf] %v1268
    %1333 = vst [vmem:[%s2 + $0xf0] sm:$0xf] %v1269
    %1334 = vst [vmem:[%s2 + $0xf4] sm:$0xf] %v1270
    %1335 = vst [vmem:[%s2 + $0xf8] sm:$0xf] %v1271
    %1336 = vst [vmem:[%s2 + $0xfc] sm:$0xf] %v1272
  $region17: #{densenet_forward.13} parent=0 // pred_fallthru
    _
  // Predicated region
  $region18: #{densenet_forward.13} parent=0 // pred_check
    _
  $region19: #{densenet_forward.13} parent=0 // pred_check_branch
    %1338 = sbr.rel (0) target = $region21
  $region20: #{densenet_forward.13} parent=0 // pred_region
    _
  $region21: #{densenet_forward.13} parent=0 // pred_fallthru
    _
  // Predicated region
  $region22: #{densenet_forward.13} parent=0 // pred_check
    _
  $region23: #{densenet_forward.13} parent=0 // pred_check_branch
    %1340 = sbr.rel (0) target = $region25
  $region24: #{densenet_forward.13} parent=0 // pred_region
    _
  $region25: #{densenet_forward.13} parent=0 // pred_fallthru
    _

// kernel: densenet_forward.15
$region0: #{densenet_forward.15}
  #allocation0 [shape = 'u32[]', space=smem, size = 0x4, offset = 0x4, fixed_abs, tag = 'smem constant byte address 0x4 - core index']
  #allocation1 [shape = 'u32[72,128]{1,0:T(1,128)}', space=vmem, size = 0x9000, scoped, tag = 'internal scratch']
  #allocation2 [shape = 'f32[128,128]{1,0:T(8,128)}', space=vmem, size = 0x10000, scoped, tag = 'scratch operand']
  %s0 = inlined_call_operand.vmem [shape: bf16[128,128], index: 0, kind: input, shape index: {}]
  %s1 = inlined_call_operand.vmem [shape: bf16[128,128], index: 1, kind: input, shape index: {}]
  %s2 = inlined_call_operand.vmem [shape: bf16[128,128], index: 2, kind: output, shape index: {}]
  %s3 = sld [smem:[#allocation0]]
  $region26: #{densenet_forward.15} parent=0
    _
  %s5 = ssub.s32 1, %s3
  %s6 = scalar_select 0, %s5, %s3
  // Predicated region
  $region2: #{densenet_forward.15} parent=0 // pred_check
    _
  $region3: #{densenet_forward.15} parent=0 // pred_check_branch
    %8 = sbr.rel (0) target = $region5
  $region4: #{densenet_forward.15} parent=0 // pred_region
    _
  $region5: #{densenet_forward.15} parent=0 // pred_fallthru
    _
  // Predicated region
  $region6: #{densenet_forward.15} parent=0 // pred_check
    _
  $region7: #{densenet_forward.15} parent=0 // pred_check_branch
    %10 = sbr.rel (0) target = $region9
  $region8: #{densenet_forward.15} parent=0 // pred_region
    _
  $region9: #{densenet_forward.15} parent=0 // pred_fallthru
    _
  %p11 = scmp.eq.s32.totalorder 0, 0
  // Predicated region
  $region10: #{densenet_forward.15} parent=0 // pred_check
    %p12 = pneg %p11
  $region11: #{densenet_forward.15} parent=0 // pred_check_branch
    %14 = sbr.rel (%p12) target = $region13
  $region12: #{densenet_forward.15} parent=0 // pred_region
    %15 = vst [vmem:[#allocation2] sm:$0xff] 0.0
    %16 = vst [vmem:[#allocation2 + $0x8] sm:$0xff] 0.0
    %17 = vst [vmem:[#allocation2 + $0x10] sm:$0xff] 0.0
    %18 = vst [vmem:[#allocation2 + $0x18] sm:$0xff] 0.0
    %19 = vst [vmem:[#allocation2 + $0x20] sm:$0xff] 0.0
    %20 = vst [vmem:[#allocation2 + $0x28] sm:$0xff] 0.0
    %21 = vst [vmem:[#allocation2 + $0x30] sm:$0xff] 0.0
    %22 = vst [vmem:[#allocation2 + $0x38] sm:$0xff] 0.0
    %23 = vst [vmem:[#allocation2 + $0x40] sm:$0xff] 0.0
    %24 = vst [vmem:[#allocation2 + $0x48] sm:$0xff] 0.0
    %25 = vst [vmem:[#allocation2 + $0x50] sm:$0xff] 0.0
    %26 = vst [vmem:[#allocation2 + $0x58] sm:$0xff] 0.0
    %27 = vst [vmem:[#allocation2 + $0x60] sm:$0xff] 0.0
    %28 = vst [vmem:[#allocation2 + $0x68] sm:$0xff] 0.0
    %29 = vst [vmem:[#allocation2 + $0x70] sm:$0xff] 0.0
    %30 = vst [vmem:[#allocation2 + $0x78] sm:$0xff] 0.0
  $region13: #{densenet_forward.15} parent=0 // pred_fallthru
    _
  %v31 = vld [vmem:[%s0] sm:$0xf]
  %v32 = vld [vmem:[%s0 + $0x4] sm:$0xf]
  %v33 = vld [vmem:[%s0 + $0x8] sm:$0xf]
  %v34 = vld [vmem:[%s0 + $0xc] sm:$0xf]
  %v35 = vld [vmem:[%s0 + $0x10] sm:$0xf]
  %v36 = vld [vmem:[%s0 + $0x14] sm:$0xf]
  %v37 = vld [vmem:[%s0 + $0x18] sm:$0xf]
  %v38 = vld [vmem:[%s0 + $0x1c] sm:$0xf]
  %v39 = vld [vmem:[%s0 + $0x20] sm:$0xf]
  %v40 = vld [vmem:[%s0 + $0x24] sm:$0xf]
  %v41 = vld [vmem:[%s0 + $0x28] sm:$0xf]
  %v42 = vld [vmem:[%s0 + $0x2c] sm:$0xf]
  %v43 = vld [vmem:[%s0 + $0x30] sm:$0xf]
  %v44 = vld [vmem:[%s0 + $0x34] sm:$0xf]
  %v45 = vld [vmem:[%s0 + $0x38] sm:$0xf]
  %v46 = vld [vmem:[%s0 + $0x3c] sm:$0xf]
  %v47 = vunpack.c.l.bf16 %v31
  %v48 = vunpack.c.l.bf16 %v32
  %v49 = vunpack.c.l.bf16 %v33
  %v50 = vunpack.c.l.bf16 %v34
  %v51 = vunpack.c.l.bf16 %v35
  %v52 = vunpack.c.l.bf16 %v36
  %v53 = vunpack.c.l.bf16 %v37
  %v54 = vunpack.c.l.bf16 %v38
  %v55 = vunpack.c.l.bf16 %v39
  %v56 = vunpack.c.l.bf16 %v40
  %v57 = vunpack.c.l.bf16 %v41
  %v58 = vunpack.c.l.bf16 %v42
  %v59 = vunpack.c.l.bf16 %v43
  %v60 = vunpack.c.l.bf16 %v44
  %v61 = vunpack.c.l.bf16 %v45
  %v62 = vunpack.c.l.bf16 %v46
  %v63 = vmax.f32 %v47, 0.0
  %v64 = vmax.f32 %v48, 0.0
  %v65 = vmax.f32 %v49, 0.0
  %v66 = vmax.f32 %v50, 0.0
  %v67 = vmax.f32 %v51, 0.0
  %v68 = vmax.f32 %v52, 0.0
  %v69 = vmax.f32 %v53, 0.0
  %v70 = vmax.f32 %v54, 0.0
  %v71 = vmax.f32 %v55, 0.0
  %v72 = vmax.f32 %v56, 0.0
  %v73 = vmax.f32 %v57, 0.0
  %v74 = vmax.f32 %v58, 0.0
  %v75 = vmax.f32 %v59, 0.0
  %v76 = vmax.f32 %v60, 0.0
  %v77 = vmax.f32 %v61, 0.0
  %v78 = vmax.f32 %v62, 0.0
  %v79 = vpack.c.bf16 %v64, %v63
  %v80 = vpack.c.bf16 %v66, %v65
  %v81 = vpack.c.bf16 %v68, %v67
  %v82 = vpack.c.bf16 %v70, %v69
  %v83 = vpack.c.bf16 %v72, %v71
  %v84 = vpack.c.bf16 %v74, %v73
  %v85 = vpack.c.bf16 %v76, %v75
  %v86 = vpack.c.bf16 %v78, %v77
  %s87 = smul.u32 0, 128
  %s88 = sshra.s32 %s87, 3
  %s89 = sand.u32 %s87, 7
  %s90 = smul.addr %s88, 4
  %s91 = scalar_lea.vmem %s1, %s90
  %v92 = vld [vmem:[%s91] sm:$0xf]
  %v93 = vld [vmem:[%s91 + $0x4] sm:$0xf]
  %v94 = vld [vmem:[%s91 + $0x8] sm:$0xf]
  %v95 = vld [vmem:[%s91 + $0xc] sm:$0xf]
  %v96 = vld [vmem:[%s91 + $0x10] sm:$0xf]
  %v97 = vld [vmem:[%s91 + $0x14] sm:$0xf]
  %v98 = vld [vmem:[%s91 + $0x18] sm:$0xf]
  %v99 = vld [vmem:[%s91 + $0x1c] sm:$0xf]
  %v100 = vld [vmem:[%s91 + $0x20] sm:$0xf]
  %v101 = vld [vmem:[%s91 + $0x24] sm:$0xf]
  %v102 = vld [vmem:[%s91 + $0x28] sm:$0xf]
  %v103 = vld [vmem:[%s91 + $0x2c] sm:$0xf]
  %v104 = vld [vmem:[%s91 + $0x30] sm:$0xf]
  %v105 = vld [vmem:[%s91 + $0x34] sm:$0xf]
  %v106 = vld [vmem:[%s91 + $0x38] sm:$0xf]
  %v107 = vld [vmem:[%s91 + $0x3c] sm:$0xf]
  %v108 = vld [vmem:[#allocation2] sm:$0xff]
  %v109 = vld [vmem:[#allocation2 + $0x8] sm:$0xff]
  %v110 = vld [vmem:[#allocation2 + $0x10] sm:$0xff]
  %v111 = vld [vmem:[#allocation2 + $0x18] sm:$0xff]
  %v112 = vld [vmem:[#allocation2 + $0x20] sm:$0xff]
  %v113 = vld [vmem:[#allocation2 + $0x28] sm:$0xff]
  %v114 = vld [vmem:[#allocation2 + $0x30] sm:$0xff]
  %v115 = vld [vmem:[#allocation2 + $0x38] sm:$0xff]
  %v116 = vld [vmem:[#allocation2 + $0x40] sm:$0xff]
  %v117 = vld [vmem:[#allocation2 + $0x48] sm:$0xff]
  %v118 = vld [vmem:[#allocation2 + $0x50] sm:$0xff]
  %v119 = vld [vmem:[#allocation2 + $0x58] sm:$0xff]
  %v120 = vld [vmem:[#allocation2 + $0x60] sm:$0xff]
  %v121 = vld [vmem:[#allocation2 + $0x68] sm:$0xff]
  %v122 = vld [vmem:[#allocation2 + $0x70] sm:$0xff]
  %v123 = vld [vmem:[#allocation2 + $0x78] sm:$0xff]
  %v140 = vunpack.c.l.b16 %v92
  %v141 = vunpack.c.l.b16 %v93
  %v142 = vunpack.c.l.b16 %v94
  %v143 = vunpack.c.l.b16 %v95
  %v144 = vunpack.c.l.b16 %v96
  %v145 = vunpack.c.l.b16 %v97
  %v146 = vunpack.c.l.b16 %v98
  %v147 = vunpack.c.l.b16 %v99
  %v148 = vunpack.c.l.b16 %v100
  %v149 = vunpack.c.l.b16 %v101
  %v150 = vunpack.c.l.b16 %v102
  %v151 = vunpack.c.l.b16 %v103
  %v152 = vunpack.c.l.b16 %v104
  %v153 = vunpack.c.l.b16 %v105
  %v154 = vunpack.c.l.b16 %v106
  %v155 = vunpack.c.l.b16 %v107
  %v156 = vpack.c.b16 %v141, %v140
  %v157 = vpack.c.b16 %v143, %v142
  %v158 = vpack.c.b16 %v145, %v144
  %v159 = vpack.c.b16 %v147, %v146
  %v160 = vpack.c.b16 %v149, %v148
  %v161 = vpack.c.b16 %v151, %v150
  %v162 = vpack.c.b16 %v153, %v152
  %v163 = vpack.c.b16 %v155, %v154
  %172 = vmatpush.bf16.msra.mxu0 %v163
  %173 = vmatpush.bf16.msra.mxu0 %v162
  %174 = vmatpush.bf16.msra.mxu0 %v161
  %175 = vmatpush.bf16.msra.mxu0 %v160
  %176 = vmatpush.bf16.msra.mxu0 %v159
  %177 = vmatpush.bf16.msra.mxu0 %v158
  %178 = vmatpush.bf16.msra.mxu0 %v157
  %179 = vmatpush.bf16.msra.mxu0 %v156
  %180 = vmatmul.bf16.gmra.mxu0 %v79
  %v181 = vpop.f32.mrf.mxu0
  %v182 = vadd.f32 0.0, %v181
  %v183 = vpop.f32.mrf.mxu0
  %v184 = vadd.f32 0.0, %v183
  %185 = vmatmul.bf16.gmra.mxu0 %v80
  %v186 = vpop.f32.mrf.mxu0
  %v187 = vadd.f32 0.0, %v186
  %v188 = vpop.f32.mrf.mxu0
  %v189 = vadd.f32 0.0, %v188
  %190 = vmatmul.bf16.gmra.mxu0 %v81
  %v191 = vpop.f32.mrf.mxu0
  %v192 = vadd.f32 0.0, %v191
  %v193 = vpop.f32.mrf.mxu0
  %v194 = vadd.f32 0.0, %v193
  %195 = vmatmul.bf16.gmra.mxu0 %v82
  %v196 = vpop.f32.mrf.mxu0
  %v197 = vadd.f32 0.0, %v196
  %v198 = vpop.f32.mrf.mxu0
  %v199 = vadd.f32 0.0, %v198
  %200 = vmatmul.bf16.gmra.mxu0 %v83
  %v201 = vpop.f32.mrf.mxu0
  %v202 = vadd.f32 0.0, %v201
  %v203 = vpop.f32.mrf.mxu0
  %v204 = vadd.f32 0.0, %v203
  %205 = vmatmul.bf16.gmra.mxu0 %v84
  %v206 = vpop.f32.mrf.mxu0
  %v207 = vadd.f32 0.0, %v206
  %v208 = vpop.f32.mrf.mxu0
  %v209 = vadd.f32 0.0, %v208
  %210 = vmatmul.bf16.gmra.mxu0 %v85
  %v211 = vpop.f32.mrf.mxu0
  %v212 = vadd.f32 0.0, %v211
  %v213 = vpop.f32.mrf.mxu0
  %v214 = vadd.f32 0.0, %v213
  %215 = vmatmul.bf16.gmra.mxu0 %v86
  %v216 = vpop.f32.mrf.mxu0
  %v217 = vadd.f32 0.0, %v216
  %v218 = vpop.f32.mrf.mxu0
  %v219 = vadd.f32 0.0, %v218
  %220 = vdwg.mxu0
  %v221 = vadd.f32 %v108, %v182
  %v222 = vadd.f32 %v109, %v184
  %v223 = vadd.f32 %v110, %v187
  %v224 = vadd.f32 %v111, %v189
  %v225 = vadd.f32 %v112, %v192
  %v226 = vadd.f32 %v113, %v194
  %v227 = vadd.f32 %v114, %v197
  %v228 = vadd.f32 %v115, %v199
  %v229 = vadd.f32 %v116, %v202
  %v230 = vadd.f32 %v117, %v204
  %v231 = vadd.f32 %v118, %v207
  %v232 = vadd.f32 %v119, %v209
  %v233 = vadd.f32 %v120, %v212
  %v234 = vadd.f32 %v121, %v214
  %v235 = vadd.f32 %v122, %v217
  %v236 = vadd.f32 %v123, %v219
  %237 = vst [vmem:[#allocation2] sm:$0xff] %v221
  %238 = vst [vmem:[#allocation2 + $0x8] sm:$0xff] %v222
  %239 = vst [vmem:[#allocation2 + $0x10] sm:$0xff] %v223
  %240 = vst [vmem:[#allocation2 + $0x18] sm:$0xff] %v224
  %241 = vst [vmem:[#allocation2 + $0x20] sm:$0xff] %v225
  %242 = vst [vmem:[#allocation2 + $0x28] sm:$0xff] %v226
  %243 = vst [vmem:[#allocation2 + $0x30] sm:$0xff] %v227
  %244 = vst [vmem:[#allocation2 + $0x38] sm:$0xff] %v228
  %245 = vst [vmem:[#allocation2 + $0x40] sm:$0xff] %v229
  %246 = vst [vmem:[#allocation2 + $0x48] sm:$0xff] %v230
  %247 = vst [vmem:[#allocation2 + $0x50] sm:$0xff] %v231
  %248 = vst [vmem:[#allocation2 + $0x58] sm:$0xff] %v232
  %249 = vst [vmem:[#allocation2 + $0x60] sm:$0xff] %v233
  %250 = vst [vmem:[#allocation2 + $0x68] sm:$0xff] %v234
  %251 = vst [vmem:[#allocation2 + $0x70] sm:$0xff] %v235
  %252 = vst [vmem:[#allocation2 + $0x78] sm:$0xff] %v236
  // Predicated region
  $region14: #{densenet_forward.15} parent=0 // pred_check
    %p253 = pneg %p11
  $region15: #{densenet_forward.15} parent=0 // pred_check_branch
    %255 = sbr.rel (%p253) target = $region17
  $region16: #{densenet_forward.15} parent=0 // pred_region
    %v256 = vld [vmem:[#allocation2] sm:$0xff]
    %v257 = vld [vmem:[#allocation2 + $0x8] sm:$0xff]
    %v258 = vld [vmem:[#allocation2 + $0x10] sm:$0xff]
    %v259 = vld [vmem:[#allocation2 + $0x18] sm:$0xff]
    %v260 = vld [vmem:[#allocation2 + $0x20] sm:$0xff]
    %v261 = vld [vmem:[#allocation2 + $0x28] sm:$0xff]
    %v262 = vld [vmem:[#allocation2 + $0x30] sm:$0xff]
    %v263 = vld [vmem:[#allocation2 + $0x38] sm:$0xff]
    %v264 = vld [vmem:[#allocation2 + $0x40] sm:$0xff]
    %v265 = vld [vmem:[#allocation2 + $0x48] sm:$0xff]
    %v266 = vld [vmem:[#allocation2 + $0x50] sm:$0xff]
    %v267 = vld [vmem:[#allocation2 + $0x58] sm:$0xff]
    %v268 = vld [vmem:[#allocation2 + $0x60] sm:$0xff]
    %v269 = vld [vmem:[#allocation2 + $0x68] sm:$0xff]
    %v270 = vld [vmem:[#allocation2 + $0x70] sm:$0xff]
    %v271 = vld [vmem:[#allocation2 + $0x78] sm:$0xff]
    %v272 = vpack.c.bf16 %v256, %v256
    %v273 = vpack.c.bf16 %v257, %v257
    %v274 = vpack.c.bf16 %v258, %v258
    %v275 = vpack.c.bf16 %v259, %v259
    %v276 = vpack.c.bf16 %v260, %v260
    %v277 = vpack.c.bf16 %v261, %v261
    %v278 = vpack.c.bf16 %v262, %v262
    %v279 = vpack.c.bf16 %v263, %v263
    %v280 = vpack.c.bf16 %v264, %v264
    %v281 = vpack.c.bf16 %v265, %v265
    %v282 = vpack.c.bf16 %v266, %v266
    %v283 = vpack.c.bf16 %v267, %v267
    %v284 = vpack.c.bf16 %v268, %v268
    %v285 = vpack.c.bf16 %v269, %v269
    %v286 = vpack.c.bf16 %v270, %v270
    %v287 = vpack.c.bf16 %v271, %v271
    %288 = vst [vmem:[%s2] sm:$0xf] %v272
    %289 = vst [vmem:[%s2 + $0x4] sm:$0xf] %v273
    %290 = vst [vmem:[%s2 + $0x8] sm:$0xf] %v274
    %291 = vst [vmem:[%s2 + $0xc] sm:$0xf] %v275
    %292 = vst [vmem:[%s2 + $0x10] sm:$0xf] %v276
    %293 = vst [vmem:[%s2 + $0x14] sm:$0xf] %v277
    %294 = vst [vmem:[%s2 + $0x18] sm:$0xf] %v278
    %295 = vst [vmem:[%s2 + $0x1c] sm:$0xf] %v279
    %296 = vst [vmem:[%s2 + $0x20] sm:$0xf] %v280
    %297 = vst [vmem:[%s2 + $0x24] sm:$0xf] %v281
    %298 = vst [vmem:[%s2 + $0x28] sm:$0xf] %v282
    %299 = vst [vmem:[%s2 + $0x2c] sm:$0xf] %v283
    %300 = vst [vmem:[%s2 + $0x30] sm:$0xf] %v284
    %301 = vst [vmem:[%s2 + $0x34] sm:$0xf] %v285
    %302 = vst [vmem:[%s2 + $0x38] sm:$0xf] %v286
    %303 = vst [vmem:[%s2 + $0x3c] sm:$0xf] %v287
  $region17: #{densenet_forward.15} parent=0 // pred_fallthru
    _
  // Predicated region
  $region18: #{densenet_forward.15} parent=0 // pred_check
    _
  $region19: #{densenet_forward.15} parent=0 // pred_check_branch
    %305 = sbr.rel (0) target = $region21
  $region20: #{densenet_forward.15} parent=0 // pred_region
    _
  $region21: #{densenet_forward.15} parent=0 // pred_fallthru
    _
  // Predicated region
  $region22: #{densenet_forward.15} parent=0 // pred_check
    _
  $region23: #{densenet_forward.15} parent=0 // pred_check_branch
    %307 = sbr.rel (0) target = $region25
  $region24: #{densenet_forward.15} parent=0 // pred_region
    _
  $region25: #{densenet_forward.15} parent=0 // pred_fallthru
    _

// kernel: densenet_forward.19
$region0: #{densenet_forward.19}
  #allocation0 [shape = 'u32[]', space=smem, size = 0x4, offset = 0x4, fixed_abs, tag = 'smem constant byte address 0x4 - core index']
  #allocation1 [shape = 'u32[72,128]{1,0:T(1,128)}', space=vmem, size = 0x9000, scoped, tag = 'internal scratch']
  %s0 = inlined_call_operand.vmem [shape: bf16[4,32,128], index: 0, kind: input, shape index: {}]
  %s1 = inlined_call_operand.vmem [shape: bf16[32,128], index: 1, kind: output, shape index: {}]
  %s2 = sld [smem:[#allocation0]]
  $region14: #{densenet_forward.19} parent=0
    _
  %s4 = ssub.s32 1, %s2
  %s5 = scalar_select 0, %s4, %s2
  // Predicated region
  $region2: #{densenet_forward.19} parent=0 // pred_check
    _
  $region3: #{densenet_forward.19} parent=0 // pred_check_branch
    %7 = sbr.rel (0) target = $region5
  $region4: #{densenet_forward.19} parent=0 // pred_region
    _
  $region5: #{densenet_forward.19} parent=0 // pred_fallthru
    _
  %v8 = vld [vmem:[%s0] sm:$0xf]
  %v9 = vld [vmem:[%s0 + $0x4] sm:$0xf]
  %v10 = vld [vmem:[%s0 + $0x8] sm:$0xf]
  %v11 = vld [vmem:[%s0 + $0xc] sm:$0xf]
  %v12 = vld [vmem:[%s0 + $0x10] sm:$0xf]
  %v13 = vld [vmem:[%s0 + $0x14] sm:$0xf]
  %v14 = vld [vmem:[%s0 + $0x18] sm:$0xf]
  %v15 = vld [vmem:[%s0 + $0x1c] sm:$0xf]
  %v16 = vld [vmem:[%s0 + $0x20] sm:$0xf]
  %v17 = vld [vmem:[%s0 + $0x24] sm:$0xf]
  %v18 = vld [vmem:[%s0 + $0x28] sm:$0xf]
  %v19 = vld [vmem:[%s0 + $0x2c] sm:$0xf]
  %v20 = vld [vmem:[%s0 + $0x30] sm:$0xf]
  %v21 = vld [vmem:[%s0 + $0x34] sm:$0xf]
  %v22 = vld [vmem:[%s0 + $0x38] sm:$0xf]
  %v23 = vld [vmem:[%s0 + $0x3c] sm:$0xf]
  %v24 = vunpack.c.l.bf16 %v8
  %v25 = vunpack.c.l.bf16 %v9
  %v26 = vunpack.c.l.bf16 %v10
  %v27 = vunpack.c.l.bf16 %v11
  %v28 = vunpack.c.l.bf16 %v12
  %v29 = vunpack.c.l.bf16 %v13
  %v30 = vunpack.c.l.bf16 %v14
  %v31 = vunpack.c.l.bf16 %v15
  %v32 = vunpack.c.l.bf16 %v16
  %v33 = vunpack.c.l.bf16 %v17
  %v34 = vunpack.c.l.bf16 %v18
  %v35 = vunpack.c.l.bf16 %v19
  %v36 = vunpack.c.l.bf16 %v20
  %v37 = vunpack.c.l.bf16 %v21
  %v38 = vunpack.c.l.bf16 %v22
  %v39 = vunpack.c.l.bf16 %v23
  %v40 = vmax.f32 %v24, 0.0
  %v41 = vmax.f32 %v25, 0.0
  %v42 = vmax.f32 %v26, 0.0
  %v43 = vmax.f32 %v27, 0.0
  %v44 = vmax.f32 %v28, 0.0
  %v45 = vmax.f32 %v29, 0.0
  %v46 = vmax.f32 %v30, 0.0
  %v47 = vmax.f32 %v31, 0.0
  %v48 = vmax.f32 %v32, 0.0
  %v49 = vmax.f32 %v33, 0.0
  %v50 = vmax.f32 %v34, 0.0
  %v51 = vmax.f32 %v35, 0.0
  %v52 = vmax.f32 %v36, 0.0
  %v53 = vmax.f32 %v37, 0.0
  %v54 = vmax.f32 %v38, 0.0
  %v55 = vmax.f32 %v39, 0.0
  %v56 = vpack.c.bf16 %v40, %v40
  %v57 = vpack.c.bf16 %v41, %v41
  %v58 = vpack.c.bf16 %v42, %v42
  %v59 = vpack.c.bf16 %v43, %v43
  %v60 = vpack.c.bf16 %v44, %v44
  %v61 = vpack.c.bf16 %v45, %v45
  %v62 = vpack.c.bf16 %v46, %v46
  %v63 = vpack.c.bf16 %v47, %v47
  %v64 = vpack.c.bf16 %v48, %v48
  %v65 = vpack.c.bf16 %v49, %v49
  %v66 = vpack.c.bf16 %v50, %v50
  %v67 = vpack.c.bf16 %v51, %v51
  %v68 = vpack.c.bf16 %v52, %v52
  %v69 = vpack.c.bf16 %v53, %v53
  %v70 = vpack.c.bf16 %v54, %v54
  %v71 = vpack.c.bf16 %v55, %v55
  %v72 = vunpack.c.l.bf16 %v56
  %v73 = vunpack.c.l.bf16 %v57
  %v74 = vunpack.c.l.bf16 %v58
  %v75 = vunpack.c.l.bf16 %v59
  %v76 = vunpack.c.l.bf16 %v60
  %v77 = vunpack.c.l.bf16 %v61
  %v78 = vunpack.c.l.bf16 %v62
  %v79 = vunpack.c.l.bf16 %v63
  %v80 = vadd.f32 %v72, %v76
  %v81 = vadd.f32 %v73, %v77
  %v82 = vadd.f32 %v74, %v78
  %v83 = vadd.f32 %v75, %v79
  %v84 = vpack.c.bf16 %v80, %v80
  %v85 = vpack.c.bf16 %v81, %v81
  %v86 = vpack.c.bf16 %v82, %v82
  %v87 = vpack.c.bf16 %v83, %v83
  %v88 = vunpack.c.l.bf16 %v64
  %v89 = vunpack.c.l.bf16 %v65
  %v90 = vunpack.c.l.bf16 %v66
  %v91 = vunpack.c.l.bf16 %v67
  %v92 = vunpack.c.l.bf16 %v68
  %v93 = vunpack.c.l.bf16 %v69
  %v94 = vunpack.c.l.bf16 %v70
  %v95 = vunpack.c.l.bf16 %v71
  %v96 = vadd.f32 %v88, %v92
  %v97 = vadd.f32 %v89, %v93
  %v98 = vadd.f32 %v90, %v94
  %v99 = vadd.f32 %v91, %v95
  %v100 = vpack.c.bf16 %v96, %v96
  %v101 = vpack.c.bf16 %v97, %v97
  %v102 = vpack.c.bf16 %v98, %v98
  %v103 = vpack.c.bf16 %v99, %v99
  %v104 = vunpack.c.l.bf16 %v84
  %v105 = vunpack.c.l.bf16 %v85
  %v106 = vunpack.c.l.bf16 %v86
  %v107 = vunpack.c.l.bf16 %v87
  %v108 = vunpack.c.l.bf16 %v100
  %v109 = vunpack.c.l.bf16 %v101
  %v110 = vunpack.c.l.bf16 %v102
  %v111 = vunpack.c.l.bf16 %v103
  %v112 = vadd.f32 %v104, %v108
  %v113 = vadd.f32 %v105, %v109
  %v114 = vadd.f32 %v106, %v110
  %v115 = vadd.f32 %v107, %v111
  %v116 = vpack.c.bf16 %v112, %v112
  %v117 = vpack.c.bf16 %v113, %v113
  %v118 = vpack.c.bf16 %v114, %v114
  %v119 = vpack.c.bf16 %v115, %v115
  %v120 = vunpack.c.l.bf16 %v116
  %v121 = vunpack.c.l.bf16 %v117
  %v122 = vunpack.c.l.bf16 %v118
  %v123 = vunpack.c.l.bf16 %v119
  %v124 = vmul.f32 %v120, 0.25
  %v125 = vmul.f32 %v121, 0.25
  %v126 = vmul.f32 %v122, 0.25
  %v127 = vmul.f32 %v123, 0.25
  %v128 = vpack.c.bf16 %v124, %v124
  %v129 = vpack.c.bf16 %v125, %v125
  %v130 = vpack.c.bf16 %v126, %v126
  %v131 = vpack.c.bf16 %v127, %v127
  %132 = vst [vmem:[%s1] sm:$0xf] %v128
  %133 = vst [vmem:[%s1 + $0x4] sm:$0xf] %v129
  %134 = vst [vmem:[%s1 + $0x8] sm:$0xf] %v130
  %135 = vst [vmem:[%s1 + $0xc] sm:$0xf] %v131
  // Predicated region
  $region6: #{densenet_forward.19} parent=0 // pred_check
    _
  $region7: #{densenet_forward.19} parent=0 // pred_check_branch
    %137 = sbr.rel (0) target = $region9
  $region8: #{densenet_forward.19} parent=0 // pred_region
    _
  $region9: #{densenet_forward.19} parent=0 // pred_fallthru
    _
  // Predicated region
  $region10: #{densenet_forward.19} parent=0 // pred_check
    _
  $region11: #{densenet_forward.19} parent=0 // pred_check_branch
    %139 = sbr.rel (0) target = $region13
  $region12: #{densenet_forward.19} parent=0 // pred_region
    _
  $region13: #{densenet_forward.19} parent=0 // pred_fallthru
    _

// kernel: densenet_forward.16
$region0: #{densenet_forward.16}
  #allocation0 [shape = 'u32[]', space=smem, size = 0x4, offset = 0x4, fixed_abs, tag = 'smem constant byte address 0x4 - core index']
  #allocation1 [shape = 'u32[72,128]{1,0:T(1,128)}', space=vmem, size = 0x9000, scoped, tag = 'internal scratch']
  #allocation2 [shape = 'f32[80,128]{1,0:T(8,128)}', space=vmem, size = 0xa000, scoped, tag = 'scratch operand']
  %s0 = inlined_call_operand.vmem [shape: bf16[2,110,128], index: 0, kind: input, shape index: {}]
  %s1 = inlined_call_operand.vmem [shape: bf16[1152,128], index: 1, kind: input, shape index: {}]
  %s2 = inlined_call_operand.vmem [shape: bf16[2,80,128], index: 2, kind: output, shape index: {}]
  %s3 = sld [smem:[#allocation0]]
  $region41: #{densenet_forward.16} parent=0
    _
  %s5 = ssub.s32 1, %s3
  %s6 = scalar_select 0, %s5, %s3
  loop: start=0, step=1, limit=4
  $region2: #{densenet_forward.16} parent=0 // loop_pre_header
    _
  $region3: #{densenet_forward.16} parent=0 // loop_header
    %s8 = sphi 0, %s12
    %p9 = scmp.ge.s32.totalorder %s8, 4
    %s18 = sphi 0, %s20
    %s21 = sphi 0, %s18
    %s22 = sphi 0, %s21
    %s38 = sphi 0, %s22
    %s42 = sphi 0, %s42
    %s44 = sphi 0, %s42
    %s45 = sphi 0, %s44
    %s59 = sphi 0, %s45
    %s65 = sphi 0, %s67
    %s68 = sphi 0, %s65
    %s69 = sphi 0, %s68
    %s85 = sphi 0, %s69
  $region4: #{densenet_forward.16} parent=0 // loop_header_branch
    %11 = sbr.rel (%p9) target = $region8
  $region5: #{densenet_forward.16} parent=0 // loop_body
    %s13 = ssub.s32 %s8, 1
    %s14 = ssub.s32 %s8, 2
    %s15 = sadd.s32 %s8, 1
    %s16 = ssub.s32 %s8, %s15
    %p17 = scmp.eq.s32.totalorder %s16, 0
    %s19 = sadd.s32 %s18, 1
    %s20 = scalar_select %p17, %s18, %s19
    %p23 = pneg %p17
    %p24 = scmp.eq.s32.totalorder %s8, 1
    %p25 = por %p23, %p24
    %p26 = scmp.ne.s32.totalorder %s18, %s21
    %p27 = scmp.eq.s32.totalorder %s8, 0
    %p28 = por %p26, %p27
    %p29 = scmp.ne.s32.totalorder %s18, %s21
    %p30 = scmp.eq.s32.totalorder %s13, 1
    %p31 = por %p29, %p30
    %p32 = scmp.ne.s32.totalorder %s21, %s22
    %p33 = scmp.eq.s32.totalorder %s13, 0
    %p34 = por %p32, %p33
    %p35 = scmp.ne.s32.totalorder %s21, %s22
    %p36 = scmp.eq.s32.totalorder %s14, 1
    %p37 = por %p35, %p36
    %p39 = scmp.ne.s32.totalorder %s22, %s38
    %p40 = scmp.eq.s32.totalorder %s14, 0
    %p41 = por %p39, %p40
    %s43 = sadd.s32 %s42, 1
    %p46 = scmp.eq.s32.totalorder %s8, 1
    %p47 = scmp.ne.s32.totalorder %s42, %s44
    %p48 = scmp.eq.s32.totalorder %s8, 0
    %p49 = por %p47, %p48
    %p50 = scmp.ne.s32.totalorder %s42, %s44
    %p51 = scmp.eq.s32.totalorder %s13, 1
    %p52 = por %p50, %p51
    %p53 = scmp.ne.s32.totalorder %s44, %s45
    %p54 = scmp.eq.s32.totalorder %s13, 0
    %p55 = por %p53, %p54
    %p56 = scmp.ne.s32.totalorder %s44, %s45
    %p57 = scmp.eq.s32.totalorder %s14, 1
    %p58 = por %p56, %p57
    %p60 = scmp.ne.s32.totalorder %s45, %s59
    %p61 = scmp.eq.s32.totalorder %s14, 0
    %p62 = por %p60, %p61
    %s63 = ssub.s32 %s8, %s15
    %p64 = scmp.eq.s32.totalorder %s63, 0
    %s66 = sadd.s32 %s65, 1
    %s67 = scalar_select %p64, %s65, %s66
    %p70 = pneg %p64
    %p71 = scmp.eq.s32.totalorder %s8, 1
    %p72 = por %p70, %p71
    %p73 = scmp.ne.s32.totalorder %s65, %s68
    %p74 = scmp.eq.s32.totalorder %s8, 0
    %p75 = por %p73, %p74
    %p76 = scmp.ne.s32.totalorder %s65, %s68
    %p77 = scmp.eq.s32.totalorder %s13, 1
    %p78 = por %p76, %p77
    %p79 = scmp.ne.s32.totalorder %s68, %s69
    %p80 = scmp.eq.s32.totalorder %s13, 0
    %p81 = por %p79, %p80
    %p82 = scmp.ne.s32.totalorder %s68, %s69
    %p83 = scmp.eq.s32.totalorder %s14, 1
    %p84 = por %p82, %p83
    %p86 = scmp.ne.s32.totalorder %s69, %s85
    %p87 = scmp.eq.s32.totalorder %s14, 0
    %p88 = por %p86, %p87
    %p89 = scmp.le.s32.totalorder 1, %s8
    %p90 = scmp.lt.s32.totalorder %s8, 3
    %p91 = pnand %p89, %p90
    %p92 = pneg %p91
    // Predicated region
    $region9: #{densenet_forward.16} parent=5 // pred_check
      _
    $region10: #{densenet_forward.16} parent=5 // pred_check_branch
      %94 = sbr.rel (%p91) target = $region12
    $region11: #{densenet_forward.16} parent=5 // pred_region
      %s95 = ssub.s32 %s8, 1
      // Predicated region
      $region13: #{densenet_forward.16} parent=11 // pred_check
        %p96 = pneg %p55
      $region14: #{densenet_forward.16} parent=11 // pred_check_branch
        %98 = sbr.rel (%p96) target = $region16
      $region15: #{densenet_forward.16} parent=11 // pred_region
        _
      $region16: #{densenet_forward.16} parent=11 // pred_fallthru
        _
    $region12: #{densenet_forward.16} parent=5 // pred_fallthru
      _
    %p99 = scmp.lt.s32.totalorder %s8, 2
    // Predicated region
    $region17: #{densenet_forward.16} parent=5 // pred_check
      %p100 = pneg %p99
    $region18: #{densenet_forward.16} parent=5 // pred_check_branch
      %102 = sbr.rel (%p100) target = $region20
    $region19: #{densenet_forward.16} parent=5 // pred_region
      // Predicated region
      $region21: #{densenet_forward.16} parent=19 // pred_check
        %p103 = pneg %p28
      $region22: #{densenet_forward.16} parent=19 // pred_check_branch
        %105 = sbr.rel (%p103) target = $region24
      $region23: #{densenet_forward.16} parent=19 // pred_region
        %p106 = scmp.lt.s32.totalorder %s8, 1
        %s107 = scalar_select %p106, %s8, 1
        %s108 = smul.addr %s107, 14
        %s109 = smul.addr %s108, 4
        %s110 = scalar_lea.vmem %s0, %s109
      $region24: #{densenet_forward.16} parent=19 // pred_fallthru
        _
    $region20: #{densenet_forward.16} parent=5 // pred_fallthru
      _
    %p111 = scmp.le.s32.totalorder 1, %s8
    %p112 = scmp.lt.s32.totalorder %s8, 3
    %p113 = pnand %p111, %p112
    %p114 = pneg %p113
    // Predicated region
    $region25: #{densenet_forward.16} parent=5 // pred_check
      _
    $region26: #{densenet_forward.16} parent=5 // pred_check_branch
      %116 = sbr.rel (%p113) target = $region28
    $region27: #{densenet_forward.16} parent=5 // pred_region
      %s117 = ssub.s32 %s8, 1
      %p118 = scmp.lt.s32.totalorder %s13, 1
      %s119 = scalar_select %p118, %s13, 1
      %s120 = smul.addr %s119, 14
      %s121 = smul.addr %s120, 4
      %s122 = scalar_lea.vmem %s0, %s121
      %p123 = pneg %p34
      %p124 = pneg %p31
      %p125 = pneg %p55
      %p126 = pneg %p52
      %p127 = pneg %p81
      %p128 = pneg %p78
      %p129 = scmp.lt.s32.totalorder %s13, 1
      %s130 = scalar_select %p129, %s13, 1
      %s131 = smul.addr %s130, 10
      %s132 = smul.addr %s131, 4
      %s133 = scalar_lea.vmem %s2, %s132
      %p134 = scmp.lt.s32.totalorder %s13, 1
      %s135 = scalar_select %p134, %s13, 1
      %s136 = smul.addr %s135, 14
      %s137 = smul.addr %s136, 4
      %s138 = scalar_lea.vmem %s0, %s137
      %p139 = scmp.lt.s32.totalorder %s13, 1
      %s140 = scalar_select %p139, %s13, 1
      %s141 = smul.addr %s140, 10
      %s142 = smul.addr %s141, 4
      %s143 = scalar_lea.vmem %s2, %s142
      %v144 = vld [vmem:[%s138] sm:$0xf]
      %v145 = vld [vmem:[%s138 + $0x4] sm:$0xf]
      %v146 = vld [vmem:[%s138 + $0x8] sm:$0xf]
      %v147 = vld [vmem:[%s138 + $0xc] sm:$0xf]
      %v148 = vld [vmem:[%s138 + $0x10] sm:$0xf]
      %v149 = vld [vmem:[%s138 + $0x14] sm:$0xf]
      %v150 = vld [vmem:[%s138 + $0x18] sm:$0xf]
      %v151 = vld [vmem:[%s138 + $0x1c] sm:$0xf]
      %v152 = vld [vmem:[%s138 + $0x20] sm:$0xf]
      %v153 = vld [vmem:[%s138 + $0x24] sm:$0xf]
      %v154 = vunpack.c.l.bf16 %v144
      %v155 = vunpack.c.l.bf16 %v145
      %v156 = vunpack.c.l.bf16 %v146
      %v157 = vunpack.c.l.bf16 %v147
      %v158 = vunpack.c.l.bf16 %v148
      %v159 = vunpack.c.l.bf16 %v149
      %v160 = vunpack.c.l.bf16 %v150
      %v161 = vunpack.c.l.bf16 %v151
      %v162 = vunpack.c.l.bf16 %v152
      %v163 = vunpack.c.l.bf16 %v153
      %v164 = vmax.f32 %v154, 0.0
      %v165 = vmax.f32 %v155, 0.0
      %v166 = vmax.f32 %v156, 0.0
      %v167 = vmax.f32 %v157, 0.0
      %v168 = vmax.f32 %v158, 0.0
      %v169 = vmax.f32 %v159, 0.0
      %v170 = vmax.f32 %v160, 0.0
      %v171 = vmax.f32 %v161, 0.0
      %v172 = vmax.f32 %v162, 0.0
      %v173 = vmax.f32 %v163, 0.0
      %v174 = vpack.c.bf16 %v165, %v164
      %v175 = vpack.c.bf16 %v167, %v166
      %v176 = vpack.c.bf16 %v169, %v168
      %v177 = vpack.c.bf16 %v171, %v170
      %v178 = vpack.c.bf16 %v173, %v172
      %v179 = vld [vmem:[%s1] sm:$0xf]
      %v180 = vld [vmem:[%s1 + $0x4] sm:$0xf]
      %v181 = vld [vmem:[%s1 + $0x8] sm:$0xf]
      %v182 = vld [vmem:[%s1 + $0xc] sm:$0xf]
      %v183 = vld [vmem:[%s1 + $0x10] sm:$0xf]
      %v184 = vld [vmem:[%s1 + $0x14] sm:$0xf]
      %v185 = vld [vmem:[%s1 + $0x18] sm:$0xf]
      %v186 = vld [vmem:[%s1 + $0x1c] sm:$0xf]
      %v187 = vld [vmem:[%s1 + $0x20] sm:$0xf]
      %v188 = vld [vmem:[%s1 + $0x24] sm:$0xf]
      %v189 = vld [vmem:[%s1 + $0x28] sm:$0xf]
      %v190 = vld [vmem:[%s1 + $0x2c] sm:$0xf]
      %v191 = vld [vmem:[%s1 + $0x30] sm:$0xf]
      %v192 = vld [vmem:[%s1 + $0x34] sm:$0xf]
      %v193 = vld [vmem:[%s1 + $0x38] sm:$0xf]
      %v194 = vld [vmem:[%s1 + $0x3c] sm:$0xf]
      %v211 = vunpack.c.l.b16 %v179
      %v212 = vunpack.c.l.b16 %v180
      %v213 = vunpack.c.l.b16 %v181
      %v214 = vunpack.c.l.b16 %v182
      %v215 = vunpack.c.l.b16 %v183
      %v216 = vunpack.c.l.b16 %v184
      %v217 = vunpack.c.l.b16 %v185
      %v218 = vunpack.c.l.b16 %v186
      %v219 = vunpack.c.l.b16 %v187
      %v220 = vunpack.c.l.b16 %v188
      %v221 = vunpack.c.l.b16 %v189
      %v222 = vunpack.c.l.b16 %v190
      %v223 = vunpack.c.l.b16 %v191
      %v224 = vunpack.c.l.b16 %v192
      %v225 = vunpack.c.l.b16 %v193
      %v226 = vunpack.c.l.b16 %v194
      %v227 = vpack.c.b16 %v212, %v211
      %v228 = vpack.c.b16 %v214, %v213
      %v229 = vpack.c.b16 %v216, %v215
      %v230 = vpack.c.b16 %v218, %v217
      %v231 = vpack.c.b16 %v220, %v219
      %v232 = vpack.c.b16 %v222, %v221
      %v233 = vpack.c.b16 %v224, %v223
      %v234 = vpack.c.b16 %v226, %v225
      %243 = vmatpush.bf16.msra.mxu0 %v234
      %244 = vmatpush.bf16.msra.mxu0 %v233
      %245 = vmatpush.bf16.msra.mxu0 %v232
      %246 = vmatpush.bf16.msra.mxu0 %v231
      %247 = vmatpush.bf16.msra.mxu0 %v230
      %248 = vmatpush.bf16.msra.mxu0 %v229
      %249 = vmatpush.bf16.msra.mxu0 %v228
      %250 = vmatpush.bf16.msra.mxu0 %v227
      %251 = vmatmul.bf16.gmra.mxu0 %v174
      %v252 = vpop.f32.mrf.mxu0
      %v253 = vadd.f32 0.0, %v252
      %v254 = vpop.f32.mrf.mxu0
      %v255 = vadd.f32 0.0, %v254
      %256 = vmatmul.bf16.gmra.mxu0 %v175
      %v257 = vpop.f32.mrf.mxu0
      %v258 = vadd.f32 0.0, %v257
      %v259 = vpop.f32.mrf.mxu0
      %v260 = vadd.f32 0.0, %v259
      %261 = vmatmul.bf16.gmra.mxu0 %v176
      %v262 = vpop.f32.mrf.mxu0
      %v263 = vadd.f32 0.0, %v262
      %v264 = vpop.f32.mrf.mxu0
      %v265 = vadd.f32 0.0, %v264
      %266 = vmatmul.bf16.gmra.mxu0 %v177
      %v267 = vpop.f32.mrf.mxu0
      %v268 = vadd.f32 0.0, %v267
      %v269 = vpop.f32.mrf.mxu0
      %v270 = vadd.f32 0.0, %v269
      %271 = vmatmul.bf16.gmra.mxu0 %v178
      %v272 = vpop.f32.mrf.mxu0
      %v273 = vadd.f32 0.0, %v272
      %v274 = vpop.f32.mrf.mxu0
      %v275 = vadd.f32 0.0, %v274
      %276 = vdwg.mxu0
      %277 = vst [vmem:[#allocation2] sm:$0xff] %v253
      %278 = vst [vmem:[#allocation2 + $0x8] sm:$0xff] %v255
      %279 = vst [vmem:[#allocation2 + $0x10] sm:$0xff] %v258
      %280 = vst [vmem:[#allocation2 + $0x18] sm:$0xff] %v260
      %281 = vst [vmem:[#allocation2 + $0x20] sm:$0xff] %v263
      %282 = vst [vmem:[#allocation2 + $0x28] sm:$0xff] %v265
      %283 = vst [vmem:[#allocation2 + $0x30] sm:$0xff] %v268
      %284 = vst [vmem:[#allocation2 + $0x38] sm:$0xff] %v270
      %285 = vst [vmem:[#allocation2 + $0x40] sm:$0xff] %v273
      %286 = vst [vmem:[#allocation2 + $0x48] sm:$0xff] %v275
      %v287 = vld [vmem:[%s138] sm:$0xf]
      %v288 = vld [vmem:[%s138 + $0x4] sm:$0xf]
      %v289 = vld [vmem:[%s138 + $0x8] sm:$0xf]
      %v290 = vld [vmem:[%s138 + $0xc] sm:$0xf]
      %v291 = vld [vmem:[%s138 + $0x10] sm:$0xf]
      %v292 = vld [vmem:[%s138 + $0x14] sm:$0xf]
      %v293 = vld [vmem:[%s138 + $0x18] sm:$0xf]
      %v294 = vld [vmem:[%s138 + $0x1c] sm:$0xf]
      %v295 = vld [vmem:[%s138 + $0x20] sm:$0xf]
      %v296 = vld [vmem:[%s138 + $0x24] sm:$0xf]
      %v297 = vld [vmem:[%s138 + $0x28] sm:$0x1]
      %v298 = vunpack.c.l.bf16 %v287
      %v299 = vunpack.c.l.bf16 %v288
      %v300 = vunpack.c.l.bf16 %v289
      %v301 = vunpack.c.l.bf16 %v290
      %v302 = vunpack.c.l.bf16 %v291
      %v303 = vunpack.c.l.bf16 %v292
      %v304 = vunpack.c.l.bf16 %v293
      %v305 = vunpack.c.l.bf16 %v294
      %v306 = vunpack.c.l.bf16 %v295
      %v307 = vunpack.c.l.bf16 %v296
      %v308 = vunpack.c.l.bf16 %v297
      %v309 = vmax.f32 %v298, 0.0
      %v310 = vmax.f32 %v299, 0.0
      %v311 = vmax.f32 %v300, 0.0
      %v312 = vmax.f32 %v301, 0.0
      %v313 = vmax.f32 %v302, 0.0
      %v314 = vmax.f32 %v303, 0.0
      %v315 = vmax.f32 %v304, 0.0
      %v316 = vmax.f32 %v305, 0.0
      %v317 = vmax.f32 %v306, 0.0
      %v318 = vmax.f32 %v307, 0.0
      %v319 = vmax.f32 %v308, 0.0
      %v320 = vpack.c.bf16 %v310, %v309
      %v321 = vpack.c.bf16 %v312, %v311
      %v322 = vpack.c.bf16 %v314, %v313
      %v323 = vpack.c.bf16 %v316, %v315
      %v324 = vpack.c.bf16 %v318, %v317
      %v325 = vpack.c.bf16 %v319, %v319
      %v326 = vld [vmem:[%s1 + $0x40] sm:$0xf]
      %v327 = vld [vmem:[%s1 + $0x44] sm:$0xf]
      %v328 = vld [vmem:[%s1 + $0x48] sm:$0xf]
      %v329 = vld [vmem:[%s1 + $0x4c] sm:$0xf]
      %v330 = vld [vmem:[%s1 + $0x50] sm:$0xf]
      %v331 = vld [vmem:[%s1 + $0x54] sm:$0xf]
      %v332 = vld [vmem:[%s1 + $0x58] sm:$0xf]
      %v333 = vld [vmem:[%s1 + $0x5c] sm:$0xf]
      %v334 = vld [vmem:[%s1 + $0x60] sm:$0xf]
      %v335 = vld [vmem:[%s1 + $0x64] sm:$0xf]
      %v336 = vld [vmem:[%s1 + $0x68] sm:$0xf]
      %v337 = vld [vmem:[%s1 + $0x6c] sm:$0xf]
      %v338 = vld [vmem:[%s1 + $0x70] sm:$0xf]
      %v339 = vld [vmem:[%s1 + $0x74] sm:$0xf]
      %v340 = vld [vmem:[%s1 + $0x78] sm:$0xf]
      %v341 = vld [vmem:[%s1 + $0x7c] sm:$0xf]
      %vm342 = vsmask.f32 7424
      %v344 = vshrl.u32 %v320, 16
      %v346 = vshll.u32 %v320, 16
      %v348 = vrot.slane %v346, 1
      %v349 = vor.u32 %v344, %v348
      %v351 = vshll.u32 %v321, 16
      %v353 = vrot.slane %v351, 1
      %v354 = vsel %vm342, %v349, %v353
      %v355 = vshrl.u32 %v321, 16
      %v357 = vor.u32 %v355, %v353
      %v359 = vshll.u32 %v322, 16
      %v361 = vrot.slane %v359, 1
      %v362 = vsel %vm342, %v357, %v361
      %v363 = vshrl.u32 %v322, 16
      %v365 = vor.u32 %v363, %v361
      %v367 = vshll.u32 %v323, 16
      %v369 = vrot.slane %v367, 1
      %v370 = vsel %vm342, %v365, %v369
      %v371 = vshrl.u32 %v323, 16
      %v373 = vor.u32 %v371, %v369
      %v375 = vshll.u32 %v324, 16
      %v377 = vrot.slane %v375, 1
      %v378 = vsel %vm342, %v373, %v377
      %v379 = vshrl.u32 %v324, 16
      %v381 = vor.u32 %v379, %v377
      %v383 = vshll.u32 %v325, 16
      %v385 = vrot.slane %v383, 1
      %v386 = vsel %vm342, %v381, %v385
      %v408 = vunpack.c.l.b16 %v326
      %v409 = vunpack.c.l.b16 %v327
      %v410 = vunpack.c.l.b16 %v328
      %v411 = vunpack.c.l.b16 %v329
      %v412 = vunpack.c.l.b16 %v330
      %v413 = vunpack.c.l.b16 %v331
      %v414 = vunpack.c.l.b16 %v332
      %v415 = vunpack.c.l.b16 %v333
      %v416 = vunpack.c.l.b16 %v334
      %v417 = vunpack.c.l.b16 %v335
      %v418 = vunpack.c.l.b16 %v336
      %v419 = vunpack.c.l.b16 %v337
      %v420 = vunpack.c.l.b16 %v338
      %v421 = vunpack.c.l.b16 %v339
      %v422 = vunpack.c.l.b16 %v340
      %v423 = vunpack.c.l.b16 %v341
      %v424 = vpack.c.b16 %v409, %v408
      %v425 = vpack.c.b16 %v411, %v410
      %v426 = vpack.c.b16 %v413, %v412
      %v427 = vpack.c.b16 %v415, %v414
      %v428 = vpack.c.b16 %v417, %v416
      %v429 = vpack.c.b16 %v419, %v418
      %v430 = vpack.c.b16 %v421, %v420
      %v431 = vpack.c.b16 %v423, %v422
      %440 = vmatpush.bf16.msra.mxu0 %v431
      %441 = vmatpush.bf16.msra.mxu0 %v430
      %442 = vmatpush.bf16.msra.mxu0 %v429
      %443 = vmatpush.bf16.msra.mxu0 %v428
      %444 = vmatpush.bf16.msra.mxu0 %v427
      %445 = vmatpush.bf16.msra.mxu0 %v426
      %446 = vmatpush.bf16.msra.mxu0 %v425
      %447 = vmatpush.bf16.msra.mxu0 %v424
      %448 = vmatmul.bf16.gmra.mxu0 %v354
      %v449 = vpop.f32.mrf.mxu0
      %v450 = vadd.f32 0.0, %v449
      %v451 = vpop.f32.mrf.mxu0
      %v452 = vadd.f32 0.0, %v451
      %453 = vmatmul.bf16.gmra.mxu0 %v362
      %v454 = vpop.f32.mrf.mxu0
      %v455 = vadd.f32 0.0, %v454
      %v456 = vpop.f32.mrf.mxu0
      %v457 = vadd.f32 0.0, %v456
      %458 = vmatmul.bf16.gmra.mxu0 %v370
      %v459 = vpop.f32.mrf.mxu0
      %v460 = vadd.f32 0.0, %v459
      %v461 = vpop.f32.mrf.mxu0
      %v462 = vadd.f32 0.0, %v461
      %463 = vmatmul.bf16.gmra.mxu0 %v378
      %v464 = vpop.f32.mrf.mxu0
      %v465 = vadd.f32 0.0, %v464
      %v466 = vpop.f32.mrf.mxu0
      %v467 = vadd.f32 0.0, %v466
      %468 = vmatmul.bf16.gmra.mxu0 %v386
      %v469 = vpop.f32.mrf.mxu0
      %v470 = vadd.f32 0.0, %v469
      %v471 = vpop.f32.mrf.mxu0
      %v472 = vadd.f32 0.0, %v471
      %473 = vdwg.mxu0
      %v474 = vld [vmem:[#allocation2] sm:$0xff]
      %v475 = vld [vmem:[#allocation2 + $0x8] sm:$0xff]
      %v476 = vld [vmem:[#allocation2 + $0x10] sm:$0xff]
      %v477 = vld [vmem:[#allocation2 + $0x18] sm:$0xff]
      %v478 = vld [vmem:[#allocation2 + $0x20] sm:$0xff]
      %v479 = vld [vmem:[#allocation2 + $0x28] sm:$0xff]
      %v480 = vld [vmem:[#allocation2 + $0x30] sm:$0xff]
      %v481 = vld [vmem:[#allocation2 + $0x38] sm:$0xff]
      %v482 = vld [vmem:[#allocation2 + $0x40] sm:$0xff]
      %v483 = vld [vmem:[#allocation2 + $0x48] sm:$0xff]
      %v484 = vadd.f32 %v474, %v450
      %v485 = vadd.f32 %v475, %v452
      %v486 = vadd.f32 %v476, %v455
      %v487 = vadd.f32 %v477, %v457
      %v488 = vadd.f32 %v478, %v460
      %v489 = vadd.f32 %v479, %v462
      %v490 = vadd.f32 %v480, %v465
      %v491 = vadd.f32 %v481, %v467
      %v492 = vadd.f32 %v482, %v470
      %v493 = vadd.f32 %v483, %v472
      %494 = vst [vmem:[#allocation2] sm:$0xff] %v484
      %495 = vst [vmem:[#allocation2 + $0x8] sm:$0xff] %v485
      %496 = vst [vmem:[#allocation2 + $0x10] sm:$0xff] %v486
      %497 = vst [vmem:[#allocation2 + $0x18] sm:$0xff] %v487
      %498 = vst [vmem:[#allocation2 + $0x20] sm:$0xff] %v488
      %499 = vst [vmem:[#allocation2 + $0x28] sm:$0xff] %v489
      %500 = vst [vmem:[#allocation2 + $0x30] sm:$0xff] %v490
      %501 = vst [vmem:[#allocation2 + $0x38] sm:$0xff] %v491
      %502 = vst [vmem:[#allocation2 + $0x40] sm:$0xff] %v492
      %503 = vst [vmem:[#allocation2 + $0x48] sm:$0xff] %v493
      %v504 = vld [vmem:[%s138] sm:$0xe]
      %v505 = vld [vmem:[%s138 + $0x4] sm:$0xf]
      %v506 = vld [vmem:[%s138 + $0x8] sm:$0xf]
      %v507 = vld [vmem:[%s138 + $0xc] sm:$0xf]
      %v508 = vld [vmem:[%s138 + $0x10] sm:$0xf]
      %v509 = vld [vmem:[%s138 + $0x14] sm:$0xf]
      %v510 = vld [vmem:[%s138 + $0x18] sm:$0xf]
      %v511 = vld [vmem:[%s138 + $0x1c] sm:$0xf]
      %v512 = vld [vmem:[%s138 + $0x20] sm:$0xf]
      %v513 = vld [vmem:[%s138 + $0x24] sm:$0xf]
      %v514 = vld [vmem:[%s138 + $0x28] sm:$0x1]
      %v515 = vunpack.c.l.bf16 %v504
      %v516 = vunpack.c.l.bf16 %v505
      %v517 = vunpack.c.l.bf16 %v506
      %v518 = vunpack.c.l.bf16 %v507
      %v519 = vunpack.c.l.bf16 %v508
      %v520 = vunpack.c.l.bf16 %v509
      %v521 = vunpack.c.l.bf16 %v510
      %v522 = vunpack.c.l.bf16 %v511
      %v523 = vunpack.c.l.bf16 %v512
      %v524 = vunpack.c.l.bf16 %v513
      %v525 = vunpack.c.l.bf16 %v514
      %v526 = vmax.f32 %v515, 0.0
      %v527 = vmax.f32 %v516, 0.0
      %v528 = vmax.f32 %v517, 0.0
      %v529 = vmax.f32 %v518, 0.0
      %v530 = vmax.f32 %v519, 0.0
      %v531 = vmax.f32 %v520, 0.0
      %v532 = vmax.f32 %v521, 0.0
      %v533 = vmax.f32 %v522, 0.0
      %v534 = vmax.f32 %v523, 0.0
      %v535 = vmax.f32 %v524, 0.0
      %v536 = vmax.f32 %v525, 0.0
      %v537 = vpack.c.bf16 %v527, %v526
      %v538 = vpack.c.bf16 %v529, %v528
      %v539 = vpack.c.bf16 %v531, %v530
      %v540 = vpack.c.bf16 %v533, %v532
      %v541 = vpack.c.bf16 %v535, %v534
      %v542 = vpack.c.bf16 %v536, %v536
      %v543 = vld [vmem:[%s1 + $0x80] sm:$0xf]
      %v544 = vld [vmem:[%s1 + $0x84] sm:$0xf]
      %v545 = vld [vmem:[%s1 + $0x88] sm:$0xf]
      %v546 = vld [vmem:[%s1 + $0x8c] sm:$0xf]
      %v547 = vld [vmem:[%s1 + $0x90] sm:$0xf]
      %v548 = vld [vmem:[%s1 + $0x94] sm:$0xf]
      %v549 = vld [vmem:[%s1 + $0x98] sm:$0xf]
      %v550 = vld [vmem:[%s1 + $0x9c] sm:$0xf]
      %v551 = vld [vmem:[%s1 + $0xa0] sm:$0xf]
      %v552 = vld [vmem:[%s1 + $0xa4] sm:$0xf]
      %v553 = vld [vmem:[%s1 + $0xa8] sm:$0xf]
      %v554 = vld [vmem:[%s1 + $0xac] sm:$0xf]
      %v555 = vld [vmem:[%s1 + $0xb0] sm:$0xf]
      %v556 = vld [vmem:[%s1 + $0xb4] sm:$0xf]
      %v557 = vld [vmem:[%s1 + $0xb8] sm:$0xf]
      %v558 = vld [vmem:[%s1 + $0xbc] sm:$0xf]
      %vm565 = vcmask 1046528
      %v566 = vrot.slane %v537, 1
      %v567 = vrot.slane %v538, 1
      %v568 = vsel %vm565, %v566, %v567
      %v569 = vrot.slane %v539, 1
      %v570 = vsel %vm565, %v567, %v569
      %v571 = vrot.slane %v540, 1
      %v572 = vsel %vm565, %v569, %v571
      %v573 = vrot.slane %v541, 1
      %v574 = vsel %vm565, %v571, %v573
      %v575 = vrot.slane %v542, 1
      %v576 = vsel %vm565, %v573, %v575
      %v598 = vunpack.c.l.b16 %v543
      %v599 = vunpack.c.l.b16 %v544
      %v600 = vunpack.c.l.b16 %v545
      %v601 = vunpack.c.l.b16 %v546
      %v602 = vunpack.c.l.b16 %v547
      %v603 = vunpack.c.l.b16 %v548
      %v604 = vunpack.c.l.b16 %v549
      %v605 = vunpack.c.l.b16 %v550
      %v606 = vunpack.c.l.b16 %v551
      %v607 = vunpack.c.l.b16 %v552
      %v608 = vunpack.c.l.b16 %v553
      %v609 = vunpack.c.l.b16 %v554
      %v610 = vunpack.c.l.b16 %v555
      %v611 = vunpack.c.l.b16 %v556
      %v612 = vunpack.c.l.b16 %v557
      %v613 = vunpack.c.l.b16 %v558
      %v614 = vpack.c.b16 %v599, %v598
      %v615 = vpack.c.b16 %v601, %v600
      %v616 = vpack.c.b16 %v603, %v602
      %v617 = vpack.c.b16 %v605, %v604
      %v618 = vpack.c.b16 %v607, %v606
      %v619 = vpack.c.b16 %v609, %v608
      %v620 = vpack.c.b16 %v611, %v610
      %v621 = vpack.c.b16 %v613, %v612
      %630 = vmatpush.bf16.msra.mxu0 %v621
      %631 = vmatpush.bf16.msra.mxu0 %v620
      %632 = vmatpush.bf16.msra.mxu0 %v619
      %633 = vmatpush.bf16.msra.mxu0 %v618
      %634 = vmatpush.bf16.msra.mxu0 %v617
      %635 = vmatpush.bf16.msra.mxu0 %v616
      %636 = vmatpush.bf16.msra.mxu0 %v615
      %637 = vmatpush.bf16.msra.mxu0 %v614
      %638 = vmatmul.bf16.gmra.mxu0 %v568
      %v639 = vpop.f32.mrf.mxu0
      %v640 = vadd.f32 0.0, %v639
      %v641 = vpop.f32.mrf.mxu0
      %v642 = vadd.f32 0.0, %v641
      %643 = vmatmul.bf16.gmra.mxu0 %v570
      %v644 = vpop.f32.mrf.mxu0
      %v645 = vadd.f32 0.0, %v644
      %v646 = vpop.f32.mrf.mxu0
      %v647 = vadd.f32 0.0, %v646
      %648 = vmatmul.bf16.gmra.mxu0 %v572
      %v649 = vpop.f32.mrf.mxu0
      %v650 = vadd.f32 0.0, %v649
      %v651 = vpop.f32.mrf.mxu0
      %v652 = vadd.f32 0.0, %v651
      %653 = vmatmul.bf16.gmra.mxu0 %v574
      %v654 = vpop.f32.mrf.mxu0
      %v655 = vadd.f32 0.0, %v654
      %v656 = vpop.f32.mrf.mxu0
      %v657 = vadd.f32 0.0, %v656
      %658 = vmatmul.bf16.gmra.mxu0 %v576
      %v659 = vpop.f32.mrf.mxu0
      %v660 = vadd.f32 0.0, %v659
      %v661 = vpop.f32.mrf.mxu0
      %v662 = vadd.f32 0.0, %v661
      %663 = vdwg.mxu0
      %v664 = vld [vmem:[#allocation2] sm:$0xff]
      %v665 = vld [vmem:[#allocation2 + $0x8] sm:$0xff]
      %v666 = vld [vmem:[#allocation2 + $0x10] sm:$0xff]
      %v667 = vld [vmem:[#allocation2 + $0x18] sm:$0xff]
      %v668 = vld [vmem:[#allocation2 + $0x20] sm:$0xff]
      %v669 = vld [vmem:[#allocation2 + $0x28] sm:$0xff]
      %v670 = vld [vmem:[#allocation2 + $0x30] sm:$0xff]
      %v671 = vld [vmem:[#allocation2 + $0x38] sm:$0xff]
      %v672 = vld [vmem:[#allocation2 + $0x40] sm:$0xff]
      %v673 = vld [vmem:[#allocation2 + $0x48] sm:$0xff]
      %v674 = vadd.f32 %v664, %v640
      %v675 = vadd.f32 %v665, %v642
      %v676 = vadd.f32 %v666, %v645
      %v677 = vadd.f32 %v667, %v647
      %v678 = vadd.f32 %v668, %v650
      %v679 = vadd.f32 %v669, %v652
      %v680 = vadd.f32 %v670, %v655
      %v681 = vadd.f32 %v671, %v657
      %v682 = vadd.f32 %v672, %v660
      %v683 = vadd.f32 %v673, %v662
      %684 = vst [vmem:[#allocation2] sm:$0xff] %v674
      %685 = vst [vmem:[#allocation2 + $0x8] sm:$0xff] %v675
      %686 = vst [vmem:[#allocation2 + $0x10] sm:$0xff] %v676
      %687 = vst [vmem:[#allocation2 + $0x18] sm:$0xff] %v677
      %688 = vst [vmem:[#allocation2 + $0x20] sm:$0xff] %v678
      %689 = vst [vmem:[#allocation2 + $0x28] sm:$0xff] %v679
      %690 = vst [vmem:[#allocation2 + $0x30] sm:$0xff] %v680
      %691 = vst [vmem:[#allocation2 + $0x38] sm:$0xff] %v681
      %692 = vst [vmem:[#allocation2 + $0x40] sm:$0xff] %v682
      %693 = vst [vmem:[#allocation2 + $0x48] sm:$0xff] %v683
      %v694 = vld [vmem:[%s138 + $0x4] sm:$0xe]
      %v695 = vld [vmem:[%s138 + $0x8] sm:$0xf]
      %v696 = vld [vmem:[%s138 + $0xc] sm:$0xf]
      %v697 = vld [vmem:[%s138 + $0x10] sm:$0xf]
      %v698 = vld [vmem:[%s138 + $0x14] sm:$0xf]
      %v699 = vld [vmem:[%s138 + $0x18] sm:$0xf]
      %v700 = vld [vmem:[%s138 + $0x1c] sm:$0xf]
      %v701 = vld [vmem:[%s138 + $0x20] sm:$0xf]
      %v702 = vld [vmem:[%s138 + $0x24] sm:$0xf]
      %v703 = vld [vmem:[%s138 + $0x28] sm:$0xf]
      %v704 = vld [vmem:[%s138 + $0x2c] sm:$0x1]
      %v705 = vunpack.c.l.bf16 %v694
      %v706 = vunpack.c.l.bf16 %v695
      %v707 = vunpack.c.l.bf16 %v696
      %v708 = vunpack.c.l.bf16 %v697
      %v709 = vunpack.c.l.bf16 %v698
      %v710 = vunpack.c.l.bf16 %v699
      %v711 = vunpack.c.l.bf16 %v700
      %v712 = vunpack.c.l.bf16 %v701
      %v713 = vunpack.c.l.bf16 %v702
      %v714 = vunpack.c.l.bf16 %v703
      %v715 = vunpack.c.l.bf16 %v704
      %v716 = vmax.f32 %v705, 0.0
      %v717 = vmax.f32 %v706, 0.0
      %v718 = vmax.f32 %v707, 0.0
      %v719 = vmax.f32 %v708, 0.0
      %v720 = vmax.f32 %v709, 0.0
      %v721 = vmax.f32 %v710, 0.0
      %v722 = vmax.f32 %v711, 0.0
      %v723 = vmax.f32 %v712, 0.0
      %v724 = vmax.f32 %v713, 0.0
      %v725 = vmax.f32 %v714, 0.0
      %v726 = vmax.f32 %v715, 0.0
      %v727 = vpack.c.bf16 %v717, %v716
      %v728 = vpack.c.bf16 %v719, %v718
      %v729 = vpack.c.bf16 %v721, %v720
      %v730 = vpack.c.bf16 %v723, %v722
      %v731 = vpack.c.bf16 %v725, %v724
      %v732 = vpack.c.bf16 %v726, %v726
      %v733 = vld [vmem:[%s1 + $0xc0] sm:$0xf]
      %v734 = vld [vmem:[%s1 + $0xc4] sm:$0xf]
      %v735 = vld [vmem:[%s1 + $0xc8] sm:$0xf]
      %v736 = vld [vmem:[%s1 + $0xcc] sm:$0xf]
      %v737 = vld [vmem:[%s1 + $0xd0] sm:$0xf]
      %v738 = vld [vmem:[%s1 + $0xd4] sm:$0xf]
      %v739 = vld [vmem:[%s1 + $0xd8] sm:$0xf]
      %v740 = vld [vmem:[%s1 + $0xdc] sm:$0xf]
      %v741 = vld [vmem:[%s1 + $0xe0] sm:$0xf]
      %v742 = vld [vmem:[%s1 + $0xe4] sm:$0xf]
      %v743 = vld [vmem:[%s1 + $0xe8] sm:$0xf]
      %v744 = vld [vmem:[%s1 + $0xec] sm:$0xf]
      %v745 = vld [vmem:[%s1 + $0xf0] sm:$0xf]
      %v746 = vld [vmem:[%s1 + $0xf4] sm:$0xf]
      %v747 = vld [vmem:[%s1 + $0xf8] sm:$0xf]
      %v748 = vld [vmem:[%s1 + $0xfc] sm:$0xf]
      %v755 = vrot.slane %v727, 1
      %v756 = vrot.slane %v728, 1
      %v757 = vsel %vm565, %v755, %v756
      %v758 = vrot.slane %v729, 1
      %v759 = vsel %vm565, %v756, %v758
      %v760 = vrot.slane %v730, 1
      %v761 = vsel %vm565, %v758, %v760
      %v762 = vrot.slane %v731, 1
      %v763 = vsel %vm565, %v760, %v762
      %v764 = vrot.slane %v732, 1
      %v765 = vsel %vm565, %v762, %v764
      %v787 = vunpack.c.l.b16 %v733
      %v788 = vunpack.c.l.b16 %v734
      %v789 = vunpack.c.l.b16 %v735
      %v790 = vunpack.c.l.b16 %v736
      %v791 = vunpack.c.l.b16 %v737
      %v792 = vunpack.c.l.b16 %v738
      %v793 = vunpack.c.l.b16 %v739
      %v794 = vunpack.c.l.b16 %v740
      %v795 = vunpack.c.l.b16 %v741
      %v796 = vunpack.c.l.b16 %v742
      %v797 = vunpack.c.l.b16 %v743
      %v798 = vunpack.c.l.b16 %v744
      %v799 = vunpack.c.l.b16 %v745
      %v800 = vunpack.c.l.b16 %v746
      %v801 = vunpack.c.l.b16 %v747
      %v802 = vunpack.c.l.b16 %v748
      %v803 = vpack.c.b16 %v788, %v787
      %v804 = vpack.c.b16 %v790, %v789
      %v805 = vpack.c.b16 %v792, %v791
      %v806 = vpack.c.b16 %v794, %v793
      %v807 = vpack.c.b16 %v796, %v795
      %v808 = vpack.c.b16 %v798, %v797
      %v809 = vpack.c.b16 %v800, %v799
      %v810 = vpack.c.b16 %v802, %v801
      %819 = vmatpush.bf16.msra.mxu0 %v810
      %820 = vmatpush.bf16.msra.mxu0 %v809
      %821 = vmatpush.bf16.msra.mxu0 %v808
      %822 = vmatpush.bf16.msra.mxu0 %v807
      %823 = vmatpush.bf16.msra.mxu0 %v806
      %824 = vmatpush.bf16.msra.mxu0 %v805
      %825 = vmatpush.bf16.msra.mxu0 %v804
      %826 = vmatpush.bf16.msra.mxu0 %v803
      %827 = vmatmul.bf16.gmra.mxu0 %v757
      %v828 = vpop.f32.mrf.mxu0
      %v829 = vadd.f32 0.0, %v828
      %v830 = vpop.f32.mrf.mxu0
      %v831 = vadd.f32 0.0, %v830
      %832 = vmatmul.bf16.gmra.mxu0 %v759
      %v833 = vpop.f32.mrf.mxu0
      %v834 = vadd.f32 0.0, %v833
      %v835 = vpop.f32.mrf.mxu0
      %v836 = vadd.f32 0.0, %v835
      %837 = vmatmul.bf16.gmra.mxu0 %v761
      %v838 = vpop.f32.mrf.mxu0
      %v839 = vadd.f32 0.0, %v838
      %v840 = vpop.f32.mrf.mxu0
      %v841 = vadd.f32 0.0, %v840
      %842 = vmatmul.bf16.gmra.mxu0 %v763
      %v843 = vpop.f32.mrf.mxu0
      %v844 = vadd.f32 0.0, %v843
      %v845 = vpop.f32.mrf.mxu0
      %v846 = vadd.f32 0.0, %v845
      %847 = vmatmul.bf16.gmra.mxu0 %v765
      %v848 = vpop.f32.mrf.mxu0
      %v849 = vadd.f32 0.0, %v848
      %v850 = vpop.f32.mrf.mxu0
      %v851 = vadd.f32 0.0, %v850
      %852 = vdwg.mxu0
      %v853 = vld [vmem:[#allocation2] sm:$0xff]
      %v854 = vld [vmem:[#allocation2 + $0x8] sm:$0xff]
      %v855 = vld [vmem:[#allocation2 + $0x10] sm:$0xff]
      %v856 = vld [vmem:[#allocation2 + $0x18] sm:$0xff]
      %v857 = vld [vmem:[#allocation2 + $0x20] sm:$0xff]
      %v858 = vld [vmem:[#allocation2 + $0x28] sm:$0xff]
      %v859 = vld [vmem:[#allocation2 + $0x30] sm:$0xff]
      %v860 = vld [vmem:[#allocation2 + $0x38] sm:$0xff]
      %v861 = vld [vmem:[#allocation2 + $0x40] sm:$0xff]
      %v862 = vld [vmem:[#allocation2 + $0x48] sm:$0xff]
      %v863 = vadd.f32 %v853, %v829
      %v864 = vadd.f32 %v854, %v831
      %v865 = vadd.f32 %v855, %v834
      %v866 = vadd.f32 %v856, %v836
      %v867 = vadd.f32 %v857, %v839
      %v868 = vadd.f32 %v858, %v841
      %v869 = vadd.f32 %v859, %v844
      %v870 = vadd.f32 %v860, %v846
      %v871 = vadd.f32 %v861, %v849
      %v872 = vadd.f32 %v862, %v851
      %873 = vst [vmem:[#allocation2] sm:$0xff] %v863
      %874 = vst [vmem:[#allocation2 + $0x8] sm:$0xff] %v864
      %875 = vst [vmem:[#allocation2 + $0x10] sm:$0xff] %v865
      %876 = vst [vmem:[#allocation2 + $0x18] sm:$0xff] %v866
      %877 = vst [vmem:[#allocation2 + $0x20] sm:$0xff] %v867
      %878 = vst [vmem:[#allocation2 + $0x28] sm:$0xff] %v868
      %879 = vst [vmem:[#allocation2 + $0x30] sm:$0xff] %v869
      %880 = vst [vmem:[#allocation2 + $0x38] sm:$0xff] %v870
      %881 = vst [vmem:[#allocation2 + $0x40] sm:$0xff] %v871
      %882 = vst [vmem:[#allocation2 + $0x48] sm:$0xff] %v872
      %v883 = vld [vmem:[%s138 + $0x4] sm:$0xe]
      %v884 = vld [vmem:[%s138 + $0x8] sm:$0xf]
      %v885 = vld [vmem:[%s138 + $0xc] sm:$0xf]
      %v886 = vld [vmem:[%s138 + $0x10] sm:$0xf]
      %v887 = vld [vmem:[%s138 + $0x14] sm:$0xf]
      %v888 = vld [vmem:[%s138 + $0x18] sm:$0xf]
      %v889 = vld [vmem:[%s138 + $0x1c] sm:$0xf]
      %v890 = vld [vmem:[%s138 + $0x20] sm:$0xf]
      %v891 = vld [vmem:[%s138 + $0x24] sm:$0xf]
      %v892 = vld [vmem:[%s138 + $0x28] sm:$0xf]
      %v893 = vld [vmem:[%s138 + $0x2c] sm:$0x3]
      %v894 = vunpack.c.l.bf16 %v883
      %v895 = vunpack.c.l.bf16 %v884
      %v896 = vunpack.c.l.bf16 %v885
      %v897 = vunpack.c.l.bf16 %v886
      %v898 = vunpack.c.l.bf16 %v887
      %v899 = vunpack.c.l.bf16 %v888
      %v900 = vunpack.c.l.bf16 %v889
      %v901 = vunpack.c.l.bf16 %v890
      %v902 = vunpack.c.l.bf16 %v891
      %v903 = vunpack.c.l.bf16 %v892
      %v904 = vunpack.c.l.bf16 %v893
      %v905 = vmax.f32 %v894, 0.0
      %v906 = vmax.f32 %v895, 0.0
      %v907 = vmax.f32 %v896, 0.0
      %v908 = vmax.f32 %v897, 0.0
      %v909 = vmax.f32 %v898, 0.0
      %v910 = vmax.f32 %v899, 0.0
      %v911 = vmax.f32 %v900, 0.0
      %v912 = vmax.f32 %v901, 0.0
      %v913 = vmax.f32 %v902, 0.0
      %v914 = vmax.f32 %v903, 0.0
      %v915 = vmax.f32 %v904, 0.0
      %v916 = vpack.c.bf16 %v906, %v905
      %v917 = vpack.c.bf16 %v908, %v907
      %v918 = vpack.c.bf16 %v910, %v909
      %v919 = vpack.c.bf16 %v912, %v911
      %v920 = vpack.c.bf16 %v914, %v913
      %v921 = vpack.c.bf16 %v915, %v915
      %v922 = vld [vmem:[%s1 + $0x100] sm:$0xf]
      %v923 = vld [vmem:[%s1 + $0x104] sm:$0xf]
      %v924 = vld [vmem:[%s1 + $0x108] sm:$0xf]
      %v925 = vld [vmem:[%s1 + $0x10c] sm:$0xf]
      %v926 = vld [vmem:[%s1 + $0x110] sm:$0xf]
      %v927 = vld [vmem:[%s1 + $0x114] sm:$0xf]
      %v928 = vld [vmem:[%s1 + $0x118] sm:$0xf]
      %v929 = vld [vmem:[%s1 + $0x11c] sm:$0xf]
      %v930 = vld [vmem:[%s1 + $0x120] sm:$0xf]
      %v931 = vld [vmem:[%s1 + $0x124] sm:$0xf]
      %v932 = vld [vmem:[%s1 + $0x128] sm:$0xf]
      %v933 = vld [vmem:[%s1 + $0x12c] sm:$0xf]
      %v934 = vld [vmem:[%s1 + $0x130] sm:$0xf]
      %v935 = vld [vmem:[%s1 + $0x134] sm:$0xf]
      %v936 = vld [vmem:[%s1 + $0x138] sm:$0xf]
      %v937 = vld [vmem:[%s1 + $0x13c] sm:$0xf]
      %vm938 = vsmask.f32 6400
      %v940 = vshrl.u32 %v916, 16
      %v942 = vrot.slane %v940, 1
      %v943 = vshll.u32 %v916, 16
      %v945 = vrot.slane %v943, 2
      %v946 = vor.u32 %v942, %v945
      %v948 = vshrl.u32 %v917, 16
      %v950 = vrot.slane %v948, 1
      %v951 = vshll.u32 %v917, 16
      %v953 = vrot.slane %v951, 2
      %v954 = vor.u32 %v950, %v953
      %v955 = vsel %vm938, %v946, %v954
      %v957 = vshrl.u32 %v918, 16
      %v959 = vrot.slane %v957, 1
      %v960 = vshll.u32 %v918, 16
      %v962 = vrot.slane %v960, 2
      %v963 = vor.u32 %v959, %v962
      %v964 = vsel %vm938, %v954, %v963
      %v966 = vshrl.u32 %v919, 16
      %v968 = vrot.slane %v966, 1
      %v969 = vshll.u32 %v919, 16
      %v971 = vrot.slane %v969, 2
      %v972 = vor.u32 %v968, %v971
      %v973 = vsel %vm938, %v963, %v972
      %v975 = vshrl.u32 %v920, 16
      %v977 = vrot.slane %v975, 1
      %v978 = vshll.u32 %v920, 16
      %v980 = vrot.slane %v978, 2
      %v981 = vor.u32 %v977, %v980
      %v982 = vsel %vm938, %v972, %v981
      %v984 = vshrl.u32 %v921, 16
      %v986 = vrot.slane %v984, 1
      %v987 = vshll.u32 %v921, 16
      %v989 = vrot.slane %v987, 2
      %v990 = vor.u32 %v986, %v989
      %v991 = vsel %vm938, %v981, %v990
      %v1013 = vunpack.c.l.b16 %v922
      %v1014 = vunpack.c.l.b16 %v923
      %v1015 = vunpack.c.l.b16 %v924
      %v1016 = vunpack.c.l.b16 %v925
      %v1017 = vunpack.c.l.b16 %v926
      %v1018 = vunpack.c.l.b16 %v927
      %v1019 = vunpack.c.l.b16 %v928
      %v1020 = vunpack.c.l.b16 %v929
      %v1021 = vunpack.c.l.b16 %v930
      %v1022 = vunpack.c.l.b16 %v931
      %v1023 = vunpack.c.l.b16 %v932
      %v1024 = vunpack.c.l.b16 %v933
      %v1025 = vunpack.c.l.b16 %v934
      %v1026 = vunpack.c.l.b16 %v935
      %v1027 = vunpack.c.l.b16 %v936
      %v1028 = vunpack.c.l.b16 %v937
      %v1029 = vpack.c.b16 %v1014, %v1013
      %v1030 = vpack.c.b16 %v1016, %v1015
      %v1031 = vpack.c.b16 %v1018, %v1017
      %v1032 = vpack.c.b16 %v1020, %v1019
      %v1033 = vpack.c.b16 %v1022, %v1021
      %v1034 = vpack.c.b16 %v1024, %v1023
      %v1035 = vpack.c.b16 %v1026, %v1025
      %v1036 = vpack.c.b16 %v1028, %v1027
      %1045 = vmatpush.bf16.msra.mxu0 %v1036
      %1046 = vmatpush.bf16.msra.mxu0 %v1035
      %1047 = vmatpush.bf16.msra.mxu0 %v1034
      %1048 = vmatpush.bf16.msra.mxu0 %v1033
      %1049 = vmatpush.bf16.msra.mxu0 %v1032
      %1050 = vmatpush.bf16.msra.mxu0 %v1031
      %1051 = vmatpush.bf16.msra.mxu0 %v1030
      %1052 = vmatpush.bf16.msra.mxu0 %v1029
      %1053 = vmatmul.bf16.gmra.mxu0 %v955
      %v1054 = vpop.f32.mrf.mxu0
      %v1055 = vadd.f32 0.0, %v1054
      %v1056 = vpop.f32.mrf.mxu0
      %v1057 = vadd.f32 0.0, %v1056
      %1058 = vmatmul.bf16.gmra.mxu0 %v964
      %v1059 = vpop.f32.mrf.mxu0
      %v1060 = vadd.f32 0.0, %v1059
      %v1061 = vpop.f32.mrf.mxu0
      %v1062 = vadd.f32 0.0, %v1061
      %1063 = vmatmul.bf16.gmra.mxu0 %v973
      %v1064 = vpop.f32.mrf.mxu0
      %v1065 = vadd.f32 0.0, %v1064
      %v1066 = vpop.f32.mrf.mxu0
      %v1067 = vadd.f32 0.0, %v1066
      %1068 = vmatmul.bf16.gmra.mxu0 %v982
      %v1069 = vpop.f32.mrf.mxu0
      %v1070 = vadd.f32 0.0, %v1069
      %v1071 = vpop.f32.mrf.mxu0
      %v1072 = vadd.f32 0.0, %v1071
      %1073 = vmatmul.bf16.gmra.mxu0 %v991
      %v1074 = vpop.f32.mrf.mxu0
      %v1075 = vadd.f32 0.0, %v1074
      %v1076 = vpop.f32.mrf.mxu0
      %v1077 = vadd.f32 0.0, %v1076
      %1078 = vdwg.mxu0
      %v1079 = vld [vmem:[#allocation2] sm:$0xff]
      %v1080 = vld [vmem:[#allocation2 + $0x8] sm:$0xff]
      %v1081 = vld [vmem:[#allocation2 + $0x10] sm:$0xff]
      %v1082 = vld [vmem:[#allocation2 + $0x18] sm:$0xff]
      %v1083 = vld [vmem:[#allocation2 + $0x20] sm:$0xff]
      %v1084 = vld [vmem:[#allocation2 + $0x28] sm:$0xff]
      %v1085 = vld [vmem:[#allocation2 + $0x30] sm:$0xff]
      %v1086 = vld [vmem:[#allocation2 + $0x38] sm:$0xff]
      %v1087 = vld [vmem:[#allocation2 + $0x40] sm:$0xff]
      %v1088 = vld [vmem:[#allocation2 + $0x48] sm:$0xff]
      %v1089 = vadd.f32 %v1079, %v1055
      %v1090 = vadd.f32 %v1080, %v1057
      %v1091 = vadd.f32 %v1081, %v1060
      %v1092 = vadd.f32 %v1082, %v1062
      %v1093 = vadd.f32 %v1083, %v1065
      %v1094 = vadd.f32 %v1084, %v1067
      %v1095 = vadd.f32 %v1085, %v1070
      %v1096 = vadd.f32 %v1086, %v1072
      %v1097 = vadd.f32 %v1087, %v1075
      %v1098 = vadd.f32 %v1088, %v1077
      %1099 = vst [vmem:[#allocation2] sm:$0xff] %v1089
      %1100 = vst [vmem:[#allocation2 + $0x8] sm:$0xff] %v1090
      %1101 = vst [vmem:[#allocation2 + $0x10] sm:$0xff] %v1091
      %1102 = vst [vmem:[#allocation2 + $0x18] sm:$0xff] %v1092
      %1103 = vst [vmem:[#allocation2 + $0x20] sm:$0xff] %v1093
      %1104 = vst [vmem:[#allocation2 + $0x28] sm:$0xff] %v1094
      %1105 = vst [vmem:[#allocation2 + $0x30] sm:$0xff] %v1095
      %1106 = vst [vmem:[#allocation2 + $0x38] sm:$0xff] %v1096
      %1107 = vst [vmem:[#allocation2 + $0x40] sm:$0xff] %v1097
      %1108 = vst [vmem:[#allocation2 + $0x48] sm:$0xff] %v1098
      %v1109 = vld [vmem:[%s138 + $0x4] sm:$0xc]
      %v1110 = vld [vmem:[%s138 + $0x8] sm:$0xf]
      %v1111 = vld [vmem:[%s138 + $0xc] sm:$0xf]
      %v1112 = vld [vmem:[%s138 + $0x10] sm:$0xf]
      %v1113 = vld [vmem:[%s138 + $0x14] sm:$0xf]
      %v1114 = vld [vmem:[%s138 + $0x18] sm:$0xf]
      %v1115 = vld [vmem:[%s138 + $0x1c] sm:$0xf]
      %v1116 = vld [vmem:[%s138 + $0x20] sm:$0xf]
      %v1117 = vld [vmem:[%s138 + $0x24] sm:$0xf]
      %v1118 = vld [vmem:[%s138 + $0x28] sm:$0xf]
      %v1119 = vld [vmem:[%s138 + $0x2c] sm:$0x3]
      %v1120 = vunpack.c.l.bf16 %v1109
      %v1121 = vunpack.c.l.bf16 %v1110
      %v1122 = vunpack.c.l.bf16 %v1111
      %v1123 = vunpack.c.l.bf16 %v1112
      %v1124 = vunpack.c.l.bf16 %v1113
      %v1125 = vunpack.c.l.bf16 %v1114
      %v1126 = vunpack.c.l.bf16 %v1115
      %v1127 = vunpack.c.l.bf16 %v1116
      %v1128 = vunpack.c.l.bf16 %v1117
      %v1129 = vunpack.c.l.bf16 %v1118
      %v1130 = vunpack.c.l.bf16 %v1119
      %v1131 = vmax.f32 %v1120, 0.0
      %v1132 = vmax.f32 %v1121, 0.0
      %v1133 = vmax.f32 %v1122, 0.0
      %v1134 = vmax.f32 %v1123, 0.0
      %v1135 = vmax.f32 %v1124, 0.0
      %v1136 = vmax.f32 %v1125, 0.0
      %v1137 = vmax.f32 %v1126, 0.0
      %v1138 = vmax.f32 %v1127, 0.0
      %v1139 = vmax.f32 %v1128, 0.0
      %v1140 = vmax.f32 %v1129, 0.0
      %v1141 = vmax.f32 %v1130, 0.0
      %v1142 = vpack.c.bf16 %v1132, %v1131
      %v1143 = vpack.c.bf16 %v1134, %v1133
      %v1144 = vpack.c.bf16 %v1136, %v1135
      %v1145 = vpack.c.bf16 %v1138, %v1137
      %v1146 = vpack.c.bf16 %v1140, %v1139
      %v1147 = vpack.c.bf16 %v1141, %v1141
      %v1148 = vld [vmem:[%s1 + $0x140] sm:$0xf]
      %v1149 = vld [vmem:[%s1 + $0x144] sm:$0xf]
      %v1150 = vld [vmem:[%s1 + $0x148] sm:$0xf]
      %v1151 = vld [vmem:[%s1 + $0x14c] sm:$0xf]
      %v1152 = vld [vmem:[%s1 + $0x150] sm:$0xf]
      %v1153 = vld [vmem:[%s1 + $0x154] sm:$0xf]
      %v1154 = vld [vmem:[%s1 + $0x158] sm:$0xf]
      %v1155 = vld [vmem:[%s1 + $0x15c] sm:$0xf]
      %v1156 = vld [vmem:[%s1 + $0x160] sm:$0xf]
      %v1157 = vld [vmem:[%s1 + $0x164] sm:$0xf]
      %v1158 = vld [vmem:[%s1 + $0x168] sm:$0xf]
      %v1159 = vld [vmem:[%s1 + $0x16c] sm:$0xf]
      %v1160 = vld [vmem:[%s1 + $0x170] sm:$0xf]
      %v1161 = vld [vmem:[%s1 + $0x174] sm:$0xf]
      %v1162 = vld [vmem:[%s1 + $0x178] sm:$0xf]
      %v1163 = vld [vmem:[%s1 + $0x17c] sm:$0xf]
      %vm1170 = vcmask 1045504
      %v1171 = vrot.slane %v1142, 2
      %v1172 = vrot.slane %v1143, 2
      %v1173 = vsel %vm1170, %v1171, %v1172
      %v1174 = vrot.slane %v1144, 2
      %v1175 = vsel %vm1170, %v1172, %v1174
      %v1176 = vrot.slane %v1145, 2
      %v1177 = vsel %vm1170, %v1174, %v1176
      %v1178 = vrot.slane %v1146, 2
      %v1179 = vsel %vm1170, %v1176, %v1178
      %v1180 = vrot.slane %v1147, 2
      %v1181 = vsel %vm1170, %v1178, %v1180
      %v1203 = vunpack.c.l.b16 %v1148
      %v1204 = vunpack.c.l.b16 %v1149
      %v1205 = vunpack.c.l.b16 %v1150
      %v1206 = vunpack.c.l.b16 %v1151
      %v1207 = vunpack.c.l.b16 %v1152
      %v1208 = vunpack.c.l.b16 %v1153
      %v1209 = vunpack.c.l.b16 %v1154
      %v1210 = vunpack.c.l.b16 %v1155
      %v1211 = vunpack.c.l.b16 %v1156
      %v1212 = vunpack.c.l.b16 %v1157
      %v1213 = vunpack.c.l.b16 %v1158
      %v1214 = vunpack.c.l.b16 %v1159
      %v1215 = vunpack.c.l.b16 %v1160
      %v1216 = vunpack.c.l.b16 %v1161
      %v1217 = vunpack.c.l.b16 %v1162
      %v1218 = vunpack.c.l.b16 %v1163
      %v1219 = vpack.c.b16 %v1204, %v1203
      %v1220 = vpack.c.b16 %v1206, %v1205
      %v1221 = vpack.c.b16 %v1208, %v1207
      %v1222 = vpack.c.b16 %v1210, %v1209
      %v1223 = vpack.c.b16 %v1212, %v1211
      %v1224 = vpack.c.b16 %v1214, %v1213
      %v1225 = vpack.c.b16 %v1216, %v1215
      %v1226 = vpack.c.b16 %v1218, %v1217
      %1235 = vmatpush.bf16.msra.mxu0 %v1226
      %1236 = vmatpush.bf16.msra.mxu0 %v1225
      %1237 = vmatpush.bf16.msra.mxu0 %v1224
      %1238 = vmatpush.bf16.msra.mxu0 %v1223
      %1239 = vmatpush.bf16.msra.mxu0 %v1222
      %1240 = vmatpush.bf16.msra.mxu0 %v1221
      %1241 = vmatpush.bf16.msra.mxu0 %v1220
      %1242 = vmatpush.bf16.msra.mxu0 %v1219
      %1243 = vmatmul.bf16.gmra.mxu0 %v1173
      %v1244 = vpop.f32.mrf.mxu0
      %v1245 = vadd.f32 0.0, %v1244
      %v1246 = vpop.f32.mrf.mxu0
      %v1247 = vadd.f32 0.0, %v1246
      %1248 = vmatmul.bf16.gmra.mxu0 %v1175
      %v1249 = vpop.f32.mrf.mxu0
      %v1250 = vadd.f32 0.0, %v1249
      %v1251 = vpop.f32.mrf.mxu0
      %v1252 = vadd.f32 0.0, %v1251
      %1253 = vmatmul.bf16.gmra.mxu0 %v1177
      %v1254 = vpop.f32.mrf.mxu0
      %v1255 = vadd.f32 0.0, %v1254
      %v1256 = vpop.f32.mrf.mxu0
      %v1257 = vadd.f32 0.0, %v1256
      %1258 = vmatmul.bf16.gmra.mxu0 %v1179
      %v1259 = vpop.f32.mrf.mxu0
      %v1260 = vadd.f32 0.0, %v1259
      %v1261 = vpop.f32.mrf.mxu0
      %v1262 = vadd.f32 0.0, %v1261
      %1263 = vmatmul.bf16.gmra.mxu0 %v1181
      %v1264 = vpop.f32.mrf.mxu0
      %v1265 = vadd.f32 0.0, %v1264
      %v1266 = vpop.f32.mrf.mxu0
      %v1267 = vadd.f32 0.0, %v1266
      %1268 = vdwg.mxu0
      %v1269 = vld [vmem:[#allocation2] sm:$0xff]
      %v1270 = vld [vmem:[#allocation2 + $0x8] sm:$0xff]
      %v1271 = vld [vmem:[#allocation2 + $0x10] sm:$0xff]
      %v1272 = vld [vmem:[#allocation2 + $0x18] sm:$0xff]
      %v1273 = vld [vmem:[#allocation2 + $0x20] sm:$0xff]
      %v1274 = vld [vmem:[#allocation2 + $0x28] sm:$0xff]
      %v1275 = vld [vmem:[#allocation2 + $0x30] sm:$0xff]
      %v1276 = vld [vmem:[#allocation2 + $0x38] sm:$0xff]
      %v1277 = vld [vmem:[#allocation2 + $0x40] sm:$0xff]
      %v1278 = vld [vmem:[#allocation2 + $0x48] sm:$0xff]
      %v1279 = vadd.f32 %v1269, %v1245
      %v1280 = vadd.f32 %v1270, %v1247
      %v1281 = vadd.f32 %v1271, %v1250
      %v1282 = vadd.f32 %v1272, %v1252
      %v1283 = vadd.f32 %v1273, %v1255
      %v1284 = vadd.f32 %v1274, %v1257
      %v1285 = vadd.f32 %v1275, %v1260
      %v1286 = vadd.f32 %v1276, %v1262
      %v1287 = vadd.f32 %v1277, %v1265
      %v1288 = vadd.f32 %v1278, %v1267
      %1289 = vst [vmem:[#allocation2] sm:$0xff] %v1279
      %1290 = vst [vmem:[#allocation2 + $0x8] sm:$0xff] %v1280
      %1291 = vst [vmem:[#allocation2 + $0x10] sm:$0xff] %v1281
      %1292 = vst [vmem:[#allocation2 + $0x18] sm:$0xff] %v1282
      %1293 = vst [vmem:[#allocation2 + $0x20] sm:$0xff] %v1283
      %1294 = vst [vmem:[#allocation2 + $0x28] sm:$0xff] %v1284
      %1295 = vst [vmem:[#allocation2 + $0x30] sm:$0xff] %v1285
      %1296 = vst [vmem:[#allocation2 + $0x38] sm:$0xff] %v1286
      %1297 = vst [vmem:[#allocation2 + $0x40] sm:$0xff] %v1287
      %1298 = vst [vmem:[#allocation2 + $0x48] sm:$0xff] %v1288
      %v1299 = vld [vmem:[%s138 + $0x8] sm:$0xc]
      %v1300 = vld [vmem:[%s138 + $0xc] sm:$0xf]
      %v1301 = vld [vmem:[%s138 + $0x10] sm:$0xf]
      %v1302 = vld [vmem:[%s138 + $0x14] sm:$0xf]
      %v1303 = vld [vmem:[%s138 + $0x18] sm:$0xf]
      %v1304 = vld [vmem:[%s138 + $0x1c] sm:$0xf]
      %v1305 = vld [vmem:[%s138 + $0x20] sm:$0xf]
      %v1306 = vld [vmem:[%s138 + $0x24] sm:$0xf]
      %v1307 = vld [vmem:[%s138 + $0x28] sm:$0xf]
      %v1308 = vld [vmem:[%s138 + $0x2c] sm:$0xf]
      %v1309 = vld [vmem:[%s138 + $0x30] sm:$0x3]
      %v1310 = vunpack.c.l.bf16 %v1299
      %v1311 = vunpack.c.l.bf16 %v1300
      %v1312 = vunpack.c.l.bf16 %v1301
      %v1313 = vunpack.c.l.bf16 %v1302
      %v1314 = vunpack.c.l.bf16 %v1303
      %v1315 = vunpack.c.l.bf16 %v1304
      %v1316 = vunpack.c.l.bf16 %v1305
      %v1317 = vunpack.c.l.bf16 %v1306
      %v1318 = vunpack.c.l.bf16 %v1307
      %v1319 = vunpack.c.l.bf16 %v1308
      %v1320 = vunpack.c.l.bf16 %v1309
      %v1321 = vmax.f32 %v1310, 0.0
      %v1322 = vmax.f32 %v1311, 0.0
      %v1323 = vmax.f32 %v1312, 0.0
      %v1324 = vmax.f32 %v1313, 0.0
      %v1325 = vmax.f32 %v1314, 0.0
      %v1326 = vmax.f32 %v1315, 0.0
      %v1327 = vmax.f32 %v1316, 0.0
      %v1328 = vmax.f32 %v1317, 0.0
      %v1329 = vmax.f32 %v1318, 0.0
      %v1330 = vmax.f32 %v1319, 0.0
      %v1331 = vmax.f32 %v1320, 0.0
      %v1332 = vpack.c.bf16 %v1322, %v1321
      %v1333 = vpack.c.bf16 %v1324, %v1323
      %v1334 = vpack.c.bf16 %v1326, %v1325
      %v1335 = vpack.c.bf16 %v1328, %v1327
      %v1336 = vpack.c.bf16 %v1330, %v1329
      %v1337 = vpack.c.bf16 %v1331, %v1331
      %v1338 = vld [vmem:[%s1 + $0x180] sm:$0xf]
      %v1339 = vld [vmem:[%s1 + $0x184] sm:$0xf]
      %v1340 = vld [vmem:[%s1 + $0x188] sm:$0xf]
      %v1341 = vld [vmem:[%s1 + $0x18c] sm:$0xf]
      %v1342 = vld [vmem:[%s1 + $0x190] sm:$0xf]
      %v1343 = vld [vmem:[%s1 + $0x194] sm:$0xf]
      %v1344 = vld [vmem:[%s1 + $0x198] sm:$0xf]
      %v1345 = vld [vmem:[%s1 + $0x19c] sm:$0xf]
      %v1346 = vld [vmem:[%s1 + $0x1a0] sm:$0xf]
      %v1347 = vld [vmem:[%s1 + $0x1a4] sm:$0xf]
      %v1348 = vld [vmem:[%s1 + $0x1a8] sm:$0xf]
      %v1349 = vld [vmem:[%s1 + $0x1ac] sm:$0xf]
      %v1350 = vld [vmem:[%s1 + $0x1b0] sm:$0xf]
      %v1351 = vld [vmem:[%s1 + $0x1b4] sm:$0xf]
      %v1352 = vld [vmem:[%s1 + $0x1b8] sm:$0xf]
      %v1353 = vld [vmem:[%s1 + $0x1bc] sm:$0xf]
      %v1360 = vrot.slane %v1332, 2
      %v1361 = vrot.slane %v1333, 2
      %v1362 = vsel %vm1170, %v1360, %v1361
      %v1363 = vrot.slane %v1334, 2
      %v1364 = vsel %vm1170, %v1361, %v1363
      %v1365 = vrot.slane %v1335, 2
      %v1366 = vsel %vm1170, %v1363, %v1365
      %v1367 = vrot.slane %v1336, 2
      %v1368 = vsel %vm1170, %v1365, %v1367
      %v1369 = vrot.slane %v1337, 2
      %v1370 = vsel %vm1170, %v1367, %v1369
      %v1392 = vunpack.c.l.b16 %v1338
      %v1393 = vunpack.c.l.b16 %v1339
      %v1394 = vunpack.c.l.b16 %v1340
      %v1395 = vunpack.c.l.b16 %v1341
      %v1396 = vunpack.c.l.b16 %v1342
      %v1397 = vunpack.c.l.b16 %v1343
      %v1398 = vunpack.c.l.b16 %v1344
      %v1399 = vunpack.c.l.b16 %v1345
      %v1400 = vunpack.c.l.b16 %v1346
      %v1401 = vunpack.c.l.b16 %v1347
      %v1402 = vunpack.c.l.b16 %v1348
      %v1403 = vunpack.c.l.b16 %v1349
      %v1404 = vunpack.c.l.b16 %v1350
      %v1405 = vunpack.c.l.b16 %v1351
      %v1406 = vunpack.c.l.b16 %v1352
      %v1407 = vunpack.c.l.b16 %v1353
      %v1408 = vpack.c.b16 %v1393, %v1392
      %v1409 = vpack.c.b16 %v1395, %v1394
      %v1410 = vpack.c.b16 %v1397, %v1396
      %v1411 = vpack.c.b16 %v1399, %v1398
      %v1412 = vpack.c.b16 %v1401, %v1400
      %v1413 = vpack.c.b16 %v1403, %v1402
      %v1414 = vpack.c.b16 %v1405, %v1404
      %v1415 = vpack.c.b16 %v1407, %v1406
      %1424 = vmatpush.bf16.msra.mxu0 %v1415
      %1425 = vmatpush.bf16.msra.mxu0 %v1414
      %1426 = vmatpush.bf16.msra.mxu0 %v1413
      %1427 = vmatpush.bf16.msra.mxu0 %v1412
      %1428 = vmatpush.bf16.msra.mxu0 %v1411
      %1429 = vmatpush.bf16.msra.mxu0 %v1410
      %1430 = vmatpush.bf16.msra.mxu0 %v1409
      %1431 = vmatpush.bf16.msra.mxu0 %v1408
      %1432 = vmatmul.bf16.gmra.mxu0 %v1362
      %v1433 = vpop.f32.mrf.mxu0
      %v1434 = vadd.f32 0.0, %v1433
      %v1435 = vpop.f32.mrf.mxu0
      %v1436 = vadd.f32 0.0, %v1435
      %1437 = vmatmul.bf16.gmra.mxu0 %v1364
      %v1438 = vpop.f32.mrf.mxu0
      %v1439 = vadd.f32 0.0, %v1438
      %v1440 = vpop.f32.mrf.mxu0
      %v1441 = vadd.f32 0.0, %v1440
      %1442 = vmatmul.bf16.gmra.mxu0 %v1366
      %v1443 = vpop.f32.mrf.mxu0
      %v1444 = vadd.f32 0.0, %v1443
      %v1445 = vpop.f32.mrf.mxu0
      %v1446 = vadd.f32 0.0, %v1445
      %1447 = vmatmul.bf16.gmra.mxu0 %v1368
      %v1448 = vpop.f32.mrf.mxu0
      %v1449 = vadd.f32 0.0, %v1448
      %v1450 = vpop.f32.mrf.mxu0
      %v1451 = vadd.f32 0.0, %v1450
      %1452 = vmatmul.bf16.gmra.mxu0 %v1370
      %v1453 = vpop.f32.mrf.mxu0
      %v1454 = vadd.f32 0.0, %v1453
      %v1455 = vpop.f32.mrf.mxu0
      %v1456 = vadd.f32 0.0, %v1455
      %1457 = vdwg.mxu0
      %v1458 = vld [vmem:[#allocation2] sm:$0xff]
      %v1459 = vld [vmem:[#allocation2 + $0x8] sm:$0xff]
      %v1460 = vld [vmem:[#allocation2 + $0x10] sm:$0xff]
      %v1461 = vld [vmem:[#allocation2 + $0x18] sm:$0xff]
      %v1462 = vld [vmem:[#allocation2 + $0x20] sm:$0xff]
      %v1463 = vld [vmem:[#allocation2 + $0x28] sm:$0xff]
      %v1464 = vld [vmem:[#allocation2 + $0x30] sm:$0xff]
      %v1465 = vld [vmem:[#allocation2 + $0x38] sm:$0xff]
      %v1466 = vld [vmem:[#allocation2 + $0x40] sm:$0xff]
      %v1467 = vld [vmem:[#allocation2 + $0x48] sm:$0xff]
      %v1468 = vadd.f32 %v1458, %v1434
      %v1469 = vadd.f32 %v1459, %v1436
      %v1470 = vadd.f32 %v1460, %v1439
      %v1471 = vadd.f32 %v1461, %v1441
      %v1472 = vadd.f32 %v1462, %v1444
      %v1473 = vadd.f32 %v1463, %v1446
      %v1474 = vadd.f32 %v1464, %v1449
      %v1475 = vadd.f32 %v1465, %v1451
      %v1476 = vadd.f32 %v1466, %v1454
      %v1477 = vadd.f32 %v1467, %v1456
      %1478 = vst [vmem:[#allocation2] sm:$0xff] %v1468
      %1479 = vst [vmem:[#allocation2 + $0x8] sm:$0xff] %v1469
      %1480 = vst [vmem:[#allocation2 + $0x10] sm:$0xff] %v1470
      %1481 = vst [vmem:[#allocation2 + $0x18] sm:$0xff] %v1471
      %1482 = vst [vmem:[#allocation2 + $0x20] sm:$0xff] %v1472
      %1483 = vst [vmem:[#allocation2 + $0x28] sm:$0xff] %v1473
      %1484 = vst [vmem:[#allocation2 + $0x30] sm:$0xff] %v1474
      %1485 = vst [vmem:[#allocation2 + $0x38] sm:$0xff] %v1475
      %1486 = vst [vmem:[#allocation2 + $0x40] sm:$0xff] %v1476
      %1487 = vst [vmem:[#allocation2 + $0x48] sm:$0xff] %v1477
      %v1488 = vld [vmem:[%s138 + $0x8] sm:$0xc]
      %v1489 = vld [vmem:[%s138 + $0xc] sm:$0xf]
      %v1490 = vld [vmem:[%s138 + $0x10] sm:$0xf]
      %v1491 = vld [vmem:[%s138 + $0x14] sm:$0xf]
      %v1492 = vld [vmem:[%s138 + $0x18] sm:$0xf]
      %v1493 = vld [vmem:[%s138 + $0x1c] sm:$0xf]
      %v1494 = vld [vmem:[%s138 + $0x20] sm:$0xf]
      %v1495 = vld [vmem:[%s138 + $0x24] sm:$0xf]
      %v1496 = vld [vmem:[%s138 + $0x28] sm:$0xf]
      %v1497 = vld [vmem:[%s138 + $0x2c] sm:$0xf]
      %v1498 = vld [vmem:[%s138 + $0x30] sm:$0x7]
      %v1499 = vunpack.c.l.bf16 %v1488
      %v1500 = vunpack.c.l.bf16 %v1489
      %v1501 = vunpack.c.l.bf16 %v1490
      %v1502 = vunpack.c.l.bf16 %v1491
      %v1503 = vunpack.c.l.bf16 %v1492
      %v1504 = vunpack.c.l.bf16 %v1493
      %v1505 = vunpack.c.l.bf16 %v1494
      %v1506 = vunpack.c.l.bf16 %v1495
      %v1507 = vunpack.c.l.bf16 %v1496
      %v1508 = vunpack.c.l.bf16 %v1497
      %v1509 = vunpack.c.l.bf16 %v1498
      %v1510 = vmax.f32 %v1499, 0.0
      %v1511 = vmax.f32 %v1500, 0.0
      %v1512 = vmax.f32 %v1501, 0.0
      %v1513 = vmax.f32 %v1502, 0.0
      %v1514 = vmax.f32 %v1503, 0.0
      %v1515 = vmax.f32 %v1504, 0.0
      %v1516 = vmax.f32 %v1505, 0.0
      %v1517 = vmax.f32 %v1506, 0.0
      %v1518 = vmax.f32 %v1507, 0.0
      %v1519 = vmax.f32 %v1508, 0.0
      %v1520 = vmax.f32 %v1509, 0.0
      %v1521 = vpack.c.bf16 %v1511, %v1510
      %v1522 = vpack.c.bf16 %v1513, %v1512
      %v1523 = vpack.c.bf16 %v1515, %v1514
      %v1524 = vpack.c.bf16 %v1517, %v1516
      %v1525 = vpack.c.bf16 %v1519, %v1518
      %v1526 = vpack.c.bf16 %v1520, %v1520
      %v1527 = vld [vmem:[%s1 + $0x1c0] sm:$0xf]
      %v1528 = vld [vmem:[%s1 + $0x1c4] sm:$0xf]
      %v1529 = vld [vmem:[%s1 + $0x1c8] sm:$0xf]
      %v1530 = vld [vmem:[%s1 + $0x1cc] sm:$0xf]
      %v1531 = vld [vmem:[%s1 + $0x1d0] sm:$0xf]
      %v1532 = vld [vmem:[%s1 + $0x1d4] sm:$0xf]
      %v1533 = vld [vmem:[%s1 + $0x1d8] sm:$0xf]
      %v1534 = vld [vmem:[%s1 + $0x1dc] sm:$0xf]
      %v1535 = vld [vmem:[%s1 + $0x1e0] sm:$0xf]
      %v1536 = vld [vmem:[%s1 + $0x1e4] sm:$0xf]
      %v1537 = vld [vmem:[%s1 + $0x1e8] sm:$0xf]
      %v1538 = vld [vmem:[%s1 + $0x1ec] sm:$0xf]
      %v1539 = vld [vmem:[%s1 + $0x1f0] sm:$0xf]
      %v1540 = vld [vmem:[%s1 + $0x1f4] sm:$0xf]
      %v1541 = vld [vmem:[%s1 + $0x1f8] sm:$0xf]
      %v1542 = vld [vmem:[%s1 + $0x1fc] sm:$0xf]
      %vm1543 = vsmask.f32 5376
      %v1545 = vshrl.u32 %v1521, 16
      %v1547 = vrot.slane %v1545, 2
      %v1548 = vshll.u32 %v1521, 16
      %v1550 = vrot.slane %v1548, 3
      %v1551 = vor.u32 %v1547, %v1550
      %v1553 = vshrl.u32 %v1522, 16
      %v1555 = vrot.slane %v1553, 2
      %v1556 = vshll.u32 %v1522, 16
      %v1558 = vrot.slane %v1556, 3
      %v1559 = vor.u32 %v1555, %v1558
      %v1560 = vsel %vm1543, %v1551, %v1559
      %v1562 = vshrl.u32 %v1523, 16
      %v1564 = vrot.slane %v1562, 2
      %v1565 = vshll.u32 %v1523, 16
      %v1567 = vrot.slane %v1565, 3
      %v1568 = vor.u32 %v1564, %v1567
      %v1569 = vsel %vm1543, %v1559, %v1568
      %v1571 = vshrl.u32 %v1524, 16
      %v1573 = vrot.slane %v1571, 2
      %v1574 = vshll.u32 %v1524, 16
      %v1576 = vrot.slane %v1574, 3
      %v1577 = vor.u32 %v1573, %v1576
      %v1578 = vsel %vm1543, %v1568, %v1577
      %v1580 = vshrl.u32 %v1525, 16
      %v1582 = vrot.slane %v1580, 2
      %v1583 = vshll.u32 %v1525, 16
      %v1585 = vrot.slane %v1583, 3
      %v1586 = vor.u32 %v1582, %v1585
      %v1587 = vsel %vm1543, %v1577, %v1586
      %v1589 = vshrl.u32 %v1526, 16
      %v1591 = vrot.slane %v1589, 2
      %v1592 = vshll.u32 %v1526, 16
      %v1594 = vrot.slane %v1592, 3
      %v1595 = vor.u32 %v1591, %v1594
      %v1596 = vsel %vm1543, %v1586, %v1595
      %v1618 = vunpack.c.l.b16 %v1527
      %v1619 = vunpack.c.l.b16 %v1528
      %v1620 = vunpack.c.l.b16 %v1529
      %v1621 = vunpack.c.l.b16 %v1530
      %v1622 = vunpack.c.l.b16 %v1531
      %v1623 = vunpack.c.l.b16 %v1532
      %v1624 = vunpack.c.l.b16 %v1533
      %v1625 = vunpack.c.l.b16 %v1534
      %v1626 = vunpack.c.l.b16 %v1535
      %v1627 = vunpack.c.l.b16 %v1536
      %v1628 = vunpack.c.l.b16 %v1537
      %v1629 = vunpack.c.l.b16 %v1538
      %v1630 = vunpack.c.l.b16 %v1539
      %v1631 = vunpack.c.l.b16 %v1540
      %v1632 = vunpack.c.l.b16 %v1541
      %v1633 = vunpack.c.l.b16 %v1542
      %v1634 = vpack.c.b16 %v1619, %v1618
      %v1635 = vpack.c.b16 %v1621, %v1620
      %v1636 = vpack.c.b16 %v1623, %v1622
      %v1637 = vpack.c.b16 %v1625, %v1624
      %v1638 = vpack.c.b16 %v1627, %v1626
      %v1639 = vpack.c.b16 %v1629, %v1628
      %v1640 = vpack.c.b16 %v1631, %v1630
      %v1641 = vpack.c.b16 %v1633, %v1632
      %1650 = vmatpush.bf16.msra.mxu0 %v1641
      %1651 = vmatpush.bf16.msra.mxu0 %v1640
      %1652 = vmatpush.bf16.msra.mxu0 %v1639
      %1653 = vmatpush.bf16.msra.mxu0 %v1638
      %1654 = vmatpush.bf16.msra.mxu0 %v1637
      %1655 = vmatpush.bf16.msra.mxu0 %v1636
      %1656 = vmatpush.bf16.msra.mxu0 %v1635
      %1657 = vmatpush.bf16.msra.mxu0 %v1634
      %1658 = vmatmul.bf16.gmra.mxu0 %v1560
      %v1659 = vpop.f32.mrf.mxu0
      %v1660 = vadd.f32 0.0, %v1659
      %v1661 = vpop.f32.mrf.mxu0
      %v1662 = vadd.f32 0.0, %v1661
      %1663 = vmatmul.bf16.gmra.mxu0 %v1569
      %v1664 = vpop.f32.mrf.mxu0
      %v1665 = vadd.f32 0.0, %v1664
      %v1666 = vpop.f32.mrf.mxu0
      %v1667 = vadd.f32 0.0, %v1666
      %1668 = vmatmul.bf16.gmra.mxu0 %v1578
      %v1669 = vpop.f32.mrf.mxu0
      %v1670 = vadd.f32 0.0, %v1669
      %v1671 = vpop.f32.mrf.mxu0
      %v1672 = vadd.f32 0.0, %v1671
      %1673 = vmatmul.bf16.gmra.mxu0 %v1587
      %v1674 = vpop.f32.mrf.mxu0
      %v1675 = vadd.f32 0.0, %v1674
      %v1676 = vpop.f32.mrf.mxu0
      %v1677 = vadd.f32 0.0, %v1676
      %1678 = vmatmul.bf16.gmra.mxu0 %v1596
      %v1679 = vpop.f32.mrf.mxu0
      %v1680 = vadd.f32 0.0, %v1679
      %v1681 = vpop.f32.mrf.mxu0
      %v1682 = vadd.f32 0.0, %v1681
      %1683 = vdwg.mxu0
      %v1684 = vld [vmem:[#allocation2] sm:$0xff]
      %v1685 = vld [vmem:[#allocation2 + $0x8] sm:$0xff]
      %v1686 = vld [vmem:[#allocation2 + $0x10] sm:$0xff]
      %v1687 = vld [vmem:[#allocation2 + $0x18] sm:$0xff]
      %v1688 = vld [vmem:[#allocation2 + $0x20] sm:$0xff]
      %v1689 = vld [vmem:[#allocation2 + $0x28] sm:$0xff]
      %v1690 = vld [vmem:[#allocation2 + $0x30] sm:$0xff]
      %v1691 = vld [vmem:[#allocation2 + $0x38] sm:$0xff]
      %v1692 = vld [vmem:[#allocation2 + $0x40] sm:$0xff]
      %v1693 = vld [vmem:[#allocation2 + $0x48] sm:$0xff]
      %v1694 = vadd.f32 %v1684, %v1660
      %v1695 = vadd.f32 %v1685, %v1662
      %v1696 = vadd.f32 %v1686, %v1665
      %v1697 = vadd.f32 %v1687, %v1667
      %v1698 = vadd.f32 %v1688, %v1670
      %v1699 = vadd.f32 %v1689, %v1672
      %v1700 = vadd.f32 %v1690, %v1675
      %v1701 = vadd.f32 %v1691, %v1677
      %v1702 = vadd.f32 %v1692, %v1680
      %v1703 = vadd.f32 %v1693, %v1682
      %1704 = vst [vmem:[#allocation2] sm:$0xff] %v1694
      %1705 = vst [vmem:[#allocation2 + $0x8] sm:$0xff] %v1695
      %1706 = vst [vmem:[#allocation2 + $0x10] sm:$0xff] %v1696
      %1707 = vst [vmem:[#allocation2 + $0x18] sm:$0xff] %v1697
      %1708 = vst [vmem:[#allocation2 + $0x20] sm:$0xff] %v1698
      %1709 = vst [vmem:[#allocation2 + $0x28] sm:$0xff] %v1699
      %1710 = vst [vmem:[#allocation2 + $0x30] sm:$0xff] %v1700
      %1711 = vst [vmem:[#allocation2 + $0x38] sm:$0xff] %v1701
      %1712 = vst [vmem:[#allocation2 + $0x40] sm:$0xff] %v1702
      %1713 = vst [vmem:[#allocation2 + $0x48] sm:$0xff] %v1703
      %v1714 = vld [vmem:[%s138 + $0x8] sm:$0x8]
      %v1715 = vld [vmem:[%s138 + $0xc] sm:$0xf]
      %v1716 = vld [vmem:[%s138 + $0x10] sm:$0xf]
      %v1717 = vld [vmem:[%s138 + $0x14] sm:$0xf]
      %v1718 = vld [vmem:[%s138 + $0x18] sm:$0xf]
      %v1719 = vld [vmem:[%s138 + $0x1c] sm:$0xf]
      %v1720 = vld [vmem:[%s138 + $0x20] sm:$0xf]
      %v1721 = vld [vmem:[%s138 + $0x24] sm:$0xf]
      %v1722 = vld [vmem:[%s138 + $0x28] sm:$0xf]
      %v1723 = vld [vmem:[%s138 + $0x2c] sm:$0xf]
      %v1724 = vld [vmem:[%s138 + $0x30] sm:$0x7]
      %v1725 = vunpack.c.l.bf16 %v1714
      %v1726 = vunpack.c.l.bf16 %v1715
      %v1727 = vunpack.c.l.bf16 %v1716
      %v1728 = vunpack.c.l.bf16 %v1717
      %v1729 = vunpack.c.l.bf16 %v1718
      %v1730 = vunpack.c.l.bf16 %v1719
      %v1731 = vunpack.c.l.bf16 %v1720
      %v1732 = vunpack.c.l.bf16 %v1721
      %v1733 = vunpack.c.l.bf16 %v1722
      %v1734 = vunpack.c.l.bf16 %v1723
      %v1735 = vunpack.c.l.bf16 %v1724
      %v1736 = vmax.f32 %v1725, 0.0
      %v1737 = vmax.f32 %v1726, 0.0
      %v1738 = vmax.f32 %v1727, 0.0
      %v1739 = vmax.f32 %v1728, 0.0
      %v1740 = vmax.f32 %v1729, 0.0
      %v1741 = vmax.f32 %v1730, 0.0
      %v1742 = vmax.f32 %v1731, 0.0
      %v1743 = vmax.f32 %v1732, 0.0
      %v1744 = vmax.f32 %v1733, 0.0
      %v1745 = vmax.f32 %v1734, 0.0
      %v1746 = vmax.f32 %v1735, 0.0
      %v1747 = vpack.c.bf16 %v1737, %v1736
      %v1748 = vpack.c.bf16 %v1739, %v1738
      %v1749 = vpack.c.bf16 %v1741, %v1740
      %v1750 = vpack.c.bf16 %v1743, %v1742
      %v1751 = vpack.c.bf16 %v1745, %v1744
      %v1752 = vpack.c.bf16 %v1746, %v1746
      %v1753 = vld [vmem:[%s1 + $0x200] sm:$0xf]
      %v1754 = vld [vmem:[%s1 + $0x204] sm:$0xf]
      %v1755 = vld [vmem:[%s1 + $0x208] sm:$0xf]
      %v1756 = vld [vmem:[%s1 + $0x20c] sm:$0xf]
      %v1757 = vld [vmem:[%s1 + $0x210] sm:$0xf]
      %v1758 = vld [vmem:[%s1 + $0x214] sm:$0xf]
      %v1759 = vld [vmem:[%s1 + $0x218] sm:$0xf]
      %v1760 = vld [vmem:[%s1 + $0x21c] sm:$0xf]
      %v1761 = vld [vmem:[%s1 + $0x220] sm:$0xf]
      %v1762 = vld [vmem:[%s1 + $0x224] sm:$0xf]
      %v1763 = vld [vmem:[%s1 + $0x228] sm:$0xf]
      %v1764 = vld [vmem:[%s1 + $0x22c] sm:$0xf]
      %v1765 = vld [vmem:[%s1 + $0x230] sm:$0xf]
      %v1766 = vld [vmem:[%s1 + $0x234] sm:$0xf]
      %v1767 = vld [vmem:[%s1 + $0x238] sm:$0xf]
      %v1768 = vld [vmem:[%s1 + $0x23c] sm:$0xf]
      %vm1775 = vcmask 1044480
      %v1776 = vrot.slane %v1747, 3
      %v1777 = vrot.slane %v1748, 3
      %v1778 = vsel %vm1775, %v1776, %v1777
      %v1779 = vrot.slane %v1749, 3
      %v1780 = vsel %vm1775, %v1777, %v1779
      %v1781 = vrot.slane %v1750, 3
      %v1782 = vsel %vm1775, %v1779, %v1781
      %v1783 = vrot.slane %v1751, 3
      %v1784 = vsel %vm1775, %v1781, %v1783
      %v1785 = vrot.slane %v1752, 3
      %v1786 = vsel %vm1775, %v1783, %v1785
      %v1808 = vunpack.c.l.b16 %v1753
      %v1809 = vunpack.c.l.b16 %v1754
      %v1810 = vunpack.c.l.b16 %v1755
      %v1811 = vunpack.c.l.b16 %v1756
      %v1812 = vunpack.c.l.b16 %v1757
      %v1813 = vunpack.c.l.b16 %v1758
      %v1814 = vunpack.c.l.b16 %v1759
      %v1815 = vunpack.c.l.b16 %v1760
      %v1816 = vunpack.c.l.b16 %v1761
      %v1817 = vunpack.c.l.b16 %v1762
      %v1818 = vunpack.c.l.b16 %v1763
      %v1819 = vunpack.c.l.b16 %v1764
      %v1820 = vunpack.c.l.b16 %v1765
      %v1821 = vunpack.c.l.b16 %v1766
      %v1822 = vunpack.c.l.b16 %v1767
      %v1823 = vunpack.c.l.b16 %v1768
      %v1824 = vpack.c.b16 %v1809, %v1808
      %v1825 = vpack.c.b16 %v1811, %v1810
      %v1826 = vpack.c.b16 %v1813, %v1812
      %v1827 = vpack.c.b16 %v1815, %v1814
      %v1828 = vpack.c.b16 %v1817, %v1816
      %v1829 = vpack.c.b16 %v1819, %v1818
      %v1830 = vpack.c.b16 %v1821, %v1820
      %v1831 = vpack.c.b16 %v1823, %v1822
      %1840 = vmatpush.bf16.msra.mxu0 %v1831
      %1841 = vmatpush.bf16.msra.mxu0 %v1830
      %1842 = vmatpush.bf16.msra.mxu0 %v1829
      %1843 = vmatpush.bf16.msra.mxu0 %v1828
      %1844 = vmatpush.bf16.msra.mxu0 %v1827
      %1845 = vmatpush.bf16.msra.mxu0 %v1826
      %1846 = vmatpush.bf16.msra.mxu0 %v1825
      %1847 = vmatpush.bf16.msra.mxu0 %v1824
      %1848 = vmatmul.bf16.gmra.mxu0 %v1778
      %v1849 = vpop.f32.mrf.mxu0
      %v1850 = vadd.f32 0.0, %v1849
      %v1851 = vpop.f32.mrf.mxu0
      %v1852 = vadd.f32 0.0, %v1851
      %1853 = vmatmul.bf16.gmra.mxu0 %v1780
      %v1854 = vpop.f32.mrf.mxu0
      %v1855 = vadd.f32 0.0, %v1854
      %v1856 = vpop.f32.mrf.mxu0
      %v1857 = vadd.f32 0.0, %v1856
      %1858 = vmatmul.bf16.gmra.mxu0 %v1782
      %v1859 = vpop.f32.mrf.mxu0
      %v1860 = vadd.f32 0.0, %v1859
      %v1861 = vpop.f32.mrf.mxu0
      %v1862 = vadd.f32 0.0, %v1861
      %1863 = vmatmul.bf16.gmra.mxu0 %v1784
      %v1864 = vpop.f32.mrf.mxu0
      %v1865 = vadd.f32 0.0, %v1864
      %v1866 = vpop.f32.mrf.mxu0
      %v1867 = vadd.f32 0.0, %v1866
      %1868 = vmatmul.bf16.gmra.mxu0 %v1786
      %v1869 = vpop.f32.mrf.mxu0
      %v1870 = vadd.f32 0.0, %v1869
      %v1871 = vpop.f32.mrf.mxu0
      %v1872 = vadd.f32 0.0, %v1871
      %1873 = vdwg.mxu0
      %v1874 = vld [vmem:[#allocation2] sm:$0xff]
      %v1875 = vld [vmem:[#allocation2 + $0x8] sm:$0xff]
      %v1876 = vld [vmem:[#allocation2 + $0x10] sm:$0xff]
      %v1877 = vld [vmem:[#allocation2 + $0x18] sm:$0xff]
      %v1878 = vld [vmem:[#allocation2 + $0x20] sm:$0xff]
      %v1879 = vld [vmem:[#allocation2 + $0x28] sm:$0xff]
      %v1880 = vld [vmem:[#allocation2 + $0x30] sm:$0xff]
      %v1881 = vld [vmem:[#allocation2 + $0x38] sm:$0xff]
      %v1882 = vld [vmem:[#allocation2 + $0x40] sm:$0xff]
      %v1883 = vld [vmem:[#allocation2 + $0x48] sm:$0xff]
      %v1884 = vadd.f32 %v1874, %v1850
      %v1885 = vadd.f32 %v1875, %v1852
      %v1886 = vadd.f32 %v1876, %v1855
      %v1887 = vadd.f32 %v1877, %v1857
      %v1888 = vadd.f32 %v1878, %v1860
      %v1889 = vadd.f32 %v1879, %v1862
      %v1890 = vadd.f32 %v1880, %v1865
      %v1891 = vadd.f32 %v1881, %v1867
      %v1892 = vadd.f32 %v1882, %v1870
      %v1893 = vadd.f32 %v1883, %v1872
      %1894 = vst [vmem:[#allocation2] sm:$0xff] %v1884
      %1895 = vst [vmem:[#allocation2 + $0x8] sm:$0xff] %v1885
      %1896 = vst [vmem:[#allocation2 + $0x10] sm:$0xff] %v1886
      %1897 = vst [vmem:[#allocation2 + $0x18] sm:$0xff] %v1887
      %1898 = vst [vmem:[#allocation2 + $0x20] sm:$0xff] %v1888
      %1899 = vst [vmem:[#allocation2 + $0x28] sm:$0xff] %v1889
      %1900 = vst [vmem:[#allocation2 + $0x30] sm:$0xff] %v1890
      %1901 = vst [vmem:[#allocation2 + $0x38] sm:$0xff] %v1891
      %1902 = vst [vmem:[#allocation2 + $0x40] sm:$0xff] %v1892
      %1903 = vst [vmem:[#allocation2 + $0x48] sm:$0xff] %v1893
      %v1904 = vld [vmem:[#allocation2] sm:$0xff]
      %v1905 = vld [vmem:[#allocation2 + $0x8] sm:$0xff]
      %v1906 = vld [vmem:[#allocation2 + $0x10] sm:$0xff]
      %v1907 = vld [vmem:[#allocation2 + $0x18] sm:$0xff]
      %v1908 = vld [vmem:[#allocation2 + $0x20] sm:$0xff]
      %v1909 = vld [vmem:[#allocation2 + $0x28] sm:$0xff]
      %v1910 = vld [vmem:[#allocation2 + $0x30] sm:$0xff]
      %v1911 = vld [vmem:[#allocation2 + $0x38] sm:$0xff]
      %v1912 = vld [vmem:[#allocation2 + $0x40] sm:$0xff]
      %v1913 = vld [vmem:[#allocation2 + $0x48] sm:$0xff]
      %v1914 = vpack.c.bf16 %v1904, %v1904
      %v1915 = vpack.c.bf16 %v1905, %v1905
      %v1916 = vpack.c.bf16 %v1906, %v1906
      %v1917 = vpack.c.bf16 %v1907, %v1907
      %v1918 = vpack.c.bf16 %v1908, %v1908
      %v1919 = vpack.c.bf16 %v1909, %v1909
      %v1920 = vpack.c.bf16 %v1910, %v1910
      %v1921 = vpack.c.bf16 %v1911, %v1911
      %v1922 = vpack.c.bf16 %v1912, %v1912
      %v1923 = vpack.c.bf16 %v1913, %v1913
      %1924 = vst [vmem:[%s143] sm:$0xf] %v1914
      %1925 = vst [vmem:[%s143 + $0x4] sm:$0xf] %v1915
      %1926 = vst [vmem:[%s143 + $0x8] sm:$0xf] %v1916
      %1927 = vst [vmem:[%s143 + $0xc] sm:$0xf] %v1917
      %1928 = vst [vmem:[%s143 + $0x10] sm:$0xf] %v1918
      %1929 = vst [vmem:[%s143 + $0x14] sm:$0xf] %v1919
      %1930 = vst [vmem:[%s143 + $0x18] sm:$0xf] %v1920
      %1931 = vst [vmem:[%s143 + $0x1c] sm:$0xf] %v1921
      %1932 = vst [vmem:[%s143 + $0x20] sm:$0xf] %v1922
      %1933 = vst [vmem:[%s143 + $0x24] sm:$0xf] %v1923
      %p1934 = scmp.lt.s32.totalorder %s13, 1
      %s1935 = scalar_select %p1934, %s13, 1
      %s1936 = smul.addr %s1935, 10
      %s1937 = smul.addr %s1936, 4
      %s1938 = scalar_lea.vmem %s2, %s1937
      // Predicated region
      $region29: #{densenet_forward.16} parent=27 // pred_check
        %p1939 = pneg %p78
      $region30: #{densenet_forward.16} parent=27 // pred_check_branch
        %1941 = sbr.rel (%p1939) target = $region32
      $region31: #{densenet_forward.16} parent=27 // pred_region
        _
      $region32: #{densenet_forward.16} parent=27 // pred_fallthru
        _
    $region28: #{densenet_forward.16} parent=5 // pred_fallthru
      _
    %p1942 = scmp.le.s32.totalorder 2, %s8
    // Predicated region
    $region33: #{densenet_forward.16} parent=5 // pred_check
      %p1943 = pneg %p1942
    $region34: #{densenet_forward.16} parent=5 // pred_check_branch
      %1945 = sbr.rel (%p1943) target = $region36
    $region35: #{densenet_forward.16} parent=5 // pred_region
      %s1946 = ssub.s32 %s8, 2
      // Predicated region
      $region37: #{densenet_forward.16} parent=35 // pred_check
        %p1947 = pneg %p84
      $region38: #{densenet_forward.16} parent=35 // pred_check_branch
        %1949 = sbr.rel (%p1947) target = $region40
      $region39: #{densenet_forward.16} parent=35 // pred_region
        %p1950 = scmp.lt.s32.totalorder %s14, 1
        %s1951 = scalar_select %p1950, %s14, 1
        %s1952 = smul.addr %s1951, 10
        %s1953 = smul.addr %s1952, 4
        %s1954 = scalar_lea.vmem %s2, %s1953
      $region40: #{densenet_forward.16} parent=35 // pred_fallthru
        _
    $region36: #{densenet_forward.16} parent=5 // pred_fallthru
      _
  $region6: #{densenet_forward.16} parent=0 // loop_footer
    %s12 = sadd.s32 1, %s8
  $region7: #{densenet_forward.16} parent=0 // loop_footer_branch
    %7 = sbr.rel target = $region3
  $region8: #{densenet_forward.16} parent=0 // loop_exit
    _

// kernel: densenet_forward.21
$region0: #{densenet_forward.21}
  #allocation0 [shape = 'u32[]', space=smem, size = 0x4, offset = 0x4, fixed_abs, tag = 'smem constant byte address 0x4 - core index']
  #allocation1 [shape = 'u32[72,128]{1,0:T(1,128)}', space=vmem, size = 0x9000, scoped, tag = 'internal scratch']
  #allocation2 [shape = 'f32[32,128]{1,0:T(8,128)}', space=vmem, size = 0x4000, scoped, tag = 'scratch operand']
  %s0 = inlined_call_operand.vmem [shape: bf16[32,128], index: 0, kind: input, shape index: {}]
  %s1 = inlined_call_operand.vmem [shape: bf16[128,128], index: 1, kind: input, shape index: {}]
  %s2 = inlined_call_operand.vmem [shape: bf16[32,128], index: 2, kind: output, shape index: {}]
  %s3 = sld [smem:[#allocation0]]
  $region26: #{densenet_forward.21} parent=0
    _
  %s5 = ssub.s32 1, %s3
  %s6 = scalar_select 0, %s5, %s3
  // Predicated region
  $region2: #{densenet_forward.21} parent=0 // pred_check
    _
  $region3: #{densenet_forward.21} parent=0 // pred_check_branch
    %8 = sbr.rel (0) target = $region5
  $region4: #{densenet_forward.21} parent=0 // pred_region
    _
  $region5: #{densenet_forward.21} parent=0 // pred_fallthru
    _
  // Predicated region
  $region6: #{densenet_forward.21} parent=0 // pred_check
    _
  $region7: #{densenet_forward.21} parent=0 // pred_check_branch
    %10 = sbr.rel (0) target = $region9
  $region8: #{densenet_forward.21} parent=0 // pred_region
    _
  $region9: #{densenet_forward.21} parent=0 // pred_fallthru
    _
  %p11 = scmp.eq.s32.totalorder 0, 0
  // Predicated region
  $region10: #{densenet_forward.21} parent=0 // pred_check
    %p12 = pneg %p11
  $region11: #{densenet_forward.21} parent=0 // pred_check_branch
    %14 = sbr.rel (%p12) target = $region13
  $region12: #{densenet_forward.21} parent=0 // pred_region
    %15 = vst [vmem:[#allocation2] sm:$0xff] 0.0
    %16 = vst [vmem:[#allocation2 + $0x8] sm:$0xff] 0.0
    %17 = vst [vmem:[#allocation2 + $0x10] sm:$0xff] 0.0
    %18 = vst [vmem:[#allocation2 + $0x18] sm:$0xff] 0.0
  $region13: #{densenet_forward.21} parent=0 // pred_fallthru
    _
  %v19 = vld [vmem:[%s0] sm:$0xf]
  %v20 = vld [vmem:[%s0 + $0x4] sm:$0xf]
  %v21 = vld [vmem:[%s0 + $0x8] sm:$0xf]
  %v22 = vld [vmem:[%s0 + $0xc] sm:$0xf]
  %v23 = vunpack.c.l.bf16 %v19
  %v24 = vunpack.c.l.bf16 %v20
  %v25 = vunpack.c.l.bf16 %v21
  %v26 = vunpack.c.l.bf16 %v22
  %v27 = vmax.f32 %v23, 0.0
  %v28 = vmax.f32 %v24, 0.0
  %v29 = vmax.f32 %v25, 0.0
  %v30 = vmax.f32 %v26, 0.0
  %v31 = vpack.c.bf16 %v28, %v27
  %v32 = vpack.c.bf16 %v30, %v29
  %s33 = smul.u32 0, 128
  %s34 = sshra.s32 %s33, 3
  %s35 = sand.u32 %s33, 7
  %s36 = smul.addr %s34, 4
  %s37 = scalar_lea.vmem %s1, %s36
  %v38 = vld [vmem:[%s37] sm:$0xf]
  %v39 = vld [vmem:[%s37 + $0x4] sm:$0xf]
  %v40 = vld [vmem:[%s37 + $0x8] sm:$0xf]
  %v41 = vld [vmem:[%s37 + $0xc] sm:$0xf]
  %v42 = vld [vmem:[%s37 + $0x10] sm:$0xf]
  %v43 = vld [vmem:[%s37 + $0x14] sm:$0xf]
  %v44 = vld [vmem:[%s37 + $0x18] sm:$0xf]
  %v45 = vld [vmem:[%s37 + $0x1c] sm:$0xf]
  %v46 = vld [vmem:[%s37 + $0x20] sm:$0xf]
  %v47 = vld [vmem:[%s37 + $0x24] sm:$0xf]
  %v48 = vld [vmem:[%s37 + $0x28] sm:$0xf]
  %v49 = vld [vmem:[%s37 + $0x2c] sm:$0xf]
  %v50 = vld [vmem:[%s37 + $0x30] sm:$0xf]
  %v51 = vld [vmem:[%s37 + $0x34] sm:$0xf]
  %v52 = vld [vmem:[%s37 + $0x38] sm:$0xf]
  %v53 = vld [vmem:[%s37 + $0x3c] sm:$0xf]
  %v54 = vld [vmem:[#allocation2] sm:$0xff]
  %v55 = vld [vmem:[#allocation2 + $0x8] sm:$0xff]
  %v56 = vld [vmem:[#allocation2 + $0x10] sm:$0xff]
  %v57 = vld [vmem:[#allocation2 + $0x18] sm:$0xff]
  %v74 = vunpack.c.l.b16 %v38
  %v75 = vunpack.c.l.b16 %v39
  %v76 = vunpack.c.l.b16 %v40
  %v77 = vunpack.c.l.b16 %v41
  %v78 = vunpack.c.l.b16 %v42
  %v79 = vunpack.c.l.b16 %v43
  %v80 = vunpack.c.l.b16 %v44
  %v81 = vunpack.c.l.b16 %v45
  %v82 = vunpack.c.l.b16 %v46
  %v83 = vunpack.c.l.b16 %v47
  %v84 = vunpack.c.l.b16 %v48
  %v85 = vunpack.c.l.b16 %v49
  %v86 = vunpack.c.l.b16 %v50
  %v87 = vunpack.c.l.b16 %v51
  %v88 = vunpack.c.l.b16 %v52
  %v89 = vunpack.c.l.b16 %v53
  %v90 = vpack.c.b16 %v75, %v74
  %v91 = vpack.c.b16 %v77, %v76
  %v92 = vpack.c.b16 %v79, %v78
  %v93 = vpack.c.b16 %v81, %v80
  %v94 = vpack.c.b16 %v83, %v82
  %v95 = vpack.c.b16 %v85, %v84
  %v96 = vpack.c.b16 %v87, %v86
  %v97 = vpack.c.b16 %v89, %v88
  %106 = vmatpush.bf16.msra.mxu0 %v97
  %107 = vmatpush.bf16.msra.mxu0 %v96
  %108 = vmatpush.bf16.msra.mxu0 %v95
  %109 = vmatpush.bf16.msra.mxu0 %v94
  %110 = vmatpush.bf16.msra.mxu0 %v93
  %111 = vmatpush.bf16.msra.mxu0 %v92
  %112 = vmatpush.bf16.msra.mxu0 %v91
  %113 = vmatpush.bf16.msra.mxu0 %v90
  %114 = vmatmul.bf16.gmra.mxu0 %v31
  %v115 = vpop.f32.mrf.mxu0
  %v116 = vadd.f32 0.0, %v115
  %v117 = vpop.f32.mrf.mxu0
  %v118 = vadd.f32 0.0, %v117
  %119 = vmatmul.bf16.gmra.mxu0 %v32
  %v120 = vpop.f32.mrf.mxu0
  %v121 = vadd.f32 0.0, %v120
  %v122 = vpop.f32.mrf.mxu0
  %v123 = vadd.f32 0.0, %v122
  %124 = vdwg.mxu0
  %v125 = vadd.f32 %v54, %v116
  %v126 = vadd.f32 %v55, %v118
  %v127 = vadd.f32 %v56, %v121
  %v128 = vadd.f32 %v57, %v123
  %129 = vst [vmem:[#allocation2] sm:$0xff] %v125
  %130 = vst [vmem:[#allocation2 + $0x8] sm:$0xff] %v126
  %131 = vst [vmem:[#allocation2 + $0x10] sm:$0xff] %v127
  %132 = vst [vmem:[#allocation2 + $0x18] sm:$0xff] %v128
  // Predicated region
  $region14: #{densenet_forward.21} parent=0 // pred_check
    %p133 = pneg %p11
  $region15: #{densenet_forward.21} parent=0 // pred_check_branch
    %135 = sbr.rel (%p133) target = $region17
  $region16: #{densenet_forward.21} parent=0 // pred_region
    %v136 = vld [vmem:[#allocation2] sm:$0xff]
    %v137 = vld [vmem:[#allocation2 + $0x8] sm:$0xff]
    %v138 = vld [vmem:[#allocation2 + $0x10] sm:$0xff]
    %v139 = vld [vmem:[#allocation2 + $0x18] sm:$0xff]
    %v140 = vpack.c.bf16 %v136, %v136
    %v141 = vpack.c.bf16 %v137, %v137
    %v142 = vpack.c.bf16 %v138, %v138
    %v143 = vpack.c.bf16 %v139, %v139
    %144 = vst [vmem:[%s2] sm:$0xf] %v140
    %145 = vst [vmem:[%s2 + $0x4] sm:$0xf] %v141
    %146 = vst [vmem:[%s2 + $0x8] sm:$0xf] %v142
    %147 = vst [vmem:[%s2 + $0xc] sm:$0xf] %v143
  $region17: #{densenet_forward.21} parent=0 // pred_fallthru
    _
  // Predicated region
  $region18: #{densenet_forward.21} parent=0 // pred_check
    _
  $region19: #{densenet_forward.21} parent=0 // pred_check_branch
    %149 = sbr.rel (0) target = $region21
  $region20: #{densenet_forward.21} parent=0 // pred_region
    _
  $region21: #{densenet_forward.21} parent=0 // pred_fallthru
    _
  // Predicated region
  $region22: #{densenet_forward.21} parent=0 // pred_check
    _
  $region23: #{densenet_forward.21} parent=0 // pred_check_branch
    %151 = sbr.rel (0) target = $region25
  $region24: #{densenet_forward.21} parent=0 // pred_region
    _
  $region25: #{densenet_forward.21} parent=0 // pred_fallthru
    _

// kernel: densenet_forward.20
$region0: #{densenet_forward.20}
  #allocation0 [shape = 'u32[]', space=smem, size = 0x4, offset = 0x4, fixed_abs, tag = 'smem constant byte address 0x4 - core index']
  #allocation1 [shape = 'u32[72,128]{1,0:T(1,128)}', space=vmem, size = 0x9000, scoped, tag = 'internal scratch']
  #allocation2 [shape = 'f32[32,128]{1,0:T(8,128)}', space=vmem, size = 0x4000, scoped, tag = 'scratch operand']
  %s0 = inlined_call_operand.vmem [shape: bf16[32,128], index: 0, kind: input, shape index: {}]
  %s1 = inlined_call_operand.vmem [shape: bf16[128,128], index: 1, kind: input, shape index: {}]
  %s2 = inlined_call_operand.vmem [shape: bf16[32,128], index: 2, kind: output, shape index: {}]
  %s3 = sld [smem:[#allocation0]]
  $region26: #{densenet_forward.20} parent=0
    _
  %s5 = ssub.s32 1, %s3
  %s6 = scalar_select 0, %s5, %s3
  // Predicated region
  $region2: #{densenet_forward.20} parent=0 // pred_check
    _
  $region3: #{densenet_forward.20} parent=0 // pred_check_branch
    %8 = sbr.rel (0) target = $region5
  $region4: #{densenet_forward.20} parent=0 // pred_region
    _
  $region5: #{densenet_forward.20} parent=0 // pred_fallthru
    _
  // Predicated region
  $region6: #{densenet_forward.20} parent=0 // pred_check
    _
  $region7: #{densenet_forward.20} parent=0 // pred_check_branch
    %10 = sbr.rel (0) target = $region9
  $region8: #{densenet_forward.20} parent=0 // pred_region
    _
  $region9: #{densenet_forward.20} parent=0 // pred_fallthru
    _
  %p11 = scmp.eq.s32.totalorder 0, 0
  // Predicated region
  $region10: #{densenet_forward.20} parent=0 // pred_check
    %p12 = pneg %p11
  $region11: #{densenet_forward.20} parent=0 // pred_check_branch
    %14 = sbr.rel (%p12) target = $region13
  $region12: #{densenet_forward.20} parent=0 // pred_region
    %15 = vst [vmem:[#allocation2] sm:$0xff] 0.0
    %16 = vst [vmem:[#allocation2 + $0x8] sm:$0xff] 0.0
    %17 = vst [vmem:[#allocation2 + $0x10] sm:$0xff] 0.0
    %18 = vst [vmem:[#allocation2 + $0x18] sm:$0xff] 0.0
  $region13: #{densenet_forward.20} parent=0 // pred_fallthru
    _
  %v19 = vld [vmem:[%s0] sm:$0xf]
  %v20 = vld [vmem:[%s0 + $0x4] sm:$0xf]
  %v21 = vld [vmem:[%s0 + $0x8] sm:$0xf]
  %v22 = vld [vmem:[%s0 + $0xc] sm:$0xf]
  %s23 = smul.u32 0, 128
  %s24 = sshra.s32 %s23, 3
  %s25 = sand.u32 %s23, 7
  %s26 = smul.addr %s24, 4
  %s27 = scalar_lea.vmem %s1, %s26
  %v28 = vld [vmem:[%s27] sm:$0xf]
  %v29 = vld [vmem:[%s27 + $0x4] sm:$0xf]
  %v30 = vld [vmem:[%s27 + $0x8] sm:$0xf]
  %v31 = vld [vmem:[%s27 + $0xc] sm:$0xf]
  %v32 = vld [vmem:[%s27 + $0x10] sm:$0xf]
  %v33 = vld [vmem:[%s27 + $0x14] sm:$0xf]
  %v34 = vld [vmem:[%s27 + $0x18] sm:$0xf]
  %v35 = vld [vmem:[%s27 + $0x1c] sm:$0xf]
  %v36 = vld [vmem:[%s27 + $0x20] sm:$0xf]
  %v37 = vld [vmem:[%s27 + $0x24] sm:$0xf]
  %v38 = vld [vmem:[%s27 + $0x28] sm:$0xf]
  %v39 = vld [vmem:[%s27 + $0x2c] sm:$0xf]
  %v40 = vld [vmem:[%s27 + $0x30] sm:$0xf]
  %v41 = vld [vmem:[%s27 + $0x34] sm:$0xf]
  %v42 = vld [vmem:[%s27 + $0x38] sm:$0xf]
  %v43 = vld [vmem:[%s27 + $0x3c] sm:$0xf]
  %v44 = vld [vmem:[#allocation2] sm:$0xff]
  %v45 = vld [vmem:[#allocation2 + $0x8] sm:$0xff]
  %v46 = vld [vmem:[#allocation2 + $0x10] sm:$0xff]
  %v47 = vld [vmem:[#allocation2 + $0x18] sm:$0xff]
  %v52 = vunpack.c.l.b16 %v19
  %v53 = vunpack.c.l.b16 %v20
  %v54 = vunpack.c.l.b16 %v21
  %v55 = vunpack.c.l.b16 %v22
  %v56 = vpack.c.b16 %v53, %v52
  %v57 = vpack.c.b16 %v55, %v54
  %v76 = vunpack.c.l.b16 %v28
  %v77 = vunpack.c.l.b16 %v29
  %v78 = vunpack.c.l.b16 %v30
  %v79 = vunpack.c.l.b16 %v31
  %v80 = vunpack.c.l.b16 %v32
  %v81 = vunpack.c.l.b16 %v33
  %v82 = vunpack.c.l.b16 %v34
  %v83 = vunpack.c.l.b16 %v35
  %v84 = vunpack.c.l.b16 %v36
  %v85 = vunpack.c.l.b16 %v37
  %v86 = vunpack.c.l.b16 %v38
  %v87 = vunpack.c.l.b16 %v39
  %v88 = vunpack.c.l.b16 %v40
  %v89 = vunpack.c.l.b16 %v41
  %v90 = vunpack.c.l.b16 %v42
  %v91 = vunpack.c.l.b16 %v43
  %v92 = vpack.c.b16 %v77, %v76
  %v93 = vpack.c.b16 %v79, %v78
  %v94 = vpack.c.b16 %v81, %v80
  %v95 = vpack.c.b16 %v83, %v82
  %v96 = vpack.c.b16 %v85, %v84
  %v97 = vpack.c.b16 %v87, %v86
  %v98 = vpack.c.b16 %v89, %v88
  %v99 = vpack.c.b16 %v91, %v90
  %108 = vmatpush.bf16.msra.mxu0 %v99
  %109 = vmatpush.bf16.msra.mxu0 %v98
  %110 = vmatpush.bf16.msra.mxu0 %v97
  %111 = vmatpush.bf16.msra.mxu0 %v96
  %112 = vmatpush.bf16.msra.mxu0 %v95
  %113 = vmatpush.bf16.msra.mxu0 %v94
  %114 = vmatpush.bf16.msra.mxu0 %v93
  %115 = vmatpush.bf16.msra.mxu0 %v92
  %116 = vmatmul.bf16.gmra.mxu0 %v56
  %v117 = vpop.f32.mrf.mxu0
  %v118 = vadd.f32 0.0, %v117
  %v119 = vpop.f32.mrf.mxu0
  %v120 = vadd.f32 0.0, %v119
  %121 = vmatmul.bf16.gmra.mxu0 %v57
  %v122 = vpop.f32.mrf.mxu0
  %v123 = vadd.f32 0.0, %v122
  %v124 = vpop.f32.mrf.mxu0
  %v125 = vadd.f32 0.0, %v124
  %126 = vdwg.mxu0
  %v127 = vadd.f32 %v44, %v118
  %v128 = vadd.f32 %v45, %v120
  %v129 = vadd.f32 %v46, %v123
  %v130 = vadd.f32 %v47, %v125
  %131 = vst [vmem:[#allocation2] sm:$0xff] %v127
  %132 = vst [vmem:[#allocation2 + $0x8] sm:$0xff] %v128
  %133 = vst [vmem:[#allocation2 + $0x10] sm:$0xff] %v129
  %134 = vst [vmem:[#allocation2 + $0x18] sm:$0xff] %v130
  // Predicated region
  $region14: #{densenet_forward.20} parent=0 // pred_check
    %p135 = pneg %p11
  $region15: #{densenet_forward.20} parent=0 // pred_check_branch
    %137 = sbr.rel (%p135) target = $region17
  $region16: #{densenet_forward.20} parent=0 // pred_region
    %v138 = vld [vmem:[#allocation2] sm:$0xff]
    %v139 = vld [vmem:[#allocation2 + $0x8] sm:$0xff]
    %v140 = vld [vmem:[#allocation2 + $0x10] sm:$0xff]
    %v141 = vld [vmem:[#allocation2 + $0x18] sm:$0xff]
    %v142 = vpack.c.bf16 %v138, %v138
    %v143 = vpack.c.bf16 %v139, %v139
    %v144 = vpack.c.bf16 %v140, %v140
    %v145 = vpack.c.bf16 %v141, %v141
    %146 = vst [vmem:[%s2] sm:$0xf] %v142
    %147 = vst [vmem:[%s2 + $0x4] sm:$0xf] %v143
    %148 = vst [vmem:[%s2 + $0x8] sm:$0xf] %v144
    %149 = vst [vmem:[%s2 + $0xc] sm:$0xf] %v145
  $region17: #{densenet_forward.20} parent=0 // pred_fallthru
    _
  // Predicated region
  $region18: #{densenet_forward.20} parent=0 // pred_check
    _
  $region19: #{densenet_forward.20} parent=0 // pred_check_branch
    %151 = sbr.rel (0) target = $region21
  $region20: #{densenet_forward.20} parent=0 // pred_region
    _
  $region21: #{densenet_forward.20} parent=0 // pred_fallthru
    _
  // Predicated region
  $region22: #{densenet_forward.20} parent=0 // pred_check
    _
  $region23: #{densenet_forward.20} parent=0 // pred_check_branch
    %153 = sbr.rel (0) target = $region25
  $region24: #{densenet_forward.20} parent=0 // pred_region
    _
  $region25: #{densenet_forward.20} parent=0 // pred_fallthru
    _

// kernel: densenet_forward.25
$region0: #{densenet_forward.25}
  #allocation0 [shape = 'u32[]', space=smem, size = 0x4, offset = 0x4, fixed_abs, tag = 'smem constant byte address 0x4 - core index']
  #allocation1 [shape = 'u32[72,128]{1,0:T(1,128)}', space=vmem, size = 0x9000, scoped, tag = 'internal scratch']
  %s0 = inlined_call_operand.vmem [shape: bf16[2,4,4,128], index: 0, kind: input, shape index: {}]
  %s1 = inlined_call_operand.vmem [shape: f32[2,3,3,128], index: 1, kind: output, shape index: {}]
  %s2 = sld [smem:[#allocation0]]
  $region37: #{densenet_forward.25} parent=0
    _
  %s4 = ssub.s32 1, %s2
  %s5 = scalar_select 0, %s4, %s2
  loop: start=0, step=1, limit=4
  $region2: #{densenet_forward.25} parent=0 // loop_pre_header
    _
  $region3: #{densenet_forward.25} parent=0 // loop_header
    %s7 = sphi 0, %s11
    %p8 = scmp.ge.s32.totalorder %s7, 4
    %s17 = sphi 0, %s19
    %s20 = sphi 0, %s17
    %s21 = sphi 0, %s20
    %s37 = sphi 0, %s21
    %s43 = sphi 0, %s45
    %s46 = sphi 0, %s43
    %s47 = sphi 0, %s46
    %s63 = sphi 0, %s47
  $region4: #{densenet_forward.25} parent=0 // loop_header_branch
    %10 = sbr.rel (%p8) target = $region8
  $region5: #{densenet_forward.25} parent=0 // loop_body
    %s12 = ssub.s32 %s7, 1
    %s13 = ssub.s32 %s7, 2
    %s14 = sadd.s32 %s7, 1
    %s15 = ssub.s32 %s7, %s14
    %p16 = scmp.eq.s32.totalorder %s15, 0
    %s18 = sadd.s32 %s17, 1
    %s19 = scalar_select %p16, %s17, %s18
    %p22 = pneg %p16
    %p23 = scmp.eq.s32.totalorder %s7, 1
    %p24 = por %p22, %p23
    %p25 = scmp.ne.s32.totalorder %s17, %s20
    %p26 = scmp.eq.s32.totalorder %s7, 0
    %p27 = por %p25, %p26
    %p28 = scmp.ne.s32.totalorder %s17, %s20
    %p29 = scmp.eq.s32.totalorder %s12, 1
    %p30 = por %p28, %p29
    %p31 = scmp.ne.s32.totalorder %s20, %s21
    %p32 = scmp.eq.s32.totalorder %s12, 0
    %p33 = por %p31, %p32
    %p34 = scmp.ne.s32.totalorder %s20, %s21
    %p35 = scmp.eq.s32.totalorder %s13, 1
    %p36 = por %p34, %p35
    %p38 = scmp.ne.s32.totalorder %s21, %s37
    %p39 = scmp.eq.s32.totalorder %s13, 0
    %p40 = por %p38, %p39
    %s41 = ssub.s32 %s7, %s14
    %p42 = scmp.eq.s32.totalorder %s41, 0
    %s44 = sadd.s32 %s43, 1
    %s45 = scalar_select %p42, %s43, %s44
    %p48 = pneg %p42
    %p49 = scmp.eq.s32.totalorder %s7, 1
    %p50 = por %p48, %p49
    %p51 = scmp.ne.s32.totalorder %s43, %s46
    %p52 = scmp.eq.s32.totalorder %s7, 0
    %p53 = por %p51, %p52
    %p54 = scmp.ne.s32.totalorder %s43, %s46
    %p55 = scmp.eq.s32.totalorder %s12, 1
    %p56 = por %p54, %p55
    %p57 = scmp.ne.s32.totalorder %s46, %s47
    %p58 = scmp.eq.s32.totalorder %s12, 0
    %p59 = por %p57, %p58
    %p60 = scmp.ne.s32.totalorder %s46, %s47
    %p61 = scmp.eq.s32.totalorder %s13, 1
    %p62 = por %p60, %p61
    %p64 = scmp.ne.s32.totalorder %s47, %s63
    %p65 = scmp.eq.s32.totalorder %s13, 0
    %p66 = por %p64, %p65
    %p67 = scmp.le.s32.totalorder 1, %s7
    %p68 = scmp.lt.s32.totalorder %s7, 3
    %p69 = pnand %p67, %p68
    %p70 = pneg %p69
    // Predicated region
    $region9: #{densenet_forward.25} parent=5 // pred_check
      _
    $region10: #{densenet_forward.25} parent=5 // pred_check_branch
      %72 = sbr.rel (%p69) target = $region12
    $region11: #{densenet_forward.25} parent=5 // pred_region
      %s73 = ssub.s32 %s7, 1
    $region12: #{densenet_forward.25} parent=5 // pred_fallthru
      _
    %p74 = scmp.lt.s32.totalorder %s7, 2
    // Predicated region
    $region13: #{densenet_forward.25} parent=5 // pred_check
      %p75 = pneg %p74
    $region14: #{densenet_forward.25} parent=5 // pred_check_branch
      %77 = sbr.rel (%p75) target = $region16
    $region15: #{densenet_forward.25} parent=5 // pred_region
      // Predicated region
      $region17: #{densenet_forward.25} parent=15 // pred_check
        %p78 = pneg %p27
      $region18: #{densenet_forward.25} parent=15 // pred_check_branch
        %80 = sbr.rel (%p78) target = $region20
      $region19: #{densenet_forward.25} parent=15 // pred_region
        %p81 = scmp.lt.s32.totalorder %s7, 1
        %s82 = scalar_select %p81, %s7, 1
        %s83 = smul.addr %s82, 4
        %s84 = smul.addr %s83, 2
        %s85 = scalar_lea.vmem %s0, %s84
      $region20: #{densenet_forward.25} parent=15 // pred_fallthru
        _
    $region16: #{densenet_forward.25} parent=5 // pred_fallthru
      _
    %p86 = scmp.le.s32.totalorder 1, %s7
    %p87 = scmp.lt.s32.totalorder %s7, 3
    %p88 = pnand %p86, %p87
    %p89 = pneg %p88
    // Predicated region
    $region21: #{densenet_forward.25} parent=5 // pred_check
      _
    $region22: #{densenet_forward.25} parent=5 // pred_check_branch
      %91 = sbr.rel (%p88) target = $region24
    $region23: #{densenet_forward.25} parent=5 // pred_region
      %s92 = ssub.s32 %s7, 1
      %p93 = scmp.lt.s32.totalorder %s12, 1
      %s94 = scalar_select %p93, %s12, 1
      %s95 = smul.addr %s94, 4
      %s96 = smul.addr %s95, 2
      %s97 = scalar_lea.vmem %s0, %s96
      %p98 = pneg %p33
      %p99 = pneg %p30
      %p100 = pneg %p59
      %p101 = pneg %p56
      %p102 = scmp.lt.s32.totalorder %s12, 1
      %s103 = scalar_select %p102, %s12, 1
      %s104 = smul.addr %s103, 3
      %s105 = smul.addr %s104, 4
      %s106 = scalar_lea.vmem %s1, %s105
      %p107 = scmp.lt.s32.totalorder %s12, 1
      %s108 = scalar_select %p107, %s12, 1
      %s109 = smul.addr %s108, 4
      %s110 = smul.addr %s109, 2
      %s111 = scalar_lea.vmem %s0, %s110
      %p112 = scmp.lt.s32.totalorder %s12, 1
      %s113 = scalar_select %p112, %s12, 1
      %s114 = smul.addr %s113, 3
      %s115 = smul.addr %s114, 4
      %s116 = scalar_lea.vmem %s1, %s115
      %v117 = vld [vmem:[%s111] sm:$0x3]
      %v118 = vld [vmem:[%s111 + $0x2] sm:$0x3]
      %v119 = vld [vmem:[%s111 + $0x4] sm:$0x3]
      %v120 = vld [vmem:[%s111 + $0x6] sm:$0x3]
      %v121 = vunpack.c.l.bf16 %v117
      %v122 = vunpack.c.l.bf16 %v118
      %v123 = vunpack.c.l.bf16 %v119
      %v124 = vunpack.c.l.bf16 %v120
      %v125 = vmax.f32 %v121, 0.0
      %v126 = vmax.f32 %v122, 0.0
      %v127 = vmax.f32 %v123, 0.0
      %v128 = vmax.f32 %v124, 0.0
      %v129 = vmul.f32 %v125, 0.999995
      %v130 = vmul.f32 %v126, 0.999995
      %v131 = vmul.f32 %v127, 0.999995
      %v132 = vmul.f32 %v128, 0.999995
      %v136 = vrot.slane %v129, 5
      %v137 = vrot.slane %v136, 4
      %v138 = vrot.slane %v130, 5
      %v139 = vrot.slane %v138, 4
      %v140 = vrot.slane %v131, 5
      %v141 = vrot.slane %v140, 4
      %v145 = vadd.f32 %v129, %v137
      %v146 = vadd.f32 %v130, %v139
      %v147 = vadd.f32 %v131, %v141
      %v148 = vadd.f32 %v145, %v130
      %v149 = vadd.f32 %v146, %v131
      %v150 = vadd.f32 %v147, %v132
      %v152 = vrot.slane %v132, 5
      %v153 = vrot.slane %v152, 4
      %v155 = vadd.f32 %v148, %v139
      %v156 = vadd.f32 %v149, %v141
      %v157 = vadd.f32 %v150, %v153
      %v158 = vmul.f32 %v155, 0.25
      %v159 = vmul.f32 %v156, 0.25
      %v160 = vmul.f32 %v157, 0.25
      %161 = vst [vmem:[%s116] sm:$0x7] %v158
      %162 = vst [vmem:[%s116 + $0x4] sm:$0x7] %v159
      %163 = vst [vmem:[%s116 + $0x8] sm:$0x7] %v160
      %p164 = scmp.lt.s32.totalorder %s12, 1
      %s165 = scalar_select %p164, %s12, 1
      %s166 = smul.addr %s165, 3
      %s167 = smul.addr %s166, 4
      %s168 = scalar_lea.vmem %s1, %s167
      // Predicated region
      $region25: #{densenet_forward.25} parent=23 // pred_check
        %p169 = pneg %p56
      $region26: #{densenet_forward.25} parent=23 // pred_check_branch
        %171 = sbr.rel (%p169) target = $region28
      $region27: #{densenet_forward.25} parent=23 // pred_region
        _
      $region28: #{densenet_forward.25} parent=23 // pred_fallthru
        _
    $region24: #{densenet_forward.25} parent=5 // pred_fallthru
      _
    %p172 = scmp.le.s32.totalorder 2, %s7
    // Predicated region
    $region29: #{densenet_forward.25} parent=5 // pred_check
      %p173 = pneg %p172
    $region30: #{densenet_forward.25} parent=5 // pred_check_branch
      %175 = sbr.rel (%p173) target = $region32
    $region31: #{densenet_forward.25} parent=5 // pred_region
      %s176 = ssub.s32 %s7, 2
      // Predicated region
      $region33: #{densenet_forward.25} parent=31 // pred_check
        %p177 = pneg %p62
      $region34: #{densenet_forward.25} parent=31 // pred_check_branch
        %179 = sbr.rel (%p177) target = $region36
      $region35: #{densenet_forward.25} parent=31 // pred_region
        %p180 = scmp.lt.s32.totalorder %s13, 1
        %s181 = scalar_select %p180, %s13, 1
        %s182 = smul.addr %s181, 3
        %s183 = smul.addr %s182, 4
        %s184 = scalar_lea.vmem %s1, %s183
      $region36: #{densenet_forward.25} parent=31 // pred_fallthru
        _
    $region32: #{densenet_forward.25} parent=5 // pred_fallthru
      _
  $region6: #{densenet_forward.25} parent=0 // loop_footer
    %s11 = sadd.s32 1, %s7
  $region7: #{densenet_forward.25} parent=0 // loop_footer_branch
    %6 = sbr.rel target = $region3
  $region8: #{densenet_forward.25} parent=0 // loop_exit
    _

// kernel: densenet_forward.22
$region0: #{densenet_forward.22}
  #allocation0 [shape = 'u32[]', space=smem, size = 0x4, offset = 0x4, fixed_abs, tag = 'smem constant byte address 0x4 - core index']
  #allocation1 [shape = 'u32[72,128]{1,0:T(1,128)}', space=vmem, size = 0x9000, scoped, tag = 'internal scratch']
  #allocation2 [shape = 'f32[24,128]{1,0:T(8,128)}', space=vmem, size = 0x3000, scoped, tag = 'scratch operand']
  %s0 = inlined_call_operand.vmem [shape: bf16[2,42,128], index: 0, kind: input, shape index: {}]
  %s1 = inlined_call_operand.vmem [shape: bf16[1152,128], index: 1, kind: input, shape index: {}]
  %s2 = inlined_call_operand.vmem [shape: bf16[2,24,128], index: 2, kind: output, shape index: {}]
  %s3 = sld [smem:[#allocation0]]
  $region41: #{densenet_forward.22} parent=0
    _
  %s5 = ssub.s32 1, %s3
  %s6 = scalar_select 0, %s5, %s3
  loop: start=0, step=1, limit=4
  $region2: #{densenet_forward.22} parent=0 // loop_pre_header
    _
  $region3: #{densenet_forward.22} parent=0 // loop_header
    %s8 = sphi 0, %s12
    %p9 = scmp.ge.s32.totalorder %s8, 4
    %s18 = sphi 0, %s20
    %s21 = sphi 0, %s18
    %s22 = sphi 0, %s21
    %s38 = sphi 0, %s22
    %s42 = sphi 0, %s42
    %s44 = sphi 0, %s42
    %s45 = sphi 0, %s44
    %s59 = sphi 0, %s45
    %s65 = sphi 0, %s67
    %s68 = sphi 0, %s65
    %s69 = sphi 0, %s68
    %s85 = sphi 0, %s69
  $region4: #{densenet_forward.22} parent=0 // loop_header_branch
    %11 = sbr.rel (%p9) target = $region8
  $region5: #{densenet_forward.22} parent=0 // loop_body
    %s13 = ssub.s32 %s8, 1
    %s14 = ssub.s32 %s8, 2
    %s15 = sadd.s32 %s8, 1
    %s16 = ssub.s32 %s8, %s15
    %p17 = scmp.eq.s32.totalorder %s16, 0
    %s19 = sadd.s32 %s18, 1
    %s20 = scalar_select %p17, %s18, %s19
    %p23 = pneg %p17
    %p24 = scmp.eq.s32.totalorder %s8, 1
    %p25 = por %p23, %p24
    %p26 = scmp.ne.s32.totalorder %s18, %s21
    %p27 = scmp.eq.s32.totalorder %s8, 0
    %p28 = por %p26, %p27
    %p29 = scmp.ne.s32.totalorder %s18, %s21
    %p30 = scmp.eq.s32.totalorder %s13, 1
    %p31 = por %p29, %p30
    %p32 = scmp.ne.s32.totalorder %s21, %s22
    %p33 = scmp.eq.s32.totalorder %s13, 0
    %p34 = por %p32, %p33
    %p35 = scmp.ne.s32.totalorder %s21, %s22
    %p36 = scmp.eq.s32.totalorder %s14, 1
    %p37 = por %p35, %p36
    %p39 = scmp.ne.s32.totalorder %s22, %s38
    %p40 = scmp.eq.s32.totalorder %s14, 0
    %p41 = por %p39, %p40
    %s43 = sadd.s32 %s42, 1
    %p46 = scmp.eq.s32.totalorder %s8, 1
    %p47 = scmp.ne.s32.totalorder %s42, %s44
    %p48 = scmp.eq.s32.totalorder %s8, 0
    %p49 = por %p47, %p48
    %p50 = scmp.ne.s32.totalorder %s42, %s44
    %p51 = scmp.eq.s32.totalorder %s13, 1
    %p52 = por %p50, %p51
    %p53 = scmp.ne.s32.totalorder %s44, %s45
    %p54 = scmp.eq.s32.totalorder %s13, 0
    %p55 = por %p53, %p54
    %p56 = scmp.ne.s32.totalorder %s44, %s45
    %p57 = scmp.eq.s32.totalorder %s14, 1
    %p58 = por %p56, %p57
    %p60 = scmp.ne.s32.totalorder %s45, %s59
    %p61 = scmp.eq.s32.totalorder %s14, 0
    %p62 = por %p60, %p61
    %s63 = ssub.s32 %s8, %s15
    %p64 = scmp.eq.s32.totalorder %s63, 0
    %s66 = sadd.s32 %s65, 1
    %s67 = scalar_select %p64, %s65, %s66
    %p70 = pneg %p64
    %p71 = scmp.eq.s32.totalorder %s8, 1
    %p72 = por %p70, %p71
    %p73 = scmp.ne.s32.totalorder %s65, %s68
    %p74 = scmp.eq.s32.totalorder %s8, 0
    %p75 = por %p73, %p74
    %p76 = scmp.ne.s32.totalorder %s65, %s68
    %p77 = scmp.eq.s32.totalorder %s13, 1
    %p78 = por %p76, %p77
    %p79 = scmp.ne.s32.totalorder %s68, %s69
    %p80 = scmp.eq.s32.totalorder %s13, 0
    %p81 = por %p79, %p80
    %p82 = scmp.ne.s32.totalorder %s68, %s69
    %p83 = scmp.eq.s32.totalorder %s14, 1
    %p84 = por %p82, %p83
    %p86 = scmp.ne.s32.totalorder %s69, %s85
    %p87 = scmp.eq.s32.totalorder %s14, 0
    %p88 = por %p86, %p87
    %p89 = scmp.le.s32.totalorder 1, %s8
    %p90 = scmp.lt.s32.totalorder %s8, 3
    %p91 = pnand %p89, %p90
    %p92 = pneg %p91
    // Predicated region
    $region9: #{densenet_forward.22} parent=5 // pred_check
      _
    $region10: #{densenet_forward.22} parent=5 // pred_check_branch
      %94 = sbr.rel (%p91) target = $region12
    $region11: #{densenet_forward.22} parent=5 // pred_region
      %s95 = ssub.s32 %s8, 1
      // Predicated region
      $region13: #{densenet_forward.22} parent=11 // pred_check
        %p96 = pneg %p55
      $region14: #{densenet_forward.22} parent=11 // pred_check_branch
        %98 = sbr.rel (%p96) target = $region16
      $region15: #{densenet_forward.22} parent=11 // pred_region
        _
      $region16: #{densenet_forward.22} parent=11 // pred_fallthru
        _
    $region12: #{densenet_forward.22} parent=5 // pred_fallthru
      _
    %p99 = scmp.lt.s32.totalorder %s8, 2
    // Predicated region
    $region17: #{densenet_forward.22} parent=5 // pred_check
      %p100 = pneg %p99
    $region18: #{densenet_forward.22} parent=5 // pred_check_branch
      %102 = sbr.rel (%p100) target = $region20
    $region19: #{densenet_forward.22} parent=5 // pred_region
      // Predicated region
      $region21: #{densenet_forward.22} parent=19 // pred_check
        %p103 = pneg %p28
      $region22: #{densenet_forward.22} parent=19 // pred_check_branch
        %105 = sbr.rel (%p103) target = $region24
      $region23: #{densenet_forward.22} parent=19 // pred_region
        %p106 = scmp.lt.s32.totalorder %s8, 1
        %s107 = scalar_select %p106, %s8, 1
        %s108 = smul.addr %s107, 6
        %s109 = smul.addr %s108, 4
        %s110 = scalar_lea.vmem %s0, %s109
      $region24: #{densenet_forward.22} parent=19 // pred_fallthru
        _
    $region20: #{densenet_forward.22} parent=5 // pred_fallthru
      _
    %p111 = scmp.le.s32.totalorder 1, %s8
    %p112 = scmp.lt.s32.totalorder %s8, 3
    %p113 = pnand %p111, %p112
    %p114 = pneg %p113
    // Predicated region
    $region25: #{densenet_forward.22} parent=5 // pred_check
      _
    $region26: #{densenet_forward.22} parent=5 // pred_check_branch
      %116 = sbr.rel (%p113) target = $region28
    $region27: #{densenet_forward.22} parent=5 // pred_region
      %s117 = ssub.s32 %s8, 1
      %p118 = scmp.lt.s32.totalorder %s13, 1
      %s119 = scalar_select %p118, %s13, 1
      %s120 = smul.addr %s119, 6
      %s121 = smul.addr %s120, 4
      %s122 = scalar_lea.vmem %s0, %s121
      %p123 = pneg %p34
      %p124 = pneg %p31
      %p125 = pneg %p55
      %p126 = pneg %p52
      %p127 = pneg %p81
      %p128 = pneg %p78
      %p129 = scmp.lt.s32.totalorder %s13, 1
      %s130 = scalar_select %p129, %s13, 1
      %s131 = smul.addr %s130, 3
      %s132 = smul.addr %s131, 4
      %s133 = scalar_lea.vmem %s2, %s132
      %p134 = scmp.lt.s32.totalorder %s13, 1
      %s135 = scalar_select %p134, %s13, 1
      %s136 = smul.addr %s135, 6
      %s137 = smul.addr %s136, 4
      %s138 = scalar_lea.vmem %s0, %s137
      %p139 = scmp.lt.s32.totalorder %s13, 1
      %s140 = scalar_select %p139, %s13, 1
      %s141 = smul.addr %s140, 3
      %s142 = smul.addr %s141, 4
      %s143 = scalar_lea.vmem %s2, %s142
      %v144 = vld [vmem:[%s138] sm:$0xf]
      %v145 = vld [vmem:[%s138 + $0x4] sm:$0xf]
      %v146 = vld [vmem:[%s138 + $0x8] sm:$0xf]
      %v147 = vunpack.c.l.bf16 %v144
      %v148 = vunpack.c.l.bf16 %v145
      %v149 = vunpack.c.l.bf16 %v146
      %v150 = vmax.f32 %v147, 0.0
      %v151 = vmax.f32 %v148, 0.0
      %v152 = vmax.f32 %v149, 0.0
      %v153 = vpack.c.bf16 %v151, %v150
      %v154 = vpack.c.bf16 %v152, %v152
      %v155 = vld [vmem:[%s1] sm:$0xf]
      %v156 = vld [vmem:[%s1 + $0x4] sm:$0xf]
      %v157 = vld [vmem:[%s1 + $0x8] sm:$0xf]
      %v158 = vld [vmem:[%s1 + $0xc] sm:$0xf]
      %v159 = vld [vmem:[%s1 + $0x10] sm:$0xf]
      %v160 = vld [vmem:[%s1 + $0x14] sm:$0xf]
      %v161 = vld [vmem:[%s1 + $0x18] sm:$0xf]
      %v162 = vld [vmem:[%s1 + $0x1c] sm:$0xf]
      %v163 = vld [vmem:[%s1 + $0x20] sm:$0xf]
      %v164 = vld [vmem:[%s1 + $0x24] sm:$0xf]
      %v165 = vld [vmem:[%s1 + $0x28] sm:$0xf]
      %v166 = vld [vmem:[%s1 + $0x2c] sm:$0xf]
      %v167 = vld [vmem:[%s1 + $0x30] sm:$0xf]
      %v168 = vld [vmem:[%s1 + $0x34] sm:$0xf]
      %v169 = vld [vmem:[%s1 + $0x38] sm:$0xf]
      %v170 = vld [vmem:[%s1 + $0x3c] sm:$0xf]
      %v187 = vunpack.c.l.b16 %v155
      %v188 = vunpack.c.l.b16 %v156
      %v189 = vunpack.c.l.b16 %v157
      %v190 = vunpack.c.l.b16 %v158
      %v191 = vunpack.c.l.b16 %v159
      %v192 = vunpack.c.l.b16 %v160
      %v193 = vunpack.c.l.b16 %v161
      %v194 = vunpack.c.l.b16 %v162
      %v195 = vunpack.c.l.b16 %v163
      %v196 = vunpack.c.l.b16 %v164
      %v197 = vunpack.c.l.b16 %v165
      %v198 = vunpack.c.l.b16 %v166
      %v199 = vunpack.c.l.b16 %v167
      %v200 = vunpack.c.l.b16 %v168
      %v201 = vunpack.c.l.b16 %v169
      %v202 = vunpack.c.l.b16 %v170
      %v203 = vpack.c.b16 %v188, %v187
      %v204 = vpack.c.b16 %v190, %v189
      %v205 = vpack.c.b16 %v192, %v191
      %v206 = vpack.c.b16 %v194, %v193
      %v207 = vpack.c.b16 %v196, %v195
      %v208 = vpack.c.b16 %v198, %v197
      %v209 = vpack.c.b16 %v200, %v199
      %v210 = vpack.c.b16 %v202, %v201
      %219 = vmatpush.bf16.msra.mxu0 %v210
      %220 = vmatpush.bf16.msra.mxu0 %v209
      %221 = vmatpush.bf16.msra.mxu0 %v208
      %222 = vmatpush.bf16.msra.mxu0 %v207
      %223 = vmatpush.bf16.msra.mxu0 %v206
      %224 = vmatpush.bf16.msra.mxu0 %v205
      %225 = vmatpush.bf16.msra.mxu0 %v204
      %226 = vmatpush.bf16.msra.mxu0 %v203
      %227 = vmatmul.bf16.gmra.mxu0 %v153
      %v228 = vpop.f32.mrf.mxu0
      %v229 = vadd.f32 0.0, %v228
      %v230 = vpop.f32.mrf.mxu0
      %v231 = vadd.f32 0.0, %v230
      %232 = vmatmul.bf16.gmra.mxu0 %v154
      %v233 = vpop.f32.mrf.mxu0
      %v234 = vadd.f32 0.0, %v233
      %v235 = vpop.f32.mrf.mxu0
      %236 = vdwg.mxu0
      %237 = vst [vmem:[#allocation2] sm:$0xff] %v229
      %238 = vst [vmem:[#allocation2 + $0x8] sm:$0xff] %v231
      %239 = vst [vmem:[#allocation2 + $0x10] sm:$0xff] %v234
      %v240 = vld [vmem:[%s138] sm:$0xf]
      %v241 = vld [vmem:[%s138 + $0x4] sm:$0xf]
      %v242 = vld [vmem:[%s138 + $0x8] sm:$0xf]
      %v243 = vld [vmem:[%s138 + $0xc] sm:$0x1]
      %v244 = vunpack.c.l.bf16 %v240
      %v245 = vunpack.c.l.bf16 %v241
      %v246 = vunpack.c.l.bf16 %v242
      %v247 = vunpack.c.l.bf16 %v243
      %v248 = vmax.f32 %v244, 0.0
      %v249 = vmax.f32 %v245, 0.0
      %v250 = vmax.f32 %v246, 0.0
      %v251 = vmax.f32 %v247, 0.0
      %v252 = vpack.c.bf16 %v249, %v248
      %v253 = vpack.c.bf16 %v251, %v250
      %v254 = vld [vmem:[%s1 + $0x40] sm:$0xf]
      %v255 = vld [vmem:[%s1 + $0x44] sm:$0xf]
      %v256 = vld [vmem:[%s1 + $0x48] sm:$0xf]
      %v257 = vld [vmem:[%s1 + $0x4c] sm:$0xf]
      %v258 = vld [vmem:[%s1 + $0x50] sm:$0xf]
      %v259 = vld [vmem:[%s1 + $0x54] sm:$0xf]
      %v260 = vld [vmem:[%s1 + $0x58] sm:$0xf]
      %v261 = vld [vmem:[%s1 + $0x5c] sm:$0xf]
      %v262 = vld [vmem:[%s1 + $0x60] sm:$0xf]
      %v263 = vld [vmem:[%s1 + $0x64] sm:$0xf]
      %v264 = vld [vmem:[%s1 + $0x68] sm:$0xf]
      %v265 = vld [vmem:[%s1 + $0x6c] sm:$0xf]
      %v266 = vld [vmem:[%s1 + $0x70] sm:$0xf]
      %v267 = vld [vmem:[%s1 + $0x74] sm:$0xf]
      %v268 = vld [vmem:[%s1 + $0x78] sm:$0xf]
      %v269 = vld [vmem:[%s1 + $0x7c] sm:$0xf]
      %vm270 = vsmask.f32 7424
      %v272 = vshrl.u32 %v252, 16
      %v274 = vshll.u32 %v252, 16
      %v276 = vrot.slane %v274, 1
      %v277 = vor.u32 %v272, %v276
      %v279 = vshll.u32 %v253, 16
      %v281 = vrot.slane %v279, 1
      %v282 = vsel %vm270, %v277, %v281
      %v283 = vshrl.u32 %v253, 16
      %v285 = vor.u32 %v283, %v281
      %v304 = vunpack.c.l.b16 %v254
      %v305 = vunpack.c.l.b16 %v255
      %v306 = vunpack.c.l.b16 %v256
      %v307 = vunpack.c.l.b16 %v257
      %v308 = vunpack.c.l.b16 %v258
      %v309 = vunpack.c.l.b16 %v259
      %v310 = vunpack.c.l.b16 %v260
      %v311 = vunpack.c.l.b16 %v261
      %v312 = vunpack.c.l.b16 %v262
      %v313 = vunpack.c.l.b16 %v263
      %v314 = vunpack.c.l.b16 %v264
      %v315 = vunpack.c.l.b16 %v265
      %v316 = vunpack.c.l.b16 %v266
      %v317 = vunpack.c.l.b16 %v267
      %v318 = vunpack.c.l.b16 %v268
      %v319 = vunpack.c.l.b16 %v269
      %v320 = vpack.c.b16 %v305, %v304
      %v321 = vpack.c.b16 %v307, %v306
      %v322 = vpack.c.b16 %v309, %v308
      %v323 = vpack.c.b16 %v311, %v310
      %v324 = vpack.c.b16 %v313, %v312
      %v325 = vpack.c.b16 %v315, %v314
      %v326 = vpack.c.b16 %v317, %v316
      %v327 = vpack.c.b16 %v319, %v318
      %336 = vmatpush.bf16.msra.mxu0 %v327
      %337 = vmatpush.bf16.msra.mxu0 %v326
      %338 = vmatpush.bf16.msra.mxu0 %v325
      %339 = vmatpush.bf16.msra.mxu0 %v324
      %340 = vmatpush.bf16.msra.mxu0 %v323
      %341 = vmatpush.bf16.msra.mxu0 %v322
      %342 = vmatpush.bf16.msra.mxu0 %v321
      %343 = vmatpush.bf16.msra.mxu0 %v320
      %344 = vmatmul.bf16.gmra.mxu0 %v282
      %v345 = vpop.f32.mrf.mxu0
      %v346 = vadd.f32 0.0, %v345
      %v347 = vpop.f32.mrf.mxu0
      %v348 = vadd.f32 0.0, %v347
      %349 = vmatmul.bf16.gmra.mxu0 %v285
      %v350 = vpop.f32.mrf.mxu0
      %v351 = vadd.f32 0.0, %v350
      %v352 = vpop.f32.mrf.mxu0
      %353 = vdwg.mxu0
      %v354 = vld [vmem:[#allocation2] sm:$0xff]
      %v355 = vld [vmem:[#allocation2 + $0x8] sm:$0xff]
      %v356 = vld [vmem:[#allocation2 + $0x10] sm:$0xff]
      %v357 = vadd.f32 %v354, %v346
      %v358 = vadd.f32 %v355, %v348
      %v359 = vadd.f32 %v356, %v351
      %360 = vst [vmem:[#allocation2] sm:$0xff] %v357
      %361 = vst [vmem:[#allocation2 + $0x8] sm:$0xff] %v358
      %362 = vst [vmem:[#allocation2 + $0x10] sm:$0xff] %v359
      %v363 = vld [vmem:[%s138] sm:$0xe]
      %v364 = vld [vmem:[%s138 + $0x4] sm:$0xf]
      %v365 = vld [vmem:[%s138 + $0x8] sm:$0xf]
      %v366 = vld [vmem:[%s138 + $0xc] sm:$0x1]
      %v367 = vunpack.c.l.bf16 %v363
      %v368 = vunpack.c.l.bf16 %v364
      %v369 = vunpack.c.l.bf16 %v365
      %v370 = vunpack.c.l.bf16 %v366
      %v371 = vmax.f32 %v367, 0.0
      %v372 = vmax.f32 %v368, 0.0
      %v373 = vmax.f32 %v369, 0.0
      %v374 = vmax.f32 %v370, 0.0
      %v375 = vpack.c.bf16 %v372, %v371
      %v376 = vpack.c.bf16 %v374, %v373
      %v377 = vld [vmem:[%s1 + $0x80] sm:$0xf]
      %v378 = vld [vmem:[%s1 + $0x84] sm:$0xf]
      %v379 = vld [vmem:[%s1 + $0x88] sm:$0xf]
      %v380 = vld [vmem:[%s1 + $0x8c] sm:$0xf]
      %v381 = vld [vmem:[%s1 + $0x90] sm:$0xf]
      %v382 = vld [vmem:[%s1 + $0x94] sm:$0xf]
      %v383 = vld [vmem:[%s1 + $0x98] sm:$0xf]
      %v384 = vld [vmem:[%s1 + $0x9c] sm:$0xf]
      %v385 = vld [vmem:[%s1 + $0xa0] sm:$0xf]
      %v386 = vld [vmem:[%s1 + $0xa4] sm:$0xf]
      %v387 = vld [vmem:[%s1 + $0xa8] sm:$0xf]
      %v388 = vld [vmem:[%s1 + $0xac] sm:$0xf]
      %v389 = vld [vmem:[%s1 + $0xb0] sm:$0xf]
      %v390 = vld [vmem:[%s1 + $0xb4] sm:$0xf]
      %v391 = vld [vmem:[%s1 + $0xb8] sm:$0xf]
      %v392 = vld [vmem:[%s1 + $0xbc] sm:$0xf]
      %vm395 = vcmask 1046528
      %v396 = vrot.slane %v375, 1
      %v397 = vrot.slane %v376, 1
      %v398 = vsel %vm395, %v396, %v397
      %v417 = vunpack.c.l.b16 %v377
      %v418 = vunpack.c.l.b16 %v378
      %v419 = vunpack.c.l.b16 %v379
      %v420 = vunpack.c.l.b16 %v380
      %v421 = vunpack.c.l.b16 %v381
      %v422 = vunpack.c.l.b16 %v382
      %v423 = vunpack.c.l.b16 %v383
      %v424 = vunpack.c.l.b16 %v384
      %v425 = vunpack.c.l.b16 %v385
      %v426 = vunpack.c.l.b16 %v386
      %v427 = vunpack.c.l.b16 %v387
      %v428 = vunpack.c.l.b16 %v388
      %v429 = vunpack.c.l.b16 %v389
      %v430 = vunpack.c.l.b16 %v390
      %v431 = vunpack.c.l.b16 %v391
      %v432 = vunpack.c.l.b16 %v392
      %v433 = vpack.c.b16 %v418, %v417
      %v434 = vpack.c.b16 %v420, %v419
      %v435 = vpack.c.b16 %v422, %v421
      %v436 = vpack.c.b16 %v424, %v423
      %v437 = vpack.c.b16 %v426, %v425
      %v438 = vpack.c.b16 %v428, %v427
      %v439 = vpack.c.b16 %v430, %v429
      %v440 = vpack.c.b16 %v432, %v431
      %449 = vmatpush.bf16.msra.mxu0 %v440
      %450 = vmatpush.bf16.msra.mxu0 %v439
      %451 = vmatpush.bf16.msra.mxu0 %v438
      %452 = vmatpush.bf16.msra.mxu0 %v437
      %453 = vmatpush.bf16.msra.mxu0 %v436
      %454 = vmatpush.bf16.msra.mxu0 %v435
      %455 = vmatpush.bf16.msra.mxu0 %v434
      %456 = vmatpush.bf16.msra.mxu0 %v433
      %457 = vmatmul.bf16.gmra.mxu0 %v398
      %v458 = vpop.f32.mrf.mxu0
      %v459 = vadd.f32 0.0, %v458
      %v460 = vpop.f32.mrf.mxu0
      %v461 = vadd.f32 0.0, %v460
      %462 = vmatmul.bf16.gmra.mxu0 %v397
      %v463 = vpop.f32.mrf.mxu0
      %v464 = vadd.f32 0.0, %v463
      %v465 = vpop.f32.mrf.mxu0
      %466 = vdwg.mxu0
      %v467 = vld [vmem:[#allocation2] sm:$0xff]
      %v468 = vld [vmem:[#allocation2 + $0x8] sm:$0xff]
      %v469 = vld [vmem:[#allocation2 + $0x10] sm:$0xff]
      %v470 = vadd.f32 %v467, %v459
      %v471 = vadd.f32 %v468, %v461
      %v472 = vadd.f32 %v469, %v464
      %473 = vst [vmem:[#allocation2] sm:$0xff] %v470
      %474 = vst [vmem:[#allocation2 + $0x8] sm:$0xff] %v471
      %475 = vst [vmem:[#allocation2 + $0x10] sm:$0xff] %v472
      %v476 = vld [vmem:[%s138] sm:$0x8]
      %v477 = vld [vmem:[%s138 + $0x4] sm:$0xf]
      %v478 = vld [vmem:[%s138 + $0x8] sm:$0xf]
      %v479 = vld [vmem:[%s138 + $0xc] sm:$0x7]
      %v480 = vunpack.c.l.bf16 %v476
      %v481 = vunpack.c.l.bf16 %v477
      %v482 = vunpack.c.l.bf16 %v478
      %v483 = vunpack.c.l.bf16 %v479
      %v484 = vmax.f32 %v480, 0.0
      %v485 = vmax.f32 %v481, 0.0
      %v486 = vmax.f32 %v482, 0.0
      %v487 = vmax.f32 %v483, 0.0
      %v488 = vpack.c.bf16 %v485, %v484
      %v489 = vpack.c.bf16 %v487, %v486
      %v490 = vld [vmem:[%s1 + $0xc0] sm:$0xf]
      %v491 = vld [vmem:[%s1 + $0xc4] sm:$0xf]
      %v492 = vld [vmem:[%s1 + $0xc8] sm:$0xf]
      %v493 = vld [vmem:[%s1 + $0xcc] sm:$0xf]
      %v494 = vld [vmem:[%s1 + $0xd0] sm:$0xf]
      %v495 = vld [vmem:[%s1 + $0xd4] sm:$0xf]
      %v496 = vld [vmem:[%s1 + $0xd8] sm:$0xf]
      %v497 = vld [vmem:[%s1 + $0xdc] sm:$0xf]
      %v498 = vld [vmem:[%s1 + $0xe0] sm:$0xf]
      %v499 = vld [vmem:[%s1 + $0xe4] sm:$0xf]
      %v500 = vld [vmem:[%s1 + $0xe8] sm:$0xf]
      %v501 = vld [vmem:[%s1 + $0xec] sm:$0xf]
      %v502 = vld [vmem:[%s1 + $0xf0] sm:$0xf]
      %v503 = vld [vmem:[%s1 + $0xf4] sm:$0xf]
      %v504 = vld [vmem:[%s1 + $0xf8] sm:$0xf]
      %v505 = vld [vmem:[%s1 + $0xfc] sm:$0xf]
      %vm508 = vcmask 1044480
      %v509 = vrot.slane %v488, 3
      %v510 = vrot.slane %v489, 3
      %v511 = vsel %vm508, %v509, %v510
      %v530 = vunpack.c.l.b16 %v490
      %v531 = vunpack.c.l.b16 %v491
      %v532 = vunpack.c.l.b16 %v492
      %v533 = vunpack.c.l.b16 %v493
      %v534 = vunpack.c.l.b16 %v494
      %v535 = vunpack.c.l.b16 %v495
      %v536 = vunpack.c.l.b16 %v496
      %v537 = vunpack.c.l.b16 %v497
      %v538 = vunpack.c.l.b16 %v498
      %v539 = vunpack.c.l.b16 %v499
      %v540 = vunpack.c.l.b16 %v500
      %v541 = vunpack.c.l.b16 %v501
      %v542 = vunpack.c.l.b16 %v502
      %v543 = vunpack.c.l.b16 %v503
      %v544 = vunpack.c.l.b16 %v504
      %v545 = vunpack.c.l.b16 %v505
      %v546 = vpack.c.b16 %v531, %v530
      %v547 = vpack.c.b16 %v533, %v532
      %v548 = vpack.c.b16 %v535, %v534
      %v549 = vpack.c.b16 %v537, %v536
      %v550 = vpack.c.b16 %v539, %v538
      %v551 = vpack.c.b16 %v541, %v540
      %v552 = vpack.c.b16 %v543, %v542
      %v553 = vpack.c.b16 %v545, %v544
      %562 = vmatpush.bf16.msra.mxu0 %v553
      %563 = vmatpush.bf16.msra.mxu0 %v552
      %564 = vmatpush.bf16.msra.mxu0 %v551
      %565 = vmatpush.bf16.msra.mxu0 %v550
      %566 = vmatpush.bf16.msra.mxu0 %v549
      %567 = vmatpush.bf16.msra.mxu0 %v548
      %568 = vmatpush.bf16.msra.mxu0 %v547
      %569 = vmatpush.bf16.msra.mxu0 %v546
      %570 = vmatmul.bf16.gmra.mxu0 %v511
      %v571 = vpop.f32.mrf.mxu0
      %v572 = vadd.f32 0.0, %v571
      %v573 = vpop.f32.mrf.mxu0
      %v574 = vadd.f32 0.0, %v573
      %575 = vmatmul.bf16.gmra.mxu0 %v510
      %v576 = vpop.f32.mrf.mxu0
      %v577 = vadd.f32 0.0, %v576
      %v578 = vpop.f32.mrf.mxu0
      %579 = vdwg.mxu0
      %v580 = vld [vmem:[#allocation2] sm:$0xff]
      %v581 = vld [vmem:[#allocation2 + $0x8] sm:$0xff]
      %v582 = vld [vmem:[#allocation2 + $0x10] sm:$0xff]
      %v583 = vadd.f32 %v580, %v572
      %v584 = vadd.f32 %v581, %v574
      %v585 = vadd.f32 %v582, %v577
      %586 = vst [vmem:[#allocation2] sm:$0xff] %v583
      %587 = vst [vmem:[#allocation2 + $0x8] sm:$0xff] %v584
      %588 = vst [vmem:[#allocation2 + $0x10] sm:$0xff] %v585
      %v589 = vld [vmem:[%s138] sm:$0x8]
      %v590 = vld [vmem:[%s138 + $0x4] sm:$0xf]
      %v591 = vld [vmem:[%s138 + $0x8] sm:$0xf]
      %v592 = vld [vmem:[%s138 + $0xc] sm:$0xf]
      %v593 = vunpack.c.l.bf16 %v589
      %v594 = vunpack.c.l.bf16 %v590
      %v595 = vunpack.c.l.bf16 %v591
      %v596 = vunpack.c.l.bf16 %v592
      %v597 = vmax.f32 %v593, 0.0
      %v598 = vmax.f32 %v594, 0.0
      %v599 = vmax.f32 %v595, 0.0
      %v600 = vmax.f32 %v596, 0.0
      %v601 = vpack.c.bf16 %v598, %v597
      %v602 = vpack.c.bf16 %v600, %v599
      %v603 = vld [vmem:[%s1 + $0x100] sm:$0xf]
      %v604 = vld [vmem:[%s1 + $0x104] sm:$0xf]
      %v605 = vld [vmem:[%s1 + $0x108] sm:$0xf]
      %v606 = vld [vmem:[%s1 + $0x10c] sm:$0xf]
      %v607 = vld [vmem:[%s1 + $0x110] sm:$0xf]
      %v608 = vld [vmem:[%s1 + $0x114] sm:$0xf]
      %v609 = vld [vmem:[%s1 + $0x118] sm:$0xf]
      %v610 = vld [vmem:[%s1 + $0x11c] sm:$0xf]
      %v611 = vld [vmem:[%s1 + $0x120] sm:$0xf]
      %v612 = vld [vmem:[%s1 + $0x124] sm:$0xf]
      %v613 = vld [vmem:[%s1 + $0x128] sm:$0xf]
      %v614 = vld [vmem:[%s1 + $0x12c] sm:$0xf]
      %v615 = vld [vmem:[%s1 + $0x130] sm:$0xf]
      %v616 = vld [vmem:[%s1 + $0x134] sm:$0xf]
      %v617 = vld [vmem:[%s1 + $0x138] sm:$0xf]
      %v618 = vld [vmem:[%s1 + $0x13c] sm:$0xf]
      %vm619 = vsmask.f32 4352
      %v621 = vshrl.u32 %v601, 16
      %v623 = vrot.slane %v621, 3
      %v624 = vshll.u32 %v601, 16
      %v626 = vrot.slane %v624, 4
      %v627 = vor.u32 %v623, %v626
      %v629 = vshrl.u32 %v602, 16
      %v631 = vrot.slane %v629, 3
      %v632 = vshll.u32 %v602, 16
      %v634 = vrot.slane %v632, 4
      %v635 = vor.u32 %v631, %v634
      %v636 = vsel %vm619, %v627, %v635
      %v655 = vunpack.c.l.b16 %v603
      %v656 = vunpack.c.l.b16 %v604
      %v657 = vunpack.c.l.b16 %v605
      %v658 = vunpack.c.l.b16 %v606
      %v659 = vunpack.c.l.b16 %v607
      %v660 = vunpack.c.l.b16 %v608
      %v661 = vunpack.c.l.b16 %v609
      %v662 = vunpack.c.l.b16 %v610
      %v663 = vunpack.c.l.b16 %v611
      %v664 = vunpack.c.l.b16 %v612
      %v665 = vunpack.c.l.b16 %v613
      %v666 = vunpack.c.l.b16 %v614
      %v667 = vunpack.c.l.b16 %v615
      %v668 = vunpack.c.l.b16 %v616
      %v669 = vunpack.c.l.b16 %v617
      %v670 = vunpack.c.l.b16 %v618
      %v671 = vpack.c.b16 %v656, %v655
      %v672 = vpack.c.b16 %v658, %v657
      %v673 = vpack.c.b16 %v660, %v659
      %v674 = vpack.c.b16 %v662, %v661
      %v675 = vpack.c.b16 %v664, %v663
      %v676 = vpack.c.b16 %v666, %v665
      %v677 = vpack.c.b16 %v668, %v667
      %v678 = vpack.c.b16 %v670, %v669
      %687 = vmatpush.bf16.msra.mxu0 %v678
      %688 = vmatpush.bf16.msra.mxu0 %v677
      %689 = vmatpush.bf16.msra.mxu0 %v676
      %690 = vmatpush.bf16.msra.mxu0 %v675
      %691 = vmatpush.bf16.msra.mxu0 %v674
      %692 = vmatpush.bf16.msra.mxu0 %v673
      %693 = vmatpush.bf16.msra.mxu0 %v672
      %694 = vmatpush.bf16.msra.mxu0 %v671
      %695 = vmatmul.bf16.gmra.mxu0 %v636
      %v696 = vpop.f32.mrf.mxu0
      %v697 = vadd.f32 0.0, %v696
      %v698 = vpop.f32.mrf.mxu0
      %v699 = vadd.f32 0.0, %v698
      %700 = vmatmul.bf16.gmra.mxu0 %v635
      %v701 = vpop.f32.mrf.mxu0
      %v702 = vadd.f32 0.0, %v701
      %v703 = vpop.f32.mrf.mxu0
      %704 = vdwg.mxu0
      %v705 = vld [vmem:[#allocation2] sm:$0xff]
      %v706 = vld [vmem:[#allocation2 + $0x8] sm:$0xff]
      %v707 = vld [vmem:[#allocation2 + $0x10] sm:$0xff]
      %v708 = vadd.f32 %v705, %v697
      %v709 = vadd.f32 %v706, %v699
      %v710 = vadd.f32 %v707, %v702
      %711 = vst [vmem:[#allocation2] sm:$0xff] %v708
      %712 = vst [vmem:[#allocation2 + $0x8] sm:$0xff] %v709
      %713 = vst [vmem:[#allocation2 + $0x10] sm:$0xff] %v710
      %v714 = vld [vmem:[%s138 + $0x4] sm:$0xf]
      %v715 = vld [vmem:[%s138 + $0x8] sm:$0xf]
      %v716 = vld [vmem:[%s138 + $0xc] sm:$0xf]
      %v717 = vunpack.c.l.bf16 %v714
      %v718 = vunpack.c.l.bf16 %v715
      %v719 = vunpack.c.l.bf16 %v716
      %v720 = vmax.f32 %v717, 0.0
      %v721 = vmax.f32 %v718, 0.0
      %v722 = vmax.f32 %v719, 0.0
      %v723 = vpack.c.bf16 %v721, %v720
      %v724 = vpack.c.bf16 %v722, %v722
      %v725 = vld [vmem:[%s1 + $0x140] sm:$0xf]
      %v726 = vld [vmem:[%s1 + $0x144] sm:$0xf]
      %v727 = vld [vmem:[%s1 + $0x148] sm:$0xf]
      %v728 = vld [vmem:[%s1 + $0x14c] sm:$0xf]
      %v729 = vld [vmem:[%s1 + $0x150] sm:$0xf]
      %v730 = vld [vmem:[%s1 + $0x154] sm:$0xf]
      %v731 = vld [vmem:[%s1 + $0x158] sm:$0xf]
      %v732 = vld [vmem:[%s1 + $0x15c] sm:$0xf]
      %v733 = vld [vmem:[%s1 + $0x160] sm:$0xf]
      %v734 = vld [vmem:[%s1 + $0x164] sm:$0xf]
      %v735 = vld [vmem:[%s1 + $0x168] sm:$0xf]
      %v736 = vld [vmem:[%s1 + $0x16c] sm:$0xf]
      %v737 = vld [vmem:[%s1 + $0x170] sm:$0xf]
      %v738 = vld [vmem:[%s1 + $0x174] sm:$0xf]
      %v739 = vld [vmem:[%s1 + $0x178] sm:$0xf]
      %v740 = vld [vmem:[%s1 + $0x17c] sm:$0xf]
      %v757 = vunpack.c.l.b16 %v725
      %v758 = vunpack.c.l.b16 %v726
      %v759 = vunpack.c.l.b16 %v727
      %v760 = vunpack.c.l.b16 %v728
      %v761 = vunpack.c.l.b16 %v729
      %v762 = vunpack.c.l.b16 %v730
      %v763 = vunpack.c.l.b16 %v731
      %v764 = vunpack.c.l.b16 %v732
      %v765 = vunpack.c.l.b16 %v733
      %v766 = vunpack.c.l.b16 %v734
      %v767 = vunpack.c.l.b16 %v735
      %v768 = vunpack.c.l.b16 %v736
      %v769 = vunpack.c.l.b16 %v737
      %v770 = vunpack.c.l.b16 %v738
      %v771 = vunpack.c.l.b16 %v739
      %v772 = vunpack.c.l.b16 %v740
      %v773 = vpack.c.b16 %v758, %v757
      %v774 = vpack.c.b16 %v760, %v759
      %v775 = vpack.c.b16 %v762, %v761
      %v776 = vpack.c.b16 %v764, %v763
      %v777 = vpack.c.b16 %v766, %v765
      %v778 = vpack.c.b16 %v768, %v767
      %v779 = vpack.c.b16 %v770, %v769
      %v780 = vpack.c.b16 %v772, %v771
      %789 = vmatpush.bf16.msra.mxu0 %v780
      %790 = vmatpush.bf16.msra.mxu0 %v779
      %791 = vmatpush.bf16.msra.mxu0 %v778
      %792 = vmatpush.bf16.msra.mxu0 %v777
      %793 = vmatpush.bf16.msra.mxu0 %v776
      %794 = vmatpush.bf16.msra.mxu0 %v775
      %795 = vmatpush.bf16.msra.mxu0 %v774
      %796 = vmatpush.bf16.msra.mxu0 %v773
      %797 = vmatmul.bf16.gmra.mxu0 %v723
      %v798 = vpop.f32.mrf.mxu0
      %v799 = vadd.f32 0.0, %v798
      %v800 = vpop.f32.mrf.mxu0
      %v801 = vadd.f32 0.0, %v800
      %802 = vmatmul.bf16.gmra.mxu0 %v724
      %v803 = vpop.f32.mrf.mxu0
      %v804 = vadd.f32 0.0, %v803
      %v805 = vpop.f32.mrf.mxu0
      %806 = vdwg.mxu0
      %v807 = vld [vmem:[#allocation2] sm:$0xff]
      %v808 = vld [vmem:[#allocation2 + $0x8] sm:$0xff]
      %v809 = vld [vmem:[#allocation2 + $0x10] sm:$0xff]
      %v810 = vadd.f32 %v807, %v799
      %v811 = vadd.f32 %v808, %v801
      %v812 = vadd.f32 %v809, %v804
      %813 = vst [vmem:[#allocation2] sm:$0xff] %v810
      %814 = vst [vmem:[#allocation2 + $0x8] sm:$0xff] %v811
      %815 = vst [vmem:[#allocation2 + $0x10] sm:$0xff] %v812
      %v816 = vld [vmem:[%s138 + $0x4] sm:$0xc]
      %v817 = vld [vmem:[%s138 + $0x8] sm:$0xf]
      %v818 = vld [vmem:[%s138 + $0xc] sm:$0xf]
      %v819 = vld [vmem:[%s138 + $0x10] sm:$0x3]
      %v820 = vunpack.c.l.bf16 %v816
      %v821 = vunpack.c.l.bf16 %v817
      %v822 = vunpack.c.l.bf16 %v818
      %v823 = vunpack.c.l.bf16 %v819
      %v824 = vmax.f32 %v820, 0.0
      %v825 = vmax.f32 %v821, 0.0
      %v826 = vmax.f32 %v822, 0.0
      %v827 = vmax.f32 %v823, 0.0
      %v828 = vpack.c.bf16 %v825, %v824
      %v829 = vpack.c.bf16 %v827, %v826
      %v830 = vld [vmem:[%s1 + $0x180] sm:$0xf]
      %v831 = vld [vmem:[%s1 + $0x184] sm:$0xf]
      %v832 = vld [vmem:[%s1 + $0x188] sm:$0xf]
      %v833 = vld [vmem:[%s1 + $0x18c] sm:$0xf]
      %v834 = vld [vmem:[%s1 + $0x190] sm:$0xf]
      %v835 = vld [vmem:[%s1 + $0x194] sm:$0xf]
      %v836 = vld [vmem:[%s1 + $0x198] sm:$0xf]
      %v837 = vld [vmem:[%s1 + $0x19c] sm:$0xf]
      %v838 = vld [vmem:[%s1 + $0x1a0] sm:$0xf]
      %v839 = vld [vmem:[%s1 + $0x1a4] sm:$0xf]
      %v840 = vld [vmem:[%s1 + $0x1a8] sm:$0xf]
      %v841 = vld [vmem:[%s1 + $0x1ac] sm:$0xf]
      %v842 = vld [vmem:[%s1 + $0x1b0] sm:$0xf]
      %v843 = vld [vmem:[%s1 + $0x1b4] sm:$0xf]
      %v844 = vld [vmem:[%s1 + $0x1b8] sm:$0xf]
      %v845 = vld [vmem:[%s1 + $0x1bc] sm:$0xf]
      %vm848 = vcmask 1045504
      %v849 = vrot.slane %v828, 2
      %v850 = vrot.slane %v829, 2
      %v851 = vsel %vm848, %v849, %v850
      %v870 = vunpack.c.l.b16 %v830
      %v871 = vunpack.c.l.b16 %v831
      %v872 = vunpack.c.l.b16 %v832
      %v873 = vunpack.c.l.b16 %v833
      %v874 = vunpack.c.l.b16 %v834
      %v875 = vunpack.c.l.b16 %v835
      %v876 = vunpack.c.l.b16 %v836
      %v877 = vunpack.c.l.b16 %v837
      %v878 = vunpack.c.l.b16 %v838
      %v879 = vunpack.c.l.b16 %v839
      %v880 = vunpack.c.l.b16 %v840
      %v881 = vunpack.c.l.b16 %v841
      %v882 = vunpack.c.l.b16 %v842
      %v883 = vunpack.c.l.b16 %v843
      %v884 = vunpack.c.l.b16 %v844
      %v885 = vunpack.c.l.b16 %v845
      %v886 = vpack.c.b16 %v871, %v870
      %v887 = vpack.c.b16 %v873, %v872
      %v888 = vpack.c.b16 %v875, %v874
      %v889 = vpack.c.b16 %v877, %v876
      %v890 = vpack.c.b16 %v879, %v878
      %v891 = vpack.c.b16 %v881, %v880
      %v892 = vpack.c.b16 %v883, %v882
      %v893 = vpack.c.b16 %v885, %v884
      %902 = vmatpush.bf16.msra.mxu0 %v893
      %903 = vmatpush.bf16.msra.mxu0 %v892
      %904 = vmatpush.bf16.msra.mxu0 %v891
      %905 = vmatpush.bf16.msra.mxu0 %v890
      %906 = vmatpush.bf16.msra.mxu0 %v889
      %907 = vmatpush.bf16.msra.mxu0 %v888
      %908 = vmatpush.bf16.msra.mxu0 %v887
      %909 = vmatpush.bf16.msra.mxu0 %v886
      %910 = vmatmul.bf16.gmra.mxu0 %v851
      %v911 = vpop.f32.mrf.mxu0
      %v912 = vadd.f32 0.0, %v911
      %v913 = vpop.f32.mrf.mxu0
      %v914 = vadd.f32 0.0, %v913
      %915 = vmatmul.bf16.gmra.mxu0 %v850
      %v916 = vpop.f32.mrf.mxu0
      %v917 = vadd.f32 0.0, %v916
      %v918 = vpop.f32.mrf.mxu0
      %919 = vdwg.mxu0
      %v920 = vld [vmem:[#allocation2] sm:$0xff]
      %v921 = vld [vmem:[#allocation2 + $0x8] sm:$0xff]
      %v922 = vld [vmem:[#allocation2 + $0x10] sm:$0xff]
      %v923 = vadd.f32 %v920, %v912
      %v924 = vadd.f32 %v921, %v914
      %v925 = vadd.f32 %v922, %v917
      %926 = vst [vmem:[#allocation2] sm:$0xff] %v923
      %927 = vst [vmem:[#allocation2 + $0x8] sm:$0xff] %v924
      %928 = vst [vmem:[#allocation2 + $0x10] sm:$0xff] %v925
      %v929 = vld [vmem:[%s138 + $0x4] sm:$0xc]
      %v930 = vld [vmem:[%s138 + $0x8] sm:$0xf]
      %v931 = vld [vmem:[%s138 + $0xc] sm:$0xf]
      %v932 = vld [vmem:[%s138 + $0x10] sm:$0x7]
      %v933 = vunpack.c.l.bf16 %v929
      %v934 = vunpack.c.l.bf16 %v930
      %v935 = vunpack.c.l.bf16 %v931
      %v936 = vunpack.c.l.bf16 %v932
      %v937 = vmax.f32 %v933, 0.0
      %v938 = vmax.f32 %v934, 0.0
      %v939 = vmax.f32 %v935, 0.0
      %v940 = vmax.f32 %v936, 0.0
      %v941 = vpack.c.bf16 %v938, %v937
      %v942 = vpack.c.bf16 %v940, %v939
      %v943 = vld [vmem:[%s1 + $0x1c0] sm:$0xf]
      %v944 = vld [vmem:[%s1 + $0x1c4] sm:$0xf]
      %v945 = vld [vmem:[%s1 + $0x1c8] sm:$0xf]
      %v946 = vld [vmem:[%s1 + $0x1cc] sm:$0xf]
      %v947 = vld [vmem:[%s1 + $0x1d0] sm:$0xf]
      %v948 = vld [vmem:[%s1 + $0x1d4] sm:$0xf]
      %v949 = vld [vmem:[%s1 + $0x1d8] sm:$0xf]
      %v950 = vld [vmem:[%s1 + $0x1dc] sm:$0xf]
      %v951 = vld [vmem:[%s1 + $0x1e0] sm:$0xf]
      %v952 = vld [vmem:[%s1 + $0x1e4] sm:$0xf]
      %v953 = vld [vmem:[%s1 + $0x1e8] sm:$0xf]
      %v954 = vld [vmem:[%s1 + $0x1ec] sm:$0xf]
      %v955 = vld [vmem:[%s1 + $0x1f0] sm:$0xf]
      %v956 = vld [vmem:[%s1 + $0x1f4] sm:$0xf]
      %v957 = vld [vmem:[%s1 + $0x1f8] sm:$0xf]
      %v958 = vld [vmem:[%s1 + $0x1fc] sm:$0xf]
      %vm959 = vsmask.f32 5376
      %v961 = vshrl.u32 %v941, 16
      %v963 = vrot.slane %v961, 2
      %v964 = vshll.u32 %v941, 16
      %v966 = vrot.slane %v964, 3
      %v967 = vor.u32 %v963, %v966
      %v969 = vshrl.u32 %v942, 16
      %v971 = vrot.slane %v969, 2
      %v972 = vshll.u32 %v942, 16
      %v974 = vrot.slane %v972, 3
      %v975 = vor.u32 %v971, %v974
      %v976 = vsel %vm959, %v967, %v975
      %v995 = vunpack.c.l.b16 %v943
      %v996 = vunpack.c.l.b16 %v944
      %v997 = vunpack.c.l.b16 %v945
      %v998 = vunpack.c.l.b16 %v946
      %v999 = vunpack.c.l.b16 %v947
      %v1000 = vunpack.c.l.b16 %v948
      %v1001 = vunpack.c.l.b16 %v949
      %v1002 = vunpack.c.l.b16 %v950
      %v1003 = vunpack.c.l.b16 %v951
      %v1004 = vunpack.c.l.b16 %v952
      %v1005 = vunpack.c.l.b16 %v953
      %v1006 = vunpack.c.l.b16 %v954
      %v1007 = vunpack.c.l.b16 %v955
      %v1008 = vunpack.c.l.b16 %v956
      %v1009 = vunpack.c.l.b16 %v957
      %v1010 = vunpack.c.l.b16 %v958
      %v1011 = vpack.c.b16 %v996, %v995
      %v1012 = vpack.c.b16 %v998, %v997
      %v1013 = vpack.c.b16 %v1000, %v999
      %v1014 = vpack.c.b16 %v1002, %v1001
      %v1015 = vpack.c.b16 %v1004, %v1003
      %v1016 = vpack.c.b16 %v1006, %v1005
      %v1017 = vpack.c.b16 %v1008, %v1007
      %v1018 = vpack.c.b16 %v1010, %v1009
      %1027 = vmatpush.bf16.msra.mxu0 %v1018
      %1028 = vmatpush.bf16.msra.mxu0 %v1017
      %1029 = vmatpush.bf16.msra.mxu0 %v1016
      %1030 = vmatpush.bf16.msra.mxu0 %v1015
      %1031 = vmatpush.bf16.msra.mxu0 %v1014
      %1032 = vmatpush.bf16.msra.mxu0 %v1013
      %1033 = vmatpush.bf16.msra.mxu0 %v1012
      %1034 = vmatpush.bf16.msra.mxu0 %v1011
      %1035 = vmatmul.bf16.gmra.mxu0 %v976
      %v1036 = vpop.f32.mrf.mxu0
      %v1037 = vadd.f32 0.0, %v1036
      %v1038 = vpop.f32.mrf.mxu0
      %v1039 = vadd.f32 0.0, %v1038
      %1040 = vmatmul.bf16.gmra.mxu0 %v975
      %v1041 = vpop.f32.mrf.mxu0
      %v1042 = vadd.f32 0.0, %v1041
      %v1043 = vpop.f32.mrf.mxu0
      %1044 = vdwg.mxu0
      %v1045 = vld [vmem:[#allocation2] sm:$0xff]
      %v1046 = vld [vmem:[#allocation2 + $0x8] sm:$0xff]
      %v1047 = vld [vmem:[#allocation2 + $0x10] sm:$0xff]
      %v1048 = vadd.f32 %v1045, %v1037
      %v1049 = vadd.f32 %v1046, %v1039
      %v1050 = vadd.f32 %v1047, %v1042
      %1051 = vst [vmem:[#allocation2] sm:$0xff] %v1048
      %1052 = vst [vmem:[#allocation2 + $0x8] sm:$0xff] %v1049
      %1053 = vst [vmem:[#allocation2 + $0x10] sm:$0xff] %v1050
      %v1054 = vld [vmem:[%s138 + $0x4] sm:$0x8]
      %v1055 = vld [vmem:[%s138 + $0x8] sm:$0xf]
      %v1056 = vld [vmem:[%s138 + $0xc] sm:$0xf]
      %v1057 = vld [vmem:[%s138 + $0x10] sm:$0x7]
      %v1058 = vunpack.c.l.bf16 %v1054
      %v1059 = vunpack.c.l.bf16 %v1055
      %v1060 = vunpack.c.l.bf16 %v1056
      %v1061 = vunpack.c.l.bf16 %v1057
      %v1062 = vmax.f32 %v1058, 0.0
      %v1063 = vmax.f32 %v1059, 0.0
      %v1064 = vmax.f32 %v1060, 0.0
      %v1065 = vmax.f32 %v1061, 0.0
      %v1066 = vpack.c.bf16 %v1063, %v1062
      %v1067 = vpack.c.bf16 %v1065, %v1064
      %v1068 = vld [vmem:[%s1 + $0x200] sm:$0xf]
      %v1069 = vld [vmem:[%s1 + $0x204] sm:$0xf]
      %v1070 = vld [vmem:[%s1 + $0x208] sm:$0xf]
      %v1071 = vld [vmem:[%s1 + $0x20c] sm:$0xf]
      %v1072 = vld [vmem:[%s1 + $0x210] sm:$0xf]
      %v1073 = vld [vmem:[%s1 + $0x214] sm:$0xf]
      %v1074 = vld [vmem:[%s1 + $0x218] sm:$0xf]
      %v1075 = vld [vmem:[%s1 + $0x21c] sm:$0xf]
      %v1076 = vld [vmem:[%s1 + $0x220] sm:$0xf]
      %v1077 = vld [vmem:[%s1 + $0x224] sm:$0xf]
      %v1078 = vld [vmem:[%s1 + $0x228] sm:$0xf]
      %v1079 = vld [vmem:[%s1 + $0x22c] sm:$0xf]
      %v1080 = vld [vmem:[%s1 + $0x230] sm:$0xf]
      %v1081 = vld [vmem:[%s1 + $0x234] sm:$0xf]
      %v1082 = vld [vmem:[%s1 + $0x238] sm:$0xf]
      %v1083 = vld [vmem:[%s1 + $0x23c] sm:$0xf]
      %v1086 = vrot.slane %v1066, 3
      %v1087 = vrot.slane %v1067, 3
      %v1088 = vsel %vm508, %v1086, %v1087
      %v1107 = vunpack.c.l.b16 %v1068
      %v1108 = vunpack.c.l.b16 %v1069
      %v1109 = vunpack.c.l.b16 %v1070
      %v1110 = vunpack.c.l.b16 %v1071
      %v1111 = vunpack.c.l.b16 %v1072
      %v1112 = vunpack.c.l.b16 %v1073
      %v1113 = vunpack.c.l.b16 %v1074
      %v1114 = vunpack.c.l.b16 %v1075
      %v1115 = vunpack.c.l.b16 %v1076
      %v1116 = vunpack.c.l.b16 %v1077
      %v1117 = vunpack.c.l.b16 %v1078
      %v1118 = vunpack.c.l.b16 %v1079
      %v1119 = vunpack.c.l.b16 %v1080
      %v1120 = vunpack.c.l.b16 %v1081
      %v1121 = vunpack.c.l.b16 %v1082
      %v1122 = vunpack.c.l.b16 %v1083
      %v1123 = vpack.c.b16 %v1108, %v1107
      %v1124 = vpack.c.b16 %v1110, %v1109
      %v1125 = vpack.c.b16 %v1112, %v1111
      %v1126 = vpack.c.b16 %v1114, %v1113
      %v1127 = vpack.c.b16 %v1116, %v1115
      %v1128 = vpack.c.b16 %v1118, %v1117
      %v1129 = vpack.c.b16 %v1120, %v1119
      %v1130 = vpack.c.b16 %v1122, %v1121
      %1139 = vmatpush.bf16.msra.mxu0 %v1130
      %1140 = vmatpush.bf16.msra.mxu0 %v1129
      %1141 = vmatpush.bf16.msra.mxu0 %v1128
      %1142 = vmatpush.bf16.msra.mxu0 %v1127
      %1143 = vmatpush.bf16.msra.mxu0 %v1126
      %1144 = vmatpush.bf16.msra.mxu0 %v1125
      %1145 = vmatpush.bf16.msra.mxu0 %v1124
      %1146 = vmatpush.bf16.msra.mxu0 %v1123
      %1147 = vmatmul.bf16.gmra.mxu0 %v1088
      %v1148 = vpop.f32.mrf.mxu0
      %v1149 = vadd.f32 0.0, %v1148
      %v1150 = vpop.f32.mrf.mxu0
      %v1151 = vadd.f32 0.0, %v1150
      %1152 = vmatmul.bf16.gmra.mxu0 %v1087
      %v1153 = vpop.f32.mrf.mxu0
      %v1154 = vadd.f32 0.0, %v1153
      %v1155 = vpop.f32.mrf.mxu0
      %1156 = vdwg.mxu0
      %v1157 = vld [vmem:[#allocation2] sm:$0xff]
      %v1158 = vld [vmem:[#allocation2 + $0x8] sm:$0xff]
      %v1159 = vld [vmem:[#allocation2 + $0x10] sm:$0xff]
      %v1160 = vadd.f32 %v1157, %v1149
      %v1161 = vadd.f32 %v1158, %v1151
      %v1162 = vadd.f32 %v1159, %v1154
      %1163 = vst [vmem:[#allocation2] sm:$0xff] %v1160
      %1164 = vst [vmem:[#allocation2 + $0x8] sm:$0xff] %v1161
      %1165 = vst [vmem:[#allocation2 + $0x10] sm:$0xff] %v1162
      %v1166 = vld [vmem:[#allocation2] sm:$0xff]
      %v1167 = vld [vmem:[#allocation2 + $0x8] sm:$0xff]
      %v1168 = vld [vmem:[#allocation2 + $0x10] sm:$0xff]
      %v1169 = vpack.c.bf16 %v1166, %v1166
      %v1170 = vpack.c.bf16 %v1167, %v1167
      %v1171 = vpack.c.bf16 %v1168, %v1168
      %1172 = vst [vmem:[%s143] sm:$0xf] %v1169
      %1173 = vst [vmem:[%s143 + $0x4] sm:$0xf] %v1170
      %1174 = vst [vmem:[%s143 + $0x8] sm:$0xf] %v1171
      %p1175 = scmp.lt.s32.totalorder %s13, 1
      %s1176 = scalar_select %p1175, %s13, 1
      %s1177 = smul.addr %s1176, 3
      %s1178 = smul.addr %s1177, 4
      %s1179 = scalar_lea.vmem %s2, %s1178
      // Predicated region
      $region29: #{densenet_forward.22} parent=27 // pred_check
        %p1180 = pneg %p78
      $region30: #{densenet_forward.22} parent=27 // pred_check_branch
        %1182 = sbr.rel (%p1180) target = $region32
      $region31: #{densenet_forward.22} parent=27 // pred_region
        _
      $region32: #{densenet_forward.22} parent=27 // pred_fallthru
        _
    $region28: #{densenet_forward.22} parent=5 // pred_fallthru
      _
    %p1183 = scmp.le.s32.totalorder 2, %s8
    // Predicated region
    $region33: #{densenet_forward.22} parent=5 // pred_check
      %p1184 = pneg %p1183
    $region34: #{densenet_forward.22} parent=5 // pred_check_branch
      %1186 = sbr.rel (%p1184) target = $region36
    $region35: #{densenet_forward.22} parent=5 // pred_region
      %s1187 = ssub.s32 %s8, 2
      // Predicated region
      $region37: #{densenet_forward.22} parent=35 // pred_check
        %p1188 = pneg %p84
      $region38: #{densenet_forward.22} parent=35 // pred_check_branch
        %1190 = sbr.rel (%p1188) target = $region40
      $region39: #{densenet_forward.22} parent=35 // pred_region
        %p1191 = scmp.lt.s32.totalorder %s14, 1
        %s1192 = scalar_select %p1191, %s14, 1
        %s1193 = smul.addr %s1192, 3
        %s1194 = smul.addr %s1193, 4
        %s1195 = scalar_lea.vmem %s2, %s1194
      $region40: #{densenet_forward.22} parent=35 // pred_fallthru
        _
    $region36: #{densenet_forward.22} parent=5 // pred_fallthru
      _
  $region6: #{densenet_forward.22} parent=0 // loop_footer
    %s12 = sadd.s32 1, %s8
  $region7: #{densenet_forward.22} parent=0 // loop_footer_branch
    %7 = sbr.rel target = $region3
  $region8: #{densenet_forward.22} parent=0 // loop_exit
    _

</llo_original>
